<compile_context>
chip_gen: v5e
topology: v5e:2x2
jax: 0.10.0
libtpu: 0.0.40
codegen_flags: <defaults>
</compile_context>

<pallas_src>
import functools

import jax
import jax.numpy as jnp
from jax.experimental import pallas as pl
from jax.experimental.pallas import tpu as pltpu

IMAGE_SIZE = 28 * 28   # 784
H_DIM = 400
Z_DIM = 20


def _vae_kernel(x_ref,
                w1_ref, b1_ref,
                w23_ref, b23_ref,
                w4_ref, b4_ref,
                w5_ref, b5_ref,
                eps_ref,
                mulv_ref, xrec_ref,
                *, epi_dtype):
    bf16 = jnp.bfloat16
    f32 = jnp.float32

    # encode: h = relu(fc1(x))   -- bf16 MXU operands, f32 accumulation
    x = x_ref[...].astype(bf16)                                      # (TB, 784)
    h = jnp.dot(x, w1_ref[...], preferred_element_type=f32) + b1_ref[...]
    h = jnp.maximum(h, 0.0)                                          # (TB, 400)

    # fused fc2|fc3: one (400, 40) matmul instead of two N=20 matmuls
    ml = jnp.dot(h.astype(bf16), w23_ref[...],
                 preferred_element_type=f32) + b23_ref[...]          # (TB, 40)
    mu = ml[:, :Z_DIM]
    log_var = ml[:, Z_DIM:]

    # reparameterize: z = mu + eps * exp(log_var / 2)   (kept in f32)
    std = jnp.exp(log_var * 0.5)
    z = mu + eps_ref[...] * std                                      # (TB, 20)

    # decode: h2 = relu(fc4(z)); x_reconst = sigmoid(fc5(h2))
    h2 = jnp.dot(z.astype(bf16), w4_ref[...],
                 preferred_element_type=f32) + b4_ref[...]
    h2 = jnp.maximum(h2, 0.0)                                        # (TB, 400)
    logits = jnp.dot(h2.astype(bf16), w5_ref[...],
                     preferred_element_type=f32) + b5_ref[...]       # (TB, 784)

    # sigmoid(x) = 0.5 * (tanh(x/2) + 1): one EUP op per element, result is
    # always inside [0, 1] (no approx-reciprocal overshoot). epi_dtype is bf16
    # on v6e/v7x (bf16 EUP) and f32 on v5e.
    t = jnp.tanh(logits.astype(epi_dtype) * 0.5)
    x_rec = t * 0.5 + 0.5

    mulv_ref[...] = ml                                  # (TB, 40) f32  mu|log_var
    xrec_ref[...] = x_rec.astype(xrec_ref.dtype)        # (TB, 784) bf16


def _bf16_epilogue_ok():
    """bf16 VPU/EUP exists on v6e and newer; keep f32 on v5x and older."""
    try:
        kind = jax.devices()[0].device_kind.lower()
    except Exception:
        return True
    return not any(t in kind for t in ("v2", "v3", "v4", "v5"))


def _pick_tile_b(batch, tile_b):
    """Largest batch tile <= tile_b that divides batch exactly (no jnp.pad)."""
    tile_b = max(1, min(tile_b, batch))
    if batch % tile_b == 0 and (tile_b % 8 == 0 or tile_b == batch):
        return tile_b
    for t in range((tile_b // 8) * 8, 0, -8):
        if batch % t == 0:
            return t
    return batch   # single full-batch tile (no (8,128) constraint on full dims)


def pack_params(params):
    """One-time parameter packing (bf16 weights, fused fc2|fc3).

    Do this ONCE per set of weights, not per forward call: it saves ~2.6 MB of
    wrapper-side HBM traffic on every step.
    """
    bf16, f32 = jnp.bfloat16, jnp.float32
    return {
        "w1": params["w1"].astype(bf16),
        "b1": params["b1"].astype(f32),
        "w23": jnp.concatenate([params["w2"], params["w3"]], axis=1).astype(bf16),
        "b23": jnp.concatenate([params["b2"], params["b3"]], axis=1).astype(f32),
        "w4": params["w4"].astype(bf16),
        "b4": params["b4"].astype(f32),
        "w5": params["w5"].astype(bf16),
        "b5": params["b5"].astype(f32),
    }


def vae_forward(x, packed, eps, *, tile_b=512, epilogue_dtype=None):
    """VAE forward pass.

    x      : (B, 784) f32 or bf16 (bf16 halves the dominant input HBM stream -
             pass bf16 only if the producer emits it; don't add a wrapper cast).
    packed : output of pack_params().
    eps    : (B, 20) f32 noise (the torch randn_like()).
    Returns (mu f32, log_var f32, x_reconst bf16).
    """
    B = x.shape[0]
    tile_b = _pick_tile_b(B, tile_b)
    n_tiles = B // tile_b

    if epilogue_dtype is None:
        epilogue_dtype = jnp.bfloat16 if _bf16_epilogue_ok() else jnp.float32

    # Streaming (batch-tiled) specs: double-buffered by the Pallas pipeline.
    def batch_spec(feat):
        return pl.BlockSpec((tile_b, feat), lambda i: (i, 0))

    # Resident specs: constant block index -> weights DMA'd once, stay in VMEM.
    # TODO(synk): pipeline_mode=pl.Buffered(1) would drop the redundant second
    # weight buffer (~1.3 MB VMEM) once single-buffered constant blocks are
    # uniformly supported; skipped here for portability.
    def resident_spec(shape):
        return pl.BlockSpec(shape, lambda i: (0, 0))

    in_specs = [
        batch_spec(IMAGE_SIZE),                     # x
        resident_spec((IMAGE_SIZE, H_DIM)),         # w1
        resident_spec((1, H_DIM)),                  # b1
        resident_spec((H_DIM, 2 * Z_DIM)),          # w23 (fc2|fc3 fused)
        resident_spec((1, 2 * Z_DIM)),              # b23
        resident_spec((Z_DIM, H_DIM)),              # w4
        resident_spec((1, H_DIM)),                  # b4
        resident_spec((H_DIM, IMAGE_SIZE)),         # w5
        resident_spec((1, IMAGE_SIZE)),             # b5
        batch_spec(Z_DIM),                          # eps
    ]
    out_specs = (
        batch_spec(2 * Z_DIM),                      # mu | log_var (f32)
        batch_spec(IMAGE_SIZE),                     # x_reconst (bf16 writeback)
    )
    out_shape = (
        jax.ShapeDtypeStruct((B, 2 * Z_DIM), jnp.float32),
        jax.ShapeDtypeStruct((B, IMAGE_SIZE), jnp.bfloat16),
    )

    kernel = functools.partial(_vae_kernel, epi_dtype=epilogue_dtype)
    mu_lv, x_rec = pl.pallas_call(
        kernel,
        grid=(n_tiles,),
        in_specs=in_specs,
        out_specs=out_specs,
        out_shape=out_shape,
        compiler_params=pltpu.CompilerParams(
            dimension_semantics=("parallel",),
            vmem_limit_bytes=48 * 1024 * 1024),
    )(x, packed["w1"], packed["b1"], packed["w23"], packed["b23"],
      packed["w4"], packed["b4"], packed["w5"], packed["b5"], eps)

    mu = mu_lv[:, :Z_DIM]
    log_var = mu_lv[:, Z_DIM:]
    return mu, log_var, x_rec


def init_params(key):
    """Deterministic init mimicking nn.Linear's U(-1/sqrt(fan_in), 1/sqrt(fan_in))."""
    dims = [
        ("w1", "b1", IMAGE_SIZE, H_DIM),
        ("w2", "b2", H_DIM, Z_DIM),
        ("w3", "b3", H_DIM, Z_DIM),
        ("w4", "b4", Z_DIM, H_DIM),
        ("w5", "b5", H_DIM, IMAGE_SIZE),
    ]
    params = {}
    for wname, bname, fan_in, fan_out in dims:
        key, kw, kb = jax.random.split(key, 3)
        bound = 1.0 / jnp.sqrt(jnp.float32(fan_in))
        params[wname] = jax.random.uniform(
            kw, (fan_in, fan_out), jnp.float32, minval=-bound, maxval=bound)
        params[bname] = jax.random.uniform(
            kb, (1, fan_out), jnp.float32, minval=-bound, maxval=bound)
    return params


def reference_forward(x, params, eps):
    """Pure-JAX reference with the same bf16-MXU / f32-accumulation numerics."""
    bf16, f32 = jnp.bfloat16, jnp.float32

    def dot(a, w):
        return jnp.dot(a.astype(bf16), w.astype(bf16), preferred_element_type=f32)

    h = jnp.maximum(dot(x, params["w1"]) + params["b1"], 0.0)
    mu = dot(h, params["w2"]) + params["b2"]
    log_var = dot(h, params["w3"]) + params["b3"]
    z = mu + eps * jnp.exp(log_var * 0.5)
    h2 = jnp.maximum(dot(z, params["w4"]) + params["b4"], 0.0)
    x_rec = jax.nn.sigmoid(dot(h2, params["w5"]) + params["b5"])
    return mu, log_var, x_rec


if __name__ == "__main__":
    key = jax.random.PRNGKey(0)
    key, kx, keps, kparam = jax.random.split(key, 4)

    # Small demo batch; 2 grid tiles so the "parallel" batch axis can feed both
    # v7x TensorCores.
    B = 256
    TILE_B = 128
    x = jax.random.normal(kx, (B, IMAGE_SIZE), dtype=jnp.float32)
    eps = jax.random.normal(keps, (B, Z_DIM), dtype=jnp.float32)
    params = init_params(kparam)
    packed = pack_params(params)   # one-time weight packing (bf16 + fc2|fc3 fuse)

    mu, log_var, x_rec = vae_forward(x, packed, eps, tile_b=TILE_B)
    jax.block_until_ready((mu, log_var, x_rec))

    mu_r, log_var_r, x_rec_r = reference_forward(x, params, eps)
    # Tolerances account for bf16 matmul operands, the bf16 x_rec output and
    # (on v6e/v7x) the bf16 tanh epilogue.
    assert jnp.allclose(mu, mu_r, atol=2e-2, rtol=2e-2)
    assert jnp.allclose(log_var, log_var_r, atol=2e-2, rtol=2e-2)
    assert jnp.allclose(x_rec.astype(jnp.float32), x_rec_r, atol=2e-2, rtol=2e-2)
    assert float(x_rec.astype(jnp.float32).max()) <= 1.0
    assert float(x_rec.astype(jnp.float32).min()) >= 0.0

    print("KERNEL_OK")
</pallas_src>

<mosaic_0001>
module attributes {stable_mosaic.version = 11 : i64} {
  func.func @_vae_kernel(%arg0: i32, %arg1: memref<128x784xf32, #tpu.memory_space<vmem>>, %arg2: memref<784x400xbf16, #tpu.memory_space<vmem>>, %arg3: memref<1x400xf32, #tpu.memory_space<vmem>>, %arg4: memref<400x40xbf16, #tpu.memory_space<vmem>>, %arg5: memref<1x40xf32, #tpu.memory_space<vmem>>, %arg6: memref<20x400xbf16, #tpu.memory_space<vmem>>, %arg7: memref<1x400xf32, #tpu.memory_space<vmem>>, %arg8: memref<400x784xbf16, #tpu.memory_space<vmem>>, %arg9: memref<1x784xf32, #tpu.memory_space<vmem>>, %arg10: memref<128x20xf32, #tpu.memory_space<vmem>>, %arg11: memref<128x40xf32, #tpu.memory_space<vmem>>, %arg12: memref<128x784xbf16, #tpu.memory_space<vmem>>) attributes {dimension_semantics = [#tpu.dimension_semantics<parallel>], iteration_bounds = array<i64: 2>, scalar_prefetch = 0 : i64, scratch_operands = 0 : i64, tpu.core_type = #tpu.core_type<tc>, window_params = [{transform_indices = @transform_0, window_bounds = array<i64: 128, 784>}, {pipeline_mode = #tpu.pipeline_mode<synchronous>, transform_indices = @transform_1, window_bounds = array<i64: 784, 400>}, {pipeline_mode = #tpu.pipeline_mode<synchronous>, transform_indices = @transform_2, window_bounds = array<i64: 1, 400>}, {pipeline_mode = #tpu.pipeline_mode<synchronous>, transform_indices = @transform_3, window_bounds = array<i64: 400, 40>}, {pipeline_mode = #tpu.pipeline_mode<synchronous>, transform_indices = @transform_4, window_bounds = array<i64: 1, 40>}, {pipeline_mode = #tpu.pipeline_mode<synchronous>, transform_indices = @transform_5, window_bounds = array<i64: 20, 400>}, {pipeline_mode = #tpu.pipeline_mode<synchronous>, transform_indices = @transform_6, window_bounds = array<i64: 1, 400>}, {pipeline_mode = #tpu.pipeline_mode<synchronous>, transform_indices = @transform_7, window_bounds = array<i64: 400, 784>}, {pipeline_mode = #tpu.pipeline_mode<synchronous>, transform_indices = @transform_8, window_bounds = array<i64: 1, 784>}, {transform_indices = @transform_9, window_bounds = array<i64: 128, 20>}, {transform_indices = @transform_10, window_bounds = array<i64: 128, 40>}, {transform_indices = @transform_11, window_bounds = array<i64: 128, 784>}]} {
    %c0 = arith.constant 0 : index
    %c0_0 = arith.constant 0 : index
    %0 = vector.load %arg1[%c0, %c0_0] : memref<128x784xf32, #tpu.memory_space<vmem>>, vector<128x784xf32>
    %1 = arith.truncf %0 : vector<128x784xf32> to vector<128x784xbf16>
    %c0_1 = arith.constant 0 : index
    %c0_2 = arith.constant 0 : index
    %2 = vector.load %arg2[%c0_1, %c0_2] : memref<784x400xbf16, #tpu.memory_space<vmem>>, vector<784x400xbf16>
    %cst = arith.constant dense<0.000000e+00> : vector<128x400xf32>
    %3 = tpu.matmul %1, %2, %cst {dimension_numbers = #tpu.dot_dimension_numbers<[1], [0], [0], [1], [0, 0, 1, 1], [], []>} : vector<128x784xbf16>, vector<784x400xbf16>, vector<128x400xf32> -> vector<128x400xf32>
    %c0_3 = arith.constant 0 : index
    %c0_4 = arith.constant 0 : index
    %4 = vector.load %arg3[%c0_3, %c0_4] : memref<1x400xf32, #tpu.memory_space<vmem>>, vector<1x400xf32>
    %5 = vector.broadcast %4 : vector<1x400xf32> to vector<128x400xf32>
    %6 = arith.addf %3, %5 : vector<128x400xf32>
    %cst_5 = arith.constant 0.000000e+00 : f32
    %7 = vector.broadcast %cst_5 : f32 to vector<128x400xf32>
    %8 = arith.maximumf %6, %7 : vector<128x400xf32>
    %9 = arith.truncf %8 : vector<128x400xf32> to vector<128x400xbf16>
    %c0_6 = arith.constant 0 : index
    %c0_7 = arith.constant 0 : index
    %10 = vector.load %arg4[%c0_6, %c0_7] : memref<400x40xbf16, #tpu.memory_space<vmem>>, vector<400x40xbf16>
    %cst_8 = arith.constant dense<0.000000e+00> : vector<128x40xf32>
    %11 = tpu.matmul %9, %10, %cst_8 {dimension_numbers = #tpu.dot_dimension_numbers<[1], [0], [0], [1], [0, 0, 1, 1], [], []>} : vector<128x400xbf16>, vector<400x40xbf16>, vector<128x40xf32> -> vector<128x40xf32>
    %c0_9 = arith.constant 0 : index
    %c0_10 = arith.constant 0 : index
    %12 = vector.load %arg5[%c0_9, %c0_10] : memref<1x40xf32, #tpu.memory_space<vmem>>, vector<1x40xf32>
    %13 = vector.broadcast %12 : vector<1x40xf32> to vector<128x40xf32>
    %14 = arith.addf %11, %13 : vector<128x40xf32>
    %15 = vector.extract_strided_slice %14 {offsets = [0, 0], sizes = [128, 20], strides = [1, 1]} : vector<128x40xf32> to vector<128x20xf32>
    %16 = vector.extract_strided_slice %14 {offsets = [0, 20], sizes = [128, 20], strides = [1, 1]} : vector<128x40xf32> to vector<128x20xf32>
    %cst_11 = arith.constant 5.000000e-01 : f32
    %17 = vector.broadcast %cst_11 : f32 to vector<128x20xf32>
    %18 = arith.mulf %16, %17 : vector<128x20xf32>
    %19 = math.exp %18 : vector<128x20xf32>
    %c0_12 = arith.constant 0 : index
    %c0_13 = arith.constant 0 : index
    %20 = vector.load %arg10[%c0_12, %c0_13] : memref<128x20xf32, #tpu.memory_space<vmem>>, vector<128x20xf32>
    %21 = arith.mulf %20, %19 : vector<128x20xf32>
    %22 = arith.addf %15, %21 : vector<128x20xf32>
    %23 = arith.truncf %22 : vector<128x20xf32> to vector<128x20xbf16>
    %c0_14 = arith.constant 0 : index
    %c0_15 = arith.constant 0 : index
    %24 = vector.load %arg6[%c0_14, %c0_15] : memref<20x400xbf16, #tpu.memory_space<vmem>>, vector<20x400xbf16>
    %cst_16 = arith.constant dense<0.000000e+00> : vector<128x400xf32>
    %25 = tpu.matmul %23, %24, %cst_16 {dimension_numbers = #tpu.dot_dimension_numbers<[1], [0], [0], [1], [0, 0, 1, 1], [], []>} : vector<128x20xbf16>, vector<20x400xbf16>, vector<128x400xf32> -> vector<128x400xf32>
    %c0_17 = arith.constant 0 : index
    %c0_18 = arith.constant 0 : index
    %26 = vector.load %arg7[%c0_17, %c0_18] : memref<1x400xf32, #tpu.memory_space<vmem>>, vector<1x400xf32>
    %27 = vector.broadcast %26 : vector<1x400xf32> to vector<128x400xf32>
    %28 = arith.addf %25, %27 : vector<128x400xf32>
    %cst_19 = arith.constant 0.000000e+00 : f32
    %29 = vector.broadcast %cst_19 : f32 to vector<128x400xf32>
    %30 = arith.maximumf %28, %29 : vector<128x400xf32>
    %31 = arith.truncf %30 : vector<128x400xf32> to vector<128x400xbf16>
    %c0_20 = arith.constant 0 : index
    %c0_21 = arith.constant 0 : index
    %32 = vector.load %arg8[%c0_20, %c0_21] : memref<400x784xbf16, #tpu.memory_space<vmem>>, vector<400x784xbf16>
    %cst_22 = arith.constant dense<0.000000e+00> : vector<128x784xf32>
    %33 = tpu.matmul %31, %32, %cst_22 {dimension_numbers = #tpu.dot_dimension_numbers<[1], [0], [0], [1], [0, 0, 1, 1], [], []>} : vector<128x400xbf16>, vector<400x784xbf16>, vector<128x784xf32> -> vector<128x784xf32>
    %c0_23 = arith.constant 0 : index
    %c0_24 = arith.constant 0 : index
    %34 = vector.load %arg9[%c0_23, %c0_24] : memref<1x784xf32, #tpu.memory_space<vmem>>, vector<1x784xf32>
    %35 = vector.broadcast %34 : vector<1x784xf32> to vector<128x784xf32>
    %36 = arith.addf %33, %35 : vector<128x784xf32>
    %37 = arith.truncf %36 : vector<128x784xf32> to vector<128x784xbf16>
    %cst_25 = arith.constant 5.000000e-01 : bf16
    %38 = vector.broadcast %cst_25 : bf16 to vector<128x784xbf16>
    %39 = arith.mulf %37, %38 : vector<128x784xbf16>
    %40 = math.tanh %39 : vector<128x784xbf16>
    %cst_26 = arith.constant 5.000000e-01 : bf16
    %41 = vector.broadcast %cst_26 : bf16 to vector<128x784xbf16>
    %42 = arith.mulf %40, %41 : vector<128x784xbf16>
    %cst_27 = arith.constant 5.000000e-01 : bf16
    %43 = vector.broadcast %cst_27 : bf16 to vector<128x784xbf16>
    %44 = arith.addf %42, %43 : vector<128x784xbf16>
    %c0_28 = arith.constant 0 : index
    %c0_29 = arith.constant 0 : index
    %45 = vector.load %arg11[%c0_28, %c0_29] : memref<128x40xf32, #tpu.memory_space<vmem>>, vector<128x40xf32>
    tpu.vector_store %arg11[%c0_28, %c0_29], %14 {strides = array<i32>} : memref<128x40xf32, #tpu.memory_space<vmem>>, vector<128x40xf32>,
    %c0_30 = arith.constant 0 : index
    %c0_31 = arith.constant 0 : index
    %46 = vector.load %arg12[%c0_30, %c0_31] : memref<128x784xbf16, #tpu.memory_space<vmem>>, vector<128x784xbf16>
    tpu.vector_store %arg12[%c0_30, %c0_31], %44 {strides = array<i32>} : memref<128x784xbf16, #tpu.memory_space<vmem>>, vector<128x784xbf16>,
    return
  }
  func.func @transform_0(%arg0: i32) -> (i32, i32) {
    %c0_i32 = arith.constant 0 : i32
    %c0_i32_0 = arith.constant 0 : i32
    return %arg0, %c0_i32 : i32, i32
  }
  func.func @transform_1(%arg0: i32) -> (i32, i32) {
    %c0_i32 = arith.constant 0 : i32
    %c0_i32_0 = arith.constant 0 : i32
    %c0_i32_1 = arith.constant 0 : i32
    return %c0_i32, %c0_i32_0 : i32, i32
  }
  func.func @transform_2(%arg0: i32) -> (i32, i32) {
    %c0_i32 = arith.constant 0 : i32
    %c0_i32_0 = arith.constant 0 : i32
    %c0_i32_1 = arith.constant 0 : i32
    return %c0_i32, %c0_i32_0 : i32, i32
  }
  func.func @transform_3(%arg0: i32) -> (i32, i32) {
    %c0_i32 = arith.constant 0 : i32
    %c0_i32_0 = arith.constant 0 : i32
    %c0_i32_1 = arith.constant 0 : i32
    return %c0_i32, %c0_i32_0 : i32, i32
  }
  func.func @transform_4(%arg0: i32) -> (i32, i32) {
    %c0_i32 = arith.constant 0 : i32
    %c0_i32_0 = arith.constant 0 : i32
    %c0_i32_1 = arith.constant 0 : i32
    return %c0_i32, %c0_i32_0 : i32, i32
  }
  func.func @transform_5(%arg0: i32) -> (i32, i32) {
    %c0_i32 = arith.constant 0 : i32
    %c0_i32_0 = arith.constant 0 : i32
    %c0_i32_1 = arith.constant 0 : i32
    return %c0_i32, %c0_i32_0 : i32, i32
  }
  func.func @transform_6(%arg0: i32) -> (i32, i32) {
    %c0_i32 = arith.constant 0 : i32
    %c0_i32_0 = arith.constant 0 : i32
    %c0_i32_1 = arith.constant 0 : i32
    return %c0_i32, %c0_i32_0 : i32, i32
  }
  func.func @transform_7(%arg0: i32) -> (i32, i32) {
    %c0_i32 = arith.constant 0 : i32
    %c0_i32_0 = arith.constant 0 : i32
    %c0_i32_1 = arith.constant 0 : i32
    return %c0_i32, %c0_i32_0 : i32, i32
  }
  func.func @transform_8(%arg0: i32) -> (i32, i32) {
    %c0_i32 = arith.constant 0 : i32
    %c0_i32_0 = arith.constant 0 : i32
    %c0_i32_1 = arith.constant 0 : i32
    return %c0_i32, %c0_i32_0 : i32, i32
  }
  func.func @transform_9(%arg0: i32) -> (i32, i32) {
    %c0_i32 = arith.constant 0 : i32
    %c0_i32_0 = arith.constant 0 : i32
    return %arg0, %c0_i32 : i32, i32
  }
  func.func @transform_10(%arg0: i32) -> (i32, i32) {
    %c0_i32 = arith.constant 0 : i32
    %c0_i32_0 = arith.constant 0 : i32
    return %arg0, %c0_i32 : i32, i32
  }
  func.func @transform_11(%arg0: i32) -> (i32, i32) {
    %c0_i32 = arith.constant 0 : i32
    %c0_i32_0 = arith.constant 0 : i32
    return %arg0, %c0_i32 : i32, i32
  }
}

</mosaic_0001>

<llo_original>
// kernel: tpu_custom_call.1
$region0: #{tpu_custom_call.1}
  #allocation0 [shape = 'u32[]', space=smem, size = 0x4, offset = 0x4, fixed_abs, tag = 'smem constant byte address 0x4 - core index']
  #allocation1 [shape = 'u32[72,128]{1,0:T(1,128)}', space=vmem, size = 0x9000, scoped, tag = 'internal scratch']
  %s0 = inlined_call_operand.vmem [shape: f32[256,784], index: 0, kind: input, shape index: {}]
  %s1 = inlined_call_operand.vmem [shape: bf16[784,400], index: 1, kind: input, shape index: {}]
  %s2 = inlined_call_operand.vmem [shape: f32[1,400], index: 2, kind: input, shape index: {}]
  %s3 = inlined_call_operand.vmem [shape: bf16[400,40], index: 3, kind: input, shape index: {}]
  %s4 = inlined_call_operand.vmem [shape: f32[1,40], index: 4, kind: input, shape index: {}]
  %s5 = inlined_call_operand.vmem [shape: bf16[20,400], index: 5, kind: input, shape index: {}]
  %s6 = inlined_call_operand.vmem [shape: f32[1,400], index: 6, kind: input, shape index: {}]
  %s7 = inlined_call_operand.vmem [shape: bf16[400,784], index: 7, kind: input, shape index: {}]
  %s8 = inlined_call_operand.vmem [shape: f32[1,784], index: 8, kind: input, shape index: {}]
  %s9 = inlined_call_operand.vmem [shape: f32[256,20], index: 9, kind: input, shape index: {}]
  %s10 = inlined_call_operand.vmem [shape: f32[256,40], index: 10, kind: output, shape index: {0}]
  %s11 = inlined_call_operand.vmem [shape: bf16[256,784], index: 11, kind: output, shape index: {1}]
  %12 = xla_tuple %s10, %s11
  %s13 = sld [smem:[#allocation0]]
  $region81: #{tpu_custom_call.1} parent=0
    _
  %s15 = ssub.s32 1, %s13
  %s16 = scalar_select 0, %s15, %s13
  loop: start=0, step=1, limit=4
  $region2: #{tpu_custom_call.1} parent=0 // loop_pre_header
    _
  $region3: #{tpu_custom_call.1} parent=0 // loop_header
    %s18 = sphi 0, %s22
    %p19 = scmp.ge.s32.totalorder %s18, 4
    %s28 = sphi 0, %s30
    %s31 = sphi 0, %s28
    %s32 = sphi 0, %s31
    %s48 = sphi 0, %s32
    %s52 = sphi 0, %s52
    %s54 = sphi 0, %s52
    %s55 = sphi 0, %s54
    %s69 = sphi 0, %s55
    %s73 = sphi 0, %s73
    %s75 = sphi 0, %s73
    %s76 = sphi 0, %s75
    %s90 = sphi 0, %s76
    %s94 = sphi 0, %s94
    %s96 = sphi 0, %s94
    %s97 = sphi 0, %s96
    %s111 = sphi 0, %s97
    %s115 = sphi 0, %s115
    %s117 = sphi 0, %s115
    %s118 = sphi 0, %s117
    %s132 = sphi 0, %s118
    %s136 = sphi 0, %s136
    %s138 = sphi 0, %s136
    %s139 = sphi 0, %s138
    %s153 = sphi 0, %s139
    %s157 = sphi 0, %s157
    %s159 = sphi 0, %s157
    %s160 = sphi 0, %s159
    %s174 = sphi 0, %s160
    %s178 = sphi 0, %s178
    %s180 = sphi 0, %s178
    %s181 = sphi 0, %s180
    %s195 = sphi 0, %s181
    %s199 = sphi 0, %s199
    %s201 = sphi 0, %s199
    %s202 = sphi 0, %s201
    %s216 = sphi 0, %s202
    %s222 = sphi 0, %s224
    %s225 = sphi 0, %s222
    %s226 = sphi 0, %s225
    %s242 = sphi 0, %s226
    %s248 = sphi 0, %s250
    %s251 = sphi 0, %s248
    %s252 = sphi 0, %s251
    %s268 = sphi 0, %s252
    %s274 = sphi 0, %s276
    %s277 = sphi 0, %s274
    %s278 = sphi 0, %s277
    %s294 = sphi 0, %s278
  $region4: #{tpu_custom_call.1} parent=0 // loop_header_branch
    %21 = sbr.rel (%p19) target = $region8
  $region5: #{tpu_custom_call.1} parent=0 // loop_body
    %s23 = ssub.s32 %s18, 1
    %s24 = ssub.s32 %s18, 2
    %s25 = sadd.s32 %s18, 1
    %s26 = ssub.s32 %s18, %s25
    %p27 = scmp.eq.s32.totalorder %s26, 0
    %s29 = sadd.s32 %s28, 1
    %s30 = scalar_select %p27, %s28, %s29
    %p33 = pneg %p27
    %p34 = scmp.eq.s32.totalorder %s18, 1
    %p35 = por %p33, %p34
    %p36 = scmp.ne.s32.totalorder %s28, %s31
    %p37 = scmp.eq.s32.totalorder %s18, 0
    %p38 = por %p36, %p37
    %p39 = scmp.ne.s32.totalorder %s28, %s31
    %p40 = scmp.eq.s32.totalorder %s23, 1
    %p41 = por %p39, %p40
    %p42 = scmp.ne.s32.totalorder %s31, %s32
    %p43 = scmp.eq.s32.totalorder %s23, 0
    %p44 = por %p42, %p43
    %p45 = scmp.ne.s32.totalorder %s31, %s32
    %p46 = scmp.eq.s32.totalorder %s24, 1
    %p47 = por %p45, %p46
    %p49 = scmp.ne.s32.totalorder %s32, %s48
    %p50 = scmp.eq.s32.totalorder %s24, 0
    %p51 = por %p49, %p50
    %s53 = sadd.s32 %s52, 1
    %p56 = scmp.eq.s32.totalorder %s18, 1
    %p57 = scmp.ne.s32.totalorder %s52, %s54
    %p58 = scmp.eq.s32.totalorder %s18, 0
    %p59 = por %p57, %p58
    %p60 = scmp.ne.s32.totalorder %s52, %s54
    %p61 = scmp.eq.s32.totalorder %s23, 1
    %p62 = por %p60, %p61
    %p63 = scmp.ne.s32.totalorder %s54, %s55
    %p64 = scmp.eq.s32.totalorder %s23, 0
    %p65 = por %p63, %p64
    %p66 = scmp.ne.s32.totalorder %s54, %s55
    %p67 = scmp.eq.s32.totalorder %s24, 1
    %p68 = por %p66, %p67
    %p70 = scmp.ne.s32.totalorder %s55, %s69
    %p71 = scmp.eq.s32.totalorder %s24, 0
    %p72 = por %p70, %p71
    %s74 = sadd.s32 %s73, 1
    %p77 = scmp.eq.s32.totalorder %s18, 1
    %p78 = scmp.ne.s32.totalorder %s73, %s75
    %p79 = scmp.eq.s32.totalorder %s18, 0
    %p80 = por %p78, %p79
    %p81 = scmp.ne.s32.totalorder %s73, %s75
    %p82 = scmp.eq.s32.totalorder %s23, 1
    %p83 = por %p81, %p82
    %p84 = scmp.ne.s32.totalorder %s75, %s76
    %p85 = scmp.eq.s32.totalorder %s23, 0
    %p86 = por %p84, %p85
    %p87 = scmp.ne.s32.totalorder %s75, %s76
    %p88 = scmp.eq.s32.totalorder %s24, 1
    %p89 = por %p87, %p88
    %p91 = scmp.ne.s32.totalorder %s76, %s90
    %p92 = scmp.eq.s32.totalorder %s24, 0
    %p93 = por %p91, %p92
    %s95 = sadd.s32 %s94, 1
    %p98 = scmp.eq.s32.totalorder %s18, 1
    %p99 = scmp.ne.s32.totalorder %s94, %s96
    %p100 = scmp.eq.s32.totalorder %s18, 0
    %p101 = por %p99, %p100
    %p102 = scmp.ne.s32.totalorder %s94, %s96
    %p103 = scmp.eq.s32.totalorder %s23, 1
    %p104 = por %p102, %p103
    %p105 = scmp.ne.s32.totalorder %s96, %s97
    %p106 = scmp.eq.s32.totalorder %s23, 0
    %p107 = por %p105, %p106
    %p108 = scmp.ne.s32.totalorder %s96, %s97
    %p109 = scmp.eq.s32.totalorder %s24, 1
    %p110 = por %p108, %p109
    %p112 = scmp.ne.s32.totalorder %s97, %s111
    %p113 = scmp.eq.s32.totalorder %s24, 0
    %p114 = por %p112, %p113
    %s116 = sadd.s32 %s115, 1
    %p119 = scmp.eq.s32.totalorder %s18, 1
    %p120 = scmp.ne.s32.totalorder %s115, %s117
    %p121 = scmp.eq.s32.totalorder %s18, 0
    %p122 = por %p120, %p121
    %p123 = scmp.ne.s32.totalorder %s115, %s117
    %p124 = scmp.eq.s32.totalorder %s23, 1
    %p125 = por %p123, %p124
    %p126 = scmp.ne.s32.totalorder %s117, %s118
    %p127 = scmp.eq.s32.totalorder %s23, 0
    %p128 = por %p126, %p127
    %p129 = scmp.ne.s32.totalorder %s117, %s118
    %p130 = scmp.eq.s32.totalorder %s24, 1
    %p131 = por %p129, %p130
    %p133 = scmp.ne.s32.totalorder %s118, %s132
    %p134 = scmp.eq.s32.totalorder %s24, 0
    %p135 = por %p133, %p134
    %s137 = sadd.s32 %s136, 1
    %p140 = scmp.eq.s32.totalorder %s18, 1
    %p141 = scmp.ne.s32.totalorder %s136, %s138
    %p142 = scmp.eq.s32.totalorder %s18, 0
    %p143 = por %p141, %p142
    %p144 = scmp.ne.s32.totalorder %s136, %s138
    %p145 = scmp.eq.s32.totalorder %s23, 1
    %p146 = por %p144, %p145
    %p147 = scmp.ne.s32.totalorder %s138, %s139
    %p148 = scmp.eq.s32.totalorder %s23, 0
    %p149 = por %p147, %p148
    %p150 = scmp.ne.s32.totalorder %s138, %s139
    %p151 = scmp.eq.s32.totalorder %s24, 1
    %p152 = por %p150, %p151
    %p154 = scmp.ne.s32.totalorder %s139, %s153
    %p155 = scmp.eq.s32.totalorder %s24, 0
    %p156 = por %p154, %p155
    %s158 = sadd.s32 %s157, 1
    %p161 = scmp.eq.s32.totalorder %s18, 1
    %p162 = scmp.ne.s32.totalorder %s157, %s159
    %p163 = scmp.eq.s32.totalorder %s18, 0
    %p164 = por %p162, %p163
    %p165 = scmp.ne.s32.totalorder %s157, %s159
    %p166 = scmp.eq.s32.totalorder %s23, 1
    %p167 = por %p165, %p166
    %p168 = scmp.ne.s32.totalorder %s159, %s160
    %p169 = scmp.eq.s32.totalorder %s23, 0
    %p170 = por %p168, %p169
    %p171 = scmp.ne.s32.totalorder %s159, %s160
    %p172 = scmp.eq.s32.totalorder %s24, 1
    %p173 = por %p171, %p172
    %p175 = scmp.ne.s32.totalorder %s160, %s174
    %p176 = scmp.eq.s32.totalorder %s24, 0
    %p177 = por %p175, %p176
    %s179 = sadd.s32 %s178, 1
    %p182 = scmp.eq.s32.totalorder %s18, 1
    %p183 = scmp.ne.s32.totalorder %s178, %s180
    %p184 = scmp.eq.s32.totalorder %s18, 0
    %p185 = por %p183, %p184
    %p186 = scmp.ne.s32.totalorder %s178, %s180
    %p187 = scmp.eq.s32.totalorder %s23, 1
    %p188 = por %p186, %p187
    %p189 = scmp.ne.s32.totalorder %s180, %s181
    %p190 = scmp.eq.s32.totalorder %s23, 0
    %p191 = por %p189, %p190
    %p192 = scmp.ne.s32.totalorder %s180, %s181
    %p193 = scmp.eq.s32.totalorder %s24, 1
    %p194 = por %p192, %p193
    %p196 = scmp.ne.s32.totalorder %s181, %s195
    %p197 = scmp.eq.s32.totalorder %s24, 0
    %p198 = por %p196, %p197
    %s200 = sadd.s32 %s199, 1
    %p203 = scmp.eq.s32.totalorder %s18, 1
    %p204 = scmp.ne.s32.totalorder %s199, %s201
    %p205 = scmp.eq.s32.totalorder %s18, 0
    %p206 = por %p204, %p205
    %p207 = scmp.ne.s32.totalorder %s199, %s201
    %p208 = scmp.eq.s32.totalorder %s23, 1
    %p209 = por %p207, %p208
    %p210 = scmp.ne.s32.totalorder %s201, %s202
    %p211 = scmp.eq.s32.totalorder %s23, 0
    %p212 = por %p210, %p211
    %p213 = scmp.ne.s32.totalorder %s201, %s202
    %p214 = scmp.eq.s32.totalorder %s24, 1
    %p215 = por %p213, %p214
    %p217 = scmp.ne.s32.totalorder %s202, %s216
    %p218 = scmp.eq.s32.totalorder %s24, 0
    %p219 = por %p217, %p218
    %s220 = ssub.s32 %s18, %s25
    %p221 = scmp.eq.s32.totalorder %s220, 0
    %s223 = sadd.s32 %s222, 1
    %s224 = scalar_select %p221, %s222, %s223
    %p227 = pneg %p221
    %p228 = scmp.eq.s32.totalorder %s18, 1
    %p229 = por %p227, %p228
    %p230 = scmp.ne.s32.totalorder %s222, %s225
    %p231 = scmp.eq.s32.totalorder %s18, 0
    %p232 = por %p230, %p231
    %p233 = scmp.ne.s32.totalorder %s222, %s225
    %p234 = scmp.eq.s32.totalorder %s23, 1
    %p235 = por %p233, %p234
    %p236 = scmp.ne.s32.totalorder %s225, %s226
    %p237 = scmp.eq.s32.totalorder %s23, 0
    %p238 = por %p236, %p237
    %p239 = scmp.ne.s32.totalorder %s225, %s226
    %p240 = scmp.eq.s32.totalorder %s24, 1
    %p241 = por %p239, %p240
    %p243 = scmp.ne.s32.totalorder %s226, %s242
    %p244 = scmp.eq.s32.totalorder %s24, 0
    %p245 = por %p243, %p244
    %s246 = ssub.s32 %s18, %s25
    %p247 = scmp.eq.s32.totalorder %s246, 0
    %s249 = sadd.s32 %s248, 1
    %s250 = scalar_select %p247, %s248, %s249
    %p253 = pneg %p247
    %p254 = scmp.eq.s32.totalorder %s18, 1
    %p255 = por %p253, %p254
    %p256 = scmp.ne.s32.totalorder %s248, %s251
    %p257 = scmp.eq.s32.totalorder %s18, 0
    %p258 = por %p256, %p257
    %p259 = scmp.ne.s32.totalorder %s248, %s251
    %p260 = scmp.eq.s32.totalorder %s23, 1
    %p261 = por %p259, %p260
    %p262 = scmp.ne.s32.totalorder %s251, %s252
    %p263 = scmp.eq.s32.totalorder %s23, 0
    %p264 = por %p262, %p263
    %p265 = scmp.ne.s32.totalorder %s251, %s252
    %p266 = scmp.eq.s32.totalorder %s24, 1
    %p267 = por %p265, %p266
    %p269 = scmp.ne.s32.totalorder %s252, %s268
    %p270 = scmp.eq.s32.totalorder %s24, 0
    %p271 = por %p269, %p270
    %s272 = ssub.s32 %s18, %s25
    %p273 = scmp.eq.s32.totalorder %s272, 0
    %s275 = sadd.s32 %s274, 1
    %s276 = scalar_select %p273, %s274, %s275
    %p279 = pneg %p273
    %p280 = scmp.eq.s32.totalorder %s18, 1
    %p281 = por %p279, %p280
    %p282 = scmp.ne.s32.totalorder %s274, %s277
    %p283 = scmp.eq.s32.totalorder %s18, 0
    %p284 = por %p282, %p283
    %p285 = scmp.ne.s32.totalorder %s274, %s277
    %p286 = scmp.eq.s32.totalorder %s23, 1
    %p287 = por %p285, %p286
    %p288 = scmp.ne.s32.totalorder %s277, %s278
    %p289 = scmp.eq.s32.totalorder %s23, 0
    %p290 = por %p288, %p289
    %p291 = scmp.ne.s32.totalorder %s277, %s278
    %p292 = scmp.eq.s32.totalorder %s24, 1
    %p293 = por %p291, %p292
    %p295 = scmp.ne.s32.totalorder %s278, %s294
    %p296 = scmp.eq.s32.totalorder %s24, 0
    %p297 = por %p295, %p296
    %p298 = scmp.le.s32.totalorder 1, %s18
    %p299 = scmp.lt.s32.totalorder %s18, 3
    %p300 = pnand %p298, %p299
    %p301 = pneg %p300
    // Predicated region
    $region9: #{tpu_custom_call.1} parent=5 // pred_check
      _
    $region10: #{tpu_custom_call.1} parent=5 // pred_check_branch
      %303 = sbr.rel (%p300) target = $region12
    $region11: #{tpu_custom_call.1} parent=5 // pred_region
      %s304 = ssub.s32 %s18, 1
      // Predicated region
      $region13: #{tpu_custom_call.1} parent=11 // pred_check
        %p305 = pneg %p65
      $region14: #{tpu_custom_call.1} parent=11 // pred_check_branch
        %307 = sbr.rel (%p305) target = $region16
      $region15: #{tpu_custom_call.1} parent=11 // pred_region
        _
      $region16: #{tpu_custom_call.1} parent=11 // pred_fallthru
        _
      // Predicated region
      $region17: #{tpu_custom_call.1} parent=11 // pred_check
        %p308 = pneg %p86
      $region18: #{tpu_custom_call.1} parent=11 // pred_check_branch
        %310 = sbr.rel (%p308) target = $region20
      $region19: #{tpu_custom_call.1} parent=11 // pred_region
        _
      $region20: #{tpu_custom_call.1} parent=11 // pred_fallthru
        _
      // Predicated region
      $region21: #{tpu_custom_call.1} parent=11 // pred_check
        %p311 = pneg %p107
      $region22: #{tpu_custom_call.1} parent=11 // pred_check_branch
        %313 = sbr.rel (%p311) target = $region24
      $region23: #{tpu_custom_call.1} parent=11 // pred_region
        _
      $region24: #{tpu_custom_call.1} parent=11 // pred_fallthru
        _
      // Predicated region
      $region25: #{tpu_custom_call.1} parent=11 // pred_check
        %p314 = pneg %p128
      $region26: #{tpu_custom_call.1} parent=11 // pred_check_branch
        %316 = sbr.rel (%p314) target = $region28
      $region27: #{tpu_custom_call.1} parent=11 // pred_region
        _
      $region28: #{tpu_custom_call.1} parent=11 // pred_fallthru
        _
      // Predicated region
      $region29: #{tpu_custom_call.1} parent=11 // pred_check
        %p317 = pneg %p149
      $region30: #{tpu_custom_call.1} parent=11 // pred_check_branch
        %319 = sbr.rel (%p317) target = $region32
      $region31: #{tpu_custom_call.1} parent=11 // pred_region
        _
      $region32: #{tpu_custom_call.1} parent=11 // pred_fallthru
        _
      // Predicated region
      $region33: #{tpu_custom_call.1} parent=11 // pred_check
        %p320 = pneg %p170
      $region34: #{tpu_custom_call.1} parent=11 // pred_check_branch
        %322 = sbr.rel (%p320) target = $region36
      $region35: #{tpu_custom_call.1} parent=11 // pred_region
        _
      $region36: #{tpu_custom_call.1} parent=11 // pred_fallthru
        _
      // Predicated region
      $region37: #{tpu_custom_call.1} parent=11 // pred_check
        %p323 = pneg %p191
      $region38: #{tpu_custom_call.1} parent=11 // pred_check_branch
        %325 = sbr.rel (%p323) target = $region40
      $region39: #{tpu_custom_call.1} parent=11 // pred_region
        _
      $region40: #{tpu_custom_call.1} parent=11 // pred_fallthru
        _
      // Predicated region
      $region41: #{tpu_custom_call.1} parent=11 // pred_check
        %p326 = pneg %p212
      $region42: #{tpu_custom_call.1} parent=11 // pred_check_branch
        %328 = sbr.rel (%p326) target = $region44
      $region43: #{tpu_custom_call.1} parent=11 // pred_region
        _
      $region44: #{tpu_custom_call.1} parent=11 // pred_fallthru
        _
    $region12: #{tpu_custom_call.1} parent=5 // pred_fallthru
      _
    %p329 = scmp.lt.s32.totalorder %s18, 2
    // Predicated region
    $region45: #{tpu_custom_call.1} parent=5 // pred_check
      %p330 = pneg %p329
    $region46: #{tpu_custom_call.1} parent=5 // pred_check_branch
      %332 = sbr.rel (%p330) target = $region48
    $region47: #{tpu_custom_call.1} parent=5 // pred_region
      // Predicated region
      $region49: #{tpu_custom_call.1} parent=47 // pred_check
        %p333 = pneg %p38
      $region50: #{tpu_custom_call.1} parent=47 // pred_check_branch
        %335 = sbr.rel (%p333) target = $region52
      $region51: #{tpu_custom_call.1} parent=47 // pred_region
        %s336 = smul.u32 16, %s18
        %p337 = scmp.lt.s32.totalorder %s336, 31
        %s338 = scalar_select %p337, %s336, 31
        %s339 = smul.addr %s338, 7
        %s340 = smul.addr %s339, 8
        %s341 = scalar_lea.vmem %s0, %s340
        %s342 = smul.u32 16, %s18
      $region52: #{tpu_custom_call.1} parent=47 // pred_fallthru
        _
      // Predicated region
      $region53: #{tpu_custom_call.1} parent=47 // pred_check
        %p343 = pneg %p232
      $region54: #{tpu_custom_call.1} parent=47 // pred_check_branch
        %345 = sbr.rel (%p343) target = $region56
      $region55: #{tpu_custom_call.1} parent=47 // pred_region
        %s346 = smul.u32 16, %s18
        %p347 = scmp.lt.s32.totalorder %s346, 31
        %s348 = scalar_select %p347, %s346, 31
        %s349 = smul.addr %s348, 8
        %s350 = scalar_lea.vmem %s9, %s349
        %s351 = smul.u32 16, %s18
      $region56: #{tpu_custom_call.1} parent=47 // pred_fallthru
        _
    $region48: #{tpu_custom_call.1} parent=5 // pred_fallthru
      _
    %p352 = scmp.le.s32.totalorder 1, %s18
    %p353 = scmp.lt.s32.totalorder %s18, 3
    %p354 = pnand %p352, %p353
    %p355 = pneg %p354
    // Predicated region
    $region57: #{tpu_custom_call.1} parent=5 // pred_check
      _
    $region58: #{tpu_custom_call.1} parent=5 // pred_check_branch
      %357 = sbr.rel (%p354) target = $region60
    $region59: #{tpu_custom_call.1} parent=5 // pred_region
      %s358 = ssub.s32 %s18, 1
      %s359 = smul.u32 16, %s23
      %p360 = scmp.lt.s32.totalorder %s359, 31
      %s361 = scalar_select %p360, %s359, 31
      %s362 = smul.addr %s361, 7
      %s363 = smul.addr %s362, 8
      %s364 = scalar_lea.vmem %s0, %s363
      %p365 = pneg %p44
      %p366 = pneg %p41
      %p367 = pneg %p65
      %p368 = pneg %p62
      %p369 = pneg %p86
      %p370 = pneg %p83
      %p371 = pneg %p107
      %p372 = pneg %p104
      %p373 = pneg %p128
      %p374 = pneg %p125
      %p375 = pneg %p149
      %p376 = pneg %p146
      %p377 = pneg %p170
      %p378 = pneg %p167
      %p379 = pneg %p191
      %p380 = pneg %p188
      %p381 = pneg %p212
      %p382 = pneg %p209
      %s383 = smul.u32 16, %s23
      %p384 = scmp.lt.s32.totalorder %s383, 31
      %s385 = scalar_select %p384, %s383, 31
      %s386 = smul.addr %s385, 8
      %s387 = scalar_lea.vmem %s9, %s386
      %p388 = pneg %p238
      %p389 = pneg %p235
      %p390 = pneg %p264
      %p391 = pneg %p261
      %s392 = smul.u32 16, %s23
      %p393 = scmp.lt.s32.totalorder %s392, 31
      %s394 = scalar_select %p393, %s392, 31
      %s395 = smul.addr %s394, 8
      %s396 = scalar_lea.vmem %s10, %s395
      %p397 = pneg %p290
      %p398 = pneg %p287
      %s399 = smul.u32 16, %s23
      %p400 = scmp.lt.s32.totalorder %s399, 31
      %s401 = scalar_select %p400, %s399, 31
      %s402 = smul.addr %s401, 7
      %s403 = smul.addr %s402, 4
      %s404 = scalar_lea.vmem %s11, %s403
      %s405 = smul.u32 16, %s23
      %p406 = scmp.lt.s32.totalorder %s405, 31
      %s407 = scalar_select %p406, %s405, 31
      %s408 = smul.addr %s407, 7
      %s409 = smul.addr %s408, 8
      %s410 = scalar_lea.vmem %s0, %s409
      %s411 = smul.u32 16, %s23
      %s412 = smul.u32 16, %s23
      %p413 = scmp.lt.s32.totalorder %s412, 31
      %s414 = scalar_select %p413, %s412, 31
      %s415 = smul.addr %s414, 8
      %s416 = scalar_lea.vmem %s9, %s415
      %s417 = smul.u32 16, %s23
      %s418 = smul.u32 16, %s23
      %p419 = scmp.lt.s32.totalorder %s418, 31
      %s420 = scalar_select %p419, %s418, 31
      %s421 = smul.addr %s420, 8
      %s422 = scalar_lea.vmem %s10, %s421
      %s423 = smul.u32 16, %s23
      %s424 = smul.u32 16, %s23
      %p425 = scmp.lt.s32.totalorder %s424, 31
      %s426 = scalar_select %p425, %s424, 31
      %s427 = smul.addr %s426, 7
      %s428 = smul.addr %s427, 4
      %s429 = scalar_lea.vmem %s11, %s428
      %s430 = smul.u32 16, %s23
      %v432 = vld [vmem:[%s410] sm:$0xff]
      %v433 = vld [vmem:[%s410 + $0x8] sm:$0xff]
      %v434 = vld [vmem:[%s410 + $0x10] sm:$0xff]
      %v435 = vld [vmem:[%s410 + $0x18] sm:$0xff]
      %v436 = vld [vmem:[%s410 + $0x20] sm:$0xff]
      %v437 = vld [vmem:[%s410 + $0x28] sm:$0xff]
      %v438 = vld [vmem:[%s410 + $0x30] sm:$0xff]
      %v439 = vld [vmem:[%s410 + $0x38] sm:$0xff]
      %v440 = vld [vmem:[%s410 + $0x40] sm:$0xff]
      %v441 = vld [vmem:[%s410 + $0x48] sm:$0xff]
      %v442 = vld [vmem:[%s410 + $0x50] sm:$0xff]
      %v443 = vld [vmem:[%s410 + $0x58] sm:$0xff]
      %v444 = vld [vmem:[%s410 + $0x60] sm:$0xff]
      %v445 = vld [vmem:[%s410 + $0x68] sm:$0xff]
      %v446 = vld [vmem:[%s410 + $0x70] sm:$0xff]
      %v447 = vld [vmem:[%s410 + $0x78] sm:$0xff]
      %v448 = vld [vmem:[%s410 + $0x80] sm:$0xff]
      %v449 = vld [vmem:[%s410 + $0x88] sm:$0xff]
      %v450 = vld [vmem:[%s410 + $0x90] sm:$0xff]
      %v451 = vld [vmem:[%s410 + $0x98] sm:$0xff]
      %v452 = vld [vmem:[%s410 + $0xa0] sm:$0xff]
      %v453 = vld [vmem:[%s410 + $0xa8] sm:$0xff]
      %v454 = vld [vmem:[%s410 + $0xb0] sm:$0xff]
      %v455 = vld [vmem:[%s410 + $0xb8] sm:$0xff]
      %v456 = vld [vmem:[%s410 + $0xc0] sm:$0xff]
      %v457 = vld [vmem:[%s410 + $0xc8] sm:$0xff]
      %v458 = vld [vmem:[%s410 + $0xd0] sm:$0xff]
      %v459 = vld [vmem:[%s410 + $0xd8] sm:$0xff]
      %v460 = vld [vmem:[%s410 + $0xe0] sm:$0xff]
      %v461 = vld [vmem:[%s410 + $0xe8] sm:$0xff]
      %v462 = vld [vmem:[%s410 + $0xf0] sm:$0xff]
      %v463 = vld [vmem:[%s410 + $0xf8] sm:$0xff]
      %v464 = vld [vmem:[%s410 + $0x100] sm:$0xff]
      %v465 = vld [vmem:[%s410 + $0x108] sm:$0xff]
      %v466 = vld [vmem:[%s410 + $0x110] sm:$0xff]
      %v467 = vld [vmem:[%s410 + $0x118] sm:$0xff]
      %v468 = vld [vmem:[%s410 + $0x120] sm:$0xff]
      %v469 = vld [vmem:[%s410 + $0x128] sm:$0xff]
      %v470 = vld [vmem:[%s410 + $0x130] sm:$0xff]
      %v471 = vld [vmem:[%s410 + $0x138] sm:$0xff]
      %v472 = vld [vmem:[%s410 + $0x140] sm:$0xff]
      %v473 = vld [vmem:[%s410 + $0x148] sm:$0xff]
      %v474 = vld [vmem:[%s410 + $0x150] sm:$0xff]
      %v475 = vld [vmem:[%s410 + $0x158] sm:$0xff]
      %v476 = vld [vmem:[%s410 + $0x160] sm:$0xff]
      %v477 = vld [vmem:[%s410 + $0x168] sm:$0xff]
      %v478 = vld [vmem:[%s410 + $0x170] sm:$0xff]
      %v479 = vld [vmem:[%s410 + $0x178] sm:$0xff]
      %v480 = vld [vmem:[%s410 + $0x180] sm:$0xff]
      %v481 = vld [vmem:[%s410 + $0x188] sm:$0xff]
      %v482 = vld [vmem:[%s410 + $0x190] sm:$0xff]
      %v483 = vld [vmem:[%s410 + $0x198] sm:$0xff]
      %v484 = vld [vmem:[%s410 + $0x1a0] sm:$0xff]
      %v485 = vld [vmem:[%s410 + $0x1a8] sm:$0xff]
      %v486 = vld [vmem:[%s410 + $0x1b0] sm:$0xff]
      %v487 = vld [vmem:[%s410 + $0x1b8] sm:$0xff]
      %v488 = vld [vmem:[%s410 + $0x1c0] sm:$0xff]
      %v489 = vld [vmem:[%s410 + $0x1c8] sm:$0xff]
      %v490 = vld [vmem:[%s410 + $0x1d0] sm:$0xff]
      %v491 = vld [vmem:[%s410 + $0x1d8] sm:$0xff]
      %v492 = vld [vmem:[%s410 + $0x1e0] sm:$0xff]
      %v493 = vld [vmem:[%s410 + $0x1e8] sm:$0xff]
      %v494 = vld [vmem:[%s410 + $0x1f0] sm:$0xff]
      %v495 = vld [vmem:[%s410 + $0x1f8] sm:$0xff]
      %v496 = vld [vmem:[%s410 + $0x200] sm:$0xff]
      %v497 = vld [vmem:[%s410 + $0x208] sm:$0xff]
      %v498 = vld [vmem:[%s410 + $0x210] sm:$0xff]
      %v499 = vld [vmem:[%s410 + $0x218] sm:$0xff]
      %v500 = vld [vmem:[%s410 + $0x220] sm:$0xff]
      %v501 = vld [vmem:[%s410 + $0x228] sm:$0xff]
      %v502 = vld [vmem:[%s410 + $0x230] sm:$0xff]
      %v503 = vld [vmem:[%s410 + $0x238] sm:$0xff]
      %v504 = vld [vmem:[%s410 + $0x240] sm:$0xff]
      %v505 = vld [vmem:[%s410 + $0x248] sm:$0xff]
      %v506 = vld [vmem:[%s410 + $0x250] sm:$0xff]
      %v507 = vld [vmem:[%s410 + $0x258] sm:$0xff]
      %v508 = vld [vmem:[%s410 + $0x260] sm:$0xff]
      %v509 = vld [vmem:[%s410 + $0x268] sm:$0xff]
      %v510 = vld [vmem:[%s410 + $0x270] sm:$0xff]
      %v511 = vld [vmem:[%s410 + $0x278] sm:$0xff]
      %v512 = vld [vmem:[%s410 + $0x280] sm:$0xff]
      %v513 = vld [vmem:[%s410 + $0x288] sm:$0xff]
      %v514 = vld [vmem:[%s410 + $0x290] sm:$0xff]
      %v515 = vld [vmem:[%s410 + $0x298] sm:$0xff]
      %v516 = vld [vmem:[%s410 + $0x2a0] sm:$0xff]
      %v517 = vld [vmem:[%s410 + $0x2a8] sm:$0xff]
      %v518 = vld [vmem:[%s410 + $0x2b0] sm:$0xff]
      %v519 = vld [vmem:[%s410 + $0x2b8] sm:$0xff]
      %v520 = vld [vmem:[%s410 + $0x2c0] sm:$0xff]
      %v521 = vld [vmem:[%s410 + $0x2c8] sm:$0xff]
      %v522 = vld [vmem:[%s410 + $0x2d0] sm:$0xff]
      %v523 = vld [vmem:[%s410 + $0x2d8] sm:$0xff]
      %v524 = vld [vmem:[%s410 + $0x2e0] sm:$0xff]
      %v525 = vld [vmem:[%s410 + $0x2e8] sm:$0xff]
      %v526 = vld [vmem:[%s410 + $0x2f0] sm:$0xff]
      %v527 = vld [vmem:[%s410 + $0x2f8] sm:$0xff]
      %v528 = vld [vmem:[%s410 + $0x300] sm:$0xff]
      %v529 = vld [vmem:[%s410 + $0x308] sm:$0xff]
      %v530 = vld [vmem:[%s410 + $0x310] sm:$0xff]
      %v531 = vld [vmem:[%s410 + $0x318] sm:$0xff]
      %v532 = vld [vmem:[%s410 + $0x320] sm:$0xff]
      %v533 = vld [vmem:[%s410 + $0x328] sm:$0xff]
      %v534 = vld [vmem:[%s410 + $0x330] sm:$0xff]
      %v535 = vld [vmem:[%s410 + $0x338] sm:$0xff]
      %v536 = vld [vmem:[%s410 + $0x340] sm:$0xff]
      %v537 = vld [vmem:[%s410 + $0x348] sm:$0xff]
      %v538 = vld [vmem:[%s410 + $0x350] sm:$0xff]
      %v539 = vld [vmem:[%s410 + $0x358] sm:$0xff]
      %v540 = vld [vmem:[%s410 + $0x360] sm:$0xff]
      %v541 = vld [vmem:[%s410 + $0x368] sm:$0xff]
      %v542 = vld [vmem:[%s410 + $0x370] sm:$0xff]
      %v543 = vld [vmem:[%s410 + $0x378] sm:$0xff]
      %v544 = vpack.c.bf16 %v439, %v432
      %v545 = vpack.c.bf16 %v440, %v433
      %v546 = vpack.c.bf16 %v441, %v434
      %v547 = vpack.c.bf16 %v442, %v435
      %v548 = vpack.c.bf16 %v443, %v436
      %v549 = vpack.c.bf16 %v444, %v437
      %v550 = vpack.c.bf16 %v445, %v438
      %v551 = vpack.c.bf16 %v453, %v446
      %v552 = vpack.c.bf16 %v454, %v447
      %v553 = vpack.c.bf16 %v455, %v448
      %v554 = vpack.c.bf16 %v456, %v449
      %v555 = vpack.c.bf16 %v457, %v450
      %v556 = vpack.c.bf16 %v458, %v451
      %v557 = vpack.c.bf16 %v459, %v452
      %v558 = vpack.c.bf16 %v467, %v460
      %v559 = vpack.c.bf16 %v468, %v461
      %v560 = vpack.c.bf16 %v469, %v462
      %v561 = vpack.c.bf16 %v470, %v463
      %v562 = vpack.c.bf16 %v471, %v464
      %v563 = vpack.c.bf16 %v472, %v465
      %v564 = vpack.c.bf16 %v473, %v466
      %v565 = vpack.c.bf16 %v481, %v474
      %v566 = vpack.c.bf16 %v482, %v475
      %v567 = vpack.c.bf16 %v483, %v476
      %v568 = vpack.c.bf16 %v484, %v477
      %v569 = vpack.c.bf16 %v485, %v478
      %v570 = vpack.c.bf16 %v486, %v479
      %v571 = vpack.c.bf16 %v487, %v480
      %v572 = vpack.c.bf16 %v495, %v488
      %v573 = vpack.c.bf16 %v496, %v489
      %v574 = vpack.c.bf16 %v497, %v490
      %v575 = vpack.c.bf16 %v498, %v491
      %v576 = vpack.c.bf16 %v499, %v492
      %v577 = vpack.c.bf16 %v500, %v493
      %v578 = vpack.c.bf16 %v501, %v494
      %v579 = vpack.c.bf16 %v509, %v502
      %v580 = vpack.c.bf16 %v510, %v503
      %v581 = vpack.c.bf16 %v511, %v504
      %v582 = vpack.c.bf16 %v512, %v505
      %v583 = vpack.c.bf16 %v513, %v506
      %v584 = vpack.c.bf16 %v514, %v507
      %v585 = vpack.c.bf16 %v515, %v508
      %v586 = vpack.c.bf16 %v523, %v516
      %v587 = vpack.c.bf16 %v524, %v517
      %v588 = vpack.c.bf16 %v525, %v518
      %v589 = vpack.c.bf16 %v526, %v519
      %v590 = vpack.c.bf16 %v527, %v520
      %v591 = vpack.c.bf16 %v528, %v521
      %v592 = vpack.c.bf16 %v529, %v522
      %v593 = vpack.c.bf16 %v537, %v530
      %v594 = vpack.c.bf16 %v538, %v531
      %v595 = vpack.c.bf16 %v539, %v532
      %v596 = vpack.c.bf16 %v540, %v533
      %v597 = vpack.c.bf16 %v541, %v534
      %v598 = vpack.c.bf16 %v542, %v535
      %v599 = vpack.c.bf16 %v543, %v536
      %v600 = vld [vmem:[%s1] sm:$0xff]
      %v601 = vld [vmem:[%s1 + $0x8] sm:$0xff]
      %v602 = vld [vmem:[%s1 + $0x10] sm:$0xff]
      %v603 = vld [vmem:[%s1 + $0x18] sm:$0xff]
      %v604 = vld [vmem:[%s1 + $0x20] sm:$0xff]
      %v605 = vld [vmem:[%s1 + $0x28] sm:$0xff]
      %v606 = vld [vmem:[%s1 + $0x30] sm:$0xff]
      %v607 = vld [vmem:[%s1 + $0x38] sm:$0xff]
      %v608 = vld [vmem:[%s1 + $0x40] sm:$0xff]
      %v609 = vld [vmem:[%s1 + $0x48] sm:$0xff]
      %v610 = vld [vmem:[%s1 + $0x50] sm:$0xff]
      %v611 = vld [vmem:[%s1 + $0x58] sm:$0xff]
      %v612 = vld [vmem:[%s1 + $0x60] sm:$0xff]
      %v613 = vld [vmem:[%s1 + $0x68] sm:$0xff]
      %v614 = vld [vmem:[%s1 + $0x70] sm:$0xff]
      %v615 = vld [vmem:[%s1 + $0x78] sm:$0xff]
      %v616 = vld [vmem:[%s1 + $0x80] sm:$0xff]
      %v617 = vld [vmem:[%s1 + $0x88] sm:$0xff]
      %v618 = vld [vmem:[%s1 + $0x90] sm:$0xff]
      %v619 = vld [vmem:[%s1 + $0x98] sm:$0xff]
      %v620 = vld [vmem:[%s1 + $0xa0] sm:$0xff]
      %v621 = vld [vmem:[%s1 + $0xa8] sm:$0xff]
      %v622 = vld [vmem:[%s1 + $0xb0] sm:$0xff]
      %v623 = vld [vmem:[%s1 + $0xb8] sm:$0xff]
      %v624 = vld [vmem:[%s1 + $0xc0] sm:$0xff]
      %v625 = vld [vmem:[%s1 + $0xc8] sm:$0xff]
      %v626 = vld [vmem:[%s1 + $0xd0] sm:$0xff]
      %v627 = vld [vmem:[%s1 + $0xd8] sm:$0xff]
      %v628 = vld [vmem:[%s1 + $0xe0] sm:$0xff]
      %v629 = vld [vmem:[%s1 + $0xe8] sm:$0xff]
      %v630 = vld [vmem:[%s1 + $0xf0] sm:$0xff]
      %v631 = vld [vmem:[%s1 + $0xf8] sm:$0xff]
      %v632 = vld [vmem:[%s1 + $0x100] sm:$0xff]
      %v633 = vld [vmem:[%s1 + $0x108] sm:$0xff]
      %v634 = vld [vmem:[%s1 + $0x110] sm:$0xff]
      %v635 = vld [vmem:[%s1 + $0x118] sm:$0xff]
      %v636 = vld [vmem:[%s1 + $0x120] sm:$0xff]
      %v637 = vld [vmem:[%s1 + $0x128] sm:$0xff]
      %v638 = vld [vmem:[%s1 + $0x130] sm:$0xff]
      %v639 = vld [vmem:[%s1 + $0x138] sm:$0xff]
      %v640 = vld [vmem:[%s1 + $0x140] sm:$0xff]
      %v641 = vld [vmem:[%s1 + $0x148] sm:$0xff]
      %v642 = vld [vmem:[%s1 + $0x150] sm:$0xff]
      %v643 = vld [vmem:[%s1 + $0x158] sm:$0xff]
      %v644 = vld [vmem:[%s1 + $0x160] sm:$0xff]
      %v645 = vld [vmem:[%s1 + $0x168] sm:$0xff]
      %v646 = vld [vmem:[%s1 + $0x170] sm:$0xff]
      %v647 = vld [vmem:[%s1 + $0x178] sm:$0xff]
      %v648 = vld [vmem:[%s1 + $0x180] sm:$0xff]
      %v649 = vld [vmem:[%s1 + $0x188] sm:$0xff]
      %v650 = vld [vmem:[%s1 + $0x190] sm:$0xff]
      %v651 = vld [vmem:[%s1 + $0x198] sm:$0xff]
      %v652 = vld [vmem:[%s1 + $0x1a0] sm:$0xff]
      %v653 = vld [vmem:[%s1 + $0x1a8] sm:$0xff]
      %v654 = vld [vmem:[%s1 + $0x1b0] sm:$0xff]
      %v655 = vld [vmem:[%s1 + $0x1b8] sm:$0xff]
      %v656 = vld [vmem:[%s1 + $0x1c0] sm:$0xff]
      %v657 = vld [vmem:[%s1 + $0x1c8] sm:$0xff]
      %v658 = vld [vmem:[%s1 + $0x1d0] sm:$0xff]
      %v659 = vld [vmem:[%s1 + $0x1d8] sm:$0xff]
      %v660 = vld [vmem:[%s1 + $0x1e0] sm:$0xff]
      %v661 = vld [vmem:[%s1 + $0x1e8] sm:$0xff]
      %v662 = vld [vmem:[%s1 + $0x1f0] sm:$0xff]
      %v663 = vld [vmem:[%s1 + $0x1f8] sm:$0xff]
      %v664 = vld [vmem:[%s1 + $0x200] sm:$0xff]
      %v665 = vld [vmem:[%s1 + $0x208] sm:$0xff]
      %v666 = vld [vmem:[%s1 + $0x210] sm:$0xff]
      %v667 = vld [vmem:[%s1 + $0x218] sm:$0xff]
      %v668 = vld [vmem:[%s1 + $0x220] sm:$0xff]
      %v669 = vld [vmem:[%s1 + $0x228] sm:$0xff]
      %v670 = vld [vmem:[%s1 + $0x230] sm:$0xff]
      %v671 = vld [vmem:[%s1 + $0x238] sm:$0xff]
      %v672 = vld [vmem:[%s1 + $0x240] sm:$0xff]
      %v673 = vld [vmem:[%s1 + $0x248] sm:$0xff]
      %v674 = vld [vmem:[%s1 + $0x250] sm:$0xff]
      %v675 = vld [vmem:[%s1 + $0x258] sm:$0xff]
      %v676 = vld [vmem:[%s1 + $0x260] sm:$0xff]
      %v677 = vld [vmem:[%s1 + $0x268] sm:$0xff]
      %v678 = vld [vmem:[%s1 + $0x270] sm:$0xff]
      %v679 = vld [vmem:[%s1 + $0x278] sm:$0xff]
      %v680 = vld [vmem:[%s1 + $0x280] sm:$0xff]
      %v681 = vld [vmem:[%s1 + $0x288] sm:$0xff]
      %v682 = vld [vmem:[%s1 + $0x290] sm:$0xff]
      %v683 = vld [vmem:[%s1 + $0x298] sm:$0xff]
      %v684 = vld [vmem:[%s1 + $0x2a0] sm:$0xff]
      %v685 = vld [vmem:[%s1 + $0x2a8] sm:$0xff]
      %v686 = vld [vmem:[%s1 + $0x2b0] sm:$0xff]
      %v687 = vld [vmem:[%s1 + $0x2b8] sm:$0xff]
      %v688 = vld [vmem:[%s1 + $0x2c0] sm:$0xff]
      %v689 = vld [vmem:[%s1 + $0x2c8] sm:$0xff]
      %v690 = vld [vmem:[%s1 + $0x2d0] sm:$0xff]
      %v691 = vld [vmem:[%s1 + $0x2d8] sm:$0xff]
      %v692 = vld [vmem:[%s1 + $0x2e0] sm:$0xff]
      %v693 = vld [vmem:[%s1 + $0x2e8] sm:$0xff]
      %v694 = vld [vmem:[%s1 + $0x2f0] sm:$0xff]
      %v695 = vld [vmem:[%s1 + $0x2f8] sm:$0xff]
      %v696 = vld [vmem:[%s1 + $0x300] sm:$0xff]
      %v697 = vld [vmem:[%s1 + $0x308] sm:$0xff]
      %v698 = vld [vmem:[%s1 + $0x310] sm:$0xff]
      %v699 = vld [vmem:[%s1 + $0x318] sm:$0xff]
      %v700 = vld [vmem:[%s1 + $0x320] sm:$0xff]
      %v701 = vld [vmem:[%s1 + $0x328] sm:$0xff]
      %v702 = vld [vmem:[%s1 + $0x330] sm:$0xff]
      %v703 = vld [vmem:[%s1 + $0x338] sm:$0xff]
      %v704 = vld [vmem:[%s1 + $0x340] sm:$0xff]
      %v705 = vld [vmem:[%s1 + $0x348] sm:$0xff]
      %v706 = vld [vmem:[%s1 + $0x350] sm:$0xff]
      %v707 = vld [vmem:[%s1 + $0x358] sm:$0xff]
      %v708 = vld [vmem:[%s1 + $0x360] sm:$0xff]
      %v709 = vld [vmem:[%s1 + $0x368] sm:$0xff]
      %v710 = vld [vmem:[%s1 + $0x370] sm:$0xff]
      %v711 = vld [vmem:[%s1 + $0x378] sm:$0xff]
      %v712 = vld [vmem:[%s1 + $0x380] sm:$0xff]
      %v713 = vld [vmem:[%s1 + $0x388] sm:$0xff]
      %v714 = vld [vmem:[%s1 + $0x390] sm:$0xff]
      %v715 = vld [vmem:[%s1 + $0x398] sm:$0xff]
      %v716 = vld [vmem:[%s1 + $0x3a0] sm:$0xff]
      %v717 = vld [vmem:[%s1 + $0x3a8] sm:$0xff]
      %v718 = vld [vmem:[%s1 + $0x3b0] sm:$0xff]
      %v719 = vld [vmem:[%s1 + $0x3b8] sm:$0xff]
      %v720 = vld [vmem:[%s1 + $0x3c0] sm:$0xff]
      %v721 = vld [vmem:[%s1 + $0x3c8] sm:$0xff]
      %v722 = vld [vmem:[%s1 + $0x3d0] sm:$0xff]
      %v723 = vld [vmem:[%s1 + $0x3d8] sm:$0xff]
      %v724 = vld [vmem:[%s1 + $0x3e0] sm:$0xff]
      %v725 = vld [vmem:[%s1 + $0x3e8] sm:$0xff]
      %v726 = vld [vmem:[%s1 + $0x3f0] sm:$0xff]
      %v727 = vld [vmem:[%s1 + $0x3f8] sm:$0xff]
      %v728 = vld [vmem:[%s1 + $0x400] sm:$0xff]
      %v729 = vld [vmem:[%s1 + $0x408] sm:$0xff]
      %v730 = vld [vmem:[%s1 + $0x410] sm:$0xff]
      %v731 = vld [vmem:[%s1 + $0x418] sm:$0xff]
      %v732 = vld [vmem:[%s1 + $0x420] sm:$0xff]
      %v733 = vld [vmem:[%s1 + $0x428] sm:$0xff]
      %v734 = vld [vmem:[%s1 + $0x430] sm:$0xff]
      %v735 = vld [vmem:[%s1 + $0x438] sm:$0xff]
      %v736 = vld [vmem:[%s1 + $0x440] sm:$0xff]
      %v737 = vld [vmem:[%s1 + $0x448] sm:$0xff]
      %v738 = vld [vmem:[%s1 + $0x450] sm:$0xff]
      %v739 = vld [vmem:[%s1 + $0x458] sm:$0xff]
      %v740 = vld [vmem:[%s1 + $0x460] sm:$0xff]
      %v741 = vld [vmem:[%s1 + $0x468] sm:$0xff]
      %v742 = vld [vmem:[%s1 + $0x470] sm:$0xff]
      %v743 = vld [vmem:[%s1 + $0x478] sm:$0xff]
      %v744 = vld [vmem:[%s1 + $0x480] sm:$0xff]
      %v745 = vld [vmem:[%s1 + $0x488] sm:$0xff]
      %v746 = vld [vmem:[%s1 + $0x490] sm:$0xff]
      %v747 = vld [vmem:[%s1 + $0x498] sm:$0xff]
      %v748 = vld [vmem:[%s1 + $0x4a0] sm:$0xff]
      %v749 = vld [vmem:[%s1 + $0x4a8] sm:$0xff]
      %v750 = vld [vmem:[%s1 + $0x4b0] sm:$0xff]
      %v751 = vld [vmem:[%s1 + $0x4b8] sm:$0xff]
      %v752 = vld [vmem:[%s1 + $0x4c0] sm:$0xff]
      %v753 = vld [vmem:[%s1 + $0x4c8] sm:$0xff]
      %v754 = vld [vmem:[%s1 + $0x4d0] sm:$0xff]
      %v755 = vld [vmem:[%s1 + $0x4d8] sm:$0xff]
      %v756 = vld [vmem:[%s1 + $0x4e0] sm:$0xff]
      %v757 = vld [vmem:[%s1 + $0x4e8] sm:$0xff]
      %v758 = vld [vmem:[%s1 + $0x4f0] sm:$0xff]
      %v759 = vld [vmem:[%s1 + $0x4f8] sm:$0xff]
      %v760 = vld [vmem:[%s1 + $0x500] sm:$0xff]
      %v761 = vld [vmem:[%s1 + $0x508] sm:$0xff]
      %v762 = vld [vmem:[%s1 + $0x510] sm:$0xff]
      %v763 = vld [vmem:[%s1 + $0x518] sm:$0xff]
      %v764 = vld [vmem:[%s1 + $0x520] sm:$0xff]
      %v765 = vld [vmem:[%s1 + $0x528] sm:$0xff]
      %v766 = vld [vmem:[%s1 + $0x530] sm:$0xff]
      %v767 = vld [vmem:[%s1 + $0x538] sm:$0xff]
      %v768 = vld [vmem:[%s1 + $0x540] sm:$0xff]
      %v769 = vld [vmem:[%s1 + $0x548] sm:$0xff]
      %v770 = vld [vmem:[%s1 + $0x550] sm:$0xff]
      %v771 = vld [vmem:[%s1 + $0x558] sm:$0xff]
      %v772 = vld [vmem:[%s1 + $0x560] sm:$0xff]
      %v773 = vld [vmem:[%s1 + $0x568] sm:$0xff]
      %v774 = vld [vmem:[%s1 + $0x570] sm:$0xff]
      %v775 = vld [vmem:[%s1 + $0x578] sm:$0xff]
      %v776 = vld [vmem:[%s1 + $0x580] sm:$0xff]
      %v777 = vld [vmem:[%s1 + $0x588] sm:$0xff]
      %v778 = vld [vmem:[%s1 + $0x590] sm:$0xff]
      %v779 = vld [vmem:[%s1 + $0x598] sm:$0xff]
      %v780 = vld [vmem:[%s1 + $0x5a0] sm:$0xff]
      %v781 = vld [vmem:[%s1 + $0x5a8] sm:$0xff]
      %v782 = vld [vmem:[%s1 + $0x5b0] sm:$0xff]
      %v783 = vld [vmem:[%s1 + $0x5b8] sm:$0xff]
      %v784 = vld [vmem:[%s1 + $0x5c0] sm:$0xff]
      %v785 = vld [vmem:[%s1 + $0x5c8] sm:$0xff]
      %v786 = vld [vmem:[%s1 + $0x5d0] sm:$0xff]
      %v787 = vld [vmem:[%s1 + $0x5d8] sm:$0xff]
      %v788 = vld [vmem:[%s1 + $0x5e0] sm:$0xff]
      %v789 = vld [vmem:[%s1 + $0x5e8] sm:$0xff]
      %v790 = vld [vmem:[%s1 + $0x5f0] sm:$0xff]
      %v791 = vld [vmem:[%s1 + $0x5f8] sm:$0xff]
      %v792 = vld [vmem:[%s1 + $0x600] sm:$0xff]
      %v793 = vld [vmem:[%s1 + $0x608] sm:$0xff]
      %v794 = vld [vmem:[%s1 + $0x610] sm:$0xff]
      %v795 = vld [vmem:[%s1 + $0x618] sm:$0xff]
      %v796 = vld [vmem:[%s2] sm:$0xf]
      %v798 = vperm.slane %v796, 0
      %v799 = vperm.slane %v796, 1
      %v800 = vperm.slane %v796, 2
      %v801 = vperm.slane %v796, 3
      %v1002 = vunpack.c.l.b16 %v600
      %v1003 = vunpack.c.h.b16 %v600
      %v1004 = vunpack.c.l.b16 %v601
      %v1005 = vunpack.c.h.b16 %v601
      %v1006 = vunpack.c.l.b16 %v602
      %v1007 = vunpack.c.h.b16 %v602
      %v1008 = vunpack.c.l.b16 %v603
      %v1009 = vunpack.c.h.b16 %v603
      %v1010 = vunpack.c.l.b16 %v604
      %v1011 = vunpack.c.h.b16 %v604
      %v1012 = vunpack.c.l.b16 %v605
      %v1013 = vunpack.c.h.b16 %v605
      %v1014 = vunpack.c.l.b16 %v606
      %v1015 = vunpack.c.h.b16 %v606
      %v1016 = vunpack.c.l.b16 %v607
      %v1017 = vunpack.c.h.b16 %v607
      %v1018 = vunpack.c.l.b16 %v608
      %v1019 = vunpack.c.h.b16 %v608
      %v1020 = vunpack.c.l.b16 %v609
      %v1021 = vunpack.c.h.b16 %v609
      %v1022 = vunpack.c.l.b16 %v610
      %v1023 = vunpack.c.h.b16 %v610
      %v1024 = vunpack.c.l.b16 %v611
      %v1025 = vunpack.c.h.b16 %v611
      %v1026 = vunpack.c.l.b16 %v612
      %v1027 = vunpack.c.h.b16 %v612
      %v1028 = vunpack.c.l.b16 %v613
      %v1029 = vunpack.c.h.b16 %v613
      %v1030 = vunpack.c.l.b16 %v614
      %v1031 = vunpack.c.h.b16 %v614
      %v1032 = vunpack.c.l.b16 %v615
      %v1033 = vunpack.c.h.b16 %v615
      %v1034 = vunpack.c.l.b16 %v616
      %v1035 = vunpack.c.h.b16 %v616
      %v1036 = vunpack.c.l.b16 %v617
      %v1037 = vunpack.c.h.b16 %v617
      %v1038 = vunpack.c.l.b16 %v618
      %v1039 = vunpack.c.h.b16 %v618
      %v1040 = vunpack.c.l.b16 %v619
      %v1041 = vunpack.c.h.b16 %v619
      %v1042 = vunpack.c.l.b16 %v620
      %v1043 = vunpack.c.h.b16 %v620
      %v1044 = vunpack.c.l.b16 %v621
      %v1045 = vunpack.c.h.b16 %v621
      %v1046 = vunpack.c.l.b16 %v622
      %v1047 = vunpack.c.h.b16 %v622
      %v1048 = vunpack.c.l.b16 %v623
      %v1049 = vunpack.c.h.b16 %v623
      %v1050 = vunpack.c.l.b16 %v624
      %v1051 = vunpack.c.h.b16 %v624
      %v1052 = vunpack.c.l.b16 %v625
      %v1053 = vunpack.c.h.b16 %v625
      %v1054 = vunpack.c.l.b16 %v626
      %v1055 = vunpack.c.h.b16 %v626
      %v1056 = vunpack.c.l.b16 %v627
      %v1057 = vunpack.c.h.b16 %v627
      %v1058 = vunpack.c.l.b16 %v628
      %v1059 = vunpack.c.h.b16 %v628
      %v1060 = vunpack.c.l.b16 %v629
      %v1061 = vunpack.c.h.b16 %v629
      %v1062 = vunpack.c.l.b16 %v630
      %v1063 = vunpack.c.h.b16 %v630
      %v1064 = vunpack.c.l.b16 %v631
      %v1065 = vunpack.c.h.b16 %v631
      %v1066 = vunpack.c.l.b16 %v632
      %v1067 = vunpack.c.h.b16 %v632
      %v1068 = vunpack.c.l.b16 %v633
      %v1069 = vunpack.c.h.b16 %v633
      %v1070 = vunpack.c.l.b16 %v634
      %v1071 = vunpack.c.h.b16 %v634
      %v1072 = vunpack.c.l.b16 %v635
      %v1073 = vunpack.c.h.b16 %v635
      %v1074 = vunpack.c.l.b16 %v636
      %v1075 = vunpack.c.h.b16 %v636
      %v1076 = vunpack.c.l.b16 %v637
      %v1077 = vunpack.c.h.b16 %v637
      %v1078 = vunpack.c.l.b16 %v638
      %v1079 = vunpack.c.h.b16 %v638
      %v1080 = vunpack.c.l.b16 %v639
      %v1081 = vunpack.c.h.b16 %v639
      %v1082 = vunpack.c.l.b16 %v640
      %v1083 = vunpack.c.h.b16 %v640
      %v1084 = vunpack.c.l.b16 %v641
      %v1085 = vunpack.c.h.b16 %v641
      %v1086 = vunpack.c.l.b16 %v642
      %v1087 = vunpack.c.h.b16 %v642
      %v1088 = vunpack.c.l.b16 %v643
      %v1089 = vunpack.c.h.b16 %v643
      %v1090 = vunpack.c.l.b16 %v644
      %v1091 = vunpack.c.h.b16 %v644
      %v1092 = vunpack.c.l.b16 %v645
      %v1093 = vunpack.c.h.b16 %v645
      %v1094 = vunpack.c.l.b16 %v646
      %v1095 = vunpack.c.h.b16 %v646
      %v1096 = vunpack.c.l.b16 %v647
      %v1097 = vunpack.c.h.b16 %v647
      %v1098 = vunpack.c.l.b16 %v648
      %v1099 = vunpack.c.h.b16 %v648
      %v1100 = vunpack.c.l.b16 %v649
      %v1101 = vunpack.c.h.b16 %v649
      %v1102 = vunpack.c.l.b16 %v650
      %v1103 = vunpack.c.h.b16 %v650
      %v1104 = vunpack.c.l.b16 %v651
      %v1105 = vunpack.c.h.b16 %v651
      %v1106 = vunpack.c.l.b16 %v652
      %v1107 = vunpack.c.h.b16 %v652
      %v1108 = vunpack.c.l.b16 %v653
      %v1109 = vunpack.c.h.b16 %v653
      %v1110 = vunpack.c.l.b16 %v654
      %v1111 = vunpack.c.h.b16 %v654
      %v1112 = vunpack.c.l.b16 %v655
      %v1113 = vunpack.c.h.b16 %v655
      %v1114 = vunpack.c.l.b16 %v656
      %v1115 = vunpack.c.h.b16 %v656
      %v1116 = vunpack.c.l.b16 %v657
      %v1117 = vunpack.c.h.b16 %v657
      %v1118 = vunpack.c.l.b16 %v658
      %v1119 = vunpack.c.h.b16 %v658
      %v1120 = vunpack.c.l.b16 %v659
      %v1121 = vunpack.c.h.b16 %v659
      %v1122 = vunpack.c.l.b16 %v660
      %v1123 = vunpack.c.h.b16 %v660
      %v1124 = vunpack.c.l.b16 %v661
      %v1125 = vunpack.c.h.b16 %v661
      %v1126 = vunpack.c.l.b16 %v662
      %v1127 = vunpack.c.h.b16 %v662
      %v1128 = vunpack.c.l.b16 %v663
      %v1129 = vunpack.c.h.b16 %v663
      %v1130 = vunpack.c.l.b16 %v664
      %v1131 = vunpack.c.h.b16 %v664
      %v1132 = vunpack.c.l.b16 %v665
      %v1133 = vunpack.c.h.b16 %v665
      %v1134 = vunpack.c.l.b16 %v666
      %v1135 = vunpack.c.h.b16 %v666
      %v1136 = vunpack.c.l.b16 %v667
      %v1137 = vunpack.c.h.b16 %v667
      %v1138 = vunpack.c.l.b16 %v668
      %v1139 = vunpack.c.h.b16 %v668
      %v1140 = vunpack.c.l.b16 %v669
      %v1141 = vunpack.c.h.b16 %v669
      %v1142 = vunpack.c.l.b16 %v670
      %v1143 = vunpack.c.h.b16 %v670
      %v1144 = vunpack.c.l.b16 %v671
      %v1145 = vunpack.c.h.b16 %v671
      %v1146 = vunpack.c.l.b16 %v672
      %v1147 = vunpack.c.h.b16 %v672
      %v1148 = vunpack.c.l.b16 %v673
      %v1149 = vunpack.c.h.b16 %v673
      %v1150 = vunpack.c.l.b16 %v674
      %v1151 = vunpack.c.h.b16 %v674
      %v1152 = vunpack.c.l.b16 %v675
      %v1153 = vunpack.c.h.b16 %v675
      %v1154 = vunpack.c.l.b16 %v676
      %v1155 = vunpack.c.h.b16 %v676
      %v1156 = vunpack.c.l.b16 %v677
      %v1157 = vunpack.c.h.b16 %v677
      %v1158 = vunpack.c.l.b16 %v678
      %v1159 = vunpack.c.h.b16 %v678
      %v1160 = vunpack.c.l.b16 %v679
      %v1161 = vunpack.c.h.b16 %v679
      %v1162 = vunpack.c.l.b16 %v680
      %v1163 = vunpack.c.h.b16 %v680
      %v1164 = vunpack.c.l.b16 %v681
      %v1165 = vunpack.c.h.b16 %v681
      %v1166 = vunpack.c.l.b16 %v682
      %v1167 = vunpack.c.h.b16 %v682
      %v1168 = vunpack.c.l.b16 %v683
      %v1169 = vunpack.c.h.b16 %v683
      %v1170 = vunpack.c.l.b16 %v684
      %v1171 = vunpack.c.h.b16 %v684
      %v1172 = vunpack.c.l.b16 %v685
      %v1173 = vunpack.c.h.b16 %v685
      %v1174 = vunpack.c.l.b16 %v686
      %v1175 = vunpack.c.h.b16 %v686
      %v1176 = vunpack.c.l.b16 %v687
      %v1177 = vunpack.c.h.b16 %v687
      %v1178 = vunpack.c.l.b16 %v688
      %v1179 = vunpack.c.h.b16 %v688
      %v1180 = vunpack.c.l.b16 %v689
      %v1181 = vunpack.c.h.b16 %v689
      %v1182 = vunpack.c.l.b16 %v690
      %v1183 = vunpack.c.h.b16 %v690
      %v1184 = vunpack.c.l.b16 %v691
      %v1185 = vunpack.c.h.b16 %v691
      %v1186 = vunpack.c.l.b16 %v692
      %v1187 = vunpack.c.h.b16 %v692
      %v1188 = vunpack.c.l.b16 %v693
      %v1189 = vunpack.c.h.b16 %v693
      %v1190 = vunpack.c.l.b16 %v694
      %v1191 = vunpack.c.h.b16 %v694
      %v1192 = vunpack.c.l.b16 %v695
      %v1193 = vunpack.c.h.b16 %v695
      %v1194 = vunpack.c.l.b16 %v696
      %v1195 = vunpack.c.h.b16 %v696
      %v1196 = vunpack.c.l.b16 %v697
      %v1197 = vunpack.c.h.b16 %v697
      %v1198 = vunpack.c.l.b16 %v698
      %v1199 = vunpack.c.h.b16 %v698
      %v1200 = vunpack.c.l.b16 %v699
      %v1201 = vunpack.c.h.b16 %v699
      %v1202 = vunpack.c.l.b16 %v700
      %v1203 = vunpack.c.h.b16 %v700
      %v1204 = vunpack.c.l.b16 %v701
      %v1205 = vunpack.c.h.b16 %v701
      %v1206 = vunpack.c.l.b16 %v702
      %v1207 = vunpack.c.h.b16 %v702
      %v1208 = vunpack.c.l.b16 %v703
      %v1209 = vunpack.c.h.b16 %v703
      %v1210 = vunpack.c.l.b16 %v704
      %v1211 = vunpack.c.h.b16 %v704
      %v1212 = vunpack.c.l.b16 %v705
      %v1213 = vunpack.c.h.b16 %v705
      %v1214 = vunpack.c.l.b16 %v706
      %v1215 = vunpack.c.h.b16 %v706
      %v1216 = vunpack.c.l.b16 %v707
      %v1217 = vunpack.c.h.b16 %v707
      %v1218 = vunpack.c.l.b16 %v708
      %v1219 = vunpack.c.h.b16 %v708
      %v1220 = vunpack.c.l.b16 %v709
      %v1221 = vunpack.c.h.b16 %v709
      %v1222 = vunpack.c.l.b16 %v710
      %v1223 = vunpack.c.h.b16 %v710
      %v1224 = vunpack.c.l.b16 %v711
      %v1225 = vunpack.c.h.b16 %v711
      %v1226 = vunpack.c.l.b16 %v712
      %v1227 = vunpack.c.h.b16 %v712
      %v1228 = vunpack.c.l.b16 %v713
      %v1229 = vunpack.c.h.b16 %v713
      %v1230 = vunpack.c.l.b16 %v714
      %v1231 = vunpack.c.h.b16 %v714
      %v1232 = vunpack.c.l.b16 %v715
      %v1233 = vunpack.c.h.b16 %v715
      %v1234 = vunpack.c.l.b16 %v716
      %v1235 = vunpack.c.h.b16 %v716
      %v1236 = vunpack.c.l.b16 %v717
      %v1237 = vunpack.c.h.b16 %v717
      %v1238 = vunpack.c.l.b16 %v718
      %v1239 = vunpack.c.h.b16 %v718
      %v1240 = vunpack.c.l.b16 %v719
      %v1241 = vunpack.c.h.b16 %v719
      %v1242 = vunpack.c.l.b16 %v720
      %v1243 = vunpack.c.h.b16 %v720
      %v1244 = vunpack.c.l.b16 %v721
      %v1245 = vunpack.c.h.b16 %v721
      %v1246 = vunpack.c.l.b16 %v722
      %v1247 = vunpack.c.h.b16 %v722
      %v1248 = vunpack.c.l.b16 %v723
      %v1249 = vunpack.c.h.b16 %v723
      %v1250 = vunpack.c.l.b16 %v724
      %v1251 = vunpack.c.h.b16 %v724
      %v1252 = vunpack.c.l.b16 %v725
      %v1253 = vunpack.c.h.b16 %v725
      %v1254 = vunpack.c.l.b16 %v726
      %v1255 = vunpack.c.h.b16 %v726
      %v1256 = vunpack.c.l.b16 %v727
      %v1257 = vunpack.c.h.b16 %v727
      %v1258 = vunpack.c.l.b16 %v728
      %v1259 = vunpack.c.h.b16 %v728
      %v1260 = vunpack.c.l.b16 %v729
      %v1261 = vunpack.c.h.b16 %v729
      %v1262 = vunpack.c.l.b16 %v730
      %v1263 = vunpack.c.h.b16 %v730
      %v1264 = vunpack.c.l.b16 %v731
      %v1265 = vunpack.c.h.b16 %v731
      %v1266 = vunpack.c.l.b16 %v732
      %v1267 = vunpack.c.h.b16 %v732
      %v1268 = vunpack.c.l.b16 %v733
      %v1269 = vunpack.c.h.b16 %v733
      %v1270 = vunpack.c.l.b16 %v734
      %v1271 = vunpack.c.h.b16 %v734
      %v1272 = vunpack.c.l.b16 %v735
      %v1273 = vunpack.c.h.b16 %v735
      %v1274 = vunpack.c.l.b16 %v736
      %v1275 = vunpack.c.h.b16 %v736
      %v1276 = vunpack.c.l.b16 %v737
      %v1277 = vunpack.c.h.b16 %v737
      %v1278 = vunpack.c.l.b16 %v738
      %v1279 = vunpack.c.h.b16 %v738
      %v1280 = vunpack.c.l.b16 %v739
      %v1281 = vunpack.c.h.b16 %v739
      %v1282 = vunpack.c.l.b16 %v740
      %v1283 = vunpack.c.h.b16 %v740
      %v1284 = vunpack.c.l.b16 %v741
      %v1285 = vunpack.c.h.b16 %v741
      %v1286 = vunpack.c.l.b16 %v742
      %v1287 = vunpack.c.h.b16 %v742
      %v1288 = vunpack.c.l.b16 %v743
      %v1289 = vunpack.c.h.b16 %v743
      %v1290 = vunpack.c.l.b16 %v744
      %v1291 = vunpack.c.h.b16 %v744
      %v1292 = vunpack.c.l.b16 %v745
      %v1293 = vunpack.c.h.b16 %v745
      %v1294 = vunpack.c.l.b16 %v746
      %v1295 = vunpack.c.h.b16 %v746
      %v1296 = vunpack.c.l.b16 %v747
      %v1297 = vunpack.c.h.b16 %v747
      %v1298 = vunpack.c.l.b16 %v748
      %v1299 = vunpack.c.h.b16 %v748
      %v1300 = vunpack.c.l.b16 %v749
      %v1301 = vunpack.c.h.b16 %v749
      %v1302 = vunpack.c.l.b16 %v750
      %v1303 = vunpack.c.h.b16 %v750
      %v1304 = vunpack.c.l.b16 %v751
      %v1305 = vunpack.c.h.b16 %v751
      %v1306 = vunpack.c.l.b16 %v752
      %v1307 = vunpack.c.h.b16 %v752
      %v1308 = vunpack.c.l.b16 %v753
      %v1309 = vunpack.c.h.b16 %v753
      %v1310 = vunpack.c.l.b16 %v754
      %v1311 = vunpack.c.h.b16 %v754
      %v1312 = vunpack.c.l.b16 %v755
      %v1313 = vunpack.c.h.b16 %v755
      %v1314 = vunpack.c.l.b16 %v756
      %v1315 = vunpack.c.h.b16 %v756
      %v1316 = vunpack.c.l.b16 %v757
      %v1317 = vunpack.c.h.b16 %v757
      %v1318 = vunpack.c.l.b16 %v758
      %v1319 = vunpack.c.h.b16 %v758
      %v1320 = vunpack.c.l.b16 %v759
      %v1321 = vunpack.c.h.b16 %v759
      %v1322 = vunpack.c.l.b16 %v760
      %v1323 = vunpack.c.h.b16 %v760
      %v1324 = vunpack.c.l.b16 %v761
      %v1325 = vunpack.c.h.b16 %v761
      %v1326 = vunpack.c.l.b16 %v762
      %v1327 = vunpack.c.h.b16 %v762
      %v1328 = vunpack.c.l.b16 %v763
      %v1329 = vunpack.c.h.b16 %v763
      %v1330 = vunpack.c.l.b16 %v764
      %v1331 = vunpack.c.h.b16 %v764
      %v1332 = vunpack.c.l.b16 %v765
      %v1333 = vunpack.c.h.b16 %v765
      %v1334 = vunpack.c.l.b16 %v766
      %v1335 = vunpack.c.h.b16 %v766
      %v1336 = vunpack.c.l.b16 %v767
      %v1337 = vunpack.c.h.b16 %v767
      %v1338 = vunpack.c.l.b16 %v768
      %v1339 = vunpack.c.h.b16 %v768
      %v1340 = vunpack.c.l.b16 %v769
      %v1341 = vunpack.c.h.b16 %v769
      %v1342 = vunpack.c.l.b16 %v770
      %v1343 = vunpack.c.h.b16 %v770
      %v1344 = vunpack.c.l.b16 %v771
      %v1345 = vunpack.c.h.b16 %v771
      %v1346 = vunpack.c.l.b16 %v772
      %v1347 = vunpack.c.h.b16 %v772
      %v1348 = vunpack.c.l.b16 %v773
      %v1349 = vunpack.c.h.b16 %v773
      %v1350 = vunpack.c.l.b16 %v774
      %v1351 = vunpack.c.h.b16 %v774
      %v1352 = vunpack.c.l.b16 %v775
      %v1353 = vunpack.c.h.b16 %v775
      %v1354 = vunpack.c.l.b16 %v776
      %v1355 = vunpack.c.h.b16 %v776
      %v1356 = vunpack.c.l.b16 %v777
      %v1357 = vunpack.c.h.b16 %v777
      %v1358 = vunpack.c.l.b16 %v778
      %v1359 = vunpack.c.h.b16 %v778
      %v1360 = vunpack.c.l.b16 %v779
      %v1361 = vunpack.c.h.b16 %v779
      %v1362 = vunpack.c.l.b16 %v780
      %v1363 = vunpack.c.h.b16 %v780
      %v1364 = vunpack.c.l.b16 %v781
      %v1365 = vunpack.c.h.b16 %v781
      %v1366 = vunpack.c.l.b16 %v782
      %v1367 = vunpack.c.h.b16 %v782
      %v1368 = vunpack.c.l.b16 %v783
      %v1369 = vunpack.c.h.b16 %v783
      %v1370 = vunpack.c.l.b16 %v784
      %v1371 = vunpack.c.h.b16 %v784
      %v1372 = vunpack.c.l.b16 %v785
      %v1373 = vunpack.c.h.b16 %v785
      %v1374 = vunpack.c.l.b16 %v786
      %v1375 = vunpack.c.h.b16 %v786
      %v1376 = vunpack.c.l.b16 %v787
      %v1377 = vunpack.c.h.b16 %v787
      %v1378 = vunpack.c.l.b16 %v788
      %v1379 = vunpack.c.h.b16 %v788
      %v1380 = vunpack.c.l.b16 %v789
      %v1381 = vunpack.c.h.b16 %v789
      %v1382 = vunpack.c.l.b16 %v790
      %v1383 = vunpack.c.h.b16 %v790
      %v1384 = vunpack.c.l.b16 %v791
      %v1385 = vunpack.c.h.b16 %v791
      %v1386 = vunpack.c.l.b16 %v792
      %v1387 = vunpack.c.h.b16 %v792
      %v1388 = vunpack.c.l.b16 %v793
      %v1389 = vunpack.c.h.b16 %v793
      %v1390 = vunpack.c.l.b16 %v794
      %v1391 = vunpack.c.h.b16 %v794
      %v1392 = vunpack.c.l.b16 %v795
      %v1393 = vunpack.c.h.b16 %v795
      %v1394 = vpack.c.b16 %v1006, %v1002
      %v1395 = vpack.c.b16 %v1007, %v1003
      %v1396 = vpack.c.b16 %v1008, %v1004
      %v1397 = vpack.c.b16 %v1009, %v1005
      %v1398 = vpack.c.b16 %v1014, %v1010
      %v1399 = vpack.c.b16 %v1015, %v1011
      %v1400 = vpack.c.b16 %v1016, %v1012
      %v1401 = vpack.c.b16 %v1017, %v1013
      %v1402 = vpack.c.b16 %v1022, %v1018
      %v1403 = vpack.c.b16 %v1023, %v1019
      %v1404 = vpack.c.b16 %v1024, %v1020
      %v1405 = vpack.c.b16 %v1025, %v1021
      %v1406 = vpack.c.b16 %v1030, %v1026
      %v1407 = vpack.c.b16 %v1031, %v1027
      %v1408 = vpack.c.b16 %v1032, %v1028
      %v1409 = vpack.c.b16 %v1033, %v1029
      %v1410 = vpack.c.b16 %v1038, %v1034
      %v1411 = vpack.c.b16 %v1039, %v1035
      %v1412 = vpack.c.b16 %v1040, %v1036
      %v1413 = vpack.c.b16 %v1041, %v1037
      %v1414 = vpack.c.b16 %v1046, %v1042
      %v1415 = vpack.c.b16 %v1047, %v1043
      %v1416 = vpack.c.b16 %v1048, %v1044
      %v1417 = vpack.c.b16 %v1049, %v1045
      %v1418 = vpack.c.b16 %v1054, %v1050
      %v1419 = vpack.c.b16 %v1055, %v1051
      %v1420 = vpack.c.b16 %v1056, %v1052
      %v1421 = vpack.c.b16 %v1057, %v1053
      %v1422 = vpack.c.b16 %v1062, %v1058
      %v1423 = vpack.c.b16 %v1063, %v1059
      %v1424 = vpack.c.b16 %v1064, %v1060
      %v1425 = vpack.c.b16 %v1065, %v1061
      %v1426 = vpack.c.b16 %v1070, %v1066
      %v1427 = vpack.c.b16 %v1071, %v1067
      %v1428 = vpack.c.b16 %v1072, %v1068
      %v1429 = vpack.c.b16 %v1073, %v1069
      %v1430 = vpack.c.b16 %v1078, %v1074
      %v1431 = vpack.c.b16 %v1079, %v1075
      %v1432 = vpack.c.b16 %v1080, %v1076
      %v1433 = vpack.c.b16 %v1081, %v1077
      %v1434 = vpack.c.b16 %v1086, %v1082
      %v1435 = vpack.c.b16 %v1087, %v1083
      %v1436 = vpack.c.b16 %v1088, %v1084
      %v1437 = vpack.c.b16 %v1089, %v1085
      %v1438 = vpack.c.b16 %v1094, %v1090
      %v1439 = vpack.c.b16 %v1095, %v1091
      %v1440 = vpack.c.b16 %v1096, %v1092
      %v1441 = vpack.c.b16 %v1097, %v1093
      %v1442 = vpack.c.b16 %v1102, %v1098
      %v1443 = vpack.c.b16 %v1103, %v1099
      %v1444 = vpack.c.b16 %v1104, %v1100
      %v1445 = vpack.c.b16 %v1105, %v1101
      %v1446 = vpack.c.b16 %v1110, %v1106
      %v1447 = vpack.c.b16 %v1111, %v1107
      %v1448 = vpack.c.b16 %v1112, %v1108
      %v1449 = vpack.c.b16 %v1113, %v1109
      %v1450 = vpack.c.b16 %v1118, %v1114
      %v1451 = vpack.c.b16 %v1119, %v1115
      %v1452 = vpack.c.b16 %v1120, %v1116
      %v1453 = vpack.c.b16 %v1121, %v1117
      %v1454 = vpack.c.b16 %v1126, %v1122
      %v1455 = vpack.c.b16 %v1127, %v1123
      %v1456 = vpack.c.b16 %v1128, %v1124
      %v1457 = vpack.c.b16 %v1129, %v1125
      %v1458 = vpack.c.b16 %v1134, %v1130
      %v1459 = vpack.c.b16 %v1135, %v1131
      %v1460 = vpack.c.b16 %v1136, %v1132
      %v1461 = vpack.c.b16 %v1137, %v1133
      %v1462 = vpack.c.b16 %v1142, %v1138
      %v1463 = vpack.c.b16 %v1143, %v1139
      %v1464 = vpack.c.b16 %v1144, %v1140
      %v1465 = vpack.c.b16 %v1145, %v1141
      %v1466 = vpack.c.b16 %v1150, %v1146
      %v1467 = vpack.c.b16 %v1151, %v1147
      %v1468 = vpack.c.b16 %v1152, %v1148
      %v1469 = vpack.c.b16 %v1153, %v1149
      %v1470 = vpack.c.b16 %v1158, %v1154
      %v1471 = vpack.c.b16 %v1159, %v1155
      %v1472 = vpack.c.b16 %v1160, %v1156
      %v1473 = vpack.c.b16 %v1161, %v1157
      %v1474 = vpack.c.b16 %v1166, %v1162
      %v1475 = vpack.c.b16 %v1167, %v1163
      %v1476 = vpack.c.b16 %v1168, %v1164
      %v1477 = vpack.c.b16 %v1169, %v1165
      %v1478 = vpack.c.b16 %v1174, %v1170
      %v1479 = vpack.c.b16 %v1175, %v1171
      %v1480 = vpack.c.b16 %v1176, %v1172
      %v1481 = vpack.c.b16 %v1177, %v1173
      %v1482 = vpack.c.b16 %v1182, %v1178
      %v1483 = vpack.c.b16 %v1183, %v1179
      %v1484 = vpack.c.b16 %v1184, %v1180
      %v1485 = vpack.c.b16 %v1185, %v1181
      %v1486 = vpack.c.b16 %v1190, %v1186
      %v1487 = vpack.c.b16 %v1191, %v1187
      %v1488 = vpack.c.b16 %v1192, %v1188
      %v1489 = vpack.c.b16 %v1193, %v1189
      %v1490 = vpack.c.b16 %v1198, %v1194
      %v1491 = vpack.c.b16 %v1199, %v1195
      %v1492 = vpack.c.b16 %v1200, %v1196
      %v1493 = vpack.c.b16 %v1201, %v1197
      %v1494 = vpack.c.b16 %v1206, %v1202
      %v1495 = vpack.c.b16 %v1207, %v1203
      %v1496 = vpack.c.b16 %v1208, %v1204
      %v1497 = vpack.c.b16 %v1209, %v1205
      %v1498 = vpack.c.b16 %v1214, %v1210
      %v1499 = vpack.c.b16 %v1215, %v1211
      %v1500 = vpack.c.b16 %v1216, %v1212
      %v1501 = vpack.c.b16 %v1217, %v1213
      %v1502 = vpack.c.b16 %v1222, %v1218
      %v1503 = vpack.c.b16 %v1223, %v1219
      %v1504 = vpack.c.b16 %v1224, %v1220
      %v1505 = vpack.c.b16 %v1225, %v1221
      %v1506 = vpack.c.b16 %v1230, %v1226
      %v1507 = vpack.c.b16 %v1231, %v1227
      %v1508 = vpack.c.b16 %v1232, %v1228
      %v1509 = vpack.c.b16 %v1233, %v1229
      %v1510 = vpack.c.b16 %v1238, %v1234
      %v1511 = vpack.c.b16 %v1239, %v1235
      %v1512 = vpack.c.b16 %v1240, %v1236
      %v1513 = vpack.c.b16 %v1241, %v1237
      %v1514 = vpack.c.b16 %v1246, %v1242
      %v1515 = vpack.c.b16 %v1247, %v1243
      %v1516 = vpack.c.b16 %v1248, %v1244
      %v1517 = vpack.c.b16 %v1249, %v1245
      %v1518 = vpack.c.b16 %v1254, %v1250
      %v1519 = vpack.c.b16 %v1255, %v1251
      %v1520 = vpack.c.b16 %v1256, %v1252
      %v1521 = vpack.c.b16 %v1257, %v1253
      %v1522 = vpack.c.b16 %v1262, %v1258
      %v1523 = vpack.c.b16 %v1263, %v1259
      %v1524 = vpack.c.b16 %v1264, %v1260
      %v1525 = vpack.c.b16 %v1265, %v1261
      %v1526 = vpack.c.b16 %v1270, %v1266
      %v1527 = vpack.c.b16 %v1271, %v1267
      %v1528 = vpack.c.b16 %v1272, %v1268
      %v1529 = vpack.c.b16 %v1273, %v1269
      %v1530 = vpack.c.b16 %v1278, %v1274
      %v1531 = vpack.c.b16 %v1279, %v1275
      %v1532 = vpack.c.b16 %v1280, %v1276
      %v1533 = vpack.c.b16 %v1281, %v1277
      %v1534 = vpack.c.b16 %v1286, %v1282
      %v1535 = vpack.c.b16 %v1287, %v1283
      %v1536 = vpack.c.b16 %v1288, %v1284
      %v1537 = vpack.c.b16 %v1289, %v1285
      %v1538 = vpack.c.b16 %v1294, %v1290
      %v1539 = vpack.c.b16 %v1295, %v1291
      %v1540 = vpack.c.b16 %v1296, %v1292
      %v1541 = vpack.c.b16 %v1297, %v1293
      %v1542 = vpack.c.b16 %v1302, %v1298
      %v1543 = vpack.c.b16 %v1303, %v1299
      %v1544 = vpack.c.b16 %v1304, %v1300
      %v1545 = vpack.c.b16 %v1305, %v1301
      %v1546 = vpack.c.b16 %v1310, %v1306
      %v1547 = vpack.c.b16 %v1311, %v1307
      %v1548 = vpack.c.b16 %v1312, %v1308
      %v1549 = vpack.c.b16 %v1313, %v1309
      %v1550 = vpack.c.b16 %v1318, %v1314
      %v1551 = vpack.c.b16 %v1319, %v1315
      %v1552 = vpack.c.b16 %v1320, %v1316
      %v1553 = vpack.c.b16 %v1321, %v1317
      %v1554 = vpack.c.b16 %v1326, %v1322
      %v1555 = vpack.c.b16 %v1327, %v1323
      %v1556 = vpack.c.b16 %v1328, %v1324
      %v1557 = vpack.c.b16 %v1329, %v1325
      %v1558 = vpack.c.b16 %v1334, %v1330
      %v1559 = vpack.c.b16 %v1335, %v1331
      %v1560 = vpack.c.b16 %v1336, %v1332
      %v1561 = vpack.c.b16 %v1337, %v1333
      %v1562 = vpack.c.b16 %v1342, %v1338
      %v1563 = vpack.c.b16 %v1343, %v1339
      %v1564 = vpack.c.b16 %v1344, %v1340
      %v1565 = vpack.c.b16 %v1345, %v1341
      %v1566 = vpack.c.b16 %v1350, %v1346
      %v1567 = vpack.c.b16 %v1351, %v1347
      %v1568 = vpack.c.b16 %v1352, %v1348
      %v1569 = vpack.c.b16 %v1353, %v1349
      %v1570 = vpack.c.b16 %v1358, %v1354
      %v1571 = vpack.c.b16 %v1359, %v1355
      %v1572 = vpack.c.b16 %v1360, %v1356
      %v1573 = vpack.c.b16 %v1361, %v1357
      %v1574 = vpack.c.b16 %v1366, %v1362
      %v1575 = vpack.c.b16 %v1367, %v1363
      %v1576 = vpack.c.b16 %v1368, %v1364
      %v1577 = vpack.c.b16 %v1369, %v1365
      %v1578 = vpack.c.b16 %v1374, %v1370
      %v1579 = vpack.c.b16 %v1375, %v1371
      %v1580 = vpack.c.b16 %v1376, %v1372
      %v1581 = vpack.c.b16 %v1377, %v1373
      %v1582 = vpack.c.b16 %v1382, %v1378
      %v1583 = vpack.c.b16 %v1383, %v1379
      %v1584 = vpack.c.b16 %v1384, %v1380
      %v1585 = vpack.c.b16 %v1385, %v1381
      %v1586 = vpack.c.b16 %v1390, %v1386
      %v1587 = vpack.c.b16 %v1391, %v1387
      %v1588 = vpack.c.b16 %v1392, %v1388
      %v1589 = vpack.c.b16 %v1393, %v1389
      %vm1786 = vcmask 130048
      %v1788 = vsel %vm1786, %v550, 0
      %v1791 = vsel %vm1786, %v557, 0
      %v1794 = vsel %vm1786, %v564, 0
      %v1797 = vsel %vm1786, %v571, 0
      %v1800 = vsel %vm1786, %v578, 0
      %v1803 = vsel %vm1786, %v585, 0
      %v1806 = vsel %vm1786, %v592, 0
      %v1809 = vsel %vm1786, %v599, 0
      %1811 = vmatpush.bf16.msra.mxu0 %v1422
      %1812 = vmatpush.bf16.msra.mxu0 %v1418
      %1813 = vmatpush.bf16.msra.mxu0 %v1414
      %1814 = vmatpush.bf16.msra.mxu0 %v1410
      %1815 = vmatpush.bf16.msra.mxu0 %v1406
      %1816 = vmatpush.bf16.msra.mxu0 %v1402
      %1817 = vmatpush.bf16.msra.mxu0 %v1398
      %1818 = vmatpush.bf16.msra.mxu0 %v1394
      %1819 = vmatmul.bf16.gmra.mxu0 %v544
      %v1820 = vpop.f32.mrf.mxu0
      %v1821 = vadd.f32 %v798, %v1820
      %v1822 = vpop.f32.mrf.mxu0
      %v1823 = vadd.f32 %v798, %v1822
      %1824 = vmatmul.bf16.gmra.mxu0 %v551
      %v1825 = vpop.f32.mrf.mxu0
      %v1826 = vadd.f32 %v798, %v1825
      %v1827 = vpop.f32.mrf.mxu0
      %v1828 = vadd.f32 %v798, %v1827
      %1829 = vmatmul.bf16.gmra.mxu0 %v558
      %v1830 = vpop.f32.mrf.mxu0
      %v1831 = vadd.f32 %v798, %v1830
      %v1832 = vpop.f32.mrf.mxu0
      %v1833 = vadd.f32 %v798, %v1832
      %1834 = vmatmul.bf16.gmra.mxu0 %v565
      %v1835 = vpop.f32.mrf.mxu0
      %v1836 = vadd.f32 %v798, %v1835
      %v1837 = vpop.f32.mrf.mxu0
      %v1838 = vadd.f32 %v798, %v1837
      %1839 = vmatmul.bf16.gmra.mxu0 %v572
      %v1840 = vpop.f32.mrf.mxu0
      %v1841 = vadd.f32 %v798, %v1840
      %v1842 = vpop.f32.mrf.mxu0
      %v1843 = vadd.f32 %v798, %v1842
      %1844 = vmatmul.bf16.gmra.mxu0 %v579
      %v1845 = vpop.f32.mrf.mxu0
      %v1846 = vadd.f32 %v798, %v1845
      %v1847 = vpop.f32.mrf.mxu0
      %v1848 = vadd.f32 %v798, %v1847
      %1849 = vmatmul.bf16.gmra.mxu0 %v586
      %v1850 = vpop.f32.mrf.mxu0
      %v1851 = vadd.f32 %v798, %v1850
      %v1852 = vpop.f32.mrf.mxu0
      %v1853 = vadd.f32 %v798, %v1852
      %1854 = vmatmul.bf16.gmra.mxu0 %v593
      %v1855 = vpop.f32.mrf.mxu0
      %v1856 = vadd.f32 %v798, %v1855
      %v1857 = vpop.f32.mrf.mxu0
      %v1858 = vadd.f32 %v798, %v1857
      %1859 = vdwg.mxu0
      %1860 = vmatpush.bf16.msra.mxu0 %v1454
      %1861 = vmatpush.bf16.msra.mxu0 %v1450
      %1862 = vmatpush.bf16.msra.mxu0 %v1446
      %1863 = vmatpush.bf16.msra.mxu0 %v1442
      %1864 = vmatpush.bf16.msra.mxu0 %v1438
      %1865 = vmatpush.bf16.msra.mxu0 %v1434
      %1866 = vmatpush.bf16.msra.mxu0 %v1430
      %1867 = vmatpush.bf16.msra.mxu0 %v1426
      %1868 = vmatmul.bf16.gmra.mxu0 %v545
      %v1869 = vpop.f32.mrf.mxu0
      %v1870 = vadd.f32 %v1821, %v1869
      %v1871 = vpop.f32.mrf.mxu0
      %v1872 = vadd.f32 %v1823, %v1871
      %1873 = vmatmul.bf16.gmra.mxu0 %v552
      %v1874 = vpop.f32.mrf.mxu0
      %v1875 = vadd.f32 %v1826, %v1874
      %v1876 = vpop.f32.mrf.mxu0
      %v1877 = vadd.f32 %v1828, %v1876
      %1878 = vmatmul.bf16.gmra.mxu0 %v559
      %v1879 = vpop.f32.mrf.mxu0
      %v1880 = vadd.f32 %v1831, %v1879
      %v1881 = vpop.f32.mrf.mxu0
      %v1882 = vadd.f32 %v1833, %v1881
      %1883 = vmatmul.bf16.gmra.mxu0 %v566
      %v1884 = vpop.f32.mrf.mxu0
      %v1885 = vadd.f32 %v1836, %v1884
      %v1886 = vpop.f32.mrf.mxu0
      %v1887 = vadd.f32 %v1838, %v1886
      %1888 = vmatmul.bf16.gmra.mxu0 %v573
      %v1889 = vpop.f32.mrf.mxu0
      %v1890 = vadd.f32 %v1841, %v1889
      %v1891 = vpop.f32.mrf.mxu0
      %v1892 = vadd.f32 %v1843, %v1891
      %1893 = vmatmul.bf16.gmra.mxu0 %v580
      %v1894 = vpop.f32.mrf.mxu0
      %v1895 = vadd.f32 %v1846, %v1894
      %v1896 = vpop.f32.mrf.mxu0
      %v1897 = vadd.f32 %v1848, %v1896
      %1898 = vmatmul.bf16.gmra.mxu0 %v587
      %v1899 = vpop.f32.mrf.mxu0
      %v1900 = vadd.f32 %v1851, %v1899
      %v1901 = vpop.f32.mrf.mxu0
      %v1902 = vadd.f32 %v1853, %v1901
      %1903 = vmatmul.bf16.gmra.mxu0 %v594
      %v1904 = vpop.f32.mrf.mxu0
      %v1905 = vadd.f32 %v1856, %v1904
      %v1906 = vpop.f32.mrf.mxu0
      %v1907 = vadd.f32 %v1858, %v1906
      %1908 = vdwg.mxu0
      %1909 = vmatpush.bf16.msra.mxu0 %v1486
      %1910 = vmatpush.bf16.msra.mxu0 %v1482
      %1911 = vmatpush.bf16.msra.mxu0 %v1478
      %1912 = vmatpush.bf16.msra.mxu0 %v1474
      %1913 = vmatpush.bf16.msra.mxu0 %v1470
      %1914 = vmatpush.bf16.msra.mxu0 %v1466
      %1915 = vmatpush.bf16.msra.mxu0 %v1462
      %1916 = vmatpush.bf16.msra.mxu0 %v1458
      %1917 = vmatmul.bf16.gmra.mxu0 %v546
      %v1918 = vpop.f32.mrf.mxu0
      %v1919 = vadd.f32 %v1870, %v1918
      %v1920 = vpop.f32.mrf.mxu0
      %v1921 = vadd.f32 %v1872, %v1920
      %1922 = vmatmul.bf16.gmra.mxu0 %v553
      %v1923 = vpop.f32.mrf.mxu0
      %v1924 = vadd.f32 %v1875, %v1923
      %v1925 = vpop.f32.mrf.mxu0
      %v1926 = vadd.f32 %v1877, %v1925
      %1927 = vmatmul.bf16.gmra.mxu0 %v560
      %v1928 = vpop.f32.mrf.mxu0
      %v1929 = vadd.f32 %v1880, %v1928
      %v1930 = vpop.f32.mrf.mxu0
      %v1931 = vadd.f32 %v1882, %v1930
      %1932 = vmatmul.bf16.gmra.mxu0 %v567
      %v1933 = vpop.f32.mrf.mxu0
      %v1934 = vadd.f32 %v1885, %v1933
      %v1935 = vpop.f32.mrf.mxu0
      %v1936 = vadd.f32 %v1887, %v1935
      %1937 = vmatmul.bf16.gmra.mxu0 %v574
      %v1938 = vpop.f32.mrf.mxu0
      %v1939 = vadd.f32 %v1890, %v1938
      %v1940 = vpop.f32.mrf.mxu0
      %v1941 = vadd.f32 %v1892, %v1940
      %1942 = vmatmul.bf16.gmra.mxu0 %v581
      %v1943 = vpop.f32.mrf.mxu0
      %v1944 = vadd.f32 %v1895, %v1943
      %v1945 = vpop.f32.mrf.mxu0
      %v1946 = vadd.f32 %v1897, %v1945
      %1947 = vmatmul.bf16.gmra.mxu0 %v588
      %v1948 = vpop.f32.mrf.mxu0
      %v1949 = vadd.f32 %v1900, %v1948
      %v1950 = vpop.f32.mrf.mxu0
      %v1951 = vadd.f32 %v1902, %v1950
      %1952 = vmatmul.bf16.gmra.mxu0 %v595
      %v1953 = vpop.f32.mrf.mxu0
      %v1954 = vadd.f32 %v1905, %v1953
      %v1955 = vpop.f32.mrf.mxu0
      %v1956 = vadd.f32 %v1907, %v1955
      %1957 = vdwg.mxu0
      %1958 = vmatpush.bf16.msra.mxu0 %v1518
      %1959 = vmatpush.bf16.msra.mxu0 %v1514
      %1960 = vmatpush.bf16.msra.mxu0 %v1510
      %1961 = vmatpush.bf16.msra.mxu0 %v1506
      %1962 = vmatpush.bf16.msra.mxu0 %v1502
      %1963 = vmatpush.bf16.msra.mxu0 %v1498
      %1964 = vmatpush.bf16.msra.mxu0 %v1494
      %1965 = vmatpush.bf16.msra.mxu0 %v1490
      %1966 = vmatmul.bf16.gmra.mxu0 %v547
      %v1967 = vpop.f32.mrf.mxu0
      %v1968 = vadd.f32 %v1919, %v1967
      %v1969 = vpop.f32.mrf.mxu0
      %v1970 = vadd.f32 %v1921, %v1969
      %1971 = vmatmul.bf16.gmra.mxu0 %v554
      %v1972 = vpop.f32.mrf.mxu0
      %v1973 = vadd.f32 %v1924, %v1972
      %v1974 = vpop.f32.mrf.mxu0
      %v1975 = vadd.f32 %v1926, %v1974
      %1976 = vmatmul.bf16.gmra.mxu0 %v561
      %v1977 = vpop.f32.mrf.mxu0
      %v1978 = vadd.f32 %v1929, %v1977
      %v1979 = vpop.f32.mrf.mxu0
      %v1980 = vadd.f32 %v1931, %v1979
      %1981 = vmatmul.bf16.gmra.mxu0 %v568
      %v1982 = vpop.f32.mrf.mxu0
      %v1983 = vadd.f32 %v1934, %v1982
      %v1984 = vpop.f32.mrf.mxu0
      %v1985 = vadd.f32 %v1936, %v1984
      %1986 = vmatmul.bf16.gmra.mxu0 %v575
      %v1987 = vpop.f32.mrf.mxu0
      %v1988 = vadd.f32 %v1939, %v1987
      %v1989 = vpop.f32.mrf.mxu0
      %v1990 = vadd.f32 %v1941, %v1989
      %1991 = vmatmul.bf16.gmra.mxu0 %v582
      %v1992 = vpop.f32.mrf.mxu0
      %v1993 = vadd.f32 %v1944, %v1992
      %v1994 = vpop.f32.mrf.mxu0
      %v1995 = vadd.f32 %v1946, %v1994
      %1996 = vmatmul.bf16.gmra.mxu0 %v589
      %v1997 = vpop.f32.mrf.mxu0
      %v1998 = vadd.f32 %v1949, %v1997
      %v1999 = vpop.f32.mrf.mxu0
      %v2000 = vadd.f32 %v1951, %v1999
      %2001 = vmatmul.bf16.gmra.mxu0 %v596
      %v2002 = vpop.f32.mrf.mxu0
      %v2003 = vadd.f32 %v1954, %v2002
      %v2004 = vpop.f32.mrf.mxu0
      %v2005 = vadd.f32 %v1956, %v2004
      %2006 = vdwg.mxu0
      %2007 = vmatpush.bf16.msra.mxu0 %v1550
      %2008 = vmatpush.bf16.msra.mxu0 %v1546
      %2009 = vmatpush.bf16.msra.mxu0 %v1542
      %2010 = vmatpush.bf16.msra.mxu0 %v1538
      %2011 = vmatpush.bf16.msra.mxu0 %v1534
      %2012 = vmatpush.bf16.msra.mxu0 %v1530
      %2013 = vmatpush.bf16.msra.mxu0 %v1526
      %2014 = vmatpush.bf16.msra.mxu0 %v1522
      %2015 = vmatmul.bf16.gmra.mxu0 %v548
      %v2016 = vpop.f32.mrf.mxu0
      %v2017 = vadd.f32 %v1968, %v2016
      %v2018 = vpop.f32.mrf.mxu0
      %v2019 = vadd.f32 %v1970, %v2018
      %2020 = vmatmul.bf16.gmra.mxu0 %v555
      %v2021 = vpop.f32.mrf.mxu0
      %v2022 = vadd.f32 %v1973, %v2021
      %v2023 = vpop.f32.mrf.mxu0
      %v2024 = vadd.f32 %v1975, %v2023
      %2025 = vmatmul.bf16.gmra.mxu0 %v562
      %v2026 = vpop.f32.mrf.mxu0
      %v2027 = vadd.f32 %v1978, %v2026
      %v2028 = vpop.f32.mrf.mxu0
      %v2029 = vadd.f32 %v1980, %v2028
      %2030 = vmatmul.bf16.gmra.mxu0 %v569
      %v2031 = vpop.f32.mrf.mxu0
      %v2032 = vadd.f32 %v1983, %v2031
      %v2033 = vpop.f32.mrf.mxu0
      %v2034 = vadd.f32 %v1985, %v2033
      %2035 = vmatmul.bf16.gmra.mxu0 %v576
      %v2036 = vpop.f32.mrf.mxu0
      %v2037 = vadd.f32 %v1988, %v2036
      %v2038 = vpop.f32.mrf.mxu0
      %v2039 = vadd.f32 %v1990, %v2038
      %2040 = vmatmul.bf16.gmra.mxu0 %v583
      %v2041 = vpop.f32.mrf.mxu0
      %v2042 = vadd.f32 %v1993, %v2041
      %v2043 = vpop.f32.mrf.mxu0
      %v2044 = vadd.f32 %v1995, %v2043
      %2045 = vmatmul.bf16.gmra.mxu0 %v590
      %v2046 = vpop.f32.mrf.mxu0
      %v2047 = vadd.f32 %v1998, %v2046
      %v2048 = vpop.f32.mrf.mxu0
      %v2049 = vadd.f32 %v2000, %v2048
      %2050 = vmatmul.bf16.gmra.mxu0 %v597
      %v2051 = vpop.f32.mrf.mxu0
      %v2052 = vadd.f32 %v2003, %v2051
      %v2053 = vpop.f32.mrf.mxu0
      %v2054 = vadd.f32 %v2005, %v2053
      %2055 = vdwg.mxu0
      %2056 = vmatpush.bf16.msra.mxu0 %v1582
      %2057 = vmatpush.bf16.msra.mxu0 %v1578
      %2058 = vmatpush.bf16.msra.mxu0 %v1574
      %2059 = vmatpush.bf16.msra.mxu0 %v1570
      %2060 = vmatpush.bf16.msra.mxu0 %v1566
      %2061 = vmatpush.bf16.msra.mxu0 %v1562
      %2062 = vmatpush.bf16.msra.mxu0 %v1558
      %2063 = vmatpush.bf16.msra.mxu0 %v1554
      %2064 = vmatmul.bf16.gmra.mxu0 %v549
      %v2065 = vpop.f32.mrf.mxu0
      %v2066 = vadd.f32 %v2017, %v2065
      %v2067 = vpop.f32.mrf.mxu0
      %v2068 = vadd.f32 %v2019, %v2067
      %2069 = vmatmul.bf16.gmra.mxu0 %v556
      %v2070 = vpop.f32.mrf.mxu0
      %v2071 = vadd.f32 %v2022, %v2070
      %v2072 = vpop.f32.mrf.mxu0
      %v2073 = vadd.f32 %v2024, %v2072
      %2074 = vmatmul.bf16.gmra.mxu0 %v563
      %v2075 = vpop.f32.mrf.mxu0
      %v2076 = vadd.f32 %v2027, %v2075
      %v2077 = vpop.f32.mrf.mxu0
      %v2078 = vadd.f32 %v2029, %v2077
      %2079 = vmatmul.bf16.gmra.mxu0 %v570
      %v2080 = vpop.f32.mrf.mxu0
      %v2081 = vadd.f32 %v2032, %v2080
      %v2082 = vpop.f32.mrf.mxu0
      %v2083 = vadd.f32 %v2034, %v2082
      %2084 = vmatmul.bf16.gmra.mxu0 %v577
      %v2085 = vpop.f32.mrf.mxu0
      %v2086 = vadd.f32 %v2037, %v2085
      %v2087 = vpop.f32.mrf.mxu0
      %v2088 = vadd.f32 %v2039, %v2087
      %2089 = vmatmul.bf16.gmra.mxu0 %v584
      %v2090 = vpop.f32.mrf.mxu0
      %v2091 = vadd.f32 %v2042, %v2090
      %v2092 = vpop.f32.mrf.mxu0
      %v2093 = vadd.f32 %v2044, %v2092
      %2094 = vmatmul.bf16.gmra.mxu0 %v591
      %v2095 = vpop.f32.mrf.mxu0
      %v2096 = vadd.f32 %v2047, %v2095
      %v2097 = vpop.f32.mrf.mxu0
      %v2098 = vadd.f32 %v2049, %v2097
      %2099 = vmatmul.bf16.gmra.mxu0 %v598
      %v2100 = vpop.f32.mrf.mxu0
      %v2101 = vadd.f32 %v2052, %v2100
      %v2102 = vpop.f32.mrf.mxu0
      %v2103 = vadd.f32 %v2054, %v2102
      %2104 = vdwg.mxu0
      %2105 = vmatpush.bf16.msra.mxu0 0
      %2106 = vmatpush.bf16.msra.mxu0 0
      %2107 = vmatpush.bf16.msra.mxu0 0
      %2108 = vmatpush.bf16.msra.mxu0 0
      %2109 = vmatpush.bf16.msra.mxu0 0
      %2110 = vmatpush.bf16.msra.mxu0 0
      %2111 = vmatpush.bf16.msra.mxu0 0
      %2112 = vmatpush.bf16.msra.mxu0 %v1586
      %2113 = vmatmul.bf16.gmra.mxu0 %v1788
      %v2114 = vpop.f32.mrf.mxu0
      %v2115 = vadd.f32 %v2066, %v2114
      %v2116 = vpop.f32.mrf.mxu0
      %v2117 = vadd.f32 %v2068, %v2116
      %2118 = vmatmul.bf16.gmra.mxu0 %v1791
      %v2119 = vpop.f32.mrf.mxu0
      %v2120 = vadd.f32 %v2071, %v2119
      %v2121 = vpop.f32.mrf.mxu0
      %v2122 = vadd.f32 %v2073, %v2121
      %2123 = vmatmul.bf16.gmra.mxu0 %v1794
      %v2124 = vpop.f32.mrf.mxu0
      %v2125 = vadd.f32 %v2076, %v2124
      %v2126 = vpop.f32.mrf.mxu0
      %v2127 = vadd.f32 %v2078, %v2126
      %2128 = vmatmul.bf16.gmra.mxu0 %v1797
      %v2129 = vpop.f32.mrf.mxu0
      %v2130 = vadd.f32 %v2081, %v2129
      %v2131 = vpop.f32.mrf.mxu0
      %v2132 = vadd.f32 %v2083, %v2131
      %2133 = vmatmul.bf16.gmra.mxu0 %v1800
      %v2134 = vpop.f32.mrf.mxu0
      %v2135 = vadd.f32 %v2086, %v2134
      %v2136 = vpop.f32.mrf.mxu0
      %v2137 = vadd.f32 %v2088, %v2136
      %2138 = vmatmul.bf16.gmra.mxu0 %v1803
      %v2139 = vpop.f32.mrf.mxu0
      %v2140 = vadd.f32 %v2091, %v2139
      %v2141 = vpop.f32.mrf.mxu0
      %v2142 = vadd.f32 %v2093, %v2141
      %2143 = vmatmul.bf16.gmra.mxu0 %v1806
      %v2144 = vpop.f32.mrf.mxu0
      %v2145 = vadd.f32 %v2096, %v2144
      %v2146 = vpop.f32.mrf.mxu0
      %v2147 = vadd.f32 %v2098, %v2146
      %2148 = vmatmul.bf16.gmra.mxu0 %v1809
      %v2149 = vpop.f32.mrf.mxu0
      %v2150 = vadd.f32 %v2101, %v2149
      %v2151 = vpop.f32.mrf.mxu0
      %v2152 = vadd.f32 %v2103, %v2151
      %2153 = vdwg.mxu0
      %2154 = vmatpush.bf16.msra.mxu0 %v1423
      %2155 = vmatpush.bf16.msra.mxu0 %v1419
      %2156 = vmatpush.bf16.msra.mxu0 %v1415
      %2157 = vmatpush.bf16.msra.mxu0 %v1411
      %2158 = vmatpush.bf16.msra.mxu0 %v1407
      %2159 = vmatpush.bf16.msra.mxu0 %v1403
      %2160 = vmatpush.bf16.msra.mxu0 %v1399
      %2161 = vmatpush.bf16.msra.mxu0 %v1395
      %2162 = vmatmul.bf16.gmra.mxu0 %v544
      %v2163 = vpop.f32.mrf.mxu0
      %v2164 = vadd.f32 %v799, %v2163
      %v2165 = vpop.f32.mrf.mxu0
      %v2166 = vadd.f32 %v799, %v2165
      %2167 = vmatmul.bf16.gmra.mxu0 %v551
      %v2168 = vpop.f32.mrf.mxu0
      %v2169 = vadd.f32 %v799, %v2168
      %v2170 = vpop.f32.mrf.mxu0
      %v2171 = vadd.f32 %v799, %v2170
      %2172 = vmatmul.bf16.gmra.mxu0 %v558
      %v2173 = vpop.f32.mrf.mxu0
      %v2174 = vadd.f32 %v799, %v2173
      %v2175 = vpop.f32.mrf.mxu0
      %v2176 = vadd.f32 %v799, %v2175
      %2177 = vmatmul.bf16.gmra.mxu0 %v565
      %v2178 = vpop.f32.mrf.mxu0
      %v2179 = vadd.f32 %v799, %v2178
      %v2180 = vpop.f32.mrf.mxu0
      %v2181 = vadd.f32 %v799, %v2180
      %2182 = vmatmul.bf16.gmra.mxu0 %v572
      %v2183 = vpop.f32.mrf.mxu0
      %v2184 = vadd.f32 %v799, %v2183
      %v2185 = vpop.f32.mrf.mxu0
      %v2186 = vadd.f32 %v799, %v2185
      %2187 = vmatmul.bf16.gmra.mxu0 %v579
      %v2188 = vpop.f32.mrf.mxu0
      %v2189 = vadd.f32 %v799, %v2188
      %v2190 = vpop.f32.mrf.mxu0
      %v2191 = vadd.f32 %v799, %v2190
      %2192 = vmatmul.bf16.gmra.mxu0 %v586
      %v2193 = vpop.f32.mrf.mxu0
      %v2194 = vadd.f32 %v799, %v2193
      %v2195 = vpop.f32.mrf.mxu0
      %v2196 = vadd.f32 %v799, %v2195
      %2197 = vmatmul.bf16.gmra.mxu0 %v593
      %v2198 = vpop.f32.mrf.mxu0
      %v2199 = vadd.f32 %v799, %v2198
      %v2200 = vpop.f32.mrf.mxu0
      %v2201 = vadd.f32 %v799, %v2200
      %2202 = vdwg.mxu0
      %2203 = vmatpush.bf16.msra.mxu0 %v1455
      %2204 = vmatpush.bf16.msra.mxu0 %v1451
      %2205 = vmatpush.bf16.msra.mxu0 %v1447
      %2206 = vmatpush.bf16.msra.mxu0 %v1443
      %2207 = vmatpush.bf16.msra.mxu0 %v1439
      %2208 = vmatpush.bf16.msra.mxu0 %v1435
      %2209 = vmatpush.bf16.msra.mxu0 %v1431
      %2210 = vmatpush.bf16.msra.mxu0 %v1427
      %2211 = vmatmul.bf16.gmra.mxu0 %v545
      %v2212 = vpop.f32.mrf.mxu0
      %v2213 = vadd.f32 %v2164, %v2212
      %v2214 = vpop.f32.mrf.mxu0
      %v2215 = vadd.f32 %v2166, %v2214
      %2216 = vmatmul.bf16.gmra.mxu0 %v552
      %v2217 = vpop.f32.mrf.mxu0
      %v2218 = vadd.f32 %v2169, %v2217
      %v2219 = vpop.f32.mrf.mxu0
      %v2220 = vadd.f32 %v2171, %v2219
      %2221 = vmatmul.bf16.gmra.mxu0 %v559
      %v2222 = vpop.f32.mrf.mxu0
      %v2223 = vadd.f32 %v2174, %v2222
      %v2224 = vpop.f32.mrf.mxu0
      %v2225 = vadd.f32 %v2176, %v2224
      %2226 = vmatmul.bf16.gmra.mxu0 %v566
      %v2227 = vpop.f32.mrf.mxu0
      %v2228 = vadd.f32 %v2179, %v2227
      %v2229 = vpop.f32.mrf.mxu0
      %v2230 = vadd.f32 %v2181, %v2229
      %2231 = vmatmul.bf16.gmra.mxu0 %v573
      %v2232 = vpop.f32.mrf.mxu0
      %v2233 = vadd.f32 %v2184, %v2232
      %v2234 = vpop.f32.mrf.mxu0
      %v2235 = vadd.f32 %v2186, %v2234
      %2236 = vmatmul.bf16.gmra.mxu0 %v580
      %v2237 = vpop.f32.mrf.mxu0
      %v2238 = vadd.f32 %v2189, %v2237
      %v2239 = vpop.f32.mrf.mxu0
      %v2240 = vadd.f32 %v2191, %v2239
      %2241 = vmatmul.bf16.gmra.mxu0 %v587
      %v2242 = vpop.f32.mrf.mxu0
      %v2243 = vadd.f32 %v2194, %v2242
      %v2244 = vpop.f32.mrf.mxu0
      %v2245 = vadd.f32 %v2196, %v2244
      %2246 = vmatmul.bf16.gmra.mxu0 %v594
      %v2247 = vpop.f32.mrf.mxu0
      %v2248 = vadd.f32 %v2199, %v2247
      %v2249 = vpop.f32.mrf.mxu0
      %v2250 = vadd.f32 %v2201, %v2249
      %2251 = vdwg.mxu0
      %2252 = vmatpush.bf16.msra.mxu0 %v1487
      %2253 = vmatpush.bf16.msra.mxu0 %v1483
      %2254 = vmatpush.bf16.msra.mxu0 %v1479
      %2255 = vmatpush.bf16.msra.mxu0 %v1475
      %2256 = vmatpush.bf16.msra.mxu0 %v1471
      %2257 = vmatpush.bf16.msra.mxu0 %v1467
      %2258 = vmatpush.bf16.msra.mxu0 %v1463
      %2259 = vmatpush.bf16.msra.mxu0 %v1459
      %2260 = vmatmul.bf16.gmra.mxu0 %v546
      %v2261 = vpop.f32.mrf.mxu0
      %v2262 = vadd.f32 %v2213, %v2261
      %v2263 = vpop.f32.mrf.mxu0
      %v2264 = vadd.f32 %v2215, %v2263
      %2265 = vmatmul.bf16.gmra.mxu0 %v553
      %v2266 = vpop.f32.mrf.mxu0
      %v2267 = vadd.f32 %v2218, %v2266
      %v2268 = vpop.f32.mrf.mxu0
      %v2269 = vadd.f32 %v2220, %v2268
      %2270 = vmatmul.bf16.gmra.mxu0 %v560
      %v2271 = vpop.f32.mrf.mxu0
      %v2272 = vadd.f32 %v2223, %v2271
      %v2273 = vpop.f32.mrf.mxu0
      %v2274 = vadd.f32 %v2225, %v2273
      %2275 = vmatmul.bf16.gmra.mxu0 %v567
      %v2276 = vpop.f32.mrf.mxu0
      %v2277 = vadd.f32 %v2228, %v2276
      %v2278 = vpop.f32.mrf.mxu0
      %v2279 = vadd.f32 %v2230, %v2278
      %2280 = vmatmul.bf16.gmra.mxu0 %v574
      %v2281 = vpop.f32.mrf.mxu0
      %v2282 = vadd.f32 %v2233, %v2281
      %v2283 = vpop.f32.mrf.mxu0
      %v2284 = vadd.f32 %v2235, %v2283
      %2285 = vmatmul.bf16.gmra.mxu0 %v581
      %v2286 = vpop.f32.mrf.mxu0
      %v2287 = vadd.f32 %v2238, %v2286
      %v2288 = vpop.f32.mrf.mxu0
      %v2289 = vadd.f32 %v2240, %v2288
      %2290 = vmatmul.bf16.gmra.mxu0 %v588
      %v2291 = vpop.f32.mrf.mxu0
      %v2292 = vadd.f32 %v2243, %v2291
      %v2293 = vpop.f32.mrf.mxu0
      %v2294 = vadd.f32 %v2245, %v2293
      %2295 = vmatmul.bf16.gmra.mxu0 %v595
      %v2296 = vpop.f32.mrf.mxu0
      %v2297 = vadd.f32 %v2248, %v2296
      %v2298 = vpop.f32.mrf.mxu0
      %v2299 = vadd.f32 %v2250, %v2298
      %2300 = vdwg.mxu0
      %2301 = vmatpush.bf16.msra.mxu0 %v1519
      %2302 = vmatpush.bf16.msra.mxu0 %v1515
      %2303 = vmatpush.bf16.msra.mxu0 %v1511
      %2304 = vmatpush.bf16.msra.mxu0 %v1507
      %2305 = vmatpush.bf16.msra.mxu0 %v1503
      %2306 = vmatpush.bf16.msra.mxu0 %v1499
      %2307 = vmatpush.bf16.msra.mxu0 %v1495
      %2308 = vmatpush.bf16.msra.mxu0 %v1491
      %2309 = vmatmul.bf16.gmra.mxu0 %v547
      %v2310 = vpop.f32.mrf.mxu0
      %v2311 = vadd.f32 %v2262, %v2310
      %v2312 = vpop.f32.mrf.mxu0
      %v2313 = vadd.f32 %v2264, %v2312
      %2314 = vmatmul.bf16.gmra.mxu0 %v554
      %v2315 = vpop.f32.mrf.mxu0
      %v2316 = vadd.f32 %v2267, %v2315
      %v2317 = vpop.f32.mrf.mxu0
      %v2318 = vadd.f32 %v2269, %v2317
      %2319 = vmatmul.bf16.gmra.mxu0 %v561
      %v2320 = vpop.f32.mrf.mxu0
      %v2321 = vadd.f32 %v2272, %v2320
      %v2322 = vpop.f32.mrf.mxu0
      %v2323 = vadd.f32 %v2274, %v2322
      %2324 = vmatmul.bf16.gmra.mxu0 %v568
      %v2325 = vpop.f32.mrf.mxu0
      %v2326 = vadd.f32 %v2277, %v2325
      %v2327 = vpop.f32.mrf.mxu0
      %v2328 = vadd.f32 %v2279, %v2327
      %2329 = vmatmul.bf16.gmra.mxu0 %v575
      %v2330 = vpop.f32.mrf.mxu0
      %v2331 = vadd.f32 %v2282, %v2330
      %v2332 = vpop.f32.mrf.mxu0
      %v2333 = vadd.f32 %v2284, %v2332
      %2334 = vmatmul.bf16.gmra.mxu0 %v582
      %v2335 = vpop.f32.mrf.mxu0
      %v2336 = vadd.f32 %v2287, %v2335
      %v2337 = vpop.f32.mrf.mxu0
      %v2338 = vadd.f32 %v2289, %v2337
      %2339 = vmatmul.bf16.gmra.mxu0 %v589
      %v2340 = vpop.f32.mrf.mxu0
      %v2341 = vadd.f32 %v2292, %v2340
      %v2342 = vpop.f32.mrf.mxu0
      %v2343 = vadd.f32 %v2294, %v2342
      %2344 = vmatmul.bf16.gmra.mxu0 %v596
      %v2345 = vpop.f32.mrf.mxu0
      %v2346 = vadd.f32 %v2297, %v2345
      %v2347 = vpop.f32.mrf.mxu0
      %v2348 = vadd.f32 %v2299, %v2347
      %2349 = vdwg.mxu0
      %2350 = vmatpush.bf16.msra.mxu0 %v1551
      %2351 = vmatpush.bf16.msra.mxu0 %v1547
      %2352 = vmatpush.bf16.msra.mxu0 %v1543
      %2353 = vmatpush.bf16.msra.mxu0 %v1539
      %2354 = vmatpush.bf16.msra.mxu0 %v1535
      %2355 = vmatpush.bf16.msra.mxu0 %v1531
      %2356 = vmatpush.bf16.msra.mxu0 %v1527
      %2357 = vmatpush.bf16.msra.mxu0 %v1523
      %2358 = vmatmul.bf16.gmra.mxu0 %v548
      %v2359 = vpop.f32.mrf.mxu0
      %v2360 = vadd.f32 %v2311, %v2359
      %v2361 = vpop.f32.mrf.mxu0
      %v2362 = vadd.f32 %v2313, %v2361
      %2363 = vmatmul.bf16.gmra.mxu0 %v555
      %v2364 = vpop.f32.mrf.mxu0
      %v2365 = vadd.f32 %v2316, %v2364
      %v2366 = vpop.f32.mrf.mxu0
      %v2367 = vadd.f32 %v2318, %v2366
      %2368 = vmatmul.bf16.gmra.mxu0 %v562
      %v2369 = vpop.f32.mrf.mxu0
      %v2370 = vadd.f32 %v2321, %v2369
      %v2371 = vpop.f32.mrf.mxu0
      %v2372 = vadd.f32 %v2323, %v2371
      %2373 = vmatmul.bf16.gmra.mxu0 %v569
      %v2374 = vpop.f32.mrf.mxu0
      %v2375 = vadd.f32 %v2326, %v2374
      %v2376 = vpop.f32.mrf.mxu0
      %v2377 = vadd.f32 %v2328, %v2376
      %2378 = vmatmul.bf16.gmra.mxu0 %v576
      %v2379 = vpop.f32.mrf.mxu0
      %v2380 = vadd.f32 %v2331, %v2379
      %v2381 = vpop.f32.mrf.mxu0
      %v2382 = vadd.f32 %v2333, %v2381
      %2383 = vmatmul.bf16.gmra.mxu0 %v583
      %v2384 = vpop.f32.mrf.mxu0
      %v2385 = vadd.f32 %v2336, %v2384
      %v2386 = vpop.f32.mrf.mxu0
      %v2387 = vadd.f32 %v2338, %v2386
      %2388 = vmatmul.bf16.gmra.mxu0 %v590
      %v2389 = vpop.f32.mrf.mxu0
      %v2390 = vadd.f32 %v2341, %v2389
      %v2391 = vpop.f32.mrf.mxu0
      %v2392 = vadd.f32 %v2343, %v2391
      %2393 = vmatmul.bf16.gmra.mxu0 %v597
      %v2394 = vpop.f32.mrf.mxu0
      %v2395 = vadd.f32 %v2346, %v2394
      %v2396 = vpop.f32.mrf.mxu0
      %v2397 = vadd.f32 %v2348, %v2396
      %2398 = vdwg.mxu0
      %2399 = vmatpush.bf16.msra.mxu0 %v1583
      %2400 = vmatpush.bf16.msra.mxu0 %v1579
      %2401 = vmatpush.bf16.msra.mxu0 %v1575
      %2402 = vmatpush.bf16.msra.mxu0 %v1571
      %2403 = vmatpush.bf16.msra.mxu0 %v1567
      %2404 = vmatpush.bf16.msra.mxu0 %v1563
      %2405 = vmatpush.bf16.msra.mxu0 %v1559
      %2406 = vmatpush.bf16.msra.mxu0 %v1555
      %2407 = vmatmul.bf16.gmra.mxu0 %v549
      %v2408 = vpop.f32.mrf.mxu0
      %v2409 = vadd.f32 %v2360, %v2408
      %v2410 = vpop.f32.mrf.mxu0
      %v2411 = vadd.f32 %v2362, %v2410
      %2412 = vmatmul.bf16.gmra.mxu0 %v556
      %v2413 = vpop.f32.mrf.mxu0
      %v2414 = vadd.f32 %v2365, %v2413
      %v2415 = vpop.f32.mrf.mxu0
      %v2416 = vadd.f32 %v2367, %v2415
      %2417 = vmatmul.bf16.gmra.mxu0 %v563
      %v2418 = vpop.f32.mrf.mxu0
      %v2419 = vadd.f32 %v2370, %v2418
      %v2420 = vpop.f32.mrf.mxu0
      %v2421 = vadd.f32 %v2372, %v2420
      %2422 = vmatmul.bf16.gmra.mxu0 %v570
      %v2423 = vpop.f32.mrf.mxu0
      %v2424 = vadd.f32 %v2375, %v2423
      %v2425 = vpop.f32.mrf.mxu0
      %v2426 = vadd.f32 %v2377, %v2425
      %2427 = vmatmul.bf16.gmra.mxu0 %v577
      %v2428 = vpop.f32.mrf.mxu0
      %v2429 = vadd.f32 %v2380, %v2428
      %v2430 = vpop.f32.mrf.mxu0
      %v2431 = vadd.f32 %v2382, %v2430
      %2432 = vmatmul.bf16.gmra.mxu0 %v584
      %v2433 = vpop.f32.mrf.mxu0
      %v2434 = vadd.f32 %v2385, %v2433
      %v2435 = vpop.f32.mrf.mxu0
      %v2436 = vadd.f32 %v2387, %v2435
      %2437 = vmatmul.bf16.gmra.mxu0 %v591
      %v2438 = vpop.f32.mrf.mxu0
      %v2439 = vadd.f32 %v2390, %v2438
      %v2440 = vpop.f32.mrf.mxu0
      %v2441 = vadd.f32 %v2392, %v2440
      %2442 = vmatmul.bf16.gmra.mxu0 %v598
      %v2443 = vpop.f32.mrf.mxu0
      %v2444 = vadd.f32 %v2395, %v2443
      %v2445 = vpop.f32.mrf.mxu0
      %v2446 = vadd.f32 %v2397, %v2445
      %2447 = vdwg.mxu0
      %2448 = vmatpush.bf16.msra.mxu0 0
      %2449 = vmatpush.bf16.msra.mxu0 0
      %2450 = vmatpush.bf16.msra.mxu0 0
      %2451 = vmatpush.bf16.msra.mxu0 0
      %2452 = vmatpush.bf16.msra.mxu0 0
      %2453 = vmatpush.bf16.msra.mxu0 0
      %2454 = vmatpush.bf16.msra.mxu0 0
      %2455 = vmatpush.bf16.msra.mxu0 %v1587
      %2456 = vmatmul.bf16.gmra.mxu0 %v1788
      %v2457 = vpop.f32.mrf.mxu0
      %v2458 = vadd.f32 %v2409, %v2457
      %v2459 = vpop.f32.mrf.mxu0
      %v2460 = vadd.f32 %v2411, %v2459
      %2461 = vmatmul.bf16.gmra.mxu0 %v1791
      %v2462 = vpop.f32.mrf.mxu0
      %v2463 = vadd.f32 %v2414, %v2462
      %v2464 = vpop.f32.mrf.mxu0
      %v2465 = vadd.f32 %v2416, %v2464
      %2466 = vmatmul.bf16.gmra.mxu0 %v1794
      %v2467 = vpop.f32.mrf.mxu0
      %v2468 = vadd.f32 %v2419, %v2467
      %v2469 = vpop.f32.mrf.mxu0
      %v2470 = vadd.f32 %v2421, %v2469
      %2471 = vmatmul.bf16.gmra.mxu0 %v1797
      %v2472 = vpop.f32.mrf.mxu0
      %v2473 = vadd.f32 %v2424, %v2472
      %v2474 = vpop.f32.mrf.mxu0
      %v2475 = vadd.f32 %v2426, %v2474
      %2476 = vmatmul.bf16.gmra.mxu0 %v1800
      %v2477 = vpop.f32.mrf.mxu0
      %v2478 = vadd.f32 %v2429, %v2477
      %v2479 = vpop.f32.mrf.mxu0
      %v2480 = vadd.f32 %v2431, %v2479
      %2481 = vmatmul.bf16.gmra.mxu0 %v1803
      %v2482 = vpop.f32.mrf.mxu0
      %v2483 = vadd.f32 %v2434, %v2482
      %v2484 = vpop.f32.mrf.mxu0
      %v2485 = vadd.f32 %v2436, %v2484
      %2486 = vmatmul.bf16.gmra.mxu0 %v1806
      %v2487 = vpop.f32.mrf.mxu0
      %v2488 = vadd.f32 %v2439, %v2487
      %v2489 = vpop.f32.mrf.mxu0
      %v2490 = vadd.f32 %v2441, %v2489
      %2491 = vmatmul.bf16.gmra.mxu0 %v1809
      %v2492 = vpop.f32.mrf.mxu0
      %v2493 = vadd.f32 %v2444, %v2492
      %v2494 = vpop.f32.mrf.mxu0
      %v2495 = vadd.f32 %v2446, %v2494
      %2496 = vdwg.mxu0
      %2497 = vmatpush.bf16.msra.mxu0 %v1424
      %2498 = vmatpush.bf16.msra.mxu0 %v1420
      %2499 = vmatpush.bf16.msra.mxu0 %v1416
      %2500 = vmatpush.bf16.msra.mxu0 %v1412
      %2501 = vmatpush.bf16.msra.mxu0 %v1408
      %2502 = vmatpush.bf16.msra.mxu0 %v1404
      %2503 = vmatpush.bf16.msra.mxu0 %v1400
      %2504 = vmatpush.bf16.msra.mxu0 %v1396
      %2505 = vmatmul.bf16.gmra.mxu0 %v544
      %v2506 = vpop.f32.mrf.mxu0
      %v2507 = vadd.f32 %v800, %v2506
      %v2508 = vpop.f32.mrf.mxu0
      %v2509 = vadd.f32 %v800, %v2508
      %2510 = vmatmul.bf16.gmra.mxu0 %v551
      %v2511 = vpop.f32.mrf.mxu0
      %v2512 = vadd.f32 %v800, %v2511
      %v2513 = vpop.f32.mrf.mxu0
      %v2514 = vadd.f32 %v800, %v2513
      %2515 = vmatmul.bf16.gmra.mxu0 %v558
      %v2516 = vpop.f32.mrf.mxu0
      %v2517 = vadd.f32 %v800, %v2516
      %v2518 = vpop.f32.mrf.mxu0
      %v2519 = vadd.f32 %v800, %v2518
      %2520 = vmatmul.bf16.gmra.mxu0 %v565
      %v2521 = vpop.f32.mrf.mxu0
      %v2522 = vadd.f32 %v800, %v2521
      %v2523 = vpop.f32.mrf.mxu0
      %v2524 = vadd.f32 %v800, %v2523
      %2525 = vmatmul.bf16.gmra.mxu0 %v572
      %v2526 = vpop.f32.mrf.mxu0
      %v2527 = vadd.f32 %v800, %v2526
      %v2528 = vpop.f32.mrf.mxu0
      %v2529 = vadd.f32 %v800, %v2528
      %2530 = vmatmul.bf16.gmra.mxu0 %v579
      %v2531 = vpop.f32.mrf.mxu0
      %v2532 = vadd.f32 %v800, %v2531
      %v2533 = vpop.f32.mrf.mxu0
      %v2534 = vadd.f32 %v800, %v2533
      %2535 = vmatmul.bf16.gmra.mxu0 %v586
      %v2536 = vpop.f32.mrf.mxu0
      %v2537 = vadd.f32 %v800, %v2536
      %v2538 = vpop.f32.mrf.mxu0
      %v2539 = vadd.f32 %v800, %v2538
      %2540 = vmatmul.bf16.gmra.mxu0 %v593
      %v2541 = vpop.f32.mrf.mxu0
      %v2542 = vadd.f32 %v800, %v2541
      %v2543 = vpop.f32.mrf.mxu0
      %v2544 = vadd.f32 %v800, %v2543
      %2545 = vdwg.mxu0
      %2546 = vmatpush.bf16.msra.mxu0 %v1456
      %2547 = vmatpush.bf16.msra.mxu0 %v1452
      %2548 = vmatpush.bf16.msra.mxu0 %v1448
      %2549 = vmatpush.bf16.msra.mxu0 %v1444
      %2550 = vmatpush.bf16.msra.mxu0 %v1440
      %2551 = vmatpush.bf16.msra.mxu0 %v1436
      %2552 = vmatpush.bf16.msra.mxu0 %v1432
      %2553 = vmatpush.bf16.msra.mxu0 %v1428
      %2554 = vmatmul.bf16.gmra.mxu0 %v545
      %v2555 = vpop.f32.mrf.mxu0
      %v2556 = vadd.f32 %v2507, %v2555
      %v2557 = vpop.f32.mrf.mxu0
      %v2558 = vadd.f32 %v2509, %v2557
      %2559 = vmatmul.bf16.gmra.mxu0 %v552
      %v2560 = vpop.f32.mrf.mxu0
      %v2561 = vadd.f32 %v2512, %v2560
      %v2562 = vpop.f32.mrf.mxu0
      %v2563 = vadd.f32 %v2514, %v2562
      %2564 = vmatmul.bf16.gmra.mxu0 %v559
      %v2565 = vpop.f32.mrf.mxu0
      %v2566 = vadd.f32 %v2517, %v2565
      %v2567 = vpop.f32.mrf.mxu0
      %v2568 = vadd.f32 %v2519, %v2567
      %2569 = vmatmul.bf16.gmra.mxu0 %v566
      %v2570 = vpop.f32.mrf.mxu0
      %v2571 = vadd.f32 %v2522, %v2570
      %v2572 = vpop.f32.mrf.mxu0
      %v2573 = vadd.f32 %v2524, %v2572
      %2574 = vmatmul.bf16.gmra.mxu0 %v573
      %v2575 = vpop.f32.mrf.mxu0
      %v2576 = vadd.f32 %v2527, %v2575
      %v2577 = vpop.f32.mrf.mxu0
      %v2578 = vadd.f32 %v2529, %v2577
      %2579 = vmatmul.bf16.gmra.mxu0 %v580
      %v2580 = vpop.f32.mrf.mxu0
      %v2581 = vadd.f32 %v2532, %v2580
      %v2582 = vpop.f32.mrf.mxu0
      %v2583 = vadd.f32 %v2534, %v2582
      %2584 = vmatmul.bf16.gmra.mxu0 %v587
      %v2585 = vpop.f32.mrf.mxu0
      %v2586 = vadd.f32 %v2537, %v2585
      %v2587 = vpop.f32.mrf.mxu0
      %v2588 = vadd.f32 %v2539, %v2587
      %2589 = vmatmul.bf16.gmra.mxu0 %v594
      %v2590 = vpop.f32.mrf.mxu0
      %v2591 = vadd.f32 %v2542, %v2590
      %v2592 = vpop.f32.mrf.mxu0
      %v2593 = vadd.f32 %v2544, %v2592
      %2594 = vdwg.mxu0
      %2595 = vmatpush.bf16.msra.mxu0 %v1488
      %2596 = vmatpush.bf16.msra.mxu0 %v1484
      %2597 = vmatpush.bf16.msra.mxu0 %v1480
      %2598 = vmatpush.bf16.msra.mxu0 %v1476
      %2599 = vmatpush.bf16.msra.mxu0 %v1472
      %2600 = vmatpush.bf16.msra.mxu0 %v1468
      %2601 = vmatpush.bf16.msra.mxu0 %v1464
      %2602 = vmatpush.bf16.msra.mxu0 %v1460
      %2603 = vmatmul.bf16.gmra.mxu0 %v546
      %v2604 = vpop.f32.mrf.mxu0
      %v2605 = vadd.f32 %v2556, %v2604
      %v2606 = vpop.f32.mrf.mxu0
      %v2607 = vadd.f32 %v2558, %v2606
      %2608 = vmatmul.bf16.gmra.mxu0 %v553
      %v2609 = vpop.f32.mrf.mxu0
      %v2610 = vadd.f32 %v2561, %v2609
      %v2611 = vpop.f32.mrf.mxu0
      %v2612 = vadd.f32 %v2563, %v2611
      %2613 = vmatmul.bf16.gmra.mxu0 %v560
      %v2614 = vpop.f32.mrf.mxu0
      %v2615 = vadd.f32 %v2566, %v2614
      %v2616 = vpop.f32.mrf.mxu0
      %v2617 = vadd.f32 %v2568, %v2616
      %2618 = vmatmul.bf16.gmra.mxu0 %v567
      %v2619 = vpop.f32.mrf.mxu0
      %v2620 = vadd.f32 %v2571, %v2619
      %v2621 = vpop.f32.mrf.mxu0
      %v2622 = vadd.f32 %v2573, %v2621
      %2623 = vmatmul.bf16.gmra.mxu0 %v574
      %v2624 = vpop.f32.mrf.mxu0
      %v2625 = vadd.f32 %v2576, %v2624
      %v2626 = vpop.f32.mrf.mxu0
      %v2627 = vadd.f32 %v2578, %v2626
      %2628 = vmatmul.bf16.gmra.mxu0 %v581
      %v2629 = vpop.f32.mrf.mxu0
      %v2630 = vadd.f32 %v2581, %v2629
      %v2631 = vpop.f32.mrf.mxu0
      %v2632 = vadd.f32 %v2583, %v2631
      %2633 = vmatmul.bf16.gmra.mxu0 %v588
      %v2634 = vpop.f32.mrf.mxu0
      %v2635 = vadd.f32 %v2586, %v2634
      %v2636 = vpop.f32.mrf.mxu0
      %v2637 = vadd.f32 %v2588, %v2636
      %2638 = vmatmul.bf16.gmra.mxu0 %v595
      %v2639 = vpop.f32.mrf.mxu0
      %v2640 = vadd.f32 %v2591, %v2639
      %v2641 = vpop.f32.mrf.mxu0
      %v2642 = vadd.f32 %v2593, %v2641
      %2643 = vdwg.mxu0
      %2644 = vmatpush.bf16.msra.mxu0 %v1520
      %2645 = vmatpush.bf16.msra.mxu0 %v1516
      %2646 = vmatpush.bf16.msra.mxu0 %v1512
      %2647 = vmatpush.bf16.msra.mxu0 %v1508
      %2648 = vmatpush.bf16.msra.mxu0 %v1504
      %2649 = vmatpush.bf16.msra.mxu0 %v1500
      %2650 = vmatpush.bf16.msra.mxu0 %v1496
      %2651 = vmatpush.bf16.msra.mxu0 %v1492
      %2652 = vmatmul.bf16.gmra.mxu0 %v547
      %v2653 = vpop.f32.mrf.mxu0
      %v2654 = vadd.f32 %v2605, %v2653
      %v2655 = vpop.f32.mrf.mxu0
      %v2656 = vadd.f32 %v2607, %v2655
      %2657 = vmatmul.bf16.gmra.mxu0 %v554
      %v2658 = vpop.f32.mrf.mxu0
      %v2659 = vadd.f32 %v2610, %v2658
      %v2660 = vpop.f32.mrf.mxu0
      %v2661 = vadd.f32 %v2612, %v2660
      %2662 = vmatmul.bf16.gmra.mxu0 %v561
      %v2663 = vpop.f32.mrf.mxu0
      %v2664 = vadd.f32 %v2615, %v2663
      %v2665 = vpop.f32.mrf.mxu0
      %v2666 = vadd.f32 %v2617, %v2665
      %2667 = vmatmul.bf16.gmra.mxu0 %v568
      %v2668 = vpop.f32.mrf.mxu0
      %v2669 = vadd.f32 %v2620, %v2668
      %v2670 = vpop.f32.mrf.mxu0
      %v2671 = vadd.f32 %v2622, %v2670
      %2672 = vmatmul.bf16.gmra.mxu0 %v575
      %v2673 = vpop.f32.mrf.mxu0
      %v2674 = vadd.f32 %v2625, %v2673
      %v2675 = vpop.f32.mrf.mxu0
      %v2676 = vadd.f32 %v2627, %v2675
      %2677 = vmatmul.bf16.gmra.mxu0 %v582
      %v2678 = vpop.f32.mrf.mxu0
      %v2679 = vadd.f32 %v2630, %v2678
      %v2680 = vpop.f32.mrf.mxu0
      %v2681 = vadd.f32 %v2632, %v2680
      %2682 = vmatmul.bf16.gmra.mxu0 %v589
      %v2683 = vpop.f32.mrf.mxu0
      %v2684 = vadd.f32 %v2635, %v2683
      %v2685 = vpop.f32.mrf.mxu0
      %v2686 = vadd.f32 %v2637, %v2685
      %2687 = vmatmul.bf16.gmra.mxu0 %v596
      %v2688 = vpop.f32.mrf.mxu0
      %v2689 = vadd.f32 %v2640, %v2688
      %v2690 = vpop.f32.mrf.mxu0
      %v2691 = vadd.f32 %v2642, %v2690
      %2692 = vdwg.mxu0
      %2693 = vmatpush.bf16.msra.mxu0 %v1552
      %2694 = vmatpush.bf16.msra.mxu0 %v1548
      %2695 = vmatpush.bf16.msra.mxu0 %v1544
      %2696 = vmatpush.bf16.msra.mxu0 %v1540
      %2697 = vmatpush.bf16.msra.mxu0 %v1536
      %2698 = vmatpush.bf16.msra.mxu0 %v1532
      %2699 = vmatpush.bf16.msra.mxu0 %v1528
      %2700 = vmatpush.bf16.msra.mxu0 %v1524
      %2701 = vmatmul.bf16.gmra.mxu0 %v548
      %v2702 = vpop.f32.mrf.mxu0
      %v2703 = vadd.f32 %v2654, %v2702
      %v2704 = vpop.f32.mrf.mxu0
      %v2705 = vadd.f32 %v2656, %v2704
      %2706 = vmatmul.bf16.gmra.mxu0 %v555
      %v2707 = vpop.f32.mrf.mxu0
      %v2708 = vadd.f32 %v2659, %v2707
      %v2709 = vpop.f32.mrf.mxu0
      %v2710 = vadd.f32 %v2661, %v2709
      %2711 = vmatmul.bf16.gmra.mxu0 %v562
      %v2712 = vpop.f32.mrf.mxu0
      %v2713 = vadd.f32 %v2664, %v2712
      %v2714 = vpop.f32.mrf.mxu0
      %v2715 = vadd.f32 %v2666, %v2714
      %2716 = vmatmul.bf16.gmra.mxu0 %v569
      %v2717 = vpop.f32.mrf.mxu0
      %v2718 = vadd.f32 %v2669, %v2717
      %v2719 = vpop.f32.mrf.mxu0
      %v2720 = vadd.f32 %v2671, %v2719
      %2721 = vmatmul.bf16.gmra.mxu0 %v576
      %v2722 = vpop.f32.mrf.mxu0
      %v2723 = vadd.f32 %v2674, %v2722
      %v2724 = vpop.f32.mrf.mxu0
      %v2725 = vadd.f32 %v2676, %v2724
      %2726 = vmatmul.bf16.gmra.mxu0 %v583
      %v2727 = vpop.f32.mrf.mxu0
      %v2728 = vadd.f32 %v2679, %v2727
      %v2729 = vpop.f32.mrf.mxu0
      %v2730 = vadd.f32 %v2681, %v2729
      %2731 = vmatmul.bf16.gmra.mxu0 %v590
      %v2732 = vpop.f32.mrf.mxu0
      %v2733 = vadd.f32 %v2684, %v2732
      %v2734 = vpop.f32.mrf.mxu0
      %v2735 = vadd.f32 %v2686, %v2734
      %2736 = vmatmul.bf16.gmra.mxu0 %v597
      %v2737 = vpop.f32.mrf.mxu0
      %v2738 = vadd.f32 %v2689, %v2737
      %v2739 = vpop.f32.mrf.mxu0
      %v2740 = vadd.f32 %v2691, %v2739
      %2741 = vdwg.mxu0
      %2742 = vmatpush.bf16.msra.mxu0 %v1584
      %2743 = vmatpush.bf16.msra.mxu0 %v1580
      %2744 = vmatpush.bf16.msra.mxu0 %v1576
      %2745 = vmatpush.bf16.msra.mxu0 %v1572
      %2746 = vmatpush.bf16.msra.mxu0 %v1568
      %2747 = vmatpush.bf16.msra.mxu0 %v1564
      %2748 = vmatpush.bf16.msra.mxu0 %v1560
      %2749 = vmatpush.bf16.msra.mxu0 %v1556
      %2750 = vmatmul.bf16.gmra.mxu0 %v549
      %v2751 = vpop.f32.mrf.mxu0
      %v2752 = vadd.f32 %v2703, %v2751
      %v2753 = vpop.f32.mrf.mxu0
      %v2754 = vadd.f32 %v2705, %v2753
      %2755 = vmatmul.bf16.gmra.mxu0 %v556
      %v2756 = vpop.f32.mrf.mxu0
      %v2757 = vadd.f32 %v2708, %v2756
      %v2758 = vpop.f32.mrf.mxu0
      %v2759 = vadd.f32 %v2710, %v2758
      %2760 = vmatmul.bf16.gmra.mxu0 %v563
      %v2761 = vpop.f32.mrf.mxu0
      %v2762 = vadd.f32 %v2713, %v2761
      %v2763 = vpop.f32.mrf.mxu0
      %v2764 = vadd.f32 %v2715, %v2763
      %2765 = vmatmul.bf16.gmra.mxu0 %v570
      %v2766 = vpop.f32.mrf.mxu0
      %v2767 = vadd.f32 %v2718, %v2766
      %v2768 = vpop.f32.mrf.mxu0
      %v2769 = vadd.f32 %v2720, %v2768
      %2770 = vmatmul.bf16.gmra.mxu0 %v577
      %v2771 = vpop.f32.mrf.mxu0
      %v2772 = vadd.f32 %v2723, %v2771
      %v2773 = vpop.f32.mrf.mxu0
      %v2774 = vadd.f32 %v2725, %v2773
      %2775 = vmatmul.bf16.gmra.mxu0 %v584
      %v2776 = vpop.f32.mrf.mxu0
      %v2777 = vadd.f32 %v2728, %v2776
      %v2778 = vpop.f32.mrf.mxu0
      %v2779 = vadd.f32 %v2730, %v2778
      %2780 = vmatmul.bf16.gmra.mxu0 %v591
      %v2781 = vpop.f32.mrf.mxu0
      %v2782 = vadd.f32 %v2733, %v2781
      %v2783 = vpop.f32.mrf.mxu0
      %v2784 = vadd.f32 %v2735, %v2783
      %2785 = vmatmul.bf16.gmra.mxu0 %v598
      %v2786 = vpop.f32.mrf.mxu0
      %v2787 = vadd.f32 %v2738, %v2786
      %v2788 = vpop.f32.mrf.mxu0
      %v2789 = vadd.f32 %v2740, %v2788
      %2790 = vdwg.mxu0
      %2791 = vmatpush.bf16.msra.mxu0 0
      %2792 = vmatpush.bf16.msra.mxu0 0
      %2793 = vmatpush.bf16.msra.mxu0 0
      %2794 = vmatpush.bf16.msra.mxu0 0
      %2795 = vmatpush.bf16.msra.mxu0 0
      %2796 = vmatpush.bf16.msra.mxu0 0
      %2797 = vmatpush.bf16.msra.mxu0 0
      %2798 = vmatpush.bf16.msra.mxu0 %v1588
      %2799 = vmatmul.bf16.gmra.mxu0 %v1788
      %v2800 = vpop.f32.mrf.mxu0
      %v2801 = vadd.f32 %v2752, %v2800
      %v2802 = vpop.f32.mrf.mxu0
      %v2803 = vadd.f32 %v2754, %v2802
      %2804 = vmatmul.bf16.gmra.mxu0 %v1791
      %v2805 = vpop.f32.mrf.mxu0
      %v2806 = vadd.f32 %v2757, %v2805
      %v2807 = vpop.f32.mrf.mxu0
      %v2808 = vadd.f32 %v2759, %v2807
      %2809 = vmatmul.bf16.gmra.mxu0 %v1794
      %v2810 = vpop.f32.mrf.mxu0
      %v2811 = vadd.f32 %v2762, %v2810
      %v2812 = vpop.f32.mrf.mxu0
      %v2813 = vadd.f32 %v2764, %v2812
      %2814 = vmatmul.bf16.gmra.mxu0 %v1797
      %v2815 = vpop.f32.mrf.mxu0
      %v2816 = vadd.f32 %v2767, %v2815
      %v2817 = vpop.f32.mrf.mxu0
      %v2818 = vadd.f32 %v2769, %v2817
      %2819 = vmatmul.bf16.gmra.mxu0 %v1800
      %v2820 = vpop.f32.mrf.mxu0
      %v2821 = vadd.f32 %v2772, %v2820
      %v2822 = vpop.f32.mrf.mxu0
      %v2823 = vadd.f32 %v2774, %v2822
      %2824 = vmatmul.bf16.gmra.mxu0 %v1803
      %v2825 = vpop.f32.mrf.mxu0
      %v2826 = vadd.f32 %v2777, %v2825
      %v2827 = vpop.f32.mrf.mxu0
      %v2828 = vadd.f32 %v2779, %v2827
      %2829 = vmatmul.bf16.gmra.mxu0 %v1806
      %v2830 = vpop.f32.mrf.mxu0
      %v2831 = vadd.f32 %v2782, %v2830
      %v2832 = vpop.f32.mrf.mxu0
      %v2833 = vadd.f32 %v2784, %v2832
      %2834 = vmatmul.bf16.gmra.mxu0 %v1809
      %v2835 = vpop.f32.mrf.mxu0
      %v2836 = vadd.f32 %v2787, %v2835
      %v2837 = vpop.f32.mrf.mxu0
      %v2838 = vadd.f32 %v2789, %v2837
      %2839 = vdwg.mxu0
      %2840 = vmatpush.bf16.msra.mxu0 %v1425
      %2841 = vmatpush.bf16.msra.mxu0 %v1421
      %2842 = vmatpush.bf16.msra.mxu0 %v1417
      %2843 = vmatpush.bf16.msra.mxu0 %v1413
      %2844 = vmatpush.bf16.msra.mxu0 %v1409
      %2845 = vmatpush.bf16.msra.mxu0 %v1405
      %2846 = vmatpush.bf16.msra.mxu0 %v1401
      %2847 = vmatpush.bf16.msra.mxu0 %v1397
      %2848 = vmatmul.bf16.gmra.mxu0 %v544
      %v2849 = vpop.f32.mrf.mxu0
      %v2850 = vadd.f32 %v801, %v2849
      %v2851 = vpop.f32.mrf.mxu0
      %v2852 = vadd.f32 %v801, %v2851
      %2853 = vmatmul.bf16.gmra.mxu0 %v551
      %v2854 = vpop.f32.mrf.mxu0
      %v2855 = vadd.f32 %v801, %v2854
      %v2856 = vpop.f32.mrf.mxu0
      %v2857 = vadd.f32 %v801, %v2856
      %2858 = vmatmul.bf16.gmra.mxu0 %v558
      %v2859 = vpop.f32.mrf.mxu0
      %v2860 = vadd.f32 %v801, %v2859
      %v2861 = vpop.f32.mrf.mxu0
      %v2862 = vadd.f32 %v801, %v2861
      %2863 = vmatmul.bf16.gmra.mxu0 %v565
      %v2864 = vpop.f32.mrf.mxu0
      %v2865 = vadd.f32 %v801, %v2864
      %v2866 = vpop.f32.mrf.mxu0
      %v2867 = vadd.f32 %v801, %v2866
      %2868 = vmatmul.bf16.gmra.mxu0 %v572
      %v2869 = vpop.f32.mrf.mxu0
      %v2870 = vadd.f32 %v801, %v2869
      %v2871 = vpop.f32.mrf.mxu0
      %v2872 = vadd.f32 %v801, %v2871
      %2873 = vmatmul.bf16.gmra.mxu0 %v579
      %v2874 = vpop.f32.mrf.mxu0
      %v2875 = vadd.f32 %v801, %v2874
      %v2876 = vpop.f32.mrf.mxu0
      %v2877 = vadd.f32 %v801, %v2876
      %2878 = vmatmul.bf16.gmra.mxu0 %v586
      %v2879 = vpop.f32.mrf.mxu0
      %v2880 = vadd.f32 %v801, %v2879
      %v2881 = vpop.f32.mrf.mxu0
      %v2882 = vadd.f32 %v801, %v2881
      %2883 = vmatmul.bf16.gmra.mxu0 %v593
      %v2884 = vpop.f32.mrf.mxu0
      %v2885 = vadd.f32 %v801, %v2884
      %v2886 = vpop.f32.mrf.mxu0
      %v2887 = vadd.f32 %v801, %v2886
      %2888 = vdwg.mxu0
      %2889 = vmatpush.bf16.msra.mxu0 %v1457
      %2890 = vmatpush.bf16.msra.mxu0 %v1453
      %2891 = vmatpush.bf16.msra.mxu0 %v1449
      %2892 = vmatpush.bf16.msra.mxu0 %v1445
      %2893 = vmatpush.bf16.msra.mxu0 %v1441
      %2894 = vmatpush.bf16.msra.mxu0 %v1437
      %2895 = vmatpush.bf16.msra.mxu0 %v1433
      %2896 = vmatpush.bf16.msra.mxu0 %v1429
      %2897 = vmatmul.bf16.gmra.mxu0 %v545
      %v2898 = vpop.f32.mrf.mxu0
      %v2899 = vadd.f32 %v2850, %v2898
      %v2900 = vpop.f32.mrf.mxu0
      %v2901 = vadd.f32 %v2852, %v2900
      %2902 = vmatmul.bf16.gmra.mxu0 %v552
      %v2903 = vpop.f32.mrf.mxu0
      %v2904 = vadd.f32 %v2855, %v2903
      %v2905 = vpop.f32.mrf.mxu0
      %v2906 = vadd.f32 %v2857, %v2905
      %2907 = vmatmul.bf16.gmra.mxu0 %v559
      %v2908 = vpop.f32.mrf.mxu0
      %v2909 = vadd.f32 %v2860, %v2908
      %v2910 = vpop.f32.mrf.mxu0
      %v2911 = vadd.f32 %v2862, %v2910
      %2912 = vmatmul.bf16.gmra.mxu0 %v566
      %v2913 = vpop.f32.mrf.mxu0
      %v2914 = vadd.f32 %v2865, %v2913
      %v2915 = vpop.f32.mrf.mxu0
      %v2916 = vadd.f32 %v2867, %v2915
      %2917 = vmatmul.bf16.gmra.mxu0 %v573
      %v2918 = vpop.f32.mrf.mxu0
      %v2919 = vadd.f32 %v2870, %v2918
      %v2920 = vpop.f32.mrf.mxu0
      %v2921 = vadd.f32 %v2872, %v2920
      %2922 = vmatmul.bf16.gmra.mxu0 %v580
      %v2923 = vpop.f32.mrf.mxu0
      %v2924 = vadd.f32 %v2875, %v2923
      %v2925 = vpop.f32.mrf.mxu0
      %v2926 = vadd.f32 %v2877, %v2925
      %2927 = vmatmul.bf16.gmra.mxu0 %v587
      %v2928 = vpop.f32.mrf.mxu0
      %v2929 = vadd.f32 %v2880, %v2928
      %v2930 = vpop.f32.mrf.mxu0
      %v2931 = vadd.f32 %v2882, %v2930
      %2932 = vmatmul.bf16.gmra.mxu0 %v594
      %v2933 = vpop.f32.mrf.mxu0
      %v2934 = vadd.f32 %v2885, %v2933
      %v2935 = vpop.f32.mrf.mxu0
      %v2936 = vadd.f32 %v2887, %v2935
      %2937 = vdwg.mxu0
      %2938 = vmatpush.bf16.msra.mxu0 %v1489
      %2939 = vmatpush.bf16.msra.mxu0 %v1485
      %2940 = vmatpush.bf16.msra.mxu0 %v1481
      %2941 = vmatpush.bf16.msra.mxu0 %v1477
      %2942 = vmatpush.bf16.msra.mxu0 %v1473
      %2943 = vmatpush.bf16.msra.mxu0 %v1469
      %2944 = vmatpush.bf16.msra.mxu0 %v1465
      %2945 = vmatpush.bf16.msra.mxu0 %v1461
      %2946 = vmatmul.bf16.gmra.mxu0 %v546
      %v2947 = vpop.f32.mrf.mxu0
      %v2948 = vadd.f32 %v2899, %v2947
      %v2949 = vpop.f32.mrf.mxu0
      %v2950 = vadd.f32 %v2901, %v2949
      %2951 = vmatmul.bf16.gmra.mxu0 %v553
      %v2952 = vpop.f32.mrf.mxu0
      %v2953 = vadd.f32 %v2904, %v2952
      %v2954 = vpop.f32.mrf.mxu0
      %v2955 = vadd.f32 %v2906, %v2954
      %2956 = vmatmul.bf16.gmra.mxu0 %v560
      %v2957 = vpop.f32.mrf.mxu0
      %v2958 = vadd.f32 %v2909, %v2957
      %v2959 = vpop.f32.mrf.mxu0
      %v2960 = vadd.f32 %v2911, %v2959
      %2961 = vmatmul.bf16.gmra.mxu0 %v567
      %v2962 = vpop.f32.mrf.mxu0
      %v2963 = vadd.f32 %v2914, %v2962
      %v2964 = vpop.f32.mrf.mxu0
      %v2965 = vadd.f32 %v2916, %v2964
      %2966 = vmatmul.bf16.gmra.mxu0 %v574
      %v2967 = vpop.f32.mrf.mxu0
      %v2968 = vadd.f32 %v2919, %v2967
      %v2969 = vpop.f32.mrf.mxu0
      %v2970 = vadd.f32 %v2921, %v2969
      %2971 = vmatmul.bf16.gmra.mxu0 %v581
      %v2972 = vpop.f32.mrf.mxu0
      %v2973 = vadd.f32 %v2924, %v2972
      %v2974 = vpop.f32.mrf.mxu0
      %v2975 = vadd.f32 %v2926, %v2974
      %2976 = vmatmul.bf16.gmra.mxu0 %v588
      %v2977 = vpop.f32.mrf.mxu0
      %v2978 = vadd.f32 %v2929, %v2977
      %v2979 = vpop.f32.mrf.mxu0
      %v2980 = vadd.f32 %v2931, %v2979
      %2981 = vmatmul.bf16.gmra.mxu0 %v595
      %v2982 = vpop.f32.mrf.mxu0
      %v2983 = vadd.f32 %v2934, %v2982
      %v2984 = vpop.f32.mrf.mxu0
      %v2985 = vadd.f32 %v2936, %v2984
      %2986 = vdwg.mxu0
      %2987 = vmatpush.bf16.msra.mxu0 %v1521
      %2988 = vmatpush.bf16.msra.mxu0 %v1517
      %2989 = vmatpush.bf16.msra.mxu0 %v1513
      %2990 = vmatpush.bf16.msra.mxu0 %v1509
      %2991 = vmatpush.bf16.msra.mxu0 %v1505
      %2992 = vmatpush.bf16.msra.mxu0 %v1501
      %2993 = vmatpush.bf16.msra.mxu0 %v1497
      %2994 = vmatpush.bf16.msra.mxu0 %v1493
      %2995 = vmatmul.bf16.gmra.mxu0 %v547
      %v2996 = vpop.f32.mrf.mxu0
      %v2997 = vadd.f32 %v2948, %v2996
      %v2998 = vpop.f32.mrf.mxu0
      %v2999 = vadd.f32 %v2950, %v2998
      %3000 = vmatmul.bf16.gmra.mxu0 %v554
      %v3001 = vpop.f32.mrf.mxu0
      %v3002 = vadd.f32 %v2953, %v3001
      %v3003 = vpop.f32.mrf.mxu0
      %v3004 = vadd.f32 %v2955, %v3003
      %3005 = vmatmul.bf16.gmra.mxu0 %v561
      %v3006 = vpop.f32.mrf.mxu0
      %v3007 = vadd.f32 %v2958, %v3006
      %v3008 = vpop.f32.mrf.mxu0
      %v3009 = vadd.f32 %v2960, %v3008
      %3010 = vmatmul.bf16.gmra.mxu0 %v568
      %v3011 = vpop.f32.mrf.mxu0
      %v3012 = vadd.f32 %v2963, %v3011
      %v3013 = vpop.f32.mrf.mxu0
      %v3014 = vadd.f32 %v2965, %v3013
      %3015 = vmatmul.bf16.gmra.mxu0 %v575
      %v3016 = vpop.f32.mrf.mxu0
      %v3017 = vadd.f32 %v2968, %v3016
      %v3018 = vpop.f32.mrf.mxu0
      %v3019 = vadd.f32 %v2970, %v3018
      %3020 = vmatmul.bf16.gmra.mxu0 %v582
      %v3021 = vpop.f32.mrf.mxu0
      %v3022 = vadd.f32 %v2973, %v3021
      %v3023 = vpop.f32.mrf.mxu0
      %v3024 = vadd.f32 %v2975, %v3023
      %3025 = vmatmul.bf16.gmra.mxu0 %v589
      %v3026 = vpop.f32.mrf.mxu0
      %v3027 = vadd.f32 %v2978, %v3026
      %v3028 = vpop.f32.mrf.mxu0
      %v3029 = vadd.f32 %v2980, %v3028
      %3030 = vmatmul.bf16.gmra.mxu0 %v596
      %v3031 = vpop.f32.mrf.mxu0
      %v3032 = vadd.f32 %v2983, %v3031
      %v3033 = vpop.f32.mrf.mxu0
      %v3034 = vadd.f32 %v2985, %v3033
      %3035 = vdwg.mxu0
      %3036 = vmatpush.bf16.msra.mxu0 %v1553
      %3037 = vmatpush.bf16.msra.mxu0 %v1549
      %3038 = vmatpush.bf16.msra.mxu0 %v1545
      %3039 = vmatpush.bf16.msra.mxu0 %v1541
      %3040 = vmatpush.bf16.msra.mxu0 %v1537
      %3041 = vmatpush.bf16.msra.mxu0 %v1533
      %3042 = vmatpush.bf16.msra.mxu0 %v1529
      %3043 = vmatpush.bf16.msra.mxu0 %v1525
      %3044 = vmatmul.bf16.gmra.mxu0 %v548
      %v3045 = vpop.f32.mrf.mxu0
      %v3046 = vadd.f32 %v2997, %v3045
      %v3047 = vpop.f32.mrf.mxu0
      %v3048 = vadd.f32 %v2999, %v3047
      %3049 = vmatmul.bf16.gmra.mxu0 %v555
      %v3050 = vpop.f32.mrf.mxu0
      %v3051 = vadd.f32 %v3002, %v3050
      %v3052 = vpop.f32.mrf.mxu0
      %v3053 = vadd.f32 %v3004, %v3052
      %3054 = vmatmul.bf16.gmra.mxu0 %v562
      %v3055 = vpop.f32.mrf.mxu0
      %v3056 = vadd.f32 %v3007, %v3055
      %v3057 = vpop.f32.mrf.mxu0
      %v3058 = vadd.f32 %v3009, %v3057
      %3059 = vmatmul.bf16.gmra.mxu0 %v569
      %v3060 = vpop.f32.mrf.mxu0
      %v3061 = vadd.f32 %v3012, %v3060
      %v3062 = vpop.f32.mrf.mxu0
      %v3063 = vadd.f32 %v3014, %v3062
      %3064 = vmatmul.bf16.gmra.mxu0 %v576
      %v3065 = vpop.f32.mrf.mxu0
      %v3066 = vadd.f32 %v3017, %v3065
      %v3067 = vpop.f32.mrf.mxu0
      %v3068 = vadd.f32 %v3019, %v3067
      %3069 = vmatmul.bf16.gmra.mxu0 %v583
      %v3070 = vpop.f32.mrf.mxu0
      %v3071 = vadd.f32 %v3022, %v3070
      %v3072 = vpop.f32.mrf.mxu0
      %v3073 = vadd.f32 %v3024, %v3072
      %3074 = vmatmul.bf16.gmra.mxu0 %v590
      %v3075 = vpop.f32.mrf.mxu0
      %v3076 = vadd.f32 %v3027, %v3075
      %v3077 = vpop.f32.mrf.mxu0
      %v3078 = vadd.f32 %v3029, %v3077
      %3079 = vmatmul.bf16.gmra.mxu0 %v597
      %v3080 = vpop.f32.mrf.mxu0
      %v3081 = vadd.f32 %v3032, %v3080
      %v3082 = vpop.f32.mrf.mxu0
      %v3083 = vadd.f32 %v3034, %v3082
      %3084 = vdwg.mxu0
      %3085 = vmatpush.bf16.msra.mxu0 %v1585
      %3086 = vmatpush.bf16.msra.mxu0 %v1581
      %3087 = vmatpush.bf16.msra.mxu0 %v1577
      %3088 = vmatpush.bf16.msra.mxu0 %v1573
      %3089 = vmatpush.bf16.msra.mxu0 %v1569
      %3090 = vmatpush.bf16.msra.mxu0 %v1565
      %3091 = vmatpush.bf16.msra.mxu0 %v1561
      %3092 = vmatpush.bf16.msra.mxu0 %v1557
      %3093 = vmatmul.bf16.gmra.mxu0 %v549
      %v3094 = vpop.f32.mrf.mxu0
      %v3095 = vadd.f32 %v3046, %v3094
      %v3096 = vpop.f32.mrf.mxu0
      %v3097 = vadd.f32 %v3048, %v3096
      %3098 = vmatmul.bf16.gmra.mxu0 %v556
      %v3099 = vpop.f32.mrf.mxu0
      %v3100 = vadd.f32 %v3051, %v3099
      %v3101 = vpop.f32.mrf.mxu0
      %v3102 = vadd.f32 %v3053, %v3101
      %3103 = vmatmul.bf16.gmra.mxu0 %v563
      %v3104 = vpop.f32.mrf.mxu0
      %v3105 = vadd.f32 %v3056, %v3104
      %v3106 = vpop.f32.mrf.mxu0
      %v3107 = vadd.f32 %v3058, %v3106
      %3108 = vmatmul.bf16.gmra.mxu0 %v570
      %v3109 = vpop.f32.mrf.mxu0
      %v3110 = vadd.f32 %v3061, %v3109
      %v3111 = vpop.f32.mrf.mxu0
      %v3112 = vadd.f32 %v3063, %v3111
      %3113 = vmatmul.bf16.gmra.mxu0 %v577
      %v3114 = vpop.f32.mrf.mxu0
      %v3115 = vadd.f32 %v3066, %v3114
      %v3116 = vpop.f32.mrf.mxu0
      %v3117 = vadd.f32 %v3068, %v3116
      %3118 = vmatmul.bf16.gmra.mxu0 %v584
      %v3119 = vpop.f32.mrf.mxu0
      %v3120 = vadd.f32 %v3071, %v3119
      %v3121 = vpop.f32.mrf.mxu0
      %v3122 = vadd.f32 %v3073, %v3121
      %3123 = vmatmul.bf16.gmra.mxu0 %v591
      %v3124 = vpop.f32.mrf.mxu0
      %v3125 = vadd.f32 %v3076, %v3124
      %v3126 = vpop.f32.mrf.mxu0
      %v3127 = vadd.f32 %v3078, %v3126
      %3128 = vmatmul.bf16.gmra.mxu0 %v598
      %v3129 = vpop.f32.mrf.mxu0
      %v3130 = vadd.f32 %v3081, %v3129
      %v3131 = vpop.f32.mrf.mxu0
      %v3132 = vadd.f32 %v3083, %v3131
      %3133 = vdwg.mxu0
      %3134 = vmatpush.bf16.msra.mxu0 0
      %3135 = vmatpush.bf16.msra.mxu0 0
      %3136 = vmatpush.bf16.msra.mxu0 0
      %3137 = vmatpush.bf16.msra.mxu0 0
      %3138 = vmatpush.bf16.msra.mxu0 0
      %3139 = vmatpush.bf16.msra.mxu0 0
      %3140 = vmatpush.bf16.msra.mxu0 0
      %3141 = vmatpush.bf16.msra.mxu0 %v1589
      %3142 = vmatmul.bf16.gmra.mxu0 %v1788
      %v3143 = vpop.f32.mrf.mxu0
      %v3144 = vadd.f32 %v3095, %v3143
      %v3145 = vpop.f32.mrf.mxu0
      %v3146 = vadd.f32 %v3097, %v3145
      %3147 = vmatmul.bf16.gmra.mxu0 %v1791
      %v3148 = vpop.f32.mrf.mxu0
      %v3149 = vadd.f32 %v3100, %v3148
      %v3150 = vpop.f32.mrf.mxu0
      %v3151 = vadd.f32 %v3102, %v3150
      %3152 = vmatmul.bf16.gmra.mxu0 %v1794
      %v3153 = vpop.f32.mrf.mxu0
      %v3154 = vadd.f32 %v3105, %v3153
      %v3155 = vpop.f32.mrf.mxu0
      %v3156 = vadd.f32 %v3107, %v3155
      %3157 = vmatmul.bf16.gmra.mxu0 %v1797
      %v3158 = vpop.f32.mrf.mxu0
      %v3159 = vadd.f32 %v3110, %v3158
      %v3160 = vpop.f32.mrf.mxu0
      %v3161 = vadd.f32 %v3112, %v3160
      %3162 = vmatmul.bf16.gmra.mxu0 %v1800
      %v3163 = vpop.f32.mrf.mxu0
      %v3164 = vadd.f32 %v3115, %v3163
      %v3165 = vpop.f32.mrf.mxu0
      %v3166 = vadd.f32 %v3117, %v3165
      %3167 = vmatmul.bf16.gmra.mxu0 %v1803
      %v3168 = vpop.f32.mrf.mxu0
      %v3169 = vadd.f32 %v3120, %v3168
      %v3170 = vpop.f32.mrf.mxu0
      %v3171 = vadd.f32 %v3122, %v3170
      %3172 = vmatmul.bf16.gmra.mxu0 %v1806
      %v3173 = vpop.f32.mrf.mxu0
      %v3174 = vadd.f32 %v3125, %v3173
      %v3175 = vpop.f32.mrf.mxu0
      %v3176 = vadd.f32 %v3127, %v3175
      %3177 = vmatmul.bf16.gmra.mxu0 %v1809
      %v3178 = vpop.f32.mrf.mxu0
      %v3179 = vadd.f32 %v3130, %v3178
      %v3180 = vpop.f32.mrf.mxu0
      %v3181 = vadd.f32 %v3132, %v3180
      %3182 = vdwg.mxu0
      %v3183 = vmax.f32 %v2115, 0.0
      %v3184 = vmax.f32 %v2458, 0.0
      %v3185 = vmax.f32 %v2801, 0.0
      %v3186 = vmax.f32 %v3144, 0.0
      %v3187 = vmax.f32 %v2117, 0.0
      %v3188 = vmax.f32 %v2460, 0.0
      %v3189 = vmax.f32 %v2803, 0.0
      %v3190 = vmax.f32 %v3146, 0.0
      %v3191 = vmax.f32 %v2120, 0.0
      %v3192 = vmax.f32 %v2463, 0.0
      %v3193 = vmax.f32 %v2806, 0.0
      %v3194 = vmax.f32 %v3149, 0.0
      %v3195 = vmax.f32 %v2122, 0.0
      %v3196 = vmax.f32 %v2465, 0.0
      %v3197 = vmax.f32 %v2808, 0.0
      %v3198 = vmax.f32 %v3151, 0.0
      %v3199 = vmax.f32 %v2125, 0.0
      %v3200 = vmax.f32 %v2468, 0.0
      %v3201 = vmax.f32 %v2811, 0.0
      %v3202 = vmax.f32 %v3154, 0.0
      %v3203 = vmax.f32 %v2127, 0.0
      %v3204 = vmax.f32 %v2470, 0.0
      %v3205 = vmax.f32 %v2813, 0.0
      %v3206 = vmax.f32 %v3156, 0.0
      %v3207 = vmax.f32 %v2130, 0.0
      %v3208 = vmax.f32 %v2473, 0.0
      %v3209 = vmax.f32 %v2816, 0.0
      %v3210 = vmax.f32 %v3159, 0.0
      %v3211 = vmax.f32 %v2132, 0.0
      %v3212 = vmax.f32 %v2475, 0.0
      %v3213 = vmax.f32 %v2818, 0.0
      %v3214 = vmax.f32 %v3161, 0.0
      %v3215 = vmax.f32 %v2135, 0.0
      %v3216 = vmax.f32 %v2478, 0.0
      %v3217 = vmax.f32 %v2821, 0.0
      %v3218 = vmax.f32 %v3164, 0.0
      %v3219 = vmax.f32 %v2137, 0.0
      %v3220 = vmax.f32 %v2480, 0.0
      %v3221 = vmax.f32 %v2823, 0.0
      %v3222 = vmax.f32 %v3166, 0.0
      %v3223 = vmax.f32 %v2140, 0.0
      %v3224 = vmax.f32 %v2483, 0.0
      %v3225 = vmax.f32 %v2826, 0.0
      %v3226 = vmax.f32 %v3169, 0.0
      %v3227 = vmax.f32 %v2142, 0.0
      %v3228 = vmax.f32 %v2485, 0.0
      %v3229 = vmax.f32 %v2828, 0.0
      %v3230 = vmax.f32 %v3171, 0.0
      %v3231 = vmax.f32 %v2145, 0.0
      %v3232 = vmax.f32 %v2488, 0.0
      %v3233 = vmax.f32 %v2831, 0.0
      %v3234 = vmax.f32 %v3174, 0.0
      %v3235 = vmax.f32 %v2147, 0.0
      %v3236 = vmax.f32 %v2490, 0.0
      %v3237 = vmax.f32 %v2833, 0.0
      %v3238 = vmax.f32 %v3176, 0.0
      %v3239 = vmax.f32 %v2150, 0.0
      %v3240 = vmax.f32 %v2493, 0.0
      %v3241 = vmax.f32 %v2836, 0.0
      %v3242 = vmax.f32 %v3179, 0.0
      %v3243 = vmax.f32 %v2152, 0.0
      %v3244 = vmax.f32 %v2495, 0.0
      %v3245 = vmax.f32 %v2838, 0.0
      %v3246 = vmax.f32 %v3181, 0.0
      %v3247 = vpack.c.bf16 %v3187, %v3183
      %v3248 = vpack.c.bf16 %v3188, %v3184
      %v3249 = vpack.c.bf16 %v3189, %v3185
      %v3250 = vpack.c.bf16 %v3190, %v3186
      %v3251 = vpack.c.bf16 %v3195, %v3191
      %v3252 = vpack.c.bf16 %v3196, %v3192
      %v3253 = vpack.c.bf16 %v3197, %v3193
      %v3254 = vpack.c.bf16 %v3198, %v3194
      %v3255 = vpack.c.bf16 %v3203, %v3199
      %v3256 = vpack.c.bf16 %v3204, %v3200
      %v3257 = vpack.c.bf16 %v3205, %v3201
      %v3258 = vpack.c.bf16 %v3206, %v3202
      %v3259 = vpack.c.bf16 %v3211, %v3207
      %v3260 = vpack.c.bf16 %v3212, %v3208
      %v3261 = vpack.c.bf16 %v3213, %v3209
      %v3262 = vpack.c.bf16 %v3214, %v3210
      %v3263 = vpack.c.bf16 %v3219, %v3215
      %v3264 = vpack.c.bf16 %v3220, %v3216
      %v3265 = vpack.c.bf16 %v3221, %v3217
      %v3266 = vpack.c.bf16 %v3222, %v3218
      %v3267 = vpack.c.bf16 %v3227, %v3223
      %v3268 = vpack.c.bf16 %v3228, %v3224
      %v3269 = vpack.c.bf16 %v3229, %v3225
      %v3270 = vpack.c.bf16 %v3230, %v3226
      %v3271 = vpack.c.bf16 %v3235, %v3231
      %v3272 = vpack.c.bf16 %v3236, %v3232
      %v3273 = vpack.c.bf16 %v3237, %v3233
      %v3274 = vpack.c.bf16 %v3238, %v3234
      %v3275 = vpack.c.bf16 %v3243, %v3239
      %v3276 = vpack.c.bf16 %v3244, %v3240
      %v3277 = vpack.c.bf16 %v3245, %v3241
      %v3278 = vpack.c.bf16 %v3246, %v3242
      %v3279 = vld [vmem:[%s3] sm:$0xf]
      %v3280 = vld [vmem:[%s3 + $0x4] sm:$0xf]
      %v3281 = vld [vmem:[%s3 + $0x8] sm:$0xf]
      %v3282 = vld [vmem:[%s3 + $0xc] sm:$0xf]
      %v3283 = vld [vmem:[%s3 + $0x10] sm:$0xf]
      %v3284 = vld [vmem:[%s3 + $0x14] sm:$0xf]
      %v3285 = vld [vmem:[%s3 + $0x18] sm:$0xf]
      %v3286 = vld [vmem:[%s3 + $0x1c] sm:$0xf]
      %v3287 = vld [vmem:[%s3 + $0x20] sm:$0xf]
      %v3288 = vld [vmem:[%s3 + $0x24] sm:$0xf]
      %v3289 = vld [vmem:[%s3 + $0x28] sm:$0xf]
      %v3290 = vld [vmem:[%s3 + $0x2c] sm:$0xf]
      %v3291 = vld [vmem:[%s3 + $0x30] sm:$0xf]
      %v3292 = vld [vmem:[%s3 + $0x34] sm:$0xf]
      %v3293 = vld [vmem:[%s3 + $0x38] sm:$0xf]
      %v3294 = vld [vmem:[%s3 + $0x3c] sm:$0xf]
      %v3295 = vld [vmem:[%s3 + $0x40] sm:$0xf]
      %v3296 = vld [vmem:[%s3 + $0x44] sm:$0xf]
      %v3297 = vld [vmem:[%s3 + $0x48] sm:$0xf]
      %v3298 = vld [vmem:[%s3 + $0x4c] sm:$0xf]
      %v3299 = vld [vmem:[%s3 + $0x50] sm:$0xf]
      %v3300 = vld [vmem:[%s3 + $0x54] sm:$0xf]
      %v3301 = vld [vmem:[%s3 + $0x58] sm:$0xf]
      %v3302 = vld [vmem:[%s3 + $0x5c] sm:$0xf]
      %v3303 = vld [vmem:[%s3 + $0x60] sm:$0xf]
      %v3304 = vld [vmem:[%s3 + $0x64] sm:$0xf]
      %v3305 = vld [vmem:[%s3 + $0x68] sm:$0xf]
      %v3306 = vld [vmem:[%s3 + $0x6c] sm:$0xf]
      %v3307 = vld [vmem:[%s3 + $0x70] sm:$0xf]
      %v3308 = vld [vmem:[%s3 + $0x74] sm:$0xf]
      %v3309 = vld [vmem:[%s3 + $0x78] sm:$0xf]
      %v3310 = vld [vmem:[%s3 + $0x7c] sm:$0xf]
      %v3311 = vld [vmem:[%s3 + $0x80] sm:$0xf]
      %v3312 = vld [vmem:[%s3 + $0x84] sm:$0xf]
      %v3313 = vld [vmem:[%s3 + $0x88] sm:$0xf]
      %v3314 = vld [vmem:[%s3 + $0x8c] sm:$0xf]
      %v3315 = vld [vmem:[%s3 + $0x90] sm:$0xf]
      %v3316 = vld [vmem:[%s3 + $0x94] sm:$0xf]
      %v3317 = vld [vmem:[%s3 + $0x98] sm:$0xf]
      %v3318 = vld [vmem:[%s3 + $0x9c] sm:$0xf]
      %v3319 = vld [vmem:[%s3 + $0xa0] sm:$0xf]
      %v3320 = vld [vmem:[%s3 + $0xa4] sm:$0xf]
      %v3321 = vld [vmem:[%s3 + $0xa8] sm:$0xf]
      %v3322 = vld [vmem:[%s3 + $0xac] sm:$0xf]
      %v3323 = vld [vmem:[%s3 + $0xb0] sm:$0xf]
      %v3324 = vld [vmem:[%s3 + $0xb4] sm:$0xf]
      %v3325 = vld [vmem:[%s3 + $0xb8] sm:$0xf]
      %v3326 = vld [vmem:[%s3 + $0xbc] sm:$0xf]
      %v3327 = vld [vmem:[%s3 + $0xc0] sm:$0xf]
      %v3328 = vld [vmem:[%s3 + $0xc4] sm:$0xf]
      %v3329 = vld [vmem:[%s4] sm:$0x1]
      %v3331 = vperm.slane %v3329, 0
      %v3383 = vunpack.c.l.b16 %v3279
      %v3384 = vunpack.c.l.b16 %v3280
      %v3385 = vunpack.c.l.b16 %v3281
      %v3386 = vunpack.c.l.b16 %v3282
      %v3387 = vunpack.c.l.b16 %v3283
      %v3388 = vunpack.c.l.b16 %v3284
      %v3389 = vunpack.c.l.b16 %v3285
      %v3390 = vunpack.c.l.b16 %v3286
      %v3391 = vunpack.c.l.b16 %v3287
      %v3392 = vunpack.c.l.b16 %v3288
      %v3393 = vunpack.c.l.b16 %v3289
      %v3394 = vunpack.c.l.b16 %v3290
      %v3395 = vunpack.c.l.b16 %v3291
      %v3396 = vunpack.c.l.b16 %v3292
      %v3397 = vunpack.c.l.b16 %v3293
      %v3398 = vunpack.c.l.b16 %v3294
      %v3399 = vunpack.c.l.b16 %v3295
      %v3400 = vunpack.c.l.b16 %v3296
      %v3401 = vunpack.c.l.b16 %v3297
      %v3402 = vunpack.c.l.b16 %v3298
      %v3403 = vunpack.c.l.b16 %v3299
      %v3404 = vunpack.c.l.b16 %v3300
      %v3405 = vunpack.c.l.b16 %v3301
      %v3406 = vunpack.c.l.b16 %v3302
      %v3407 = vunpack.c.l.b16 %v3303
      %v3408 = vunpack.c.l.b16 %v3304
      %v3409 = vunpack.c.l.b16 %v3305
      %v3410 = vunpack.c.l.b16 %v3306
      %v3411 = vunpack.c.l.b16 %v3307
      %v3412 = vunpack.c.l.b16 %v3308
      %v3413 = vunpack.c.l.b16 %v3309
      %v3414 = vunpack.c.l.b16 %v3310
      %v3415 = vunpack.c.l.b16 %v3311
      %v3416 = vunpack.c.l.b16 %v3312
      %v3417 = vunpack.c.l.b16 %v3313
      %v3418 = vunpack.c.l.b16 %v3314
      %v3419 = vunpack.c.l.b16 %v3315
      %v3420 = vunpack.c.l.b16 %v3316
      %v3421 = vunpack.c.l.b16 %v3317
      %v3422 = vunpack.c.l.b16 %v3318
      %v3423 = vunpack.c.l.b16 %v3319
      %v3424 = vunpack.c.l.b16 %v3320
      %v3425 = vunpack.c.l.b16 %v3321
      %v3426 = vunpack.c.l.b16 %v3322
      %v3427 = vunpack.c.l.b16 %v3323
      %v3428 = vunpack.c.l.b16 %v3324
      %v3429 = vunpack.c.l.b16 %v3325
      %v3430 = vunpack.c.l.b16 %v3326
      %v3431 = vunpack.c.l.b16 %v3327
      %v3432 = vunpack.c.l.b16 %v3328
      %v3433 = vpack.c.b16 %v3384, %v3383
      %v3434 = vpack.c.b16 %v3386, %v3385
      %v3435 = vpack.c.b16 %v3388, %v3387
      %v3436 = vpack.c.b16 %v3390, %v3389
      %v3437 = vpack.c.b16 %v3392, %v3391
      %v3438 = vpack.c.b16 %v3394, %v3393
      %v3439 = vpack.c.b16 %v3396, %v3395
      %v3440 = vpack.c.b16 %v3398, %v3397
      %v3441 = vpack.c.b16 %v3400, %v3399
      %v3442 = vpack.c.b16 %v3402, %v3401
      %v3443 = vpack.c.b16 %v3404, %v3403
      %v3444 = vpack.c.b16 %v3406, %v3405
      %v3445 = vpack.c.b16 %v3408, %v3407
      %v3446 = vpack.c.b16 %v3410, %v3409
      %v3447 = vpack.c.b16 %v3412, %v3411
      %v3448 = vpack.c.b16 %v3414, %v3413
      %v3449 = vpack.c.b16 %v3416, %v3415
      %v3450 = vpack.c.b16 %v3418, %v3417
      %v3451 = vpack.c.b16 %v3420, %v3419
      %v3452 = vpack.c.b16 %v3422, %v3421
      %v3453 = vpack.c.b16 %v3424, %v3423
      %v3454 = vpack.c.b16 %v3426, %v3425
      %v3455 = vpack.c.b16 %v3428, %v3427
      %v3456 = vpack.c.b16 %v3430, %v3429
      %v3457 = vpack.c.b16 %v3432, %v3431
      %v3484 = vsel %vm1786, %v3250, 0
      %v3487 = vsel %vm1786, %v3254, 0
      %v3490 = vsel %vm1786, %v3258, 0
      %v3493 = vsel %vm1786, %v3262, 0
      %v3496 = vsel %vm1786, %v3266, 0
      %v3499 = vsel %vm1786, %v3270, 0
      %v3502 = vsel %vm1786, %v3274, 0
      %v3505 = vsel %vm1786, %v3278, 0
      %3507 = vmatpush.bf16.msra.mxu0 %v3440
      %3508 = vmatpush.bf16.msra.mxu0 %v3439
      %3509 = vmatpush.bf16.msra.mxu0 %v3438
      %3510 = vmatpush.bf16.msra.mxu0 %v3437
      %3511 = vmatpush.bf16.msra.mxu0 %v3436
      %3512 = vmatpush.bf16.msra.mxu0 %v3435
      %3513 = vmatpush.bf16.msra.mxu0 %v3434
      %3514 = vmatpush.bf16.msra.mxu0 %v3433
      %3515 = vmatmul.bf16.gmra.mxu0 %v3247
      %v3516 = vpop.f32.mrf.mxu0
      %v3517 = vadd.f32 %v3331, %v3516
      %v3518 = vpop.f32.mrf.mxu0
      %v3519 = vadd.f32 %v3331, %v3518
      %3520 = vmatmul.bf16.gmra.mxu0 %v3251
      %v3521 = vpop.f32.mrf.mxu0
      %v3522 = vadd.f32 %v3331, %v3521
      %v3523 = vpop.f32.mrf.mxu0
      %v3524 = vadd.f32 %v3331, %v3523
      %3525 = vmatmul.bf16.gmra.mxu0 %v3255
      %v3526 = vpop.f32.mrf.mxu0
      %v3527 = vadd.f32 %v3331, %v3526
      %v3528 = vpop.f32.mrf.mxu0
      %v3529 = vadd.f32 %v3331, %v3528
      %3530 = vmatmul.bf16.gmra.mxu0 %v3259
      %v3531 = vpop.f32.mrf.mxu0
      %v3532 = vadd.f32 %v3331, %v3531
      %v3533 = vpop.f32.mrf.mxu0
      %v3534 = vadd.f32 %v3331, %v3533
      %3535 = vmatmul.bf16.gmra.mxu0 %v3263
      %v3536 = vpop.f32.mrf.mxu0
      %v3537 = vadd.f32 %v3331, %v3536
      %v3538 = vpop.f32.mrf.mxu0
      %v3539 = vadd.f32 %v3331, %v3538
      %3540 = vmatmul.bf16.gmra.mxu0 %v3267
      %v3541 = vpop.f32.mrf.mxu0
      %v3542 = vadd.f32 %v3331, %v3541
      %v3543 = vpop.f32.mrf.mxu0
      %v3544 = vadd.f32 %v3331, %v3543
      %3545 = vmatmul.bf16.gmra.mxu0 %v3271
      %v3546 = vpop.f32.mrf.mxu0
      %v3547 = vadd.f32 %v3331, %v3546
      %v3548 = vpop.f32.mrf.mxu0
      %v3549 = vadd.f32 %v3331, %v3548
      %3550 = vmatmul.bf16.gmra.mxu0 %v3275
      %v3551 = vpop.f32.mrf.mxu0
      %v3552 = vadd.f32 %v3331, %v3551
      %v3553 = vpop.f32.mrf.mxu0
      %v3554 = vadd.f32 %v3331, %v3553
      %3555 = vdwg.mxu0
      %3556 = vmatpush.bf16.msra.mxu0 %v3448
      %3557 = vmatpush.bf16.msra.mxu0 %v3447
      %3558 = vmatpush.bf16.msra.mxu0 %v3446
      %3559 = vmatpush.bf16.msra.mxu0 %v3445
      %3560 = vmatpush.bf16.msra.mxu0 %v3444
      %3561 = vmatpush.bf16.msra.mxu0 %v3443
      %3562 = vmatpush.bf16.msra.mxu0 %v3442
      %3563 = vmatpush.bf16.msra.mxu0 %v3441
      %3564 = vmatmul.bf16.gmra.mxu0 %v3248
      %v3565 = vpop.f32.mrf.mxu0
      %v3566 = vadd.f32 %v3517, %v3565
      %v3567 = vpop.f32.mrf.mxu0
      %v3568 = vadd.f32 %v3519, %v3567
      %3569 = vmatmul.bf16.gmra.mxu0 %v3252
      %v3570 = vpop.f32.mrf.mxu0
      %v3571 = vadd.f32 %v3522, %v3570
      %v3572 = vpop.f32.mrf.mxu0
      %v3573 = vadd.f32 %v3524, %v3572
      %3574 = vmatmul.bf16.gmra.mxu0 %v3256
      %v3575 = vpop.f32.mrf.mxu0
      %v3576 = vadd.f32 %v3527, %v3575
      %v3577 = vpop.f32.mrf.mxu0
      %v3578 = vadd.f32 %v3529, %v3577
      %3579 = vmatmul.bf16.gmra.mxu0 %v3260
      %v3580 = vpop.f32.mrf.mxu0
      %v3581 = vadd.f32 %v3532, %v3580
      %v3582 = vpop.f32.mrf.mxu0
      %v3583 = vadd.f32 %v3534, %v3582
      %3584 = vmatmul.bf16.gmra.mxu0 %v3264
      %v3585 = vpop.f32.mrf.mxu0
      %v3586 = vadd.f32 %v3537, %v3585
      %v3587 = vpop.f32.mrf.mxu0
      %v3588 = vadd.f32 %v3539, %v3587
      %3589 = vmatmul.bf16.gmra.mxu0 %v3268
      %v3590 = vpop.f32.mrf.mxu0
      %v3591 = vadd.f32 %v3542, %v3590
      %v3592 = vpop.f32.mrf.mxu0
      %v3593 = vadd.f32 %v3544, %v3592
      %3594 = vmatmul.bf16.gmra.mxu0 %v3272
      %v3595 = vpop.f32.mrf.mxu0
      %v3596 = vadd.f32 %v3547, %v3595
      %v3597 = vpop.f32.mrf.mxu0
      %v3598 = vadd.f32 %v3549, %v3597
      %3599 = vmatmul.bf16.gmra.mxu0 %v3276
      %v3600 = vpop.f32.mrf.mxu0
      %v3601 = vadd.f32 %v3552, %v3600
      %v3602 = vpop.f32.mrf.mxu0
      %v3603 = vadd.f32 %v3554, %v3602
      %3604 = vdwg.mxu0
      %3605 = vmatpush.bf16.msra.mxu0 %v3456
      %3606 = vmatpush.bf16.msra.mxu0 %v3455
      %3607 = vmatpush.bf16.msra.mxu0 %v3454
      %3608 = vmatpush.bf16.msra.mxu0 %v3453
      %3609 = vmatpush.bf16.msra.mxu0 %v3452
      %3610 = vmatpush.bf16.msra.mxu0 %v3451
      %3611 = vmatpush.bf16.msra.mxu0 %v3450
      %3612 = vmatpush.bf16.msra.mxu0 %v3449
      %3613 = vmatmul.bf16.gmra.mxu0 %v3249
      %v3614 = vpop.f32.mrf.mxu0
      %v3615 = vadd.f32 %v3566, %v3614
      %v3616 = vpop.f32.mrf.mxu0
      %v3617 = vadd.f32 %v3568, %v3616
      %3618 = vmatmul.bf16.gmra.mxu0 %v3253
      %v3619 = vpop.f32.mrf.mxu0
      %v3620 = vadd.f32 %v3571, %v3619
      %v3621 = vpop.f32.mrf.mxu0
      %v3622 = vadd.f32 %v3573, %v3621
      %3623 = vmatmul.bf16.gmra.mxu0 %v3257
      %v3624 = vpop.f32.mrf.mxu0
      %v3625 = vadd.f32 %v3576, %v3624
      %v3626 = vpop.f32.mrf.mxu0
      %v3627 = vadd.f32 %v3578, %v3626
      %3628 = vmatmul.bf16.gmra.mxu0 %v3261
      %v3629 = vpop.f32.mrf.mxu0
      %v3630 = vadd.f32 %v3581, %v3629
      %v3631 = vpop.f32.mrf.mxu0
      %v3632 = vadd.f32 %v3583, %v3631
      %3633 = vmatmul.bf16.gmra.mxu0 %v3265
      %v3634 = vpop.f32.mrf.mxu0
      %v3635 = vadd.f32 %v3586, %v3634
      %v3636 = vpop.f32.mrf.mxu0
      %v3637 = vadd.f32 %v3588, %v3636
      %3638 = vmatmul.bf16.gmra.mxu0 %v3269
      %v3639 = vpop.f32.mrf.mxu0
      %v3640 = vadd.f32 %v3591, %v3639
      %v3641 = vpop.f32.mrf.mxu0
      %v3642 = vadd.f32 %v3593, %v3641
      %3643 = vmatmul.bf16.gmra.mxu0 %v3273
      %v3644 = vpop.f32.mrf.mxu0
      %v3645 = vadd.f32 %v3596, %v3644
      %v3646 = vpop.f32.mrf.mxu0
      %v3647 = vadd.f32 %v3598, %v3646
      %3648 = vmatmul.bf16.gmra.mxu0 %v3277
      %v3649 = vpop.f32.mrf.mxu0
      %v3650 = vadd.f32 %v3601, %v3649
      %v3651 = vpop.f32.mrf.mxu0
      %v3652 = vadd.f32 %v3603, %v3651
      %3653 = vdwg.mxu0
      %3654 = vmatpush.bf16.msra.mxu0 0
      %3655 = vmatpush.bf16.msra.mxu0 0
      %3656 = vmatpush.bf16.msra.mxu0 0
      %3657 = vmatpush.bf16.msra.mxu0 0
      %3658 = vmatpush.bf16.msra.mxu0 0
      %3659 = vmatpush.bf16.msra.mxu0 0
      %3660 = vmatpush.bf16.msra.mxu0 0
      %3661 = vmatpush.bf16.msra.mxu0 %v3457
      %3662 = vmatmul.bf16.gmra.mxu0 %v3484
      %v3663 = vpop.f32.mrf.mxu0
      %v3664 = vadd.f32 %v3615, %v3663
      %v3665 = vpop.f32.mrf.mxu0
      %v3666 = vadd.f32 %v3617, %v3665
      %3667 = vmatmul.bf16.gmra.mxu0 %v3487
      %v3668 = vpop.f32.mrf.mxu0
      %v3669 = vadd.f32 %v3620, %v3668
      %v3670 = vpop.f32.mrf.mxu0
      %v3671 = vadd.f32 %v3622, %v3670
      %3672 = vmatmul.bf16.gmra.mxu0 %v3490
      %v3673 = vpop.f32.mrf.mxu0
      %v3674 = vadd.f32 %v3625, %v3673
      %v3675 = vpop.f32.mrf.mxu0
      %v3676 = vadd.f32 %v3627, %v3675
      %3677 = vmatmul.bf16.gmra.mxu0 %v3493
      %v3678 = vpop.f32.mrf.mxu0
      %v3679 = vadd.f32 %v3630, %v3678
      %v3680 = vpop.f32.mrf.mxu0
      %v3681 = vadd.f32 %v3632, %v3680
      %3682 = vmatmul.bf16.gmra.mxu0 %v3496
      %v3683 = vpop.f32.mrf.mxu0
      %v3684 = vadd.f32 %v3635, %v3683
      %v3685 = vpop.f32.mrf.mxu0
      %v3686 = vadd.f32 %v3637, %v3685
      %3687 = vmatmul.bf16.gmra.mxu0 %v3499
      %v3688 = vpop.f32.mrf.mxu0
      %v3689 = vadd.f32 %v3640, %v3688
      %v3690 = vpop.f32.mrf.mxu0
      %v3691 = vadd.f32 %v3642, %v3690
      %3692 = vmatmul.bf16.gmra.mxu0 %v3502
      %v3693 = vpop.f32.mrf.mxu0
      %v3694 = vadd.f32 %v3645, %v3693
      %v3695 = vpop.f32.mrf.mxu0
      %v3696 = vadd.f32 %v3647, %v3695
      %3697 = vmatmul.bf16.gmra.mxu0 %v3505
      %v3698 = vpop.f32.mrf.mxu0
      %v3699 = vadd.f32 %v3650, %v3698
      %v3700 = vpop.f32.mrf.mxu0
      %v3701 = vadd.f32 %v3652, %v3700
      %3702 = vdwg.mxu0
      %v3703 = vmul.f32 %v3664, 0.5
      %v3704 = vmul.f32 %v3666, 0.5
      %v3705 = vmul.f32 %v3669, 0.5
      %v3706 = vmul.f32 %v3671, 0.5
      %v3707 = vmul.f32 %v3674, 0.5
      %v3708 = vmul.f32 %v3676, 0.5
      %v3709 = vmul.f32 %v3679, 0.5
      %v3710 = vmul.f32 %v3681, 0.5
      %v3711 = vmul.f32 %v3684, 0.5
      %v3712 = vmul.f32 %v3686, 0.5
      %v3713 = vmul.f32 %v3689, 0.5
      %v3714 = vmul.f32 %v3691, 0.5
      %v3715 = vmul.f32 %v3694, 0.5
      %v3716 = vmul.f32 %v3696, 0.5
      %v3717 = vmul.f32 %v3699, 0.5
      %v3718 = vmul.f32 %v3701, 0.5
      %v3719 = vmul.f32 %v3703, 1.442695
      %v3720 = vpow.pop %v3719
      %v3721 = vmul.f32 %v3704, 1.442695
      %v3722 = vpow.pop %v3721
      %v3723 = vmul.f32 %v3705, 1.442695
      %v3724 = vpow.pop %v3723
      %v3725 = vmul.f32 %v3706, 1.442695
      %v3726 = vpow.pop %v3725
      %v3727 = vmul.f32 %v3707, 1.442695
      %v3728 = vpow.pop %v3727
      %v3729 = vmul.f32 %v3708, 1.442695
      %v3730 = vpow.pop %v3729
      %v3731 = vmul.f32 %v3709, 1.442695
      %v3732 = vpow.pop %v3731
      %v3733 = vmul.f32 %v3710, 1.442695
      %v3734 = vpow.pop %v3733
      %v3735 = vmul.f32 %v3711, 1.442695
      %v3736 = vpow.pop %v3735
      %v3737 = vmul.f32 %v3712, 1.442695
      %v3738 = vpow.pop %v3737
      %v3739 = vmul.f32 %v3713, 1.442695
      %v3740 = vpow.pop %v3739
      %v3741 = vmul.f32 %v3714, 1.442695
      %v3742 = vpow.pop %v3741
      %v3743 = vmul.f32 %v3715, 1.442695
      %v3744 = vpow.pop %v3743
      %v3745 = vmul.f32 %v3716, 1.442695
      %v3746 = vpow.pop %v3745
      %v3747 = vmul.f32 %v3717, 1.442695
      %v3748 = vpow.pop %v3747
      %v3749 = vmul.f32 %v3718, 1.442695
      %v3750 = vpow.pop %v3749
      %v3751 = vld [vmem:[%s416] sm:$0xff]
      %v3752 = vld [vmem:[%s416 + $0x8] sm:$0xff]
      %v3753 = vld [vmem:[%s416 + $0x10] sm:$0xff]
      %v3754 = vld [vmem:[%s416 + $0x18] sm:$0xff]
      %v3755 = vld [vmem:[%s416 + $0x20] sm:$0xff]
      %v3756 = vld [vmem:[%s416 + $0x28] sm:$0xff]
      %v3757 = vld [vmem:[%s416 + $0x30] sm:$0xff]
      %v3758 = vld [vmem:[%s416 + $0x38] sm:$0xff]
      %v3759 = vld [vmem:[%s416 + $0x40] sm:$0xff]
      %v3760 = vld [vmem:[%s416 + $0x48] sm:$0xff]
      %v3761 = vld [vmem:[%s416 + $0x50] sm:$0xff]
      %v3762 = vld [vmem:[%s416 + $0x58] sm:$0xff]
      %v3763 = vld [vmem:[%s416 + $0x60] sm:$0xff]
      %v3764 = vld [vmem:[%s416 + $0x68] sm:$0xff]
      %v3765 = vld [vmem:[%s416 + $0x70] sm:$0xff]
      %v3766 = vld [vmem:[%s416 + $0x78] sm:$0xff]
      %3783 = vrot.lane.b32.xlu0 %v3720, 108
      %v3784 = vpop.permute.xlu0 %3783
      %3785 = vrot.lane.b32.xlu0 %v3722, 108
      %v3786 = vpop.permute.xlu0 %3785
      %3787 = vrot.lane.b32.xlu0 %v3724, 108
      %v3788 = vpop.permute.xlu0 %3787
      %3789 = vrot.lane.b32.xlu0 %v3726, 108
      %v3790 = vpop.permute.xlu0 %3789
      %3791 = vrot.lane.b32.xlu0 %v3728, 108
      %v3792 = vpop.permute.xlu0 %3791
      %3793 = vrot.lane.b32.xlu0 %v3730, 108
      %v3794 = vpop.permute.xlu0 %3793
      %3795 = vrot.lane.b32.xlu0 %v3732, 108
      %v3796 = vpop.permute.xlu0 %3795
      %3797 = vrot.lane.b32.xlu0 %v3734, 108
      %v3798 = vpop.permute.xlu0 %3797
      %3799 = vrot.lane.b32.xlu0 %v3736, 108
      %v3800 = vpop.permute.xlu0 %3799
      %3801 = vrot.lane.b32.xlu0 %v3738, 108
      %v3802 = vpop.permute.xlu0 %3801
      %3803 = vrot.lane.b32.xlu0 %v3740, 108
      %v3804 = vpop.permute.xlu0 %3803
      %3805 = vrot.lane.b32.xlu0 %v3742, 108
      %v3806 = vpop.permute.xlu0 %3805
      %3807 = vrot.lane.b32.xlu0 %v3744, 108
      %v3808 = vpop.permute.xlu0 %3807
      %3809 = vrot.lane.b32.xlu0 %v3746, 108
      %v3810 = vpop.permute.xlu0 %3809
      %3811 = vrot.lane.b32.xlu0 %v3748, 108
      %v3812 = vpop.permute.xlu0 %3811
      %3813 = vrot.lane.b32.xlu0 %v3750, 108
      %v3814 = vpop.permute.xlu0 %3813
      %v3831 = vmul.f32 %v3751, %v3784
      %v3832 = vmul.f32 %v3752, %v3786
      %v3833 = vmul.f32 %v3753, %v3788
      %v3834 = vmul.f32 %v3754, %v3790
      %v3835 = vmul.f32 %v3755, %v3792
      %v3836 = vmul.f32 %v3756, %v3794
      %v3837 = vmul.f32 %v3757, %v3796
      %v3838 = vmul.f32 %v3758, %v3798
      %v3839 = vmul.f32 %v3759, %v3800
      %v3840 = vmul.f32 %v3760, %v3802
      %v3841 = vmul.f32 %v3761, %v3804
      %v3842 = vmul.f32 %v3762, %v3806
      %v3843 = vmul.f32 %v3763, %v3808
      %v3844 = vmul.f32 %v3764, %v3810
      %v3845 = vmul.f32 %v3765, %v3812
      %v3846 = vmul.f32 %v3766, %v3814
      %v3847 = vadd.f32 %v3664, %v3831
      %v3848 = vadd.f32 %v3666, %v3832
      %v3849 = vadd.f32 %v3669, %v3833
      %v3850 = vadd.f32 %v3671, %v3834
      %v3851 = vadd.f32 %v3674, %v3835
      %v3852 = vadd.f32 %v3676, %v3836
      %v3853 = vadd.f32 %v3679, %v3837
      %v3854 = vadd.f32 %v3681, %v3838
      %v3855 = vadd.f32 %v3684, %v3839
      %v3856 = vadd.f32 %v3686, %v3840
      %v3857 = vadd.f32 %v3689, %v3841
      %v3858 = vadd.f32 %v3691, %v3842
      %v3859 = vadd.f32 %v3694, %v3843
      %v3860 = vadd.f32 %v3696, %v3844
      %v3861 = vadd.f32 %v3699, %v3845
      %v3862 = vadd.f32 %v3701, %v3846
      %v3863 = vpack.c.bf16 %v3848, %v3847
      %v3864 = vpack.c.bf16 %v3850, %v3849
      %v3865 = vpack.c.bf16 %v3852, %v3851
      %v3866 = vpack.c.bf16 %v3854, %v3853
      %v3867 = vpack.c.bf16 %v3856, %v3855
      %v3868 = vpack.c.bf16 %v3858, %v3857
      %v3869 = vpack.c.bf16 %v3860, %v3859
      %v3870 = vpack.c.bf16 %v3862, %v3861
      %v3871 = vld [vmem:[%s5] sm:$0xff]
      %v3872 = vld [vmem:[%s5 + $0x8] sm:$0xff]
      %v3873 = vld [vmem:[%s5 + $0x10] sm:$0xff]
      %v3874 = vld [vmem:[%s5 + $0x18] sm:$0xff]
      %v3875 = vld [vmem:[%s5 + $0x20] sm:$0x33]
      %v3876 = vld [vmem:[%s5 + $0x28] sm:$0x33]
      %v3877 = vld [vmem:[%s6] sm:$0xf]
      %v3879 = vperm.slane %v3877, 0
      %v3880 = vperm.slane %v3877, 1
      %v3881 = vperm.slane %v3877, 2
      %v3882 = vperm.slane %v3877, 3
      %v3893 = vunpack.c.l.b16 %v3871
      %v3894 = vunpack.c.h.b16 %v3871
      %v3895 = vunpack.c.l.b16 %v3872
      %v3896 = vunpack.c.h.b16 %v3872
      %v3897 = vunpack.c.l.b16 %v3873
      %v3898 = vunpack.c.h.b16 %v3873
      %v3899 = vunpack.c.l.b16 %v3874
      %v3900 = vunpack.c.h.b16 %v3874
      %v3901 = vunpack.c.l.b16 %v3875
      %v3902 = vunpack.c.h.b16 %v3875
      %v3903 = vunpack.c.l.b16 %v3876
      %v3904 = vunpack.c.h.b16 %v3876
      %v3905 = vpack.c.b16 %v3897, %v3893
      %v3906 = vpack.c.b16 %v3898, %v3894
      %v3907 = vpack.c.b16 %v3899, %v3895
      %v3908 = vpack.c.b16 %v3900, %v3896
      %v3909 = vpack.c.b16 %v3901, %v3901
      %v3910 = vpack.c.b16 %v3902, %v3902
      %v3911 = vpack.c.b16 %v3903, %v3903
      %v3912 = vpack.c.b16 %v3904, %v3904
      %vm3917 = vcmask 162816
      %v3919 = vsel %vm3917, %v3863, 0
      %v3922 = vsel %vm3917, %v3864, 0
      %v3925 = vsel %vm3917, %v3865, 0
      %v3928 = vsel %vm3917, %v3866, 0
      %v3931 = vsel %vm3917, %v3867, 0
      %v3934 = vsel %vm3917, %v3868, 0
      %v3937 = vsel %vm3917, %v3869, 0
      %v3940 = vsel %vm3917, %v3870, 0
      %vm3942 = vcmask 1041408
      %v3944 = vsel %vm3942, %v3909, 0
      %v3947 = vsel %vm3942, %v3910, 0
      %v3950 = vsel %vm3942, %v3911, 0
      %v3953 = vsel %vm3942, %v3912, 0
      %3955 = vmatpush.bf16.msra.mxu0 0
      %3956 = vmatpush.bf16.msra.mxu0 0
      %3957 = vmatpush.bf16.msra.mxu0 0
      %3958 = vmatpush.bf16.msra.mxu0 0
      %3959 = vmatpush.bf16.msra.mxu0 0
      %3960 = vmatpush.bf16.msra.mxu0 0
      %3961 = vmatpush.bf16.msra.mxu0 %v3944
      %3962 = vmatpush.bf16.msra.mxu0 %v3905
      %3963 = vmatmul.bf16.gmra.mxu0 %v3919
      %v3964 = vpop.f32.mrf.mxu0
      %v3965 = vadd.f32 %v3879, %v3964
      %v3966 = vpop.f32.mrf.mxu0
      %v3967 = vadd.f32 %v3879, %v3966
      %3968 = vmatmul.bf16.gmra.mxu0 %v3922
      %v3969 = vpop.f32.mrf.mxu0
      %v3970 = vadd.f32 %v3879, %v3969
      %v3971 = vpop.f32.mrf.mxu0
      %v3972 = vadd.f32 %v3879, %v3971
      %3973 = vmatmul.bf16.gmra.mxu0 %v3925
      %v3974 = vpop.f32.mrf.mxu0
      %v3975 = vadd.f32 %v3879, %v3974
      %v3976 = vpop.f32.mrf.mxu0
      %v3977 = vadd.f32 %v3879, %v3976
      %3978 = vmatmul.bf16.gmra.mxu0 %v3928
      %v3979 = vpop.f32.mrf.mxu0
      %v3980 = vadd.f32 %v3879, %v3979
      %v3981 = vpop.f32.mrf.mxu0
      %v3982 = vadd.f32 %v3879, %v3981
      %3983 = vmatmul.bf16.gmra.mxu0 %v3931
      %v3984 = vpop.f32.mrf.mxu0
      %v3985 = vadd.f32 %v3879, %v3984
      %v3986 = vpop.f32.mrf.mxu0
      %v3987 = vadd.f32 %v3879, %v3986
      %3988 = vmatmul.bf16.gmra.mxu0 %v3934
      %v3989 = vpop.f32.mrf.mxu0
      %v3990 = vadd.f32 %v3879, %v3989
      %v3991 = vpop.f32.mrf.mxu0
      %v3992 = vadd.f32 %v3879, %v3991
      %3993 = vmatmul.bf16.gmra.mxu0 %v3937
      %v3994 = vpop.f32.mrf.mxu0
      %v3995 = vadd.f32 %v3879, %v3994
      %v3996 = vpop.f32.mrf.mxu0
      %v3997 = vadd.f32 %v3879, %v3996
      %3998 = vmatmul.bf16.gmra.mxu0 %v3940
      %v3999 = vpop.f32.mrf.mxu0
      %v4000 = vadd.f32 %v3879, %v3999
      %v4001 = vpop.f32.mrf.mxu0
      %v4002 = vadd.f32 %v3879, %v4001
      %4003 = vdwg.mxu0
      %4004 = vmatpush.bf16.msra.mxu0 0
      %4005 = vmatpush.bf16.msra.mxu0 0
      %4006 = vmatpush.bf16.msra.mxu0 0
      %4007 = vmatpush.bf16.msra.mxu0 0
      %4008 = vmatpush.bf16.msra.mxu0 0
      %4009 = vmatpush.bf16.msra.mxu0 0
      %4010 = vmatpush.bf16.msra.mxu0 %v3947
      %4011 = vmatpush.bf16.msra.mxu0 %v3906
      %4012 = vmatmul.bf16.gmra.mxu0 %v3919
      %v4013 = vpop.f32.mrf.mxu0
      %v4014 = vadd.f32 %v3880, %v4013
      %v4015 = vpop.f32.mrf.mxu0
      %v4016 = vadd.f32 %v3880, %v4015
      %4017 = vmatmul.bf16.gmra.mxu0 %v3922
      %v4018 = vpop.f32.mrf.mxu0
      %v4019 = vadd.f32 %v3880, %v4018
      %v4020 = vpop.f32.mrf.mxu0
      %v4021 = vadd.f32 %v3880, %v4020
      %4022 = vmatmul.bf16.gmra.mxu0 %v3925
      %v4023 = vpop.f32.mrf.mxu0
      %v4024 = vadd.f32 %v3880, %v4023
      %v4025 = vpop.f32.mrf.mxu0
      %v4026 = vadd.f32 %v3880, %v4025
      %4027 = vmatmul.bf16.gmra.mxu0 %v3928
      %v4028 = vpop.f32.mrf.mxu0
      %v4029 = vadd.f32 %v3880, %v4028
      %v4030 = vpop.f32.mrf.mxu0
      %v4031 = vadd.f32 %v3880, %v4030
      %4032 = vmatmul.bf16.gmra.mxu0 %v3931
      %v4033 = vpop.f32.mrf.mxu0
      %v4034 = vadd.f32 %v3880, %v4033
      %v4035 = vpop.f32.mrf.mxu0
      %v4036 = vadd.f32 %v3880, %v4035
      %4037 = vmatmul.bf16.gmra.mxu0 %v3934
      %v4038 = vpop.f32.mrf.mxu0
      %v4039 = vadd.f32 %v3880, %v4038
      %v4040 = vpop.f32.mrf.mxu0
      %v4041 = vadd.f32 %v3880, %v4040
      %4042 = vmatmul.bf16.gmra.mxu0 %v3937
      %v4043 = vpop.f32.mrf.mxu0
      %v4044 = vadd.f32 %v3880, %v4043
      %v4045 = vpop.f32.mrf.mxu0
      %v4046 = vadd.f32 %v3880, %v4045
      %4047 = vmatmul.bf16.gmra.mxu0 %v3940
      %v4048 = vpop.f32.mrf.mxu0
      %v4049 = vadd.f32 %v3880, %v4048
      %v4050 = vpop.f32.mrf.mxu0
      %v4051 = vadd.f32 %v3880, %v4050
      %4052 = vdwg.mxu0
      %4053 = vmatpush.bf16.msra.mxu0 0
      %4054 = vmatpush.bf16.msra.mxu0 0
      %4055 = vmatpush.bf16.msra.mxu0 0
      %4056 = vmatpush.bf16.msra.mxu0 0
      %4057 = vmatpush.bf16.msra.mxu0 0
      %4058 = vmatpush.bf16.msra.mxu0 0
      %4059 = vmatpush.bf16.msra.mxu0 %v3950
      %4060 = vmatpush.bf16.msra.mxu0 %v3907
      %4061 = vmatmul.bf16.gmra.mxu0 %v3919
      %v4062 = vpop.f32.mrf.mxu0
      %v4063 = vadd.f32 %v3881, %v4062
      %v4064 = vpop.f32.mrf.mxu0
      %v4065 = vadd.f32 %v3881, %v4064
      %4066 = vmatmul.bf16.gmra.mxu0 %v3922
      %v4067 = vpop.f32.mrf.mxu0
      %v4068 = vadd.f32 %v3881, %v4067
      %v4069 = vpop.f32.mrf.mxu0
      %v4070 = vadd.f32 %v3881, %v4069
      %4071 = vmatmul.bf16.gmra.mxu0 %v3925
      %v4072 = vpop.f32.mrf.mxu0
      %v4073 = vadd.f32 %v3881, %v4072
      %v4074 = vpop.f32.mrf.mxu0
      %v4075 = vadd.f32 %v3881, %v4074
      %4076 = vmatmul.bf16.gmra.mxu0 %v3928
      %v4077 = vpop.f32.mrf.mxu0
      %v4078 = vadd.f32 %v3881, %v4077
      %v4079 = vpop.f32.mrf.mxu0
      %v4080 = vadd.f32 %v3881, %v4079
      %4081 = vmatmul.bf16.gmra.mxu0 %v3931
      %v4082 = vpop.f32.mrf.mxu0
      %v4083 = vadd.f32 %v3881, %v4082
      %v4084 = vpop.f32.mrf.mxu0
      %v4085 = vadd.f32 %v3881, %v4084
      %4086 = vmatmul.bf16.gmra.mxu0 %v3934
      %v4087 = vpop.f32.mrf.mxu0
      %v4088 = vadd.f32 %v3881, %v4087
      %v4089 = vpop.f32.mrf.mxu0
      %v4090 = vadd.f32 %v3881, %v4089
      %4091 = vmatmul.bf16.gmra.mxu0 %v3937
      %v4092 = vpop.f32.mrf.mxu0
      %v4093 = vadd.f32 %v3881, %v4092
      %v4094 = vpop.f32.mrf.mxu0
      %v4095 = vadd.f32 %v3881, %v4094
      %4096 = vmatmul.bf16.gmra.mxu0 %v3940
      %v4097 = vpop.f32.mrf.mxu0
      %v4098 = vadd.f32 %v3881, %v4097
      %v4099 = vpop.f32.mrf.mxu0
      %v4100 = vadd.f32 %v3881, %v4099
      %4101 = vdwg.mxu0
      %4102 = vmatpush.bf16.msra.mxu0 0
      %4103 = vmatpush.bf16.msra.mxu0 0
      %4104 = vmatpush.bf16.msra.mxu0 0
      %4105 = vmatpush.bf16.msra.mxu0 0
      %4106 = vmatpush.bf16.msra.mxu0 0
      %4107 = vmatpush.bf16.msra.mxu0 0
      %4108 = vmatpush.bf16.msra.mxu0 %v3953
      %4109 = vmatpush.bf16.msra.mxu0 %v3908
      %4110 = vmatmul.bf16.gmra.mxu0 %v3919
      %v4111 = vpop.f32.mrf.mxu0
      %v4112 = vadd.f32 %v3882, %v4111
      %v4113 = vpop.f32.mrf.mxu0
      %v4114 = vadd.f32 %v3882, %v4113
      %4115 = vmatmul.bf16.gmra.mxu0 %v3922
      %v4116 = vpop.f32.mrf.mxu0
      %v4117 = vadd.f32 %v3882, %v4116
      %v4118 = vpop.f32.mrf.mxu0
      %v4119 = vadd.f32 %v3882, %v4118
      %4120 = vmatmul.bf16.gmra.mxu0 %v3925
      %v4121 = vpop.f32.mrf.mxu0
      %v4122 = vadd.f32 %v3882, %v4121
      %v4123 = vpop.f32.mrf.mxu0
      %v4124 = vadd.f32 %v3882, %v4123
      %4125 = vmatmul.bf16.gmra.mxu0 %v3928
      %v4126 = vpop.f32.mrf.mxu0
      %v4127 = vadd.f32 %v3882, %v4126
      %v4128 = vpop.f32.mrf.mxu0
      %v4129 = vadd.f32 %v3882, %v4128
      %4130 = vmatmul.bf16.gmra.mxu0 %v3931
      %v4131 = vpop.f32.mrf.mxu0
      %v4132 = vadd.f32 %v3882, %v4131
      %v4133 = vpop.f32.mrf.mxu0
      %v4134 = vadd.f32 %v3882, %v4133
      %4135 = vmatmul.bf16.gmra.mxu0 %v3934
      %v4136 = vpop.f32.mrf.mxu0
      %v4137 = vadd.f32 %v3882, %v4136
      %v4138 = vpop.f32.mrf.mxu0
      %v4139 = vadd.f32 %v3882, %v4138
      %4140 = vmatmul.bf16.gmra.mxu0 %v3937
      %v4141 = vpop.f32.mrf.mxu0
      %v4142 = vadd.f32 %v3882, %v4141
      %v4143 = vpop.f32.mrf.mxu0
      %v4144 = vadd.f32 %v3882, %v4143
      %4145 = vmatmul.bf16.gmra.mxu0 %v3940
      %v4146 = vpop.f32.mrf.mxu0
      %v4147 = vadd.f32 %v3882, %v4146
      %v4148 = vpop.f32.mrf.mxu0
      %v4149 = vadd.f32 %v3882, %v4148
      %4150 = vdwg.mxu0
      %v4151 = vmax.f32 %v3965, 0.0
      %v4152 = vmax.f32 %v4014, 0.0
      %v4153 = vmax.f32 %v4063, 0.0
      %v4154 = vmax.f32 %v4112, 0.0
      %v4155 = vmax.f32 %v3967, 0.0
      %v4156 = vmax.f32 %v4016, 0.0
      %v4157 = vmax.f32 %v4065, 0.0
      %v4158 = vmax.f32 %v4114, 0.0
      %v4159 = vmax.f32 %v3970, 0.0
      %v4160 = vmax.f32 %v4019, 0.0
      %v4161 = vmax.f32 %v4068, 0.0
      %v4162 = vmax.f32 %v4117, 0.0
      %v4163 = vmax.f32 %v3972, 0.0
      %v4164 = vmax.f32 %v4021, 0.0
      %v4165 = vmax.f32 %v4070, 0.0
      %v4166 = vmax.f32 %v4119, 0.0
      %v4167 = vmax.f32 %v3975, 0.0
      %v4168 = vmax.f32 %v4024, 0.0
      %v4169 = vmax.f32 %v4073, 0.0
      %v4170 = vmax.f32 %v4122, 0.0
      %v4171 = vmax.f32 %v3977, 0.0
      %v4172 = vmax.f32 %v4026, 0.0
      %v4173 = vmax.f32 %v4075, 0.0
      %v4174 = vmax.f32 %v4124, 0.0
      %v4175 = vmax.f32 %v3980, 0.0
      %v4176 = vmax.f32 %v4029, 0.0
      %v4177 = vmax.f32 %v4078, 0.0
      %v4178 = vmax.f32 %v4127, 0.0
      %v4179 = vmax.f32 %v3982, 0.0
      %v4180 = vmax.f32 %v4031, 0.0
      %v4181 = vmax.f32 %v4080, 0.0
      %v4182 = vmax.f32 %v4129, 0.0
      %v4183 = vmax.f32 %v3985, 0.0
      %v4184 = vmax.f32 %v4034, 0.0
      %v4185 = vmax.f32 %v4083, 0.0
      %v4186 = vmax.f32 %v4132, 0.0
      %v4187 = vmax.f32 %v3987, 0.0
      %v4188 = vmax.f32 %v4036, 0.0
      %v4189 = vmax.f32 %v4085, 0.0
      %v4190 = vmax.f32 %v4134, 0.0
      %v4191 = vmax.f32 %v3990, 0.0
      %v4192 = vmax.f32 %v4039, 0.0
      %v4193 = vmax.f32 %v4088, 0.0
      %v4194 = vmax.f32 %v4137, 0.0
      %v4195 = vmax.f32 %v3992, 0.0
      %v4196 = vmax.f32 %v4041, 0.0
      %v4197 = vmax.f32 %v4090, 0.0
      %v4198 = vmax.f32 %v4139, 0.0
      %v4199 = vmax.f32 %v3995, 0.0
      %v4200 = vmax.f32 %v4044, 0.0
      %v4201 = vmax.f32 %v4093, 0.0
      %v4202 = vmax.f32 %v4142, 0.0
      %v4203 = vmax.f32 %v3997, 0.0
      %v4204 = vmax.f32 %v4046, 0.0
      %v4205 = vmax.f32 %v4095, 0.0
      %v4206 = vmax.f32 %v4144, 0.0
      %v4207 = vmax.f32 %v4000, 0.0
      %v4208 = vmax.f32 %v4049, 0.0
      %v4209 = vmax.f32 %v4098, 0.0
      %v4210 = vmax.f32 %v4147, 0.0
      %v4211 = vmax.f32 %v4002, 0.0
      %v4212 = vmax.f32 %v4051, 0.0
      %v4213 = vmax.f32 %v4100, 0.0
      %v4214 = vmax.f32 %v4149, 0.0
      %v4215 = vpack.c.bf16 %v4155, %v4151
      %v4216 = vpack.c.bf16 %v4156, %v4152
      %v4217 = vpack.c.bf16 %v4157, %v4153
      %v4218 = vpack.c.bf16 %v4158, %v4154
      %v4219 = vpack.c.bf16 %v4163, %v4159
      %v4220 = vpack.c.bf16 %v4164, %v4160
      %v4221 = vpack.c.bf16 %v4165, %v4161
      %v4222 = vpack.c.bf16 %v4166, %v4162
      %v4223 = vpack.c.bf16 %v4171, %v4167
      %v4224 = vpack.c.bf16 %v4172, %v4168
      %v4225 = vpack.c.bf16 %v4173, %v4169
      %v4226 = vpack.c.bf16 %v4174, %v4170
      %v4227 = vpack.c.bf16 %v4179, %v4175
      %v4228 = vpack.c.bf16 %v4180, %v4176
      %v4229 = vpack.c.bf16 %v4181, %v4177
      %v4230 = vpack.c.bf16 %v4182, %v4178
      %v4231 = vpack.c.bf16 %v4187, %v4183
      %v4232 = vpack.c.bf16 %v4188, %v4184
      %v4233 = vpack.c.bf16 %v4189, %v4185
      %v4234 = vpack.c.bf16 %v4190, %v4186
      %v4235 = vpack.c.bf16 %v4195, %v4191
      %v4236 = vpack.c.bf16 %v4196, %v4192
      %v4237 = vpack.c.bf16 %v4197, %v4193
      %v4238 = vpack.c.bf16 %v4198, %v4194
      %v4239 = vpack.c.bf16 %v4203, %v4199
      %v4240 = vpack.c.bf16 %v4204, %v4200
      %v4241 = vpack.c.bf16 %v4205, %v4201
      %v4242 = vpack.c.bf16 %v4206, %v4202
      %v4243 = vpack.c.bf16 %v4211, %v4207
      %v4244 = vpack.c.bf16 %v4212, %v4208
      %v4245 = vpack.c.bf16 %v4213, %v4209
      %v4246 = vpack.c.bf16 %v4214, %v4210
      %v4247 = vld [vmem:[%s7] sm:$0xff]
      %v4248 = vld [vmem:[%s7 + $0x8] sm:$0xff]
      %v4249 = vld [vmem:[%s7 + $0x10] sm:$0xff]
      %v4250 = vld [vmem:[%s7 + $0x18] sm:$0xf]
      %v4251 = vld [vmem:[%s7 + $0x1c] sm:$0xff]
      %v4252 = vld [vmem:[%s7 + $0x24] sm:$0xff]
      %v4253 = vld [vmem:[%s7 + $0x2c] sm:$0xff]
      %v4254 = vld [vmem:[%s7 + $0x34] sm:$0xf]
      %v4255 = vld [vmem:[%s7 + $0x38] sm:$0xff]
      %v4256 = vld [vmem:[%s7 + $0x40] sm:$0xff]
      %v4257 = vld [vmem:[%s7 + $0x48] sm:$0xff]
      %v4258 = vld [vmem:[%s7 + $0x50] sm:$0xf]
      %v4259 = vld [vmem:[%s7 + $0x54] sm:$0xff]
      %v4260 = vld [vmem:[%s7 + $0x5c] sm:$0xff]
      %v4261 = vld [vmem:[%s7 + $0x64] sm:$0xff]
      %v4262 = vld [vmem:[%s7 + $0x6c] sm:$0xf]
      %v4263 = vld [vmem:[%s7 + $0x70] sm:$0xff]
      %v4264 = vld [vmem:[%s7 + $0x78] sm:$0xff]
      %v4265 = vld [vmem:[%s7 + $0x80] sm:$0xff]
      %v4266 = vld [vmem:[%s7 + $0x88] sm:$0xf]
      %v4267 = vld [vmem:[%s7 + $0x8c] sm:$0xff]
      %v4268 = vld [vmem:[%s7 + $0x94] sm:$0xff]
      %v4269 = vld [vmem:[%s7 + $0x9c] sm:$0xff]
      %v4270 = vld [vmem:[%s7 + $0xa4] sm:$0xf]
      %v4271 = vld [vmem:[%s7 + $0xa8] sm:$0xff]
      %v4272 = vld [vmem:[%s7 + $0xb0] sm:$0xff]
      %v4273 = vld [vmem:[%s7 + $0xb8] sm:$0xff]
      %v4274 = vld [vmem:[%s7 + $0xc0] sm:$0xf]
      %v4275 = vld [vmem:[%s7 + $0xc4] sm:$0xff]
      %v4276 = vld [vmem:[%s7 + $0xcc] sm:$0xff]
      %v4277 = vld [vmem:[%s7 + $0xd4] sm:$0xff]
      %v4278 = vld [vmem:[%s7 + $0xdc] sm:$0xf]
      %v4279 = vld [vmem:[%s7 + $0xe0] sm:$0xff]
      %v4280 = vld [vmem:[%s7 + $0xe8] sm:$0xff]
      %v4281 = vld [vmem:[%s7 + $0xf0] sm:$0xff]
      %v4282 = vld [vmem:[%s7 + $0xf8] sm:$0xf]
      %v4283 = vld [vmem:[%s7 + $0xfc] sm:$0xff]
      %v4284 = vld [vmem:[%s7 + $0x104] sm:$0xff]
      %v4285 = vld [vmem:[%s7 + $0x10c] sm:$0xff]
      %v4286 = vld [vmem:[%s7 + $0x114] sm:$0xf]
      %v4287 = vld [vmem:[%s7 + $0x118] sm:$0xff]
      %v4288 = vld [vmem:[%s7 + $0x120] sm:$0xff]
      %v4289 = vld [vmem:[%s7 + $0x128] sm:$0xff]
      %v4290 = vld [vmem:[%s7 + $0x130] sm:$0xf]
      %v4291 = vld [vmem:[%s7 + $0x134] sm:$0xff]
      %v4292 = vld [vmem:[%s7 + $0x13c] sm:$0xff]
      %v4293 = vld [vmem:[%s7 + $0x144] sm:$0xff]
      %v4294 = vld [vmem:[%s7 + $0x14c] sm:$0xf]
      %v4295 = vld [vmem:[%s7 + $0x150] sm:$0xff]
      %v4296 = vld [vmem:[%s7 + $0x158] sm:$0xff]
      %v4297 = vld [vmem:[%s7 + $0x160] sm:$0xff]
      %v4298 = vld [vmem:[%s7 + $0x168] sm:$0xf]
      %v4299 = vld [vmem:[%s7 + $0x16c] sm:$0xff]
      %v4300 = vld [vmem:[%s7 + $0x174] sm:$0xff]
      %v4301 = vld [vmem:[%s7 + $0x17c] sm:$0xff]
      %v4302 = vld [vmem:[%s7 + $0x184] sm:$0xf]
      %v4303 = vld [vmem:[%s7 + $0x188] sm:$0xff]
      %v4304 = vld [vmem:[%s7 + $0x190] sm:$0xff]
      %v4305 = vld [vmem:[%s7 + $0x198] sm:$0xff]
      %v4306 = vld [vmem:[%s7 + $0x1a0] sm:$0xf]
      %v4307 = vld [vmem:[%s7 + $0x1a4] sm:$0xff]
      %v4308 = vld [vmem:[%s7 + $0x1ac] sm:$0xff]
      %v4309 = vld [vmem:[%s7 + $0x1b4] sm:$0xff]
      %v4310 = vld [vmem:[%s7 + $0x1bc] sm:$0xf]
      %v4311 = vld [vmem:[%s7 + $0x1c0] sm:$0xff]
      %v4312 = vld [vmem:[%s7 + $0x1c8] sm:$0xff]
      %v4313 = vld [vmem:[%s7 + $0x1d0] sm:$0xff]
      %v4314 = vld [vmem:[%s7 + $0x1d8] sm:$0xf]
      %v4315 = vld [vmem:[%s7 + $0x1dc] sm:$0xff]
      %v4316 = vld [vmem:[%s7 + $0x1e4] sm:$0xff]
      %v4317 = vld [vmem:[%s7 + $0x1ec] sm:$0xff]
      %v4318 = vld [vmem:[%s7 + $0x1f4] sm:$0xf]
      %v4319 = vld [vmem:[%s7 + $0x1f8] sm:$0xff]
      %v4320 = vld [vmem:[%s7 + $0x200] sm:$0xff]
      %v4321 = vld [vmem:[%s7 + $0x208] sm:$0xff]
      %v4322 = vld [vmem:[%s7 + $0x210] sm:$0xf]
      %v4323 = vld [vmem:[%s7 + $0x214] sm:$0xff]
      %v4324 = vld [vmem:[%s7 + $0x21c] sm:$0xff]
      %v4325 = vld [vmem:[%s7 + $0x224] sm:$0xff]
      %v4326 = vld [vmem:[%s7 + $0x22c] sm:$0xf]
      %v4327 = vld [vmem:[%s7 + $0x230] sm:$0xff]
      %v4328 = vld [vmem:[%s7 + $0x238] sm:$0xff]
      %v4329 = vld [vmem:[%s7 + $0x240] sm:$0xff]
      %v4330 = vld [vmem:[%s7 + $0x248] sm:$0xf]
      %v4331 = vld [vmem:[%s7 + $0x24c] sm:$0xff]
      %v4332 = vld [vmem:[%s7 + $0x254] sm:$0xff]
      %v4333 = vld [vmem:[%s7 + $0x25c] sm:$0xff]
      %v4334 = vld [vmem:[%s7 + $0x264] sm:$0xf]
      %v4335 = vld [vmem:[%s7 + $0x268] sm:$0xff]
      %v4336 = vld [vmem:[%s7 + $0x270] sm:$0xff]
      %v4337 = vld [vmem:[%s7 + $0x278] sm:$0xff]
      %v4338 = vld [vmem:[%s7 + $0x280] sm:$0xf]
      %v4339 = vld [vmem:[%s7 + $0x284] sm:$0xff]
      %v4340 = vld [vmem:[%s7 + $0x28c] sm:$0xff]
      %v4341 = vld [vmem:[%s7 + $0x294] sm:$0xff]
      %v4342 = vld [vmem:[%s7 + $0x29c] sm:$0xf]
      %v4343 = vld [vmem:[%s7 + $0x2a0] sm:$0xff]
      %v4344 = vld [vmem:[%s7 + $0x2a8] sm:$0xff]
      %v4345 = vld [vmem:[%s7 + $0x2b0] sm:$0xff]
      %v4346 = vld [vmem:[%s7 + $0x2b8] sm:$0xf]
      %v4347 = vld [vmem:[%s7 + $0x2bc] sm:$0xff]
      %v4348 = vld [vmem:[%s7 + $0x2c4] sm:$0xff]
      %v4349 = vld [vmem:[%s7 + $0x2cc] sm:$0xff]
      %v4350 = vld [vmem:[%s7 + $0x2d4] sm:$0xf]
      %v4351 = vld [vmem:[%s7 + $0x2d8] sm:$0xff]
      %v4352 = vld [vmem:[%s7 + $0x2e0] sm:$0xff]
      %v4353 = vld [vmem:[%s7 + $0x2e8] sm:$0xff]
      %v4354 = vld [vmem:[%s7 + $0x2f0] sm:$0xf]
      %v4355 = vld [vmem:[%s7 + $0x2f4] sm:$0xff]
      %v4356 = vld [vmem:[%s7 + $0x2fc] sm:$0xff]
      %v4357 = vld [vmem:[%s7 + $0x304] sm:$0xff]
      %v4358 = vld [vmem:[%s7 + $0x30c] sm:$0xf]
      %v4359 = vld [vmem:[%s7 + $0x310] sm:$0xff]
      %v4360 = vld [vmem:[%s7 + $0x318] sm:$0xff]
      %v4361 = vld [vmem:[%s7 + $0x320] sm:$0xff]
      %v4362 = vld [vmem:[%s7 + $0x328] sm:$0xf]
      %v4363 = vld [vmem:[%s7 + $0x32c] sm:$0xff]
      %v4364 = vld [vmem:[%s7 + $0x334] sm:$0xff]
      %v4365 = vld [vmem:[%s7 + $0x33c] sm:$0xff]
      %v4366 = vld [vmem:[%s7 + $0x344] sm:$0xf]
      %v4367 = vld [vmem:[%s7 + $0x348] sm:$0xff]
      %v4368 = vld [vmem:[%s7 + $0x350] sm:$0xff]
      %v4369 = vld [vmem:[%s7 + $0x358] sm:$0xff]
      %v4370 = vld [vmem:[%s7 + $0x360] sm:$0xf]
      %v4371 = vld [vmem:[%s7 + $0x364] sm:$0xff]
      %v4372 = vld [vmem:[%s7 + $0x36c] sm:$0xff]
      %v4373 = vld [vmem:[%s7 + $0x374] sm:$0xff]
      %v4374 = vld [vmem:[%s7 + $0x37c] sm:$0xf]
      %v4375 = vld [vmem:[%s7 + $0x380] sm:$0xff]
      %v4376 = vld [vmem:[%s7 + $0x388] sm:$0xff]
      %v4377 = vld [vmem:[%s7 + $0x390] sm:$0xff]
      %v4378 = vld [vmem:[%s7 + $0x398] sm:$0xf]
      %v4379 = vld [vmem:[%s7 + $0x39c] sm:$0xff]
      %v4380 = vld [vmem:[%s7 + $0x3a4] sm:$0xff]
      %v4381 = vld [vmem:[%s7 + $0x3ac] sm:$0xff]
      %v4382 = vld [vmem:[%s7 + $0x3b4] sm:$0xf]
      %v4383 = vld [vmem:[%s7 + $0x3b8] sm:$0xff]
      %v4384 = vld [vmem:[%s7 + $0x3c0] sm:$0xff]
      %v4385 = vld [vmem:[%s7 + $0x3c8] sm:$0xff]
      %v4386 = vld [vmem:[%s7 + $0x3d0] sm:$0xf]
      %v4387 = vld [vmem:[%s7 + $0x3d4] sm:$0xff]
      %v4388 = vld [vmem:[%s7 + $0x3dc] sm:$0xff]
      %v4389 = vld [vmem:[%s7 + $0x3e4] sm:$0xff]
      %v4390 = vld [vmem:[%s7 + $0x3ec] sm:$0xf]
      %v4391 = vld [vmem:[%s7 + $0x3f0] sm:$0xff]
      %v4392 = vld [vmem:[%s7 + $0x3f8] sm:$0xff]
      %v4393 = vld [vmem:[%s7 + $0x400] sm:$0xff]
      %v4394 = vld [vmem:[%s7 + $0x408] sm:$0xf]
      %v4395 = vld [vmem:[%s7 + $0x40c] sm:$0xff]
      %v4396 = vld [vmem:[%s7 + $0x414] sm:$0xff]
      %v4397 = vld [vmem:[%s7 + $0x41c] sm:$0xff]
      %v4398 = vld [vmem:[%s7 + $0x424] sm:$0xf]
      %v4399 = vld [vmem:[%s7 + $0x428] sm:$0xff]
      %v4400 = vld [vmem:[%s7 + $0x430] sm:$0xff]
      %v4401 = vld [vmem:[%s7 + $0x438] sm:$0xff]
      %v4402 = vld [vmem:[%s7 + $0x440] sm:$0xf]
      %v4403 = vld [vmem:[%s7 + $0x444] sm:$0xff]
      %v4404 = vld [vmem:[%s7 + $0x44c] sm:$0xff]
      %v4405 = vld [vmem:[%s7 + $0x454] sm:$0xff]
      %v4406 = vld [vmem:[%s7 + $0x45c] sm:$0xf]
      %v4407 = vld [vmem:[%s7 + $0x460] sm:$0xff]
      %v4408 = vld [vmem:[%s7 + $0x468] sm:$0xff]
      %v4409 = vld [vmem:[%s7 + $0x470] sm:$0xff]
      %v4410 = vld [vmem:[%s7 + $0x478] sm:$0xf]
      %v4411 = vld [vmem:[%s7 + $0x47c] sm:$0xff]
      %v4412 = vld [vmem:[%s7 + $0x484] sm:$0xff]
      %v4413 = vld [vmem:[%s7 + $0x48c] sm:$0xff]
      %v4414 = vld [vmem:[%s7 + $0x494] sm:$0xf]
      %v4415 = vld [vmem:[%s7 + $0x498] sm:$0xff]
      %v4416 = vld [vmem:[%s7 + $0x4a0] sm:$0xff]
      %v4417 = vld [vmem:[%s7 + $0x4a8] sm:$0xff]
      %v4418 = vld [vmem:[%s7 + $0x4b0] sm:$0xf]
      %v4419 = vld [vmem:[%s7 + $0x4b4] sm:$0xff]
      %v4420 = vld [vmem:[%s7 + $0x4bc] sm:$0xff]
      %v4421 = vld [vmem:[%s7 + $0x4c4] sm:$0xff]
      %v4422 = vld [vmem:[%s7 + $0x4cc] sm:$0xf]
      %v4423 = vld [vmem:[%s7 + $0x4d0] sm:$0xff]
      %v4424 = vld [vmem:[%s7 + $0x4d8] sm:$0xff]
      %v4425 = vld [vmem:[%s7 + $0x4e0] sm:$0xff]
      %v4426 = vld [vmem:[%s7 + $0x4e8] sm:$0xf]
      %v4427 = vld [vmem:[%s7 + $0x4ec] sm:$0xff]
      %v4428 = vld [vmem:[%s7 + $0x4f4] sm:$0xff]
      %v4429 = vld [vmem:[%s7 + $0x4fc] sm:$0xff]
      %v4430 = vld [vmem:[%s7 + $0x504] sm:$0xf]
      %v4431 = vld [vmem:[%s7 + $0x508] sm:$0xff]
      %v4432 = vld [vmem:[%s7 + $0x510] sm:$0xff]
      %v4433 = vld [vmem:[%s7 + $0x518] sm:$0xff]
      %v4434 = vld [vmem:[%s7 + $0x520] sm:$0xf]
      %v4435 = vld [vmem:[%s7 + $0x524] sm:$0xff]
      %v4436 = vld [vmem:[%s7 + $0x52c] sm:$0xff]
      %v4437 = vld [vmem:[%s7 + $0x534] sm:$0xff]
      %v4438 = vld [vmem:[%s7 + $0x53c] sm:$0xf]
      %v4439 = vld [vmem:[%s7 + $0x540] sm:$0xff]
      %v4440 = vld [vmem:[%s7 + $0x548] sm:$0xff]
      %v4441 = vld [vmem:[%s7 + $0x550] sm:$0xff]
      %v4442 = vld [vmem:[%s7 + $0x558] sm:$0xf]
      %v4443 = vld [vmem:[%s7 + $0x55c] sm:$0xff]
      %v4444 = vld [vmem:[%s7 + $0x564] sm:$0xff]
      %v4445 = vld [vmem:[%s7 + $0x56c] sm:$0xff]
      %v4446 = vld [vmem:[%s7 + $0x574] sm:$0xf]
      %v4447 = vld [vmem:[%s8] sm:$0x7f]
      %v4449 = vperm.slane %v4447, 0
      %v4450 = vperm.slane %v4447, 1
      %v4451 = vperm.slane %v4447, 2
      %v4452 = vperm.slane %v4447, 3
      %v4453 = vperm.slane %v4447, 4
      %v4454 = vperm.slane %v4447, 5
      %v4455 = vperm.slane %v4447, 6
      %v4663 = vunpack.c.l.b16 %v4247
      %v4664 = vunpack.c.h.b16 %v4247
      %v4665 = vunpack.c.l.b16 %v4248
      %v4666 = vunpack.c.h.b16 %v4248
      %v4667 = vunpack.c.l.b16 %v4249
      %v4668 = vunpack.c.h.b16 %v4249
      %v4669 = vunpack.c.l.b16 %v4250
      %v4670 = vunpack.c.l.b16 %v4251
      %v4671 = vunpack.c.h.b16 %v4251
      %v4672 = vunpack.c.l.b16 %v4252
      %v4673 = vunpack.c.h.b16 %v4252
      %v4674 = vunpack.c.l.b16 %v4253
      %v4675 = vunpack.c.h.b16 %v4253
      %v4676 = vunpack.c.l.b16 %v4254
      %v4677 = vunpack.c.l.b16 %v4255
      %v4678 = vunpack.c.h.b16 %v4255
      %v4679 = vunpack.c.l.b16 %v4256
      %v4680 = vunpack.c.h.b16 %v4256
      %v4681 = vunpack.c.l.b16 %v4257
      %v4682 = vunpack.c.h.b16 %v4257
      %v4683 = vunpack.c.l.b16 %v4258
      %v4684 = vunpack.c.l.b16 %v4259
      %v4685 = vunpack.c.h.b16 %v4259
      %v4686 = vunpack.c.l.b16 %v4260
      %v4687 = vunpack.c.h.b16 %v4260
      %v4688 = vunpack.c.l.b16 %v4261
      %v4689 = vunpack.c.h.b16 %v4261
      %v4690 = vunpack.c.l.b16 %v4262
      %v4691 = vunpack.c.l.b16 %v4263
      %v4692 = vunpack.c.h.b16 %v4263
      %v4693 = vunpack.c.l.b16 %v4264
      %v4694 = vunpack.c.h.b16 %v4264
      %v4695 = vunpack.c.l.b16 %v4265
      %v4696 = vunpack.c.h.b16 %v4265
      %v4697 = vunpack.c.l.b16 %v4266
      %v4698 = vunpack.c.l.b16 %v4267
      %v4699 = vunpack.c.h.b16 %v4267
      %v4700 = vunpack.c.l.b16 %v4268
      %v4701 = vunpack.c.h.b16 %v4268
      %v4702 = vunpack.c.l.b16 %v4269
      %v4703 = vunpack.c.h.b16 %v4269
      %v4704 = vunpack.c.l.b16 %v4270
      %v4705 = vunpack.c.l.b16 %v4271
      %v4706 = vunpack.c.h.b16 %v4271
      %v4707 = vunpack.c.l.b16 %v4272
      %v4708 = vunpack.c.h.b16 %v4272
      %v4709 = vunpack.c.l.b16 %v4273
      %v4710 = vunpack.c.h.b16 %v4273
      %v4711 = vunpack.c.l.b16 %v4274
      %v4712 = vunpack.c.l.b16 %v4275
      %v4713 = vunpack.c.h.b16 %v4275
      %v4714 = vunpack.c.l.b16 %v4276
      %v4715 = vunpack.c.h.b16 %v4276
      %v4716 = vunpack.c.l.b16 %v4277
      %v4717 = vunpack.c.h.b16 %v4277
      %v4718 = vunpack.c.l.b16 %v4278
      %v4719 = vunpack.c.l.b16 %v4279
      %v4720 = vunpack.c.h.b16 %v4279
      %v4721 = vunpack.c.l.b16 %v4280
      %v4722 = vunpack.c.h.b16 %v4280
      %v4723 = vunpack.c.l.b16 %v4281
      %v4724 = vunpack.c.h.b16 %v4281
      %v4725 = vunpack.c.l.b16 %v4282
      %v4726 = vunpack.c.l.b16 %v4283
      %v4727 = vunpack.c.h.b16 %v4283
      %v4728 = vunpack.c.l.b16 %v4284
      %v4729 = vunpack.c.h.b16 %v4284
      %v4730 = vunpack.c.l.b16 %v4285
      %v4731 = vunpack.c.h.b16 %v4285
      %v4732 = vunpack.c.l.b16 %v4286
      %v4733 = vunpack.c.l.b16 %v4287
      %v4734 = vunpack.c.h.b16 %v4287
      %v4735 = vunpack.c.l.b16 %v4288
      %v4736 = vunpack.c.h.b16 %v4288
      %v4737 = vunpack.c.l.b16 %v4289
      %v4738 = vunpack.c.h.b16 %v4289
      %v4739 = vunpack.c.l.b16 %v4290
      %v4740 = vunpack.c.l.b16 %v4291
      %v4741 = vunpack.c.h.b16 %v4291
      %v4742 = vunpack.c.l.b16 %v4292
      %v4743 = vunpack.c.h.b16 %v4292
      %v4744 = vunpack.c.l.b16 %v4293
      %v4745 = vunpack.c.h.b16 %v4293
      %v4746 = vunpack.c.l.b16 %v4294
      %v4747 = vunpack.c.l.b16 %v4295
      %v4748 = vunpack.c.h.b16 %v4295
      %v4749 = vunpack.c.l.b16 %v4296
      %v4750 = vunpack.c.h.b16 %v4296
      %v4751 = vunpack.c.l.b16 %v4297
      %v4752 = vunpack.c.h.b16 %v4297
      %v4753 = vunpack.c.l.b16 %v4298
      %v4754 = vunpack.c.l.b16 %v4299
      %v4755 = vunpack.c.h.b16 %v4299
      %v4756 = vunpack.c.l.b16 %v4300
      %v4757 = vunpack.c.h.b16 %v4300
      %v4758 = vunpack.c.l.b16 %v4301
      %v4759 = vunpack.c.h.b16 %v4301
      %v4760 = vunpack.c.l.b16 %v4302
      %v4761 = vunpack.c.l.b16 %v4303
      %v4762 = vunpack.c.h.b16 %v4303
      %v4763 = vunpack.c.l.b16 %v4304
      %v4764 = vunpack.c.h.b16 %v4304
      %v4765 = vunpack.c.l.b16 %v4305
      %v4766 = vunpack.c.h.b16 %v4305
      %v4767 = vunpack.c.l.b16 %v4306
      %v4768 = vunpack.c.l.b16 %v4307
      %v4769 = vunpack.c.h.b16 %v4307
      %v4770 = vunpack.c.l.b16 %v4308
      %v4771 = vunpack.c.h.b16 %v4308
      %v4772 = vunpack.c.l.b16 %v4309
      %v4773 = vunpack.c.h.b16 %v4309
      %v4774 = vunpack.c.l.b16 %v4310
      %v4775 = vunpack.c.l.b16 %v4311
      %v4776 = vunpack.c.h.b16 %v4311
      %v4777 = vunpack.c.l.b16 %v4312
      %v4778 = vunpack.c.h.b16 %v4312
      %v4779 = vunpack.c.l.b16 %v4313
      %v4780 = vunpack.c.h.b16 %v4313
      %v4781 = vunpack.c.l.b16 %v4314
      %v4782 = vunpack.c.l.b16 %v4315
      %v4783 = vunpack.c.h.b16 %v4315
      %v4784 = vunpack.c.l.b16 %v4316
      %v4785 = vunpack.c.h.b16 %v4316
      %v4786 = vunpack.c.l.b16 %v4317
      %v4787 = vunpack.c.h.b16 %v4317
      %v4788 = vunpack.c.l.b16 %v4318
      %v4789 = vunpack.c.l.b16 %v4319
      %v4790 = vunpack.c.h.b16 %v4319
      %v4791 = vunpack.c.l.b16 %v4320
      %v4792 = vunpack.c.h.b16 %v4320
      %v4793 = vunpack.c.l.b16 %v4321
      %v4794 = vunpack.c.h.b16 %v4321
      %v4795 = vunpack.c.l.b16 %v4322
      %v4796 = vunpack.c.l.b16 %v4323
      %v4797 = vunpack.c.h.b16 %v4323
      %v4798 = vunpack.c.l.b16 %v4324
      %v4799 = vunpack.c.h.b16 %v4324
      %v4800 = vunpack.c.l.b16 %v4325
      %v4801 = vunpack.c.h.b16 %v4325
      %v4802 = vunpack.c.l.b16 %v4326
      %v4803 = vunpack.c.l.b16 %v4327
      %v4804 = vunpack.c.h.b16 %v4327
      %v4805 = vunpack.c.l.b16 %v4328
      %v4806 = vunpack.c.h.b16 %v4328
      %v4807 = vunpack.c.l.b16 %v4329
      %v4808 = vunpack.c.h.b16 %v4329
      %v4809 = vunpack.c.l.b16 %v4330
      %v4810 = vunpack.c.l.b16 %v4331
      %v4811 = vunpack.c.h.b16 %v4331
      %v4812 = vunpack.c.l.b16 %v4332
      %v4813 = vunpack.c.h.b16 %v4332
      %v4814 = vunpack.c.l.b16 %v4333
      %v4815 = vunpack.c.h.b16 %v4333
      %v4816 = vunpack.c.l.b16 %v4334
      %v4817 = vunpack.c.l.b16 %v4335
      %v4818 = vunpack.c.h.b16 %v4335
      %v4819 = vunpack.c.l.b16 %v4336
      %v4820 = vunpack.c.h.b16 %v4336
      %v4821 = vunpack.c.l.b16 %v4337
      %v4822 = vunpack.c.h.b16 %v4337
      %v4823 = vunpack.c.l.b16 %v4338
      %v4824 = vunpack.c.l.b16 %v4339
      %v4825 = vunpack.c.h.b16 %v4339
      %v4826 = vunpack.c.l.b16 %v4340
      %v4827 = vunpack.c.h.b16 %v4340
      %v4828 = vunpack.c.l.b16 %v4341
      %v4829 = vunpack.c.h.b16 %v4341
      %v4830 = vunpack.c.l.b16 %v4342
      %v4831 = vunpack.c.l.b16 %v4343
      %v4832 = vunpack.c.h.b16 %v4343
      %v4833 = vunpack.c.l.b16 %v4344
      %v4834 = vunpack.c.h.b16 %v4344
      %v4835 = vunpack.c.l.b16 %v4345
      %v4836 = vunpack.c.h.b16 %v4345
      %v4837 = vunpack.c.l.b16 %v4346
      %v4838 = vunpack.c.l.b16 %v4347
      %v4839 = vunpack.c.h.b16 %v4347
      %v4840 = vunpack.c.l.b16 %v4348
      %v4841 = vunpack.c.h.b16 %v4348
      %v4842 = vunpack.c.l.b16 %v4349
      %v4843 = vunpack.c.h.b16 %v4349
      %v4844 = vunpack.c.l.b16 %v4350
      %v4845 = vunpack.c.l.b16 %v4351
      %v4846 = vunpack.c.h.b16 %v4351
      %v4847 = vunpack.c.l.b16 %v4352
      %v4848 = vunpack.c.h.b16 %v4352
      %v4849 = vunpack.c.l.b16 %v4353
      %v4850 = vunpack.c.h.b16 %v4353
      %v4851 = vunpack.c.l.b16 %v4354
      %v4852 = vunpack.c.l.b16 %v4355
      %v4853 = vunpack.c.h.b16 %v4355
      %v4854 = vunpack.c.l.b16 %v4356
      %v4855 = vunpack.c.h.b16 %v4356
      %v4856 = vunpack.c.l.b16 %v4357
      %v4857 = vunpack.c.h.b16 %v4357
      %v4858 = vunpack.c.l.b16 %v4358
      %v4859 = vunpack.c.l.b16 %v4359
      %v4860 = vunpack.c.h.b16 %v4359
      %v4861 = vunpack.c.l.b16 %v4360
      %v4862 = vunpack.c.h.b16 %v4360
      %v4863 = vunpack.c.l.b16 %v4361
      %v4864 = vunpack.c.h.b16 %v4361
      %v4865 = vunpack.c.l.b16 %v4362
      %v4866 = vunpack.c.l.b16 %v4363
      %v4867 = vunpack.c.h.b16 %v4363
      %v4868 = vunpack.c.l.b16 %v4364
      %v4869 = vunpack.c.h.b16 %v4364
      %v4870 = vunpack.c.l.b16 %v4365
      %v4871 = vunpack.c.h.b16 %v4365
      %v4872 = vunpack.c.l.b16 %v4366
      %v4873 = vunpack.c.l.b16 %v4367
      %v4874 = vunpack.c.h.b16 %v4367
      %v4875 = vunpack.c.l.b16 %v4368
      %v4876 = vunpack.c.h.b16 %v4368
      %v4877 = vunpack.c.l.b16 %v4369
      %v4878 = vunpack.c.h.b16 %v4369
      %v4879 = vunpack.c.l.b16 %v4370
      %v4880 = vunpack.c.l.b16 %v4371
      %v4881 = vunpack.c.h.b16 %v4371
      %v4882 = vunpack.c.l.b16 %v4372
      %v4883 = vunpack.c.h.b16 %v4372
      %v4884 = vunpack.c.l.b16 %v4373
      %v4885 = vunpack.c.h.b16 %v4373
      %v4886 = vunpack.c.l.b16 %v4374
      %v4887 = vunpack.c.l.b16 %v4375
      %v4888 = vunpack.c.h.b16 %v4375
      %v4889 = vunpack.c.l.b16 %v4376
      %v4890 = vunpack.c.h.b16 %v4376
      %v4891 = vunpack.c.l.b16 %v4377
      %v4892 = vunpack.c.h.b16 %v4377
      %v4893 = vunpack.c.l.b16 %v4378
      %v4894 = vunpack.c.l.b16 %v4379
      %v4895 = vunpack.c.h.b16 %v4379
      %v4896 = vunpack.c.l.b16 %v4380
      %v4897 = vunpack.c.h.b16 %v4380
      %v4898 = vunpack.c.l.b16 %v4381
      %v4899 = vunpack.c.h.b16 %v4381
      %v4900 = vunpack.c.l.b16 %v4382
      %v4901 = vunpack.c.l.b16 %v4383
      %v4902 = vunpack.c.h.b16 %v4383
      %v4903 = vunpack.c.l.b16 %v4384
      %v4904 = vunpack.c.h.b16 %v4384
      %v4905 = vunpack.c.l.b16 %v4385
      %v4906 = vunpack.c.h.b16 %v4385
      %v4907 = vunpack.c.l.b16 %v4386
      %v4908 = vunpack.c.l.b16 %v4387
      %v4909 = vunpack.c.h.b16 %v4387
      %v4910 = vunpack.c.l.b16 %v4388
      %v4911 = vunpack.c.h.b16 %v4388
      %v4912 = vunpack.c.l.b16 %v4389
      %v4913 = vunpack.c.h.b16 %v4389
      %v4914 = vunpack.c.l.b16 %v4390
      %v4915 = vunpack.c.l.b16 %v4391
      %v4916 = vunpack.c.h.b16 %v4391
      %v4917 = vunpack.c.l.b16 %v4392
      %v4918 = vunpack.c.h.b16 %v4392
      %v4919 = vunpack.c.l.b16 %v4393
      %v4920 = vunpack.c.h.b16 %v4393
      %v4921 = vunpack.c.l.b16 %v4394
      %v4922 = vunpack.c.l.b16 %v4395
      %v4923 = vunpack.c.h.b16 %v4395
      %v4924 = vunpack.c.l.b16 %v4396
      %v4925 = vunpack.c.h.b16 %v4396
      %v4926 = vunpack.c.l.b16 %v4397
      %v4927 = vunpack.c.h.b16 %v4397
      %v4928 = vunpack.c.l.b16 %v4398
      %v4929 = vunpack.c.l.b16 %v4399
      %v4930 = vunpack.c.h.b16 %v4399
      %v4931 = vunpack.c.l.b16 %v4400
      %v4932 = vunpack.c.h.b16 %v4400
      %v4933 = vunpack.c.l.b16 %v4401
      %v4934 = vunpack.c.h.b16 %v4401
      %v4935 = vunpack.c.l.b16 %v4402
      %v4936 = vunpack.c.l.b16 %v4403
      %v4937 = vunpack.c.h.b16 %v4403
      %v4938 = vunpack.c.l.b16 %v4404
      %v4939 = vunpack.c.h.b16 %v4404
      %v4940 = vunpack.c.l.b16 %v4405
      %v4941 = vunpack.c.h.b16 %v4405
      %v4942 = vunpack.c.l.b16 %v4406
      %v4943 = vunpack.c.l.b16 %v4407
      %v4944 = vunpack.c.h.b16 %v4407
      %v4945 = vunpack.c.l.b16 %v4408
      %v4946 = vunpack.c.h.b16 %v4408
      %v4947 = vunpack.c.l.b16 %v4409
      %v4948 = vunpack.c.h.b16 %v4409
      %v4949 = vunpack.c.l.b16 %v4410
      %v4950 = vunpack.c.l.b16 %v4411
      %v4951 = vunpack.c.h.b16 %v4411
      %v4952 = vunpack.c.l.b16 %v4412
      %v4953 = vunpack.c.h.b16 %v4412
      %v4954 = vunpack.c.l.b16 %v4413
      %v4955 = vunpack.c.h.b16 %v4413
      %v4956 = vunpack.c.l.b16 %v4414
      %v4957 = vunpack.c.l.b16 %v4415
      %v4958 = vunpack.c.h.b16 %v4415
      %v4959 = vunpack.c.l.b16 %v4416
      %v4960 = vunpack.c.h.b16 %v4416
      %v4961 = vunpack.c.l.b16 %v4417
      %v4962 = vunpack.c.h.b16 %v4417
      %v4963 = vunpack.c.l.b16 %v4418
      %v4964 = vunpack.c.l.b16 %v4419
      %v4965 = vunpack.c.h.b16 %v4419
      %v4966 = vunpack.c.l.b16 %v4420
      %v4967 = vunpack.c.h.b16 %v4420
      %v4968 = vunpack.c.l.b16 %v4421
      %v4969 = vunpack.c.h.b16 %v4421
      %v4970 = vunpack.c.l.b16 %v4422
      %v4971 = vunpack.c.l.b16 %v4423
      %v4972 = vunpack.c.h.b16 %v4423
      %v4973 = vunpack.c.l.b16 %v4424
      %v4974 = vunpack.c.h.b16 %v4424
      %v4975 = vunpack.c.l.b16 %v4425
      %v4976 = vunpack.c.h.b16 %v4425
      %v4977 = vunpack.c.l.b16 %v4426
      %v4978 = vunpack.c.l.b16 %v4427
      %v4979 = vunpack.c.h.b16 %v4427
      %v4980 = vunpack.c.l.b16 %v4428
      %v4981 = vunpack.c.h.b16 %v4428
      %v4982 = vunpack.c.l.b16 %v4429
      %v4983 = vunpack.c.h.b16 %v4429
      %v4984 = vunpack.c.l.b16 %v4430
      %v4985 = vunpack.c.l.b16 %v4431
      %v4986 = vunpack.c.h.b16 %v4431
      %v4987 = vunpack.c.l.b16 %v4432
      %v4988 = vunpack.c.h.b16 %v4432
      %v4989 = vunpack.c.l.b16 %v4433
      %v4990 = vunpack.c.h.b16 %v4433
      %v4991 = vunpack.c.l.b16 %v4434
      %v4992 = vunpack.c.l.b16 %v4435
      %v4993 = vunpack.c.h.b16 %v4435
      %v4994 = vunpack.c.l.b16 %v4436
      %v4995 = vunpack.c.h.b16 %v4436
      %v4996 = vunpack.c.l.b16 %v4437
      %v4997 = vunpack.c.h.b16 %v4437
      %v4998 = vunpack.c.l.b16 %v4438
      %v4999 = vunpack.c.l.b16 %v4439
      %v5000 = vunpack.c.h.b16 %v4439
      %v5001 = vunpack.c.l.b16 %v4440
      %v5002 = vunpack.c.h.b16 %v4440
      %v5003 = vunpack.c.l.b16 %v4441
      %v5004 = vunpack.c.h.b16 %v4441
      %v5005 = vunpack.c.l.b16 %v4442
      %v5006 = vunpack.c.l.b16 %v4443
      %v5007 = vunpack.c.h.b16 %v4443
      %v5008 = vunpack.c.l.b16 %v4444
      %v5009 = vunpack.c.h.b16 %v4444
      %v5010 = vunpack.c.l.b16 %v4445
      %v5011 = vunpack.c.h.b16 %v4445
      %v5012 = vunpack.c.l.b16 %v4446
      %v5013 = vpack.c.b16 %v4670, %v4663
      %v5014 = vpack.c.b16 %v4671, %v4664
      %v5015 = vpack.c.b16 %v4672, %v4665
      %v5016 = vpack.c.b16 %v4673, %v4666
      %v5017 = vpack.c.b16 %v4674, %v4667
      %v5018 = vpack.c.b16 %v4675, %v4668
      %v5019 = vpack.c.b16 %v4676, %v4669
      %v5020 = vpack.c.b16 %v4684, %v4677
      %v5021 = vpack.c.b16 %v4685, %v4678
      %v5022 = vpack.c.b16 %v4686, %v4679
      %v5023 = vpack.c.b16 %v4687, %v4680
      %v5024 = vpack.c.b16 %v4688, %v4681
      %v5025 = vpack.c.b16 %v4689, %v4682
      %v5026 = vpack.c.b16 %v4690, %v4683
      %v5027 = vpack.c.b16 %v4698, %v4691
      %v5028 = vpack.c.b16 %v4699, %v4692
      %v5029 = vpack.c.b16 %v4700, %v4693
      %v5030 = vpack.c.b16 %v4701, %v4694
      %v5031 = vpack.c.b16 %v4702, %v4695
      %v5032 = vpack.c.b16 %v4703, %v4696
      %v5033 = vpack.c.b16 %v4704, %v4697
      %v5034 = vpack.c.b16 %v4712, %v4705
      %v5035 = vpack.c.b16 %v4713, %v4706
      %v5036 = vpack.c.b16 %v4714, %v4707
      %v5037 = vpack.c.b16 %v4715, %v4708
      %v5038 = vpack.c.b16 %v4716, %v4709
      %v5039 = vpack.c.b16 %v4717, %v4710
      %v5040 = vpack.c.b16 %v4718, %v4711
      %v5041 = vpack.c.b16 %v4726, %v4719
      %v5042 = vpack.c.b16 %v4727, %v4720
      %v5043 = vpack.c.b16 %v4728, %v4721
      %v5044 = vpack.c.b16 %v4729, %v4722
      %v5045 = vpack.c.b16 %v4730, %v4723
      %v5046 = vpack.c.b16 %v4731, %v4724
      %v5047 = vpack.c.b16 %v4732, %v4725
      %v5048 = vpack.c.b16 %v4740, %v4733
      %v5049 = vpack.c.b16 %v4741, %v4734
      %v5050 = vpack.c.b16 %v4742, %v4735
      %v5051 = vpack.c.b16 %v4743, %v4736
      %v5052 = vpack.c.b16 %v4744, %v4737
      %v5053 = vpack.c.b16 %v4745, %v4738
      %v5054 = vpack.c.b16 %v4746, %v4739
      %v5055 = vpack.c.b16 %v4754, %v4747
      %v5056 = vpack.c.b16 %v4755, %v4748
      %v5057 = vpack.c.b16 %v4756, %v4749
      %v5058 = vpack.c.b16 %v4757, %v4750
      %v5059 = vpack.c.b16 %v4758, %v4751
      %v5060 = vpack.c.b16 %v4759, %v4752
      %v5061 = vpack.c.b16 %v4760, %v4753
      %v5062 = vpack.c.b16 %v4768, %v4761
      %v5063 = vpack.c.b16 %v4769, %v4762
      %v5064 = vpack.c.b16 %v4770, %v4763
      %v5065 = vpack.c.b16 %v4771, %v4764
      %v5066 = vpack.c.b16 %v4772, %v4765
      %v5067 = vpack.c.b16 %v4773, %v4766
      %v5068 = vpack.c.b16 %v4774, %v4767
      %v5069 = vpack.c.b16 %v4782, %v4775
      %v5070 = vpack.c.b16 %v4783, %v4776
      %v5071 = vpack.c.b16 %v4784, %v4777
      %v5072 = vpack.c.b16 %v4785, %v4778
      %v5073 = vpack.c.b16 %v4786, %v4779
      %v5074 = vpack.c.b16 %v4787, %v4780
      %v5075 = vpack.c.b16 %v4788, %v4781
      %v5076 = vpack.c.b16 %v4796, %v4789
      %v5077 = vpack.c.b16 %v4797, %v4790
      %v5078 = vpack.c.b16 %v4798, %v4791
      %v5079 = vpack.c.b16 %v4799, %v4792
      %v5080 = vpack.c.b16 %v4800, %v4793
      %v5081 = vpack.c.b16 %v4801, %v4794
      %v5082 = vpack.c.b16 %v4802, %v4795
      %v5083 = vpack.c.b16 %v4810, %v4803
      %v5084 = vpack.c.b16 %v4811, %v4804
      %v5085 = vpack.c.b16 %v4812, %v4805
      %v5086 = vpack.c.b16 %v4813, %v4806
      %v5087 = vpack.c.b16 %v4814, %v4807
      %v5088 = vpack.c.b16 %v4815, %v4808
      %v5089 = vpack.c.b16 %v4816, %v4809
      %v5090 = vpack.c.b16 %v4824, %v4817
      %v5091 = vpack.c.b16 %v4825, %v4818
      %v5092 = vpack.c.b16 %v4826, %v4819
      %v5093 = vpack.c.b16 %v4827, %v4820
      %v5094 = vpack.c.b16 %v4828, %v4821
      %v5095 = vpack.c.b16 %v4829, %v4822
      %v5096 = vpack.c.b16 %v4830, %v4823
      %v5097 = vpack.c.b16 %v4838, %v4831
      %v5098 = vpack.c.b16 %v4839, %v4832
      %v5099 = vpack.c.b16 %v4840, %v4833
      %v5100 = vpack.c.b16 %v4841, %v4834
      %v5101 = vpack.c.b16 %v4842, %v4835
      %v5102 = vpack.c.b16 %v4843, %v4836
      %v5103 = vpack.c.b16 %v4844, %v4837
      %v5104 = vpack.c.b16 %v4852, %v4845
      %v5105 = vpack.c.b16 %v4853, %v4846
      %v5106 = vpack.c.b16 %v4854, %v4847
      %v5107 = vpack.c.b16 %v4855, %v4848
      %v5108 = vpack.c.b16 %v4856, %v4849
      %v5109 = vpack.c.b16 %v4857, %v4850
      %v5110 = vpack.c.b16 %v4858, %v4851
      %v5111 = vpack.c.b16 %v4866, %v4859
      %v5112 = vpack.c.b16 %v4867, %v4860
      %v5113 = vpack.c.b16 %v4868, %v4861
      %v5114 = vpack.c.b16 %v4869, %v4862
      %v5115 = vpack.c.b16 %v4870, %v4863
      %v5116 = vpack.c.b16 %v4871, %v4864
      %v5117 = vpack.c.b16 %v4872, %v4865
      %v5118 = vpack.c.b16 %v4880, %v4873
      %v5119 = vpack.c.b16 %v4881, %v4874
      %v5120 = vpack.c.b16 %v4882, %v4875
      %v5121 = vpack.c.b16 %v4883, %v4876
      %v5122 = vpack.c.b16 %v4884, %v4877
      %v5123 = vpack.c.b16 %v4885, %v4878
      %v5124 = vpack.c.b16 %v4886, %v4879
      %v5125 = vpack.c.b16 %v4894, %v4887
      %v5126 = vpack.c.b16 %v4895, %v4888
      %v5127 = vpack.c.b16 %v4896, %v4889
      %v5128 = vpack.c.b16 %v4897, %v4890
      %v5129 = vpack.c.b16 %v4898, %v4891
      %v5130 = vpack.c.b16 %v4899, %v4892
      %v5131 = vpack.c.b16 %v4900, %v4893
      %v5132 = vpack.c.b16 %v4908, %v4901
      %v5133 = vpack.c.b16 %v4909, %v4902
      %v5134 = vpack.c.b16 %v4910, %v4903
      %v5135 = vpack.c.b16 %v4911, %v4904
      %v5136 = vpack.c.b16 %v4912, %v4905
      %v5137 = vpack.c.b16 %v4913, %v4906
      %v5138 = vpack.c.b16 %v4914, %v4907
      %v5139 = vpack.c.b16 %v4922, %v4915
      %v5140 = vpack.c.b16 %v4923, %v4916
      %v5141 = vpack.c.b16 %v4924, %v4917
      %v5142 = vpack.c.b16 %v4925, %v4918
      %v5143 = vpack.c.b16 %v4926, %v4919
      %v5144 = vpack.c.b16 %v4927, %v4920
      %v5145 = vpack.c.b16 %v4928, %v4921
      %v5146 = vpack.c.b16 %v4936, %v4929
      %v5147 = vpack.c.b16 %v4937, %v4930
      %v5148 = vpack.c.b16 %v4938, %v4931
      %v5149 = vpack.c.b16 %v4939, %v4932
      %v5150 = vpack.c.b16 %v4940, %v4933
      %v5151 = vpack.c.b16 %v4941, %v4934
      %v5152 = vpack.c.b16 %v4942, %v4935
      %v5153 = vpack.c.b16 %v4950, %v4943
      %v5154 = vpack.c.b16 %v4951, %v4944
      %v5155 = vpack.c.b16 %v4952, %v4945
      %v5156 = vpack.c.b16 %v4953, %v4946
      %v5157 = vpack.c.b16 %v4954, %v4947
      %v5158 = vpack.c.b16 %v4955, %v4948
      %v5159 = vpack.c.b16 %v4956, %v4949
      %v5160 = vpack.c.b16 %v4964, %v4957
      %v5161 = vpack.c.b16 %v4965, %v4958
      %v5162 = vpack.c.b16 %v4966, %v4959
      %v5163 = vpack.c.b16 %v4967, %v4960
      %v5164 = vpack.c.b16 %v4968, %v4961
      %v5165 = vpack.c.b16 %v4969, %v4962
      %v5166 = vpack.c.b16 %v4970, %v4963
      %v5167 = vpack.c.b16 %v4978, %v4971
      %v5168 = vpack.c.b16 %v4979, %v4972
      %v5169 = vpack.c.b16 %v4980, %v4973
      %v5170 = vpack.c.b16 %v4981, %v4974
      %v5171 = vpack.c.b16 %v4982, %v4975
      %v5172 = vpack.c.b16 %v4983, %v4976
      %v5173 = vpack.c.b16 %v4984, %v4977
      %v5174 = vpack.c.b16 %v4992, %v4985
      %v5175 = vpack.c.b16 %v4993, %v4986
      %v5176 = vpack.c.b16 %v4994, %v4987
      %v5177 = vpack.c.b16 %v4995, %v4988
      %v5178 = vpack.c.b16 %v4996, %v4989
      %v5179 = vpack.c.b16 %v4997, %v4990
      %v5180 = vpack.c.b16 %v4998, %v4991
      %v5181 = vpack.c.b16 %v5006, %v4999
      %v5182 = vpack.c.b16 %v5007, %v5000
      %v5183 = vpack.c.b16 %v5008, %v5001
      %v5184 = vpack.c.b16 %v5009, %v5002
      %v5185 = vpack.c.b16 %v5010, %v5003
      %v5186 = vpack.c.b16 %v5011, %v5004
      %v5187 = vpack.c.b16 %v5012, %v5005
      %v5364 = vsel %vm1786, %v4218, 0
      %v5367 = vsel %vm1786, %v4222, 0
      %v5370 = vsel %vm1786, %v4226, 0
      %v5373 = vsel %vm1786, %v4230, 0
      %v5376 = vsel %vm1786, %v4234, 0
      %v5379 = vsel %vm1786, %v4238, 0
      %v5382 = vsel %vm1786, %v4242, 0
      %v5385 = vsel %vm1786, %v4246, 0
      %5387 = vmatpush.bf16.msra.mxu0 %v5062
      %5388 = vmatpush.bf16.msra.mxu0 %v5055
      %5389 = vmatpush.bf16.msra.mxu0 %v5048
      %5390 = vmatpush.bf16.msra.mxu0 %v5041
      %5391 = vmatpush.bf16.msra.mxu0 %v5034
      %5392 = vmatpush.bf16.msra.mxu0 %v5027
      %5393 = vmatpush.bf16.msra.mxu0 %v5020
      %5394 = vmatpush.bf16.msra.mxu0 %v5013
      %5395 = vmatmul.bf16.gmra.mxu0 %v4215
      %v5396 = vpop.f32.mrf.mxu0
      %v5397 = vadd.f32 %v4449, %v5396
      %v5398 = vpop.f32.mrf.mxu0
      %v5399 = vadd.f32 %v4449, %v5398
      %5400 = vmatmul.bf16.gmra.mxu0 %v4219
      %v5401 = vpop.f32.mrf.mxu0
      %v5402 = vadd.f32 %v4449, %v5401
      %v5403 = vpop.f32.mrf.mxu0
      %v5404 = vadd.f32 %v4449, %v5403
      %5405 = vmatmul.bf16.gmra.mxu0 %v4223
      %v5406 = vpop.f32.mrf.mxu0
      %v5407 = vadd.f32 %v4449, %v5406
      %v5408 = vpop.f32.mrf.mxu0
      %v5409 = vadd.f32 %v4449, %v5408
      %5410 = vmatmul.bf16.gmra.mxu0 %v4227
      %v5411 = vpop.f32.mrf.mxu0
      %v5412 = vadd.f32 %v4449, %v5411
      %v5413 = vpop.f32.mrf.mxu0
      %v5414 = vadd.f32 %v4449, %v5413
      %5415 = vmatmul.bf16.gmra.mxu0 %v4231
      %v5416 = vpop.f32.mrf.mxu0
      %v5417 = vadd.f32 %v4449, %v5416
      %v5418 = vpop.f32.mrf.mxu0
      %v5419 = vadd.f32 %v4449, %v5418
      %5420 = vmatmul.bf16.gmra.mxu0 %v4235
      %v5421 = vpop.f32.mrf.mxu0
      %v5422 = vadd.f32 %v4449, %v5421
      %v5423 = vpop.f32.mrf.mxu0
      %v5424 = vadd.f32 %v4449, %v5423
      %5425 = vmatmul.bf16.gmra.mxu0 %v4239
      %v5426 = vpop.f32.mrf.mxu0
      %v5427 = vadd.f32 %v4449, %v5426
      %v5428 = vpop.f32.mrf.mxu0
      %v5429 = vadd.f32 %v4449, %v5428
      %5430 = vmatmul.bf16.gmra.mxu0 %v4243
      %v5431 = vpop.f32.mrf.mxu0
      %v5432 = vadd.f32 %v4449, %v5431
      %v5433 = vpop.f32.mrf.mxu0
      %v5434 = vadd.f32 %v4449, %v5433
      %5435 = vdwg.mxu0
      %5436 = vmatpush.bf16.msra.mxu0 %v5118
      %5437 = vmatpush.bf16.msra.mxu0 %v5111
      %5438 = vmatpush.bf16.msra.mxu0 %v5104
      %5439 = vmatpush.bf16.msra.mxu0 %v5097
      %5440 = vmatpush.bf16.msra.mxu0 %v5090
      %5441 = vmatpush.bf16.msra.mxu0 %v5083
      %5442 = vmatpush.bf16.msra.mxu0 %v5076
      %5443 = vmatpush.bf16.msra.mxu0 %v5069
      %5444 = vmatmul.bf16.gmra.mxu0 %v4216
      %v5445 = vpop.f32.mrf.mxu0
      %v5446 = vadd.f32 %v5397, %v5445
      %v5447 = vpop.f32.mrf.mxu0
      %v5448 = vadd.f32 %v5399, %v5447
      %5449 = vmatmul.bf16.gmra.mxu0 %v4220
      %v5450 = vpop.f32.mrf.mxu0
      %v5451 = vadd.f32 %v5402, %v5450
      %v5452 = vpop.f32.mrf.mxu0
      %v5453 = vadd.f32 %v5404, %v5452
      %5454 = vmatmul.bf16.gmra.mxu0 %v4224
      %v5455 = vpop.f32.mrf.mxu0
      %v5456 = vadd.f32 %v5407, %v5455
      %v5457 = vpop.f32.mrf.mxu0
      %v5458 = vadd.f32 %v5409, %v5457
      %5459 = vmatmul.bf16.gmra.mxu0 %v4228
      %v5460 = vpop.f32.mrf.mxu0
      %v5461 = vadd.f32 %v5412, %v5460
      %v5462 = vpop.f32.mrf.mxu0
      %v5463 = vadd.f32 %v5414, %v5462
      %5464 = vmatmul.bf16.gmra.mxu0 %v4232
      %v5465 = vpop.f32.mrf.mxu0
      %v5466 = vadd.f32 %v5417, %v5465
      %v5467 = vpop.f32.mrf.mxu0
      %v5468 = vadd.f32 %v5419, %v5467
      %5469 = vmatmul.bf16.gmra.mxu0 %v4236
      %v5470 = vpop.f32.mrf.mxu0
      %v5471 = vadd.f32 %v5422, %v5470
      %v5472 = vpop.f32.mrf.mxu0
      %v5473 = vadd.f32 %v5424, %v5472
      %5474 = vmatmul.bf16.gmra.mxu0 %v4240
      %v5475 = vpop.f32.mrf.mxu0
      %v5476 = vadd.f32 %v5427, %v5475
      %v5477 = vpop.f32.mrf.mxu0
      %v5478 = vadd.f32 %v5429, %v5477
      %5479 = vmatmul.bf16.gmra.mxu0 %v4244
      %v5480 = vpop.f32.mrf.mxu0
      %v5481 = vadd.f32 %v5432, %v5480
      %v5482 = vpop.f32.mrf.mxu0
      %v5483 = vadd.f32 %v5434, %v5482
      %5484 = vdwg.mxu0
      %5485 = vmatpush.bf16.msra.mxu0 %v5174
      %5486 = vmatpush.bf16.msra.mxu0 %v5167
      %5487 = vmatpush.bf16.msra.mxu0 %v5160
      %5488 = vmatpush.bf16.msra.mxu0 %v5153
      %5489 = vmatpush.bf16.msra.mxu0 %v5146
      %5490 = vmatpush.bf16.msra.mxu0 %v5139
      %5491 = vmatpush.bf16.msra.mxu0 %v5132
      %5492 = vmatpush.bf16.msra.mxu0 %v5125
      %5493 = vmatmul.bf16.gmra.mxu0 %v4217
      %v5494 = vpop.f32.mrf.mxu0
      %v5495 = vadd.f32 %v5446, %v5494
      %v5496 = vpop.f32.mrf.mxu0
      %v5497 = vadd.f32 %v5448, %v5496
      %5498 = vmatmul.bf16.gmra.mxu0 %v4221
      %v5499 = vpop.f32.mrf.mxu0
      %v5500 = vadd.f32 %v5451, %v5499
      %v5501 = vpop.f32.mrf.mxu0
      %v5502 = vadd.f32 %v5453, %v5501
      %5503 = vmatmul.bf16.gmra.mxu0 %v4225
      %v5504 = vpop.f32.mrf.mxu0
      %v5505 = vadd.f32 %v5456, %v5504
      %v5506 = vpop.f32.mrf.mxu0
      %v5507 = vadd.f32 %v5458, %v5506
      %5508 = vmatmul.bf16.gmra.mxu0 %v4229
      %v5509 = vpop.f32.mrf.mxu0
      %v5510 = vadd.f32 %v5461, %v5509
      %v5511 = vpop.f32.mrf.mxu0
      %v5512 = vadd.f32 %v5463, %v5511
      %5513 = vmatmul.bf16.gmra.mxu0 %v4233
      %v5514 = vpop.f32.mrf.mxu0
      %v5515 = vadd.f32 %v5466, %v5514
      %v5516 = vpop.f32.mrf.mxu0
      %v5517 = vadd.f32 %v5468, %v5516
      %5518 = vmatmul.bf16.gmra.mxu0 %v4237
      %v5519 = vpop.f32.mrf.mxu0
      %v5520 = vadd.f32 %v5471, %v5519
      %v5521 = vpop.f32.mrf.mxu0
      %v5522 = vadd.f32 %v5473, %v5521
      %5523 = vmatmul.bf16.gmra.mxu0 %v4241
      %v5524 = vpop.f32.mrf.mxu0
      %v5525 = vadd.f32 %v5476, %v5524
      %v5526 = vpop.f32.mrf.mxu0
      %v5527 = vadd.f32 %v5478, %v5526
      %5528 = vmatmul.bf16.gmra.mxu0 %v4245
      %v5529 = vpop.f32.mrf.mxu0
      %v5530 = vadd.f32 %v5481, %v5529
      %v5531 = vpop.f32.mrf.mxu0
      %v5532 = vadd.f32 %v5483, %v5531
      %5533 = vdwg.mxu0
      %5534 = vmatpush.bf16.msra.mxu0 0
      %5535 = vmatpush.bf16.msra.mxu0 0
      %5536 = vmatpush.bf16.msra.mxu0 0
      %5537 = vmatpush.bf16.msra.mxu0 0
      %5538 = vmatpush.bf16.msra.mxu0 0
      %5539 = vmatpush.bf16.msra.mxu0 0
      %5540 = vmatpush.bf16.msra.mxu0 0
      %5541 = vmatpush.bf16.msra.mxu0 %v5181
      %5542 = vmatmul.bf16.gmra.mxu0 %v5364
      %v5543 = vpop.f32.mrf.mxu0
      %v5544 = vadd.f32 %v5495, %v5543
      %v5545 = vpop.f32.mrf.mxu0
      %v5546 = vadd.f32 %v5497, %v5545
      %5547 = vmatmul.bf16.gmra.mxu0 %v5367
      %v5548 = vpop.f32.mrf.mxu0
      %v5549 = vadd.f32 %v5500, %v5548
      %v5550 = vpop.f32.mrf.mxu0
      %v5551 = vadd.f32 %v5502, %v5550
      %5552 = vmatmul.bf16.gmra.mxu0 %v5370
      %v5553 = vpop.f32.mrf.mxu0
      %v5554 = vadd.f32 %v5505, %v5553
      %v5555 = vpop.f32.mrf.mxu0
      %v5556 = vadd.f32 %v5507, %v5555
      %5557 = vmatmul.bf16.gmra.mxu0 %v5373
      %v5558 = vpop.f32.mrf.mxu0
      %v5559 = vadd.f32 %v5510, %v5558
      %v5560 = vpop.f32.mrf.mxu0
      %v5561 = vadd.f32 %v5512, %v5560
      %5562 = vmatmul.bf16.gmra.mxu0 %v5376
      %v5563 = vpop.f32.mrf.mxu0
      %v5564 = vadd.f32 %v5515, %v5563
      %v5565 = vpop.f32.mrf.mxu0
      %v5566 = vadd.f32 %v5517, %v5565
      %5567 = vmatmul.bf16.gmra.mxu0 %v5379
      %v5568 = vpop.f32.mrf.mxu0
      %v5569 = vadd.f32 %v5520, %v5568
      %v5570 = vpop.f32.mrf.mxu0
      %v5571 = vadd.f32 %v5522, %v5570
      %5572 = vmatmul.bf16.gmra.mxu0 %v5382
      %v5573 = vpop.f32.mrf.mxu0
      %v5574 = vadd.f32 %v5525, %v5573
      %v5575 = vpop.f32.mrf.mxu0
      %v5576 = vadd.f32 %v5527, %v5575
      %5577 = vmatmul.bf16.gmra.mxu0 %v5385
      %v5578 = vpop.f32.mrf.mxu0
      %v5579 = vadd.f32 %v5530, %v5578
      %v5580 = vpop.f32.mrf.mxu0
      %v5581 = vadd.f32 %v5532, %v5580
      %5582 = vdwg.mxu0
      %5583 = vmatpush.bf16.msra.mxu0 %v5063
      %5584 = vmatpush.bf16.msra.mxu0 %v5056
      %5585 = vmatpush.bf16.msra.mxu0 %v5049
      %5586 = vmatpush.bf16.msra.mxu0 %v5042
      %5587 = vmatpush.bf16.msra.mxu0 %v5035
      %5588 = vmatpush.bf16.msra.mxu0 %v5028
      %5589 = vmatpush.bf16.msra.mxu0 %v5021
      %5590 = vmatpush.bf16.msra.mxu0 %v5014
      %5591 = vmatmul.bf16.gmra.mxu0 %v4215
      %v5592 = vpop.f32.mrf.mxu0
      %v5593 = vadd.f32 %v4450, %v5592
      %v5594 = vpop.f32.mrf.mxu0
      %v5595 = vadd.f32 %v4450, %v5594
      %5596 = vmatmul.bf16.gmra.mxu0 %v4219
      %v5597 = vpop.f32.mrf.mxu0
      %v5598 = vadd.f32 %v4450, %v5597
      %v5599 = vpop.f32.mrf.mxu0
      %v5600 = vadd.f32 %v4450, %v5599
      %5601 = vmatmul.bf16.gmra.mxu0 %v4223
      %v5602 = vpop.f32.mrf.mxu0
      %v5603 = vadd.f32 %v4450, %v5602
      %v5604 = vpop.f32.mrf.mxu0
      %v5605 = vadd.f32 %v4450, %v5604
      %5606 = vmatmul.bf16.gmra.mxu0 %v4227
      %v5607 = vpop.f32.mrf.mxu0
      %v5608 = vadd.f32 %v4450, %v5607
      %v5609 = vpop.f32.mrf.mxu0
      %v5610 = vadd.f32 %v4450, %v5609
      %5611 = vmatmul.bf16.gmra.mxu0 %v4231
      %v5612 = vpop.f32.mrf.mxu0
      %v5613 = vadd.f32 %v4450, %v5612
      %v5614 = vpop.f32.mrf.mxu0
      %v5615 = vadd.f32 %v4450, %v5614
      %5616 = vmatmul.bf16.gmra.mxu0 %v4235
      %v5617 = vpop.f32.mrf.mxu0
      %v5618 = vadd.f32 %v4450, %v5617
      %v5619 = vpop.f32.mrf.mxu0
      %v5620 = vadd.f32 %v4450, %v5619
      %5621 = vmatmul.bf16.gmra.mxu0 %v4239
      %v5622 = vpop.f32.mrf.mxu0
      %v5623 = vadd.f32 %v4450, %v5622
      %v5624 = vpop.f32.mrf.mxu0
      %v5625 = vadd.f32 %v4450, %v5624
      %5626 = vmatmul.bf16.gmra.mxu0 %v4243
      %v5627 = vpop.f32.mrf.mxu0
      %v5628 = vadd.f32 %v4450, %v5627
      %v5629 = vpop.f32.mrf.mxu0
      %v5630 = vadd.f32 %v4450, %v5629
      %5631 = vdwg.mxu0
      %5632 = vmatpush.bf16.msra.mxu0 %v5119
      %5633 = vmatpush.bf16.msra.mxu0 %v5112
      %5634 = vmatpush.bf16.msra.mxu0 %v5105
      %5635 = vmatpush.bf16.msra.mxu0 %v5098
      %5636 = vmatpush.bf16.msra.mxu0 %v5091
      %5637 = vmatpush.bf16.msra.mxu0 %v5084
      %5638 = vmatpush.bf16.msra.mxu0 %v5077
      %5639 = vmatpush.bf16.msra.mxu0 %v5070
      %5640 = vmatmul.bf16.gmra.mxu0 %v4216
      %v5641 = vpop.f32.mrf.mxu0
      %v5642 = vadd.f32 %v5593, %v5641
      %v5643 = vpop.f32.mrf.mxu0
      %v5644 = vadd.f32 %v5595, %v5643
      %5645 = vmatmul.bf16.gmra.mxu0 %v4220
      %v5646 = vpop.f32.mrf.mxu0
      %v5647 = vadd.f32 %v5598, %v5646
      %v5648 = vpop.f32.mrf.mxu0
      %v5649 = vadd.f32 %v5600, %v5648
      %5650 = vmatmul.bf16.gmra.mxu0 %v4224
      %v5651 = vpop.f32.mrf.mxu0
      %v5652 = vadd.f32 %v5603, %v5651
      %v5653 = vpop.f32.mrf.mxu0
      %v5654 = vadd.f32 %v5605, %v5653
      %5655 = vmatmul.bf16.gmra.mxu0 %v4228
      %v5656 = vpop.f32.mrf.mxu0
      %v5657 = vadd.f32 %v5608, %v5656
      %v5658 = vpop.f32.mrf.mxu0
      %v5659 = vadd.f32 %v5610, %v5658
      %5660 = vmatmul.bf16.gmra.mxu0 %v4232
      %v5661 = vpop.f32.mrf.mxu0
      %v5662 = vadd.f32 %v5613, %v5661
      %v5663 = vpop.f32.mrf.mxu0
      %v5664 = vadd.f32 %v5615, %v5663
      %5665 = vmatmul.bf16.gmra.mxu0 %v4236
      %v5666 = vpop.f32.mrf.mxu0
      %v5667 = vadd.f32 %v5618, %v5666
      %v5668 = vpop.f32.mrf.mxu0
      %v5669 = vadd.f32 %v5620, %v5668
      %5670 = vmatmul.bf16.gmra.mxu0 %v4240
      %v5671 = vpop.f32.mrf.mxu0
      %v5672 = vadd.f32 %v5623, %v5671
      %v5673 = vpop.f32.mrf.mxu0
      %v5674 = vadd.f32 %v5625, %v5673
      %5675 = vmatmul.bf16.gmra.mxu0 %v4244
      %v5676 = vpop.f32.mrf.mxu0
      %v5677 = vadd.f32 %v5628, %v5676
      %v5678 = vpop.f32.mrf.mxu0
      %v5679 = vadd.f32 %v5630, %v5678
      %5680 = vdwg.mxu0
      %5681 = vmatpush.bf16.msra.mxu0 %v5175
      %5682 = vmatpush.bf16.msra.mxu0 %v5168
      %5683 = vmatpush.bf16.msra.mxu0 %v5161
      %5684 = vmatpush.bf16.msra.mxu0 %v5154
      %5685 = vmatpush.bf16.msra.mxu0 %v5147
      %5686 = vmatpush.bf16.msra.mxu0 %v5140
      %5687 = vmatpush.bf16.msra.mxu0 %v5133
      %5688 = vmatpush.bf16.msra.mxu0 %v5126
      %5689 = vmatmul.bf16.gmra.mxu0 %v4217
      %v5690 = vpop.f32.mrf.mxu0
      %v5691 = vadd.f32 %v5642, %v5690
      %v5692 = vpop.f32.mrf.mxu0
      %v5693 = vadd.f32 %v5644, %v5692
      %5694 = vmatmul.bf16.gmra.mxu0 %v4221
      %v5695 = vpop.f32.mrf.mxu0
      %v5696 = vadd.f32 %v5647, %v5695
      %v5697 = vpop.f32.mrf.mxu0
      %v5698 = vadd.f32 %v5649, %v5697
      %5699 = vmatmul.bf16.gmra.mxu0 %v4225
      %v5700 = vpop.f32.mrf.mxu0
      %v5701 = vadd.f32 %v5652, %v5700
      %v5702 = vpop.f32.mrf.mxu0
      %v5703 = vadd.f32 %v5654, %v5702
      %5704 = vmatmul.bf16.gmra.mxu0 %v4229
      %v5705 = vpop.f32.mrf.mxu0
      %v5706 = vadd.f32 %v5657, %v5705
      %v5707 = vpop.f32.mrf.mxu0
      %v5708 = vadd.f32 %v5659, %v5707
      %5709 = vmatmul.bf16.gmra.mxu0 %v4233
      %v5710 = vpop.f32.mrf.mxu0
      %v5711 = vadd.f32 %v5662, %v5710
      %v5712 = vpop.f32.mrf.mxu0
      %v5713 = vadd.f32 %v5664, %v5712
      %5714 = vmatmul.bf16.gmra.mxu0 %v4237
      %v5715 = vpop.f32.mrf.mxu0
      %v5716 = vadd.f32 %v5667, %v5715
      %v5717 = vpop.f32.mrf.mxu0
      %v5718 = vadd.f32 %v5669, %v5717
      %5719 = vmatmul.bf16.gmra.mxu0 %v4241
      %v5720 = vpop.f32.mrf.mxu0
      %v5721 = vadd.f32 %v5672, %v5720
      %v5722 = vpop.f32.mrf.mxu0
      %v5723 = vadd.f32 %v5674, %v5722
      %5724 = vmatmul.bf16.gmra.mxu0 %v4245
      %v5725 = vpop.f32.mrf.mxu0
      %v5726 = vadd.f32 %v5677, %v5725
      %v5727 = vpop.f32.mrf.mxu0
      %v5728 = vadd.f32 %v5679, %v5727
      %5729 = vdwg.mxu0
      %5730 = vmatpush.bf16.msra.mxu0 0
      %5731 = vmatpush.bf16.msra.mxu0 0
      %5732 = vmatpush.bf16.msra.mxu0 0
      %5733 = vmatpush.bf16.msra.mxu0 0
      %5734 = vmatpush.bf16.msra.mxu0 0
      %5735 = vmatpush.bf16.msra.mxu0 0
      %5736 = vmatpush.bf16.msra.mxu0 0
      %5737 = vmatpush.bf16.msra.mxu0 %v5182
      %5738 = vmatmul.bf16.gmra.mxu0 %v5364
      %v5739 = vpop.f32.mrf.mxu0
      %v5740 = vadd.f32 %v5691, %v5739
      %v5741 = vpop.f32.mrf.mxu0
      %v5742 = vadd.f32 %v5693, %v5741
      %5743 = vmatmul.bf16.gmra.mxu0 %v5367
      %v5744 = vpop.f32.mrf.mxu0
      %v5745 = vadd.f32 %v5696, %v5744
      %v5746 = vpop.f32.mrf.mxu0
      %v5747 = vadd.f32 %v5698, %v5746
      %5748 = vmatmul.bf16.gmra.mxu0 %v5370
      %v5749 = vpop.f32.mrf.mxu0
      %v5750 = vadd.f32 %v5701, %v5749
      %v5751 = vpop.f32.mrf.mxu0
      %v5752 = vadd.f32 %v5703, %v5751
      %5753 = vmatmul.bf16.gmra.mxu0 %v5373
      %v5754 = vpop.f32.mrf.mxu0
      %v5755 = vadd.f32 %v5706, %v5754
      %v5756 = vpop.f32.mrf.mxu0
      %v5757 = vadd.f32 %v5708, %v5756
      %5758 = vmatmul.bf16.gmra.mxu0 %v5376
      %v5759 = vpop.f32.mrf.mxu0
      %v5760 = vadd.f32 %v5711, %v5759
      %v5761 = vpop.f32.mrf.mxu0
      %v5762 = vadd.f32 %v5713, %v5761
      %5763 = vmatmul.bf16.gmra.mxu0 %v5379
      %v5764 = vpop.f32.mrf.mxu0
      %v5765 = vadd.f32 %v5716, %v5764
      %v5766 = vpop.f32.mrf.mxu0
      %v5767 = vadd.f32 %v5718, %v5766
      %5768 = vmatmul.bf16.gmra.mxu0 %v5382
      %v5769 = vpop.f32.mrf.mxu0
      %v5770 = vadd.f32 %v5721, %v5769
      %v5771 = vpop.f32.mrf.mxu0
      %v5772 = vadd.f32 %v5723, %v5771
      %5773 = vmatmul.bf16.gmra.mxu0 %v5385
      %v5774 = vpop.f32.mrf.mxu0
      %v5775 = vadd.f32 %v5726, %v5774
      %v5776 = vpop.f32.mrf.mxu0
      %v5777 = vadd.f32 %v5728, %v5776
      %5778 = vdwg.mxu0
      %5779 = vmatpush.bf16.msra.mxu0 %v5064
      %5780 = vmatpush.bf16.msra.mxu0 %v5057
      %5781 = vmatpush.bf16.msra.mxu0 %v5050
      %5782 = vmatpush.bf16.msra.mxu0 %v5043
      %5783 = vmatpush.bf16.msra.mxu0 %v5036
      %5784 = vmatpush.bf16.msra.mxu0 %v5029
      %5785 = vmatpush.bf16.msra.mxu0 %v5022
      %5786 = vmatpush.bf16.msra.mxu0 %v5015
      %5787 = vmatmul.bf16.gmra.mxu0 %v4215
      %v5788 = vpop.f32.mrf.mxu0
      %v5789 = vadd.f32 %v4451, %v5788
      %v5790 = vpop.f32.mrf.mxu0
      %v5791 = vadd.f32 %v4451, %v5790
      %5792 = vmatmul.bf16.gmra.mxu0 %v4219
      %v5793 = vpop.f32.mrf.mxu0
      %v5794 = vadd.f32 %v4451, %v5793
      %v5795 = vpop.f32.mrf.mxu0
      %v5796 = vadd.f32 %v4451, %v5795
      %5797 = vmatmul.bf16.gmra.mxu0 %v4223
      %v5798 = vpop.f32.mrf.mxu0
      %v5799 = vadd.f32 %v4451, %v5798
      %v5800 = vpop.f32.mrf.mxu0
      %v5801 = vadd.f32 %v4451, %v5800
      %5802 = vmatmul.bf16.gmra.mxu0 %v4227
      %v5803 = vpop.f32.mrf.mxu0
      %v5804 = vadd.f32 %v4451, %v5803
      %v5805 = vpop.f32.mrf.mxu0
      %v5806 = vadd.f32 %v4451, %v5805
      %5807 = vmatmul.bf16.gmra.mxu0 %v4231
      %v5808 = vpop.f32.mrf.mxu0
      %v5809 = vadd.f32 %v4451, %v5808
      %v5810 = vpop.f32.mrf.mxu0
      %v5811 = vadd.f32 %v4451, %v5810
      %5812 = vmatmul.bf16.gmra.mxu0 %v4235
      %v5813 = vpop.f32.mrf.mxu0
      %v5814 = vadd.f32 %v4451, %v5813
      %v5815 = vpop.f32.mrf.mxu0
      %v5816 = vadd.f32 %v4451, %v5815
      %5817 = vmatmul.bf16.gmra.mxu0 %v4239
      %v5818 = vpop.f32.mrf.mxu0
      %v5819 = vadd.f32 %v4451, %v5818
      %v5820 = vpop.f32.mrf.mxu0
      %v5821 = vadd.f32 %v4451, %v5820
      %5822 = vmatmul.bf16.gmra.mxu0 %v4243
      %v5823 = vpop.f32.mrf.mxu0
      %v5824 = vadd.f32 %v4451, %v5823
      %v5825 = vpop.f32.mrf.mxu0
      %v5826 = vadd.f32 %v4451, %v5825
      %5827 = vdwg.mxu0
      %5828 = vmatpush.bf16.msra.mxu0 %v5120
      %5829 = vmatpush.bf16.msra.mxu0 %v5113
      %5830 = vmatpush.bf16.msra.mxu0 %v5106
      %5831 = vmatpush.bf16.msra.mxu0 %v5099
      %5832 = vmatpush.bf16.msra.mxu0 %v5092
      %5833 = vmatpush.bf16.msra.mxu0 %v5085
      %5834 = vmatpush.bf16.msra.mxu0 %v5078
      %5835 = vmatpush.bf16.msra.mxu0 %v5071
      %5836 = vmatmul.bf16.gmra.mxu0 %v4216
      %v5837 = vpop.f32.mrf.mxu0
      %v5838 = vadd.f32 %v5789, %v5837
      %v5839 = vpop.f32.mrf.mxu0
      %v5840 = vadd.f32 %v5791, %v5839
      %5841 = vmatmul.bf16.gmra.mxu0 %v4220
      %v5842 = vpop.f32.mrf.mxu0
      %v5843 = vadd.f32 %v5794, %v5842
      %v5844 = vpop.f32.mrf.mxu0
      %v5845 = vadd.f32 %v5796, %v5844
      %5846 = vmatmul.bf16.gmra.mxu0 %v4224
      %v5847 = vpop.f32.mrf.mxu0
      %v5848 = vadd.f32 %v5799, %v5847
      %v5849 = vpop.f32.mrf.mxu0
      %v5850 = vadd.f32 %v5801, %v5849
      %5851 = vmatmul.bf16.gmra.mxu0 %v4228
      %v5852 = vpop.f32.mrf.mxu0
      %v5853 = vadd.f32 %v5804, %v5852
      %v5854 = vpop.f32.mrf.mxu0
      %v5855 = vadd.f32 %v5806, %v5854
      %5856 = vmatmul.bf16.gmra.mxu0 %v4232
      %v5857 = vpop.f32.mrf.mxu0
      %v5858 = vadd.f32 %v5809, %v5857
      %v5859 = vpop.f32.mrf.mxu0
      %v5860 = vadd.f32 %v5811, %v5859
      %5861 = vmatmul.bf16.gmra.mxu0 %v4236
      %v5862 = vpop.f32.mrf.mxu0
      %v5863 = vadd.f32 %v5814, %v5862
      %v5864 = vpop.f32.mrf.mxu0
      %v5865 = vadd.f32 %v5816, %v5864
      %5866 = vmatmul.bf16.gmra.mxu0 %v4240
      %v5867 = vpop.f32.mrf.mxu0
      %v5868 = vadd.f32 %v5819, %v5867
      %v5869 = vpop.f32.mrf.mxu0
      %v5870 = vadd.f32 %v5821, %v5869
      %5871 = vmatmul.bf16.gmra.mxu0 %v4244
      %v5872 = vpop.f32.mrf.mxu0
      %v5873 = vadd.f32 %v5824, %v5872
      %v5874 = vpop.f32.mrf.mxu0
      %v5875 = vadd.f32 %v5826, %v5874
      %5876 = vdwg.mxu0
      %5877 = vmatpush.bf16.msra.mxu0 %v5176
      %5878 = vmatpush.bf16.msra.mxu0 %v5169
      %5879 = vmatpush.bf16.msra.mxu0 %v5162
      %5880 = vmatpush.bf16.msra.mxu0 %v5155
      %5881 = vmatpush.bf16.msra.mxu0 %v5148
      %5882 = vmatpush.bf16.msra.mxu0 %v5141
      %5883 = vmatpush.bf16.msra.mxu0 %v5134
      %5884 = vmatpush.bf16.msra.mxu0 %v5127
      %5885 = vmatmul.bf16.gmra.mxu0 %v4217
      %v5886 = vpop.f32.mrf.mxu0
      %v5887 = vadd.f32 %v5838, %v5886
      %v5888 = vpop.f32.mrf.mxu0
      %v5889 = vadd.f32 %v5840, %v5888
      %5890 = vmatmul.bf16.gmra.mxu0 %v4221
      %v5891 = vpop.f32.mrf.mxu0
      %v5892 = vadd.f32 %v5843, %v5891
      %v5893 = vpop.f32.mrf.mxu0
      %v5894 = vadd.f32 %v5845, %v5893
      %5895 = vmatmul.bf16.gmra.mxu0 %v4225
      %v5896 = vpop.f32.mrf.mxu0
      %v5897 = vadd.f32 %v5848, %v5896
      %v5898 = vpop.f32.mrf.mxu0
      %v5899 = vadd.f32 %v5850, %v5898
      %5900 = vmatmul.bf16.gmra.mxu0 %v4229
      %v5901 = vpop.f32.mrf.mxu0
      %v5902 = vadd.f32 %v5853, %v5901
      %v5903 = vpop.f32.mrf.mxu0
      %v5904 = vadd.f32 %v5855, %v5903
      %5905 = vmatmul.bf16.gmra.mxu0 %v4233
      %v5906 = vpop.f32.mrf.mxu0
      %v5907 = vadd.f32 %v5858, %v5906
      %v5908 = vpop.f32.mrf.mxu0
      %v5909 = vadd.f32 %v5860, %v5908
      %5910 = vmatmul.bf16.gmra.mxu0 %v4237
      %v5911 = vpop.f32.mrf.mxu0
      %v5912 = vadd.f32 %v5863, %v5911
      %v5913 = vpop.f32.mrf.mxu0
      %v5914 = vadd.f32 %v5865, %v5913
      %5915 = vmatmul.bf16.gmra.mxu0 %v4241
      %v5916 = vpop.f32.mrf.mxu0
      %v5917 = vadd.f32 %v5868, %v5916
      %v5918 = vpop.f32.mrf.mxu0
      %v5919 = vadd.f32 %v5870, %v5918
      %5920 = vmatmul.bf16.gmra.mxu0 %v4245
      %v5921 = vpop.f32.mrf.mxu0
      %v5922 = vadd.f32 %v5873, %v5921
      %v5923 = vpop.f32.mrf.mxu0
      %v5924 = vadd.f32 %v5875, %v5923
      %5925 = vdwg.mxu0
      %5926 = vmatpush.bf16.msra.mxu0 0
      %5927 = vmatpush.bf16.msra.mxu0 0
      %5928 = vmatpush.bf16.msra.mxu0 0
      %5929 = vmatpush.bf16.msra.mxu0 0
      %5930 = vmatpush.bf16.msra.mxu0 0
      %5931 = vmatpush.bf16.msra.mxu0 0
      %5932 = vmatpush.bf16.msra.mxu0 0
      %5933 = vmatpush.bf16.msra.mxu0 %v5183
      %5934 = vmatmul.bf16.gmra.mxu0 %v5364
      %v5935 = vpop.f32.mrf.mxu0
      %v5936 = vadd.f32 %v5887, %v5935
      %v5937 = vpop.f32.mrf.mxu0
      %v5938 = vadd.f32 %v5889, %v5937
      %5939 = vmatmul.bf16.gmra.mxu0 %v5367
      %v5940 = vpop.f32.mrf.mxu0
      %v5941 = vadd.f32 %v5892, %v5940
      %v5942 = vpop.f32.mrf.mxu0
      %v5943 = vadd.f32 %v5894, %v5942
      %5944 = vmatmul.bf16.gmra.mxu0 %v5370
      %v5945 = vpop.f32.mrf.mxu0
      %v5946 = vadd.f32 %v5897, %v5945
      %v5947 = vpop.f32.mrf.mxu0
      %v5948 = vadd.f32 %v5899, %v5947
      %5949 = vmatmul.bf16.gmra.mxu0 %v5373
      %v5950 = vpop.f32.mrf.mxu0
      %v5951 = vadd.f32 %v5902, %v5950
      %v5952 = vpop.f32.mrf.mxu0
      %v5953 = vadd.f32 %v5904, %v5952
      %5954 = vmatmul.bf16.gmra.mxu0 %v5376
      %v5955 = vpop.f32.mrf.mxu0
      %v5956 = vadd.f32 %v5907, %v5955
      %v5957 = vpop.f32.mrf.mxu0
      %v5958 = vadd.f32 %v5909, %v5957
      %5959 = vmatmul.bf16.gmra.mxu0 %v5379
      %v5960 = vpop.f32.mrf.mxu0
      %v5961 = vadd.f32 %v5912, %v5960
      %v5962 = vpop.f32.mrf.mxu0
      %v5963 = vadd.f32 %v5914, %v5962
      %5964 = vmatmul.bf16.gmra.mxu0 %v5382
      %v5965 = vpop.f32.mrf.mxu0
      %v5966 = vadd.f32 %v5917, %v5965
      %v5967 = vpop.f32.mrf.mxu0
      %v5968 = vadd.f32 %v5919, %v5967
      %5969 = vmatmul.bf16.gmra.mxu0 %v5385
      %v5970 = vpop.f32.mrf.mxu0
      %v5971 = vadd.f32 %v5922, %v5970
      %v5972 = vpop.f32.mrf.mxu0
      %v5973 = vadd.f32 %v5924, %v5972
      %5974 = vdwg.mxu0
      %5975 = vmatpush.bf16.msra.mxu0 %v5065
      %5976 = vmatpush.bf16.msra.mxu0 %v5058
      %5977 = vmatpush.bf16.msra.mxu0 %v5051
      %5978 = vmatpush.bf16.msra.mxu0 %v5044
      %5979 = vmatpush.bf16.msra.mxu0 %v5037
      %5980 = vmatpush.bf16.msra.mxu0 %v5030
      %5981 = vmatpush.bf16.msra.mxu0 %v5023
      %5982 = vmatpush.bf16.msra.mxu0 %v5016
      %5983 = vmatmul.bf16.gmra.mxu0 %v4215
      %v5984 = vpop.f32.mrf.mxu0
      %v5985 = vadd.f32 %v4452, %v5984
      %v5986 = vpop.f32.mrf.mxu0
      %v5987 = vadd.f32 %v4452, %v5986
      %5988 = vmatmul.bf16.gmra.mxu0 %v4219
      %v5989 = vpop.f32.mrf.mxu0
      %v5990 = vadd.f32 %v4452, %v5989
      %v5991 = vpop.f32.mrf.mxu0
      %v5992 = vadd.f32 %v4452, %v5991
      %5993 = vmatmul.bf16.gmra.mxu0 %v4223
      %v5994 = vpop.f32.mrf.mxu0
      %v5995 = vadd.f32 %v4452, %v5994
      %v5996 = vpop.f32.mrf.mxu0
      %v5997 = vadd.f32 %v4452, %v5996
      %5998 = vmatmul.bf16.gmra.mxu0 %v4227
      %v5999 = vpop.f32.mrf.mxu0
      %v6000 = vadd.f32 %v4452, %v5999
      %v6001 = vpop.f32.mrf.mxu0
      %v6002 = vadd.f32 %v4452, %v6001
      %6003 = vmatmul.bf16.gmra.mxu0 %v4231
      %v6004 = vpop.f32.mrf.mxu0
      %v6005 = vadd.f32 %v4452, %v6004
      %v6006 = vpop.f32.mrf.mxu0
      %v6007 = vadd.f32 %v4452, %v6006
      %6008 = vmatmul.bf16.gmra.mxu0 %v4235
      %v6009 = vpop.f32.mrf.mxu0
      %v6010 = vadd.f32 %v4452, %v6009
      %v6011 = vpop.f32.mrf.mxu0
      %v6012 = vadd.f32 %v4452, %v6011
      %6013 = vmatmul.bf16.gmra.mxu0 %v4239
      %v6014 = vpop.f32.mrf.mxu0
      %v6015 = vadd.f32 %v4452, %v6014
      %v6016 = vpop.f32.mrf.mxu0
      %v6017 = vadd.f32 %v4452, %v6016
      %6018 = vmatmul.bf16.gmra.mxu0 %v4243
      %v6019 = vpop.f32.mrf.mxu0
      %v6020 = vadd.f32 %v4452, %v6019
      %v6021 = vpop.f32.mrf.mxu0
      %v6022 = vadd.f32 %v4452, %v6021
      %6023 = vdwg.mxu0
      %6024 = vmatpush.bf16.msra.mxu0 %v5121
      %6025 = vmatpush.bf16.msra.mxu0 %v5114
      %6026 = vmatpush.bf16.msra.mxu0 %v5107
      %6027 = vmatpush.bf16.msra.mxu0 %v5100
      %6028 = vmatpush.bf16.msra.mxu0 %v5093
      %6029 = vmatpush.bf16.msra.mxu0 %v5086
      %6030 = vmatpush.bf16.msra.mxu0 %v5079
      %6031 = vmatpush.bf16.msra.mxu0 %v5072
      %6032 = vmatmul.bf16.gmra.mxu0 %v4216
      %v6033 = vpop.f32.mrf.mxu0
      %v6034 = vadd.f32 %v5985, %v6033
      %v6035 = vpop.f32.mrf.mxu0
      %v6036 = vadd.f32 %v5987, %v6035
      %6037 = vmatmul.bf16.gmra.mxu0 %v4220
      %v6038 = vpop.f32.mrf.mxu0
      %v6039 = vadd.f32 %v5990, %v6038
      %v6040 = vpop.f32.mrf.mxu0
      %v6041 = vadd.f32 %v5992, %v6040
      %6042 = vmatmul.bf16.gmra.mxu0 %v4224
      %v6043 = vpop.f32.mrf.mxu0
      %v6044 = vadd.f32 %v5995, %v6043
      %v6045 = vpop.f32.mrf.mxu0
      %v6046 = vadd.f32 %v5997, %v6045
      %6047 = vmatmul.bf16.gmra.mxu0 %v4228
      %v6048 = vpop.f32.mrf.mxu0
      %v6049 = vadd.f32 %v6000, %v6048
      %v6050 = vpop.f32.mrf.mxu0
      %v6051 = vadd.f32 %v6002, %v6050
      %6052 = vmatmul.bf16.gmra.mxu0 %v4232
      %v6053 = vpop.f32.mrf.mxu0
      %v6054 = vadd.f32 %v6005, %v6053
      %v6055 = vpop.f32.mrf.mxu0
      %v6056 = vadd.f32 %v6007, %v6055
      %6057 = vmatmul.bf16.gmra.mxu0 %v4236
      %v6058 = vpop.f32.mrf.mxu0
      %v6059 = vadd.f32 %v6010, %v6058
      %v6060 = vpop.f32.mrf.mxu0
      %v6061 = vadd.f32 %v6012, %v6060
      %6062 = vmatmul.bf16.gmra.mxu0 %v4240
      %v6063 = vpop.f32.mrf.mxu0
      %v6064 = vadd.f32 %v6015, %v6063
      %v6065 = vpop.f32.mrf.mxu0
      %v6066 = vadd.f32 %v6017, %v6065
      %6067 = vmatmul.bf16.gmra.mxu0 %v4244
      %v6068 = vpop.f32.mrf.mxu0
      %v6069 = vadd.f32 %v6020, %v6068
      %v6070 = vpop.f32.mrf.mxu0
      %v6071 = vadd.f32 %v6022, %v6070
      %6072 = vdwg.mxu0
      %6073 = vmatpush.bf16.msra.mxu0 %v5177
      %6074 = vmatpush.bf16.msra.mxu0 %v5170
      %6075 = vmatpush.bf16.msra.mxu0 %v5163
      %6076 = vmatpush.bf16.msra.mxu0 %v5156
      %6077 = vmatpush.bf16.msra.mxu0 %v5149
      %6078 = vmatpush.bf16.msra.mxu0 %v5142
      %6079 = vmatpush.bf16.msra.mxu0 %v5135
      %6080 = vmatpush.bf16.msra.mxu0 %v5128
      %6081 = vmatmul.bf16.gmra.mxu0 %v4217
      %v6082 = vpop.f32.mrf.mxu0
      %v6083 = vadd.f32 %v6034, %v6082
      %v6084 = vpop.f32.mrf.mxu0
      %v6085 = vadd.f32 %v6036, %v6084
      %6086 = vmatmul.bf16.gmra.mxu0 %v4221
      %v6087 = vpop.f32.mrf.mxu0
      %v6088 = vadd.f32 %v6039, %v6087
      %v6089 = vpop.f32.mrf.mxu0
      %v6090 = vadd.f32 %v6041, %v6089
      %6091 = vmatmul.bf16.gmra.mxu0 %v4225
      %v6092 = vpop.f32.mrf.mxu0
      %v6093 = vadd.f32 %v6044, %v6092
      %v6094 = vpop.f32.mrf.mxu0
      %v6095 = vadd.f32 %v6046, %v6094
      %6096 = vmatmul.bf16.gmra.mxu0 %v4229
      %v6097 = vpop.f32.mrf.mxu0
      %v6098 = vadd.f32 %v6049, %v6097
      %v6099 = vpop.f32.mrf.mxu0
      %v6100 = vadd.f32 %v6051, %v6099
      %6101 = vmatmul.bf16.gmra.mxu0 %v4233
      %v6102 = vpop.f32.mrf.mxu0
      %v6103 = vadd.f32 %v6054, %v6102
      %v6104 = vpop.f32.mrf.mxu0
      %v6105 = vadd.f32 %v6056, %v6104
      %6106 = vmatmul.bf16.gmra.mxu0 %v4237
      %v6107 = vpop.f32.mrf.mxu0
      %v6108 = vadd.f32 %v6059, %v6107
      %v6109 = vpop.f32.mrf.mxu0
      %v6110 = vadd.f32 %v6061, %v6109
      %6111 = vmatmul.bf16.gmra.mxu0 %v4241
      %v6112 = vpop.f32.mrf.mxu0
      %v6113 = vadd.f32 %v6064, %v6112
      %v6114 = vpop.f32.mrf.mxu0
      %v6115 = vadd.f32 %v6066, %v6114
      %6116 = vmatmul.bf16.gmra.mxu0 %v4245
      %v6117 = vpop.f32.mrf.mxu0
      %v6118 = vadd.f32 %v6069, %v6117
      %v6119 = vpop.f32.mrf.mxu0
      %v6120 = vadd.f32 %v6071, %v6119
      %6121 = vdwg.mxu0
      %6122 = vmatpush.bf16.msra.mxu0 0
      %6123 = vmatpush.bf16.msra.mxu0 0
      %6124 = vmatpush.bf16.msra.mxu0 0
      %6125 = vmatpush.bf16.msra.mxu0 0
      %6126 = vmatpush.bf16.msra.mxu0 0
      %6127 = vmatpush.bf16.msra.mxu0 0
      %6128 = vmatpush.bf16.msra.mxu0 0
      %6129 = vmatpush.bf16.msra.mxu0 %v5184
      %6130 = vmatmul.bf16.gmra.mxu0 %v5364
      %v6131 = vpop.f32.mrf.mxu0
      %v6132 = vadd.f32 %v6083, %v6131
      %v6133 = vpop.f32.mrf.mxu0
      %v6134 = vadd.f32 %v6085, %v6133
      %6135 = vmatmul.bf16.gmra.mxu0 %v5367
      %v6136 = vpop.f32.mrf.mxu0
      %v6137 = vadd.f32 %v6088, %v6136
      %v6138 = vpop.f32.mrf.mxu0
      %v6139 = vadd.f32 %v6090, %v6138
      %6140 = vmatmul.bf16.gmra.mxu0 %v5370
      %v6141 = vpop.f32.mrf.mxu0
      %v6142 = vadd.f32 %v6093, %v6141
      %v6143 = vpop.f32.mrf.mxu0
      %v6144 = vadd.f32 %v6095, %v6143
      %6145 = vmatmul.bf16.gmra.mxu0 %v5373
      %v6146 = vpop.f32.mrf.mxu0
      %v6147 = vadd.f32 %v6098, %v6146
      %v6148 = vpop.f32.mrf.mxu0
      %v6149 = vadd.f32 %v6100, %v6148
      %6150 = vmatmul.bf16.gmra.mxu0 %v5376
      %v6151 = vpop.f32.mrf.mxu0
      %v6152 = vadd.f32 %v6103, %v6151
      %v6153 = vpop.f32.mrf.mxu0
      %v6154 = vadd.f32 %v6105, %v6153
      %6155 = vmatmul.bf16.gmra.mxu0 %v5379
      %v6156 = vpop.f32.mrf.mxu0
      %v6157 = vadd.f32 %v6108, %v6156
      %v6158 = vpop.f32.mrf.mxu0
      %v6159 = vadd.f32 %v6110, %v6158
      %6160 = vmatmul.bf16.gmra.mxu0 %v5382
      %v6161 = vpop.f32.mrf.mxu0
      %v6162 = vadd.f32 %v6113, %v6161
      %v6163 = vpop.f32.mrf.mxu0
      %v6164 = vadd.f32 %v6115, %v6163
      %6165 = vmatmul.bf16.gmra.mxu0 %v5385
      %v6166 = vpop.f32.mrf.mxu0
      %v6167 = vadd.f32 %v6118, %v6166
      %v6168 = vpop.f32.mrf.mxu0
      %v6169 = vadd.f32 %v6120, %v6168
      %6170 = vdwg.mxu0
      %6171 = vmatpush.bf16.msra.mxu0 %v5066
      %6172 = vmatpush.bf16.msra.mxu0 %v5059
      %6173 = vmatpush.bf16.msra.mxu0 %v5052
      %6174 = vmatpush.bf16.msra.mxu0 %v5045
      %6175 = vmatpush.bf16.msra.mxu0 %v5038
      %6176 = vmatpush.bf16.msra.mxu0 %v5031
      %6177 = vmatpush.bf16.msra.mxu0 %v5024
      %6178 = vmatpush.bf16.msra.mxu0 %v5017
      %6179 = vmatmul.bf16.gmra.mxu0 %v4215
      %v6180 = vpop.f32.mrf.mxu0
      %v6181 = vadd.f32 %v4453, %v6180
      %v6182 = vpop.f32.mrf.mxu0
      %v6183 = vadd.f32 %v4453, %v6182
      %6184 = vmatmul.bf16.gmra.mxu0 %v4219
      %v6185 = vpop.f32.mrf.mxu0
      %v6186 = vadd.f32 %v4453, %v6185
      %v6187 = vpop.f32.mrf.mxu0
      %v6188 = vadd.f32 %v4453, %v6187
      %6189 = vmatmul.bf16.gmra.mxu0 %v4223
      %v6190 = vpop.f32.mrf.mxu0
      %v6191 = vadd.f32 %v4453, %v6190
      %v6192 = vpop.f32.mrf.mxu0
      %v6193 = vadd.f32 %v4453, %v6192
      %6194 = vmatmul.bf16.gmra.mxu0 %v4227
      %v6195 = vpop.f32.mrf.mxu0
      %v6196 = vadd.f32 %v4453, %v6195
      %v6197 = vpop.f32.mrf.mxu0
      %v6198 = vadd.f32 %v4453, %v6197
      %6199 = vmatmul.bf16.gmra.mxu0 %v4231
      %v6200 = vpop.f32.mrf.mxu0
      %v6201 = vadd.f32 %v4453, %v6200
      %v6202 = vpop.f32.mrf.mxu0
      %v6203 = vadd.f32 %v4453, %v6202
      %6204 = vmatmul.bf16.gmra.mxu0 %v4235
      %v6205 = vpop.f32.mrf.mxu0
      %v6206 = vadd.f32 %v4453, %v6205
      %v6207 = vpop.f32.mrf.mxu0
      %v6208 = vadd.f32 %v4453, %v6207
      %6209 = vmatmul.bf16.gmra.mxu0 %v4239
      %v6210 = vpop.f32.mrf.mxu0
      %v6211 = vadd.f32 %v4453, %v6210
      %v6212 = vpop.f32.mrf.mxu0
      %v6213 = vadd.f32 %v4453, %v6212
      %6214 = vmatmul.bf16.gmra.mxu0 %v4243
      %v6215 = vpop.f32.mrf.mxu0
      %v6216 = vadd.f32 %v4453, %v6215
      %v6217 = vpop.f32.mrf.mxu0
      %v6218 = vadd.f32 %v4453, %v6217
      %6219 = vdwg.mxu0
      %6220 = vmatpush.bf16.msra.mxu0 %v5122
      %6221 = vmatpush.bf16.msra.mxu0 %v5115
      %6222 = vmatpush.bf16.msra.mxu0 %v5108
      %6223 = vmatpush.bf16.msra.mxu0 %v5101
      %6224 = vmatpush.bf16.msra.mxu0 %v5094
      %6225 = vmatpush.bf16.msra.mxu0 %v5087
      %6226 = vmatpush.bf16.msra.mxu0 %v5080
      %6227 = vmatpush.bf16.msra.mxu0 %v5073
      %6228 = vmatmul.bf16.gmra.mxu0 %v4216
      %v6229 = vpop.f32.mrf.mxu0
      %v6230 = vadd.f32 %v6181, %v6229
      %v6231 = vpop.f32.mrf.mxu0
      %v6232 = vadd.f32 %v6183, %v6231
      %6233 = vmatmul.bf16.gmra.mxu0 %v4220
      %v6234 = vpop.f32.mrf.mxu0
      %v6235 = vadd.f32 %v6186, %v6234
      %v6236 = vpop.f32.mrf.mxu0
      %v6237 = vadd.f32 %v6188, %v6236
      %6238 = vmatmul.bf16.gmra.mxu0 %v4224
      %v6239 = vpop.f32.mrf.mxu0
      %v6240 = vadd.f32 %v6191, %v6239
      %v6241 = vpop.f32.mrf.mxu0
      %v6242 = vadd.f32 %v6193, %v6241
      %6243 = vmatmul.bf16.gmra.mxu0 %v4228
      %v6244 = vpop.f32.mrf.mxu0
      %v6245 = vadd.f32 %v6196, %v6244
      %v6246 = vpop.f32.mrf.mxu0
      %v6247 = vadd.f32 %v6198, %v6246
      %6248 = vmatmul.bf16.gmra.mxu0 %v4232
      %v6249 = vpop.f32.mrf.mxu0
      %v6250 = vadd.f32 %v6201, %v6249
      %v6251 = vpop.f32.mrf.mxu0
      %v6252 = vadd.f32 %v6203, %v6251
      %6253 = vmatmul.bf16.gmra.mxu0 %v4236
      %v6254 = vpop.f32.mrf.mxu0
      %v6255 = vadd.f32 %v6206, %v6254
      %v6256 = vpop.f32.mrf.mxu0
      %v6257 = vadd.f32 %v6208, %v6256
      %6258 = vmatmul.bf16.gmra.mxu0 %v4240
      %v6259 = vpop.f32.mrf.mxu0
      %v6260 = vadd.f32 %v6211, %v6259
      %v6261 = vpop.f32.mrf.mxu0
      %v6262 = vadd.f32 %v6213, %v6261
      %6263 = vmatmul.bf16.gmra.mxu0 %v4244
      %v6264 = vpop.f32.mrf.mxu0
      %v6265 = vadd.f32 %v6216, %v6264
      %v6266 = vpop.f32.mrf.mxu0
      %v6267 = vadd.f32 %v6218, %v6266
      %6268 = vdwg.mxu0
      %6269 = vmatpush.bf16.msra.mxu0 %v5178
      %6270 = vmatpush.bf16.msra.mxu0 %v5171
      %6271 = vmatpush.bf16.msra.mxu0 %v5164
      %6272 = vmatpush.bf16.msra.mxu0 %v5157
      %6273 = vmatpush.bf16.msra.mxu0 %v5150
      %6274 = vmatpush.bf16.msra.mxu0 %v5143
      %6275 = vmatpush.bf16.msra.mxu0 %v5136
      %6276 = vmatpush.bf16.msra.mxu0 %v5129
      %6277 = vmatmul.bf16.gmra.mxu0 %v4217
      %v6278 = vpop.f32.mrf.mxu0
      %v6279 = vadd.f32 %v6230, %v6278
      %v6280 = vpop.f32.mrf.mxu0
      %v6281 = vadd.f32 %v6232, %v6280
      %6282 = vmatmul.bf16.gmra.mxu0 %v4221
      %v6283 = vpop.f32.mrf.mxu0
      %v6284 = vadd.f32 %v6235, %v6283
      %v6285 = vpop.f32.mrf.mxu0
      %v6286 = vadd.f32 %v6237, %v6285
      %6287 = vmatmul.bf16.gmra.mxu0 %v4225
      %v6288 = vpop.f32.mrf.mxu0
      %v6289 = vadd.f32 %v6240, %v6288
      %v6290 = vpop.f32.mrf.mxu0
      %v6291 = vadd.f32 %v6242, %v6290
      %6292 = vmatmul.bf16.gmra.mxu0 %v4229
      %v6293 = vpop.f32.mrf.mxu0
      %v6294 = vadd.f32 %v6245, %v6293
      %v6295 = vpop.f32.mrf.mxu0
      %v6296 = vadd.f32 %v6247, %v6295
      %6297 = vmatmul.bf16.gmra.mxu0 %v4233
      %v6298 = vpop.f32.mrf.mxu0
      %v6299 = vadd.f32 %v6250, %v6298
      %v6300 = vpop.f32.mrf.mxu0
      %v6301 = vadd.f32 %v6252, %v6300
      %6302 = vmatmul.bf16.gmra.mxu0 %v4237
      %v6303 = vpop.f32.mrf.mxu0
      %v6304 = vadd.f32 %v6255, %v6303
      %v6305 = vpop.f32.mrf.mxu0
      %v6306 = vadd.f32 %v6257, %v6305
      %6307 = vmatmul.bf16.gmra.mxu0 %v4241
      %v6308 = vpop.f32.mrf.mxu0
      %v6309 = vadd.f32 %v6260, %v6308
      %v6310 = vpop.f32.mrf.mxu0
      %v6311 = vadd.f32 %v6262, %v6310
      %6312 = vmatmul.bf16.gmra.mxu0 %v4245
      %v6313 = vpop.f32.mrf.mxu0
      %v6314 = vadd.f32 %v6265, %v6313
      %v6315 = vpop.f32.mrf.mxu0
      %v6316 = vadd.f32 %v6267, %v6315
      %6317 = vdwg.mxu0
      %6318 = vmatpush.bf16.msra.mxu0 0
      %6319 = vmatpush.bf16.msra.mxu0 0
      %6320 = vmatpush.bf16.msra.mxu0 0
      %6321 = vmatpush.bf16.msra.mxu0 0
      %6322 = vmatpush.bf16.msra.mxu0 0
      %6323 = vmatpush.bf16.msra.mxu0 0
      %6324 = vmatpush.bf16.msra.mxu0 0
      %6325 = vmatpush.bf16.msra.mxu0 %v5185
      %6326 = vmatmul.bf16.gmra.mxu0 %v5364
      %v6327 = vpop.f32.mrf.mxu0
      %v6328 = vadd.f32 %v6279, %v6327
      %v6329 = vpop.f32.mrf.mxu0
      %v6330 = vadd.f32 %v6281, %v6329
      %6331 = vmatmul.bf16.gmra.mxu0 %v5367
      %v6332 = vpop.f32.mrf.mxu0
      %v6333 = vadd.f32 %v6284, %v6332
      %v6334 = vpop.f32.mrf.mxu0
      %v6335 = vadd.f32 %v6286, %v6334
      %6336 = vmatmul.bf16.gmra.mxu0 %v5370
      %v6337 = vpop.f32.mrf.mxu0
      %v6338 = vadd.f32 %v6289, %v6337
      %v6339 = vpop.f32.mrf.mxu0
      %v6340 = vadd.f32 %v6291, %v6339
      %6341 = vmatmul.bf16.gmra.mxu0 %v5373
      %v6342 = vpop.f32.mrf.mxu0
      %v6343 = vadd.f32 %v6294, %v6342
      %v6344 = vpop.f32.mrf.mxu0
      %v6345 = vadd.f32 %v6296, %v6344
      %6346 = vmatmul.bf16.gmra.mxu0 %v5376
      %v6347 = vpop.f32.mrf.mxu0
      %v6348 = vadd.f32 %v6299, %v6347
      %v6349 = vpop.f32.mrf.mxu0
      %v6350 = vadd.f32 %v6301, %v6349
      %6351 = vmatmul.bf16.gmra.mxu0 %v5379
      %v6352 = vpop.f32.mrf.mxu0
      %v6353 = vadd.f32 %v6304, %v6352
      %v6354 = vpop.f32.mrf.mxu0
      %v6355 = vadd.f32 %v6306, %v6354
      %6356 = vmatmul.bf16.gmra.mxu0 %v5382
      %v6357 = vpop.f32.mrf.mxu0
      %v6358 = vadd.f32 %v6309, %v6357
      %v6359 = vpop.f32.mrf.mxu0
      %v6360 = vadd.f32 %v6311, %v6359
      %6361 = vmatmul.bf16.gmra.mxu0 %v5385
      %v6362 = vpop.f32.mrf.mxu0
      %v6363 = vadd.f32 %v6314, %v6362
      %v6364 = vpop.f32.mrf.mxu0
      %v6365 = vadd.f32 %v6316, %v6364
      %6366 = vdwg.mxu0
      %6367 = vmatpush.bf16.msra.mxu0 %v5067
      %6368 = vmatpush.bf16.msra.mxu0 %v5060
      %6369 = vmatpush.bf16.msra.mxu0 %v5053
      %6370 = vmatpush.bf16.msra.mxu0 %v5046
      %6371 = vmatpush.bf16.msra.mxu0 %v5039
      %6372 = vmatpush.bf16.msra.mxu0 %v5032
      %6373 = vmatpush.bf16.msra.mxu0 %v5025
      %6374 = vmatpush.bf16.msra.mxu0 %v5018
      %6375 = vmatmul.bf16.gmra.mxu0 %v4215
      %v6376 = vpop.f32.mrf.mxu0
      %v6377 = vadd.f32 %v4454, %v6376
      %v6378 = vpop.f32.mrf.mxu0
      %v6379 = vadd.f32 %v4454, %v6378
      %6380 = vmatmul.bf16.gmra.mxu0 %v4219
      %v6381 = vpop.f32.mrf.mxu0
      %v6382 = vadd.f32 %v4454, %v6381
      %v6383 = vpop.f32.mrf.mxu0
      %v6384 = vadd.f32 %v4454, %v6383
      %6385 = vmatmul.bf16.gmra.mxu0 %v4223
      %v6386 = vpop.f32.mrf.mxu0
      %v6387 = vadd.f32 %v4454, %v6386
      %v6388 = vpop.f32.mrf.mxu0
      %v6389 = vadd.f32 %v4454, %v6388
      %6390 = vmatmul.bf16.gmra.mxu0 %v4227
      %v6391 = vpop.f32.mrf.mxu0
      %v6392 = vadd.f32 %v4454, %v6391
      %v6393 = vpop.f32.mrf.mxu0
      %v6394 = vadd.f32 %v4454, %v6393
      %6395 = vmatmul.bf16.gmra.mxu0 %v4231
      %v6396 = vpop.f32.mrf.mxu0
      %v6397 = vadd.f32 %v4454, %v6396
      %v6398 = vpop.f32.mrf.mxu0
      %v6399 = vadd.f32 %v4454, %v6398
      %6400 = vmatmul.bf16.gmra.mxu0 %v4235
      %v6401 = vpop.f32.mrf.mxu0
      %v6402 = vadd.f32 %v4454, %v6401
      %v6403 = vpop.f32.mrf.mxu0
      %v6404 = vadd.f32 %v4454, %v6403
      %6405 = vmatmul.bf16.gmra.mxu0 %v4239
      %v6406 = vpop.f32.mrf.mxu0
      %v6407 = vadd.f32 %v4454, %v6406
      %v6408 = vpop.f32.mrf.mxu0
      %v6409 = vadd.f32 %v4454, %v6408
      %6410 = vmatmul.bf16.gmra.mxu0 %v4243
      %v6411 = vpop.f32.mrf.mxu0
      %v6412 = vadd.f32 %v4454, %v6411
      %v6413 = vpop.f32.mrf.mxu0
      %v6414 = vadd.f32 %v4454, %v6413
      %6415 = vdwg.mxu0
      %6416 = vmatpush.bf16.msra.mxu0 %v5123
      %6417 = vmatpush.bf16.msra.mxu0 %v5116
      %6418 = vmatpush.bf16.msra.mxu0 %v5109
      %6419 = vmatpush.bf16.msra.mxu0 %v5102
      %6420 = vmatpush.bf16.msra.mxu0 %v5095
      %6421 = vmatpush.bf16.msra.mxu0 %v5088
      %6422 = vmatpush.bf16.msra.mxu0 %v5081
      %6423 = vmatpush.bf16.msra.mxu0 %v5074
      %6424 = vmatmul.bf16.gmra.mxu0 %v4216
      %v6425 = vpop.f32.mrf.mxu0
      %v6426 = vadd.f32 %v6377, %v6425
      %v6427 = vpop.f32.mrf.mxu0
      %v6428 = vadd.f32 %v6379, %v6427
      %6429 = vmatmul.bf16.gmra.mxu0 %v4220
      %v6430 = vpop.f32.mrf.mxu0
      %v6431 = vadd.f32 %v6382, %v6430
      %v6432 = vpop.f32.mrf.mxu0
      %v6433 = vadd.f32 %v6384, %v6432
      %6434 = vmatmul.bf16.gmra.mxu0 %v4224
      %v6435 = vpop.f32.mrf.mxu0
      %v6436 = vadd.f32 %v6387, %v6435
      %v6437 = vpop.f32.mrf.mxu0
      %v6438 = vadd.f32 %v6389, %v6437
      %6439 = vmatmul.bf16.gmra.mxu0 %v4228
      %v6440 = vpop.f32.mrf.mxu0
      %v6441 = vadd.f32 %v6392, %v6440
      %v6442 = vpop.f32.mrf.mxu0
      %v6443 = vadd.f32 %v6394, %v6442
      %6444 = vmatmul.bf16.gmra.mxu0 %v4232
      %v6445 = vpop.f32.mrf.mxu0
      %v6446 = vadd.f32 %v6397, %v6445
      %v6447 = vpop.f32.mrf.mxu0
      %v6448 = vadd.f32 %v6399, %v6447
      %6449 = vmatmul.bf16.gmra.mxu0 %v4236
      %v6450 = vpop.f32.mrf.mxu0
      %v6451 = vadd.f32 %v6402, %v6450
      %v6452 = vpop.f32.mrf.mxu0
      %v6453 = vadd.f32 %v6404, %v6452
      %6454 = vmatmul.bf16.gmra.mxu0 %v4240
      %v6455 = vpop.f32.mrf.mxu0
      %v6456 = vadd.f32 %v6407, %v6455
      %v6457 = vpop.f32.mrf.mxu0
      %v6458 = vadd.f32 %v6409, %v6457
      %6459 = vmatmul.bf16.gmra.mxu0 %v4244
      %v6460 = vpop.f32.mrf.mxu0
      %v6461 = vadd.f32 %v6412, %v6460
      %v6462 = vpop.f32.mrf.mxu0
      %v6463 = vadd.f32 %v6414, %v6462
      %6464 = vdwg.mxu0
      %6465 = vmatpush.bf16.msra.mxu0 %v5179
      %6466 = vmatpush.bf16.msra.mxu0 %v5172
      %6467 = vmatpush.bf16.msra.mxu0 %v5165
      %6468 = vmatpush.bf16.msra.mxu0 %v5158
      %6469 = vmatpush.bf16.msra.mxu0 %v5151
      %6470 = vmatpush.bf16.msra.mxu0 %v5144
      %6471 = vmatpush.bf16.msra.mxu0 %v5137
      %6472 = vmatpush.bf16.msra.mxu0 %v5130
      %6473 = vmatmul.bf16.gmra.mxu0 %v4217
      %v6474 = vpop.f32.mrf.mxu0
      %v6475 = vadd.f32 %v6426, %v6474
      %v6476 = vpop.f32.mrf.mxu0
      %v6477 = vadd.f32 %v6428, %v6476
      %6478 = vmatmul.bf16.gmra.mxu0 %v4221
      %v6479 = vpop.f32.mrf.mxu0
      %v6480 = vadd.f32 %v6431, %v6479
      %v6481 = vpop.f32.mrf.mxu0
      %v6482 = vadd.f32 %v6433, %v6481
      %6483 = vmatmul.bf16.gmra.mxu0 %v4225
      %v6484 = vpop.f32.mrf.mxu0
      %v6485 = vadd.f32 %v6436, %v6484
      %v6486 = vpop.f32.mrf.mxu0
      %v6487 = vadd.f32 %v6438, %v6486
      %6488 = vmatmul.bf16.gmra.mxu0 %v4229
      %v6489 = vpop.f32.mrf.mxu0
      %v6490 = vadd.f32 %v6441, %v6489
      %v6491 = vpop.f32.mrf.mxu0
      %v6492 = vadd.f32 %v6443, %v6491
      %6493 = vmatmul.bf16.gmra.mxu0 %v4233
      %v6494 = vpop.f32.mrf.mxu0
      %v6495 = vadd.f32 %v6446, %v6494
      %v6496 = vpop.f32.mrf.mxu0
      %v6497 = vadd.f32 %v6448, %v6496
      %6498 = vmatmul.bf16.gmra.mxu0 %v4237
      %v6499 = vpop.f32.mrf.mxu0
      %v6500 = vadd.f32 %v6451, %v6499
      %v6501 = vpop.f32.mrf.mxu0
      %v6502 = vadd.f32 %v6453, %v6501
      %6503 = vmatmul.bf16.gmra.mxu0 %v4241
      %v6504 = vpop.f32.mrf.mxu0
      %v6505 = vadd.f32 %v6456, %v6504
      %v6506 = vpop.f32.mrf.mxu0
      %v6507 = vadd.f32 %v6458, %v6506
      %6508 = vmatmul.bf16.gmra.mxu0 %v4245
      %v6509 = vpop.f32.mrf.mxu0
      %v6510 = vadd.f32 %v6461, %v6509
      %v6511 = vpop.f32.mrf.mxu0
      %v6512 = vadd.f32 %v6463, %v6511
      %6513 = vdwg.mxu0
      %6514 = vmatpush.bf16.msra.mxu0 0
      %6515 = vmatpush.bf16.msra.mxu0 0
      %6516 = vmatpush.bf16.msra.mxu0 0
      %6517 = vmatpush.bf16.msra.mxu0 0
      %6518 = vmatpush.bf16.msra.mxu0 0
      %6519 = vmatpush.bf16.msra.mxu0 0
      %6520 = vmatpush.bf16.msra.mxu0 0
      %6521 = vmatpush.bf16.msra.mxu0 %v5186
      %6522 = vmatmul.bf16.gmra.mxu0 %v5364
      %v6523 = vpop.f32.mrf.mxu0
      %v6524 = vadd.f32 %v6475, %v6523
      %v6525 = vpop.f32.mrf.mxu0
      %v6526 = vadd.f32 %v6477, %v6525
      %6527 = vmatmul.bf16.gmra.mxu0 %v5367
      %v6528 = vpop.f32.mrf.mxu0
      %v6529 = vadd.f32 %v6480, %v6528
      %v6530 = vpop.f32.mrf.mxu0
      %v6531 = vadd.f32 %v6482, %v6530
      %6532 = vmatmul.bf16.gmra.mxu0 %v5370
      %v6533 = vpop.f32.mrf.mxu0
      %v6534 = vadd.f32 %v6485, %v6533
      %v6535 = vpop.f32.mrf.mxu0
      %v6536 = vadd.f32 %v6487, %v6535
      %6537 = vmatmul.bf16.gmra.mxu0 %v5373
      %v6538 = vpop.f32.mrf.mxu0
      %v6539 = vadd.f32 %v6490, %v6538
      %v6540 = vpop.f32.mrf.mxu0
      %v6541 = vadd.f32 %v6492, %v6540
      %6542 = vmatmul.bf16.gmra.mxu0 %v5376
      %v6543 = vpop.f32.mrf.mxu0
      %v6544 = vadd.f32 %v6495, %v6543
      %v6545 = vpop.f32.mrf.mxu0
      %v6546 = vadd.f32 %v6497, %v6545
      %6547 = vmatmul.bf16.gmra.mxu0 %v5379
      %v6548 = vpop.f32.mrf.mxu0
      %v6549 = vadd.f32 %v6500, %v6548
      %v6550 = vpop.f32.mrf.mxu0
      %v6551 = vadd.f32 %v6502, %v6550
      %6552 = vmatmul.bf16.gmra.mxu0 %v5382
      %v6553 = vpop.f32.mrf.mxu0
      %v6554 = vadd.f32 %v6505, %v6553
      %v6555 = vpop.f32.mrf.mxu0
      %v6556 = vadd.f32 %v6507, %v6555
      %6557 = vmatmul.bf16.gmra.mxu0 %v5385
      %v6558 = vpop.f32.mrf.mxu0
      %v6559 = vadd.f32 %v6510, %v6558
      %v6560 = vpop.f32.mrf.mxu0
      %v6561 = vadd.f32 %v6512, %v6560
      %6562 = vdwg.mxu0
      %6563 = vmatpush.bf16.msra.mxu0 %v5068
      %6564 = vmatpush.bf16.msra.mxu0 %v5061
      %6565 = vmatpush.bf16.msra.mxu0 %v5054
      %6566 = vmatpush.bf16.msra.mxu0 %v5047
      %6567 = vmatpush.bf16.msra.mxu0 %v5040
      %6568 = vmatpush.bf16.msra.mxu0 %v5033
      %6569 = vmatpush.bf16.msra.mxu0 %v5026
      %6570 = vmatpush.bf16.msra.mxu0 %v5019
      %6571 = vmatmul.bf16.gmra.mxu0 %v4215
      %v6572 = vpop.f32.mrf.mxu0
      %v6573 = vadd.f32 %v4455, %v6572
      %v6574 = vpop.f32.mrf.mxu0
      %v6575 = vadd.f32 %v4455, %v6574
      %6576 = vmatmul.bf16.gmra.mxu0 %v4219
      %v6577 = vpop.f32.mrf.mxu0
      %v6578 = vadd.f32 %v4455, %v6577
      %v6579 = vpop.f32.mrf.mxu0
      %v6580 = vadd.f32 %v4455, %v6579
      %6581 = vmatmul.bf16.gmra.mxu0 %v4223
      %v6582 = vpop.f32.mrf.mxu0
      %v6583 = vadd.f32 %v4455, %v6582
      %v6584 = vpop.f32.mrf.mxu0
      %v6585 = vadd.f32 %v4455, %v6584
      %6586 = vmatmul.bf16.gmra.mxu0 %v4227
      %v6587 = vpop.f32.mrf.mxu0
      %v6588 = vadd.f32 %v4455, %v6587
      %v6589 = vpop.f32.mrf.mxu0
      %v6590 = vadd.f32 %v4455, %v6589
      %6591 = vmatmul.bf16.gmra.mxu0 %v4231
      %v6592 = vpop.f32.mrf.mxu0
      %v6593 = vadd.f32 %v4455, %v6592
      %v6594 = vpop.f32.mrf.mxu0
      %v6595 = vadd.f32 %v4455, %v6594
      %6596 = vmatmul.bf16.gmra.mxu0 %v4235
      %v6597 = vpop.f32.mrf.mxu0
      %v6598 = vadd.f32 %v4455, %v6597
      %v6599 = vpop.f32.mrf.mxu0
      %v6600 = vadd.f32 %v4455, %v6599
      %6601 = vmatmul.bf16.gmra.mxu0 %v4239
      %v6602 = vpop.f32.mrf.mxu0
      %v6603 = vadd.f32 %v4455, %v6602
      %v6604 = vpop.f32.mrf.mxu0
      %v6605 = vadd.f32 %v4455, %v6604
      %6606 = vmatmul.bf16.gmra.mxu0 %v4243
      %v6607 = vpop.f32.mrf.mxu0
      %v6608 = vadd.f32 %v4455, %v6607
      %v6609 = vpop.f32.mrf.mxu0
      %v6610 = vadd.f32 %v4455, %v6609
      %6611 = vdwg.mxu0
      %6612 = vmatpush.bf16.msra.mxu0 %v5124
      %6613 = vmatpush.bf16.msra.mxu0 %v5117
      %6614 = vmatpush.bf16.msra.mxu0 %v5110
      %6615 = vmatpush.bf16.msra.mxu0 %v5103
      %6616 = vmatpush.bf16.msra.mxu0 %v5096
      %6617 = vmatpush.bf16.msra.mxu0 %v5089
      %6618 = vmatpush.bf16.msra.mxu0 %v5082
      %6619 = vmatpush.bf16.msra.mxu0 %v5075
      %6620 = vmatmul.bf16.gmra.mxu0 %v4216
      %v6621 = vpop.f32.mrf.mxu0
      %v6622 = vadd.f32 %v6573, %v6621
      %v6623 = vpop.f32.mrf.mxu0
      %v6624 = vadd.f32 %v6575, %v6623
      %6625 = vmatmul.bf16.gmra.mxu0 %v4220
      %v6626 = vpop.f32.mrf.mxu0
      %v6627 = vadd.f32 %v6578, %v6626
      %v6628 = vpop.f32.mrf.mxu0
      %v6629 = vadd.f32 %v6580, %v6628
      %6630 = vmatmul.bf16.gmra.mxu0 %v4224
      %v6631 = vpop.f32.mrf.mxu0
      %v6632 = vadd.f32 %v6583, %v6631
      %v6633 = vpop.f32.mrf.mxu0
      %v6634 = vadd.f32 %v6585, %v6633
      %6635 = vmatmul.bf16.gmra.mxu0 %v4228
      %v6636 = vpop.f32.mrf.mxu0
      %v6637 = vadd.f32 %v6588, %v6636
      %v6638 = vpop.f32.mrf.mxu0
      %v6639 = vadd.f32 %v6590, %v6638
      %6640 = vmatmul.bf16.gmra.mxu0 %v4232
      %v6641 = vpop.f32.mrf.mxu0
      %v6642 = vadd.f32 %v6593, %v6641
      %v6643 = vpop.f32.mrf.mxu0
      %v6644 = vadd.f32 %v6595, %v6643
      %6645 = vmatmul.bf16.gmra.mxu0 %v4236
      %v6646 = vpop.f32.mrf.mxu0
      %v6647 = vadd.f32 %v6598, %v6646
      %v6648 = vpop.f32.mrf.mxu0
      %v6649 = vadd.f32 %v6600, %v6648
      %6650 = vmatmul.bf16.gmra.mxu0 %v4240
      %v6651 = vpop.f32.mrf.mxu0
      %v6652 = vadd.f32 %v6603, %v6651
      %v6653 = vpop.f32.mrf.mxu0
      %v6654 = vadd.f32 %v6605, %v6653
      %6655 = vmatmul.bf16.gmra.mxu0 %v4244
      %v6656 = vpop.f32.mrf.mxu0
      %v6657 = vadd.f32 %v6608, %v6656
      %v6658 = vpop.f32.mrf.mxu0
      %v6659 = vadd.f32 %v6610, %v6658
      %6660 = vdwg.mxu0
      %6661 = vmatpush.bf16.msra.mxu0 %v5180
      %6662 = vmatpush.bf16.msra.mxu0 %v5173
      %6663 = vmatpush.bf16.msra.mxu0 %v5166
      %6664 = vmatpush.bf16.msra.mxu0 %v5159
      %6665 = vmatpush.bf16.msra.mxu0 %v5152
      %6666 = vmatpush.bf16.msra.mxu0 %v5145
      %6667 = vmatpush.bf16.msra.mxu0 %v5138
      %6668 = vmatpush.bf16.msra.mxu0 %v5131
      %6669 = vmatmul.bf16.gmra.mxu0 %v4217
      %v6670 = vpop.f32.mrf.mxu0
      %v6671 = vadd.f32 %v6622, %v6670
      %v6672 = vpop.f32.mrf.mxu0
      %v6673 = vadd.f32 %v6624, %v6672
      %6674 = vmatmul.bf16.gmra.mxu0 %v4221
      %v6675 = vpop.f32.mrf.mxu0
      %v6676 = vadd.f32 %v6627, %v6675
      %v6677 = vpop.f32.mrf.mxu0
      %v6678 = vadd.f32 %v6629, %v6677
      %6679 = vmatmul.bf16.gmra.mxu0 %v4225
      %v6680 = vpop.f32.mrf.mxu0
      %v6681 = vadd.f32 %v6632, %v6680
      %v6682 = vpop.f32.mrf.mxu0
      %v6683 = vadd.f32 %v6634, %v6682
      %6684 = vmatmul.bf16.gmra.mxu0 %v4229
      %v6685 = vpop.f32.mrf.mxu0
      %v6686 = vadd.f32 %v6637, %v6685
      %v6687 = vpop.f32.mrf.mxu0
      %v6688 = vadd.f32 %v6639, %v6687
      %6689 = vmatmul.bf16.gmra.mxu0 %v4233
      %v6690 = vpop.f32.mrf.mxu0
      %v6691 = vadd.f32 %v6642, %v6690
      %v6692 = vpop.f32.mrf.mxu0
      %v6693 = vadd.f32 %v6644, %v6692
      %6694 = vmatmul.bf16.gmra.mxu0 %v4237
      %v6695 = vpop.f32.mrf.mxu0
      %v6696 = vadd.f32 %v6647, %v6695
      %v6697 = vpop.f32.mrf.mxu0
      %v6698 = vadd.f32 %v6649, %v6697
      %6699 = vmatmul.bf16.gmra.mxu0 %v4241
      %v6700 = vpop.f32.mrf.mxu0
      %v6701 = vadd.f32 %v6652, %v6700
      %v6702 = vpop.f32.mrf.mxu0
      %v6703 = vadd.f32 %v6654, %v6702
      %6704 = vmatmul.bf16.gmra.mxu0 %v4245
      %v6705 = vpop.f32.mrf.mxu0
      %v6706 = vadd.f32 %v6657, %v6705
      %v6707 = vpop.f32.mrf.mxu0
      %v6708 = vadd.f32 %v6659, %v6707
      %6709 = vdwg.mxu0
      %6710 = vmatpush.bf16.msra.mxu0 0
      %6711 = vmatpush.bf16.msra.mxu0 0
      %6712 = vmatpush.bf16.msra.mxu0 0
      %6713 = vmatpush.bf16.msra.mxu0 0
      %6714 = vmatpush.bf16.msra.mxu0 0
      %6715 = vmatpush.bf16.msra.mxu0 0
      %6716 = vmatpush.bf16.msra.mxu0 0
      %6717 = vmatpush.bf16.msra.mxu0 %v5187
      %6718 = vmatmul.bf16.gmra.mxu0 %v5364
      %v6719 = vpop.f32.mrf.mxu0
      %v6720 = vadd.f32 %v6671, %v6719
      %v6721 = vpop.f32.mrf.mxu0
      %v6722 = vadd.f32 %v6673, %v6721
      %6723 = vmatmul.bf16.gmra.mxu0 %v5367
      %v6724 = vpop.f32.mrf.mxu0
      %v6725 = vadd.f32 %v6676, %v6724
      %v6726 = vpop.f32.mrf.mxu0
      %v6727 = vadd.f32 %v6678, %v6726
      %6728 = vmatmul.bf16.gmra.mxu0 %v5370
      %v6729 = vpop.f32.mrf.mxu0
      %v6730 = vadd.f32 %v6681, %v6729
      %v6731 = vpop.f32.mrf.mxu0
      %v6732 = vadd.f32 %v6683, %v6731
      %6733 = vmatmul.bf16.gmra.mxu0 %v5373
      %v6734 = vpop.f32.mrf.mxu0
      %v6735 = vadd.f32 %v6686, %v6734
      %v6736 = vpop.f32.mrf.mxu0
      %v6737 = vadd.f32 %v6688, %v6736
      %6738 = vmatmul.bf16.gmra.mxu0 %v5376
      %v6739 = vpop.f32.mrf.mxu0
      %v6740 = vadd.f32 %v6691, %v6739
      %v6741 = vpop.f32.mrf.mxu0
      %v6742 = vadd.f32 %v6693, %v6741
      %6743 = vmatmul.bf16.gmra.mxu0 %v5379
      %v6744 = vpop.f32.mrf.mxu0
      %v6745 = vadd.f32 %v6696, %v6744
      %v6746 = vpop.f32.mrf.mxu0
      %v6747 = vadd.f32 %v6698, %v6746
      %6748 = vmatmul.bf16.gmra.mxu0 %v5382
      %v6749 = vpop.f32.mrf.mxu0
      %v6750 = vadd.f32 %v6701, %v6749
      %v6751 = vpop.f32.mrf.mxu0
      %v6752 = vadd.f32 %v6703, %v6751
      %6753 = vmatmul.bf16.gmra.mxu0 %v5385
      %v6754 = vpop.f32.mrf.mxu0
      %v6755 = vadd.f32 %v6706, %v6754
      %v6756 = vpop.f32.mrf.mxu0
      %v6757 = vadd.f32 %v6708, %v6756
      %6758 = vdwg.mxu0
      %v6759 = vpack.c.bf16 %v5740, %v5544
      %v6760 = vpack.c.bf16 %v6132, %v5936
      %v6761 = vpack.c.bf16 %v6524, %v6328
      %v6762 = vpack.c.bf16 %v6720, %v6720
      %v6763 = vpack.c.bf16 %v5742, %v5546
      %v6764 = vpack.c.bf16 %v6134, %v5938
      %v6765 = vpack.c.bf16 %v6526, %v6330
      %v6766 = vpack.c.bf16 %v6722, %v6722
      %v6767 = vpack.c.bf16 %v5745, %v5549
      %v6768 = vpack.c.bf16 %v6137, %v5941
      %v6769 = vpack.c.bf16 %v6529, %v6333
      %v6770 = vpack.c.bf16 %v6725, %v6725
      %v6771 = vpack.c.bf16 %v5747, %v5551
      %v6772 = vpack.c.bf16 %v6139, %v5943
      %v6773 = vpack.c.bf16 %v6531, %v6335
      %v6774 = vpack.c.bf16 %v6727, %v6727
      %v6775 = vpack.c.bf16 %v5750, %v5554
      %v6776 = vpack.c.bf16 %v6142, %v5946
      %v6777 = vpack.c.bf16 %v6534, %v6338
      %v6778 = vpack.c.bf16 %v6730, %v6730
      %v6779 = vpack.c.bf16 %v5752, %v5556
      %v6780 = vpack.c.bf16 %v6144, %v5948
      %v6781 = vpack.c.bf16 %v6536, %v6340
      %v6782 = vpack.c.bf16 %v6732, %v6732
      %v6783 = vpack.c.bf16 %v5755, %v5559
      %v6784 = vpack.c.bf16 %v6147, %v5951
      %v6785 = vpack.c.bf16 %v6539, %v6343
      %v6786 = vpack.c.bf16 %v6735, %v6735
      %v6787 = vpack.c.bf16 %v5757, %v5561
      %v6788 = vpack.c.bf16 %v6149, %v5953
      %v6789 = vpack.c.bf16 %v6541, %v6345
      %v6790 = vpack.c.bf16 %v6737, %v6737
      %v6791 = vpack.c.bf16 %v5760, %v5564
      %v6792 = vpack.c.bf16 %v6152, %v5956
      %v6793 = vpack.c.bf16 %v6544, %v6348
      %v6794 = vpack.c.bf16 %v6740, %v6740
      %v6795 = vpack.c.bf16 %v5762, %v5566
      %v6796 = vpack.c.bf16 %v6154, %v5958
      %v6797 = vpack.c.bf16 %v6546, %v6350
      %v6798 = vpack.c.bf16 %v6742, %v6742
      %v6799 = vpack.c.bf16 %v5765, %v5569
      %v6800 = vpack.c.bf16 %v6157, %v5961
      %v6801 = vpack.c.bf16 %v6549, %v6353
      %v6802 = vpack.c.bf16 %v6745, %v6745
      %v6803 = vpack.c.bf16 %v5767, %v5571
      %v6804 = vpack.c.bf16 %v6159, %v5963
      %v6805 = vpack.c.bf16 %v6551, %v6355
      %v6806 = vpack.c.bf16 %v6747, %v6747
      %v6807 = vpack.c.bf16 %v5770, %v5574
      %v6808 = vpack.c.bf16 %v6162, %v5966
      %v6809 = vpack.c.bf16 %v6554, %v6358
      %v6810 = vpack.c.bf16 %v6750, %v6750
      %v6811 = vpack.c.bf16 %v5772, %v5576
      %v6812 = vpack.c.bf16 %v6164, %v5968
      %v6813 = vpack.c.bf16 %v6556, %v6360
      %v6814 = vpack.c.bf16 %v6752, %v6752
      %v6815 = vpack.c.bf16 %v5775, %v5579
      %v6816 = vpack.c.bf16 %v6167, %v5971
      %v6817 = vpack.c.bf16 %v6559, %v6363
      %v6818 = vpack.c.bf16 %v6755, %v6755
      %v6819 = vpack.c.bf16 %v5777, %v5581
      %v6820 = vpack.c.bf16 %v6169, %v5973
      %v6821 = vpack.c.bf16 %v6561, %v6365
      %v6822 = vpack.c.bf16 %v6757, %v6757
      %v6823 = vunpack.c.l.bf16 %v6759
      %v6824 = vunpack.c.h.bf16 %v6759
      %v6825 = vunpack.c.l.bf16 %v6760
      %v6826 = vunpack.c.h.bf16 %v6760
      %v6827 = vunpack.c.l.bf16 %v6761
      %v6828 = vunpack.c.h.bf16 %v6761
      %v6829 = vunpack.c.l.bf16 %v6762
      %v6830 = vunpack.c.l.bf16 %v6763
      %v6831 = vunpack.c.h.bf16 %v6763
      %v6832 = vunpack.c.l.bf16 %v6764
      %v6833 = vunpack.c.h.bf16 %v6764
      %v6834 = vunpack.c.l.bf16 %v6765
      %v6835 = vunpack.c.h.bf16 %v6765
      %v6836 = vunpack.c.l.bf16 %v6766
      %v6837 = vunpack.c.l.bf16 %v6767
      %v6838 = vunpack.c.h.bf16 %v6767
      %v6839 = vunpack.c.l.bf16 %v6768
      %v6840 = vunpack.c.h.bf16 %v6768
      %v6841 = vunpack.c.l.bf16 %v6769
      %v6842 = vunpack.c.h.bf16 %v6769
      %v6843 = vunpack.c.l.bf16 %v6770
      %v6844 = vunpack.c.l.bf16 %v6771
      %v6845 = vunpack.c.h.bf16 %v6771
      %v6846 = vunpack.c.l.bf16 %v6772
      %v6847 = vunpack.c.h.bf16 %v6772
      %v6848 = vunpack.c.l.bf16 %v6773
      %v6849 = vunpack.c.h.bf16 %v6773
      %v6850 = vunpack.c.l.bf16 %v6774
      %v6851 = vunpack.c.l.bf16 %v6775
      %v6852 = vunpack.c.h.bf16 %v6775
      %v6853 = vunpack.c.l.bf16 %v6776
      %v6854 = vunpack.c.h.bf16 %v6776
      %v6855 = vunpack.c.l.bf16 %v6777
      %v6856 = vunpack.c.h.bf16 %v6777
      %v6857 = vunpack.c.l.bf16 %v6778
      %v6858 = vunpack.c.l.bf16 %v6779
      %v6859 = vunpack.c.h.bf16 %v6779
      %v6860 = vunpack.c.l.bf16 %v6780
      %v6861 = vunpack.c.h.bf16 %v6780
      %v6862 = vunpack.c.l.bf16 %v6781
      %v6863 = vunpack.c.h.bf16 %v6781
      %v6864 = vunpack.c.l.bf16 %v6782
      %v6865 = vunpack.c.l.bf16 %v6783
      %v6866 = vunpack.c.h.bf16 %v6783
      %v6867 = vunpack.c.l.bf16 %v6784
      %v6868 = vunpack.c.h.bf16 %v6784
      %v6869 = vunpack.c.l.bf16 %v6785
      %v6870 = vunpack.c.h.bf16 %v6785
      %v6871 = vunpack.c.l.bf16 %v6786
      %v6872 = vunpack.c.l.bf16 %v6787
      %v6873 = vunpack.c.h.bf16 %v6787
      %v6874 = vunpack.c.l.bf16 %v6788
      %v6875 = vunpack.c.h.bf16 %v6788
      %v6876 = vunpack.c.l.bf16 %v6789
      %v6877 = vunpack.c.h.bf16 %v6789
      %v6878 = vunpack.c.l.bf16 %v6790
      %v6879 = vunpack.c.l.bf16 %v6791
      %v6880 = vunpack.c.h.bf16 %v6791
      %v6881 = vunpack.c.l.bf16 %v6792
      %v6882 = vunpack.c.h.bf16 %v6792
      %v6883 = vunpack.c.l.bf16 %v6793
      %v6884 = vunpack.c.h.bf16 %v6793
      %v6885 = vunpack.c.l.bf16 %v6794
      %v6886 = vunpack.c.l.bf16 %v6795
      %v6887 = vunpack.c.h.bf16 %v6795
      %v6888 = vunpack.c.l.bf16 %v6796
      %v6889 = vunpack.c.h.bf16 %v6796
      %v6890 = vunpack.c.l.bf16 %v6797
      %v6891 = vunpack.c.h.bf16 %v6797
      %v6892 = vunpack.c.l.bf16 %v6798
      %v6893 = vunpack.c.l.bf16 %v6799
      %v6894 = vunpack.c.h.bf16 %v6799
      %v6895 = vunpack.c.l.bf16 %v6800
      %v6896 = vunpack.c.h.bf16 %v6800
      %v6897 = vunpack.c.l.bf16 %v6801
      %v6898 = vunpack.c.h.bf16 %v6801
      %v6899 = vunpack.c.l.bf16 %v6802
      %v6900 = vunpack.c.l.bf16 %v6803
      %v6901 = vunpack.c.h.bf16 %v6803
      %v6902 = vunpack.c.l.bf16 %v6804
      %v6903 = vunpack.c.h.bf16 %v6804
      %v6904 = vunpack.c.l.bf16 %v6805
      %v6905 = vunpack.c.h.bf16 %v6805
      %v6906 = vunpack.c.l.bf16 %v6806
      %v6907 = vunpack.c.l.bf16 %v6807
      %v6908 = vunpack.c.h.bf16 %v6807
      %v6909 = vunpack.c.l.bf16 %v6808
      %v6910 = vunpack.c.h.bf16 %v6808
      %v6911 = vunpack.c.l.bf16 %v6809
      %v6912 = vunpack.c.h.bf16 %v6809
      %v6913 = vunpack.c.l.bf16 %v6810
      %v6914 = vunpack.c.l.bf16 %v6811
      %v6915 = vunpack.c.h.bf16 %v6811
      %v6916 = vunpack.c.l.bf16 %v6812
      %v6917 = vunpack.c.h.bf16 %v6812
      %v6918 = vunpack.c.l.bf16 %v6813
      %v6919 = vunpack.c.h.bf16 %v6813
      %v6920 = vunpack.c.l.bf16 %v6814
      %v6921 = vunpack.c.l.bf16 %v6815
      %v6922 = vunpack.c.h.bf16 %v6815
      %v6923 = vunpack.c.l.bf16 %v6816
      %v6924 = vunpack.c.h.bf16 %v6816
      %v6925 = vunpack.c.l.bf16 %v6817
      %v6926 = vunpack.c.h.bf16 %v6817
      %v6927 = vunpack.c.l.bf16 %v6818
      %v6928 = vunpack.c.l.bf16 %v6819
      %v6929 = vunpack.c.h.bf16 %v6819
      %v6930 = vunpack.c.l.bf16 %v6820
      %v6931 = vunpack.c.h.bf16 %v6820
      %v6932 = vunpack.c.l.bf16 %v6821
      %v6933 = vunpack.c.h.bf16 %v6821
      %v6934 = vunpack.c.l.bf16 %v6822
      %v6935 = vmul.f32 %v6823, 0.5
      %v6936 = vmul.f32 %v6824, 0.5
      %v6937 = vmul.f32 %v6825, 0.5
      %v6938 = vmul.f32 %v6826, 0.5
      %v6939 = vmul.f32 %v6827, 0.5
      %v6940 = vmul.f32 %v6828, 0.5
      %v6941 = vmul.f32 %v6829, 0.5
      %v6942 = vmul.f32 %v6830, 0.5
      %v6943 = vmul.f32 %v6831, 0.5
      %v6944 = vmul.f32 %v6832, 0.5
      %v6945 = vmul.f32 %v6833, 0.5
      %v6946 = vmul.f32 %v6834, 0.5
      %v6947 = vmul.f32 %v6835, 0.5
      %v6948 = vmul.f32 %v6836, 0.5
      %v6949 = vmul.f32 %v6837, 0.5
      %v6950 = vmul.f32 %v6838, 0.5
      %v6951 = vmul.f32 %v6839, 0.5
      %v6952 = vmul.f32 %v6840, 0.5
      %v6953 = vmul.f32 %v6841, 0.5
      %v6954 = vmul.f32 %v6842, 0.5
      %v6955 = vmul.f32 %v6843, 0.5
      %v6956 = vmul.f32 %v6844, 0.5
      %v6957 = vmul.f32 %v6845, 0.5
      %v6958 = vmul.f32 %v6846, 0.5
      %v6959 = vmul.f32 %v6847, 0.5
      %v6960 = vmul.f32 %v6848, 0.5
      %v6961 = vmul.f32 %v6849, 0.5
      %v6962 = vmul.f32 %v6850, 0.5
      %v6963 = vmul.f32 %v6851, 0.5
      %v6964 = vmul.f32 %v6852, 0.5
      %v6965 = vmul.f32 %v6853, 0.5
      %v6966 = vmul.f32 %v6854, 0.5
      %v6967 = vmul.f32 %v6855, 0.5
      %v6968 = vmul.f32 %v6856, 0.5
      %v6969 = vmul.f32 %v6857, 0.5
      %v6970 = vmul.f32 %v6858, 0.5
      %v6971 = vmul.f32 %v6859, 0.5
      %v6972 = vmul.f32 %v6860, 0.5
      %v6973 = vmul.f32 %v6861, 0.5
      %v6974 = vmul.f32 %v6862, 0.5
      %v6975 = vmul.f32 %v6863, 0.5
      %v6976 = vmul.f32 %v6864, 0.5
      %v6977 = vmul.f32 %v6865, 0.5
      %v6978 = vmul.f32 %v6866, 0.5
      %v6979 = vmul.f32 %v6867, 0.5
      %v6980 = vmul.f32 %v6868, 0.5
      %v6981 = vmul.f32 %v6869, 0.5
      %v6982 = vmul.f32 %v6870, 0.5
      %v6983 = vmul.f32 %v6871, 0.5
      %v6984 = vmul.f32 %v6872, 0.5
      %v6985 = vmul.f32 %v6873, 0.5
      %v6986 = vmul.f32 %v6874, 0.5
      %v6987 = vmul.f32 %v6875, 0.5
      %v6988 = vmul.f32 %v6876, 0.5
      %v6989 = vmul.f32 %v6877, 0.5
      %v6990 = vmul.f32 %v6878, 0.5
      %v6991 = vmul.f32 %v6879, 0.5
      %v6992 = vmul.f32 %v6880, 0.5
      %v6993 = vmul.f32 %v6881, 0.5
      %v6994 = vmul.f32 %v6882, 0.5
      %v6995 = vmul.f32 %v6883, 0.5
      %v6996 = vmul.f32 %v6884, 0.5
      %v6997 = vmul.f32 %v6885, 0.5
      %v6998 = vmul.f32 %v6886, 0.5
      %v6999 = vmul.f32 %v6887, 0.5
      %v7000 = vmul.f32 %v6888, 0.5
      %v7001 = vmul.f32 %v6889, 0.5
      %v7002 = vmul.f32 %v6890, 0.5
      %v7003 = vmul.f32 %v6891, 0.5
      %v7004 = vmul.f32 %v6892, 0.5
      %v7005 = vmul.f32 %v6893, 0.5
      %v7006 = vmul.f32 %v6894, 0.5
      %v7007 = vmul.f32 %v6895, 0.5
      %v7008 = vmul.f32 %v6896, 0.5
      %v7009 = vmul.f32 %v6897, 0.5
      %v7010 = vmul.f32 %v6898, 0.5
      %v7011 = vmul.f32 %v6899, 0.5
      %v7012 = vmul.f32 %v6900, 0.5
      %v7013 = vmul.f32 %v6901, 0.5
      %v7014 = vmul.f32 %v6902, 0.5
      %v7015 = vmul.f32 %v6903, 0.5
      %v7016 = vmul.f32 %v6904, 0.5
      %v7017 = vmul.f32 %v6905, 0.5
      %v7018 = vmul.f32 %v6906, 0.5
      %v7019 = vmul.f32 %v6907, 0.5
      %v7020 = vmul.f32 %v6908, 0.5
      %v7021 = vmul.f32 %v6909, 0.5
      %v7022 = vmul.f32 %v6910, 0.5
      %v7023 = vmul.f32 %v6911, 0.5
      %v7024 = vmul.f32 %v6912, 0.5
      %v7025 = vmul.f32 %v6913, 0.5
      %v7026 = vmul.f32 %v6914, 0.5
      %v7027 = vmul.f32 %v6915, 0.5
      %v7028 = vmul.f32 %v6916, 0.5
      %v7029 = vmul.f32 %v6917, 0.5
      %v7030 = vmul.f32 %v6918, 0.5
      %v7031 = vmul.f32 %v6919, 0.5
      %v7032 = vmul.f32 %v6920, 0.5
      %v7033 = vmul.f32 %v6921, 0.5
      %v7034 = vmul.f32 %v6922, 0.5
      %v7035 = vmul.f32 %v6923, 0.5
      %v7036 = vmul.f32 %v6924, 0.5
      %v7037 = vmul.f32 %v6925, 0.5
      %v7038 = vmul.f32 %v6926, 0.5
      %v7039 = vmul.f32 %v6927, 0.5
      %v7040 = vmul.f32 %v6928, 0.5
      %v7041 = vmul.f32 %v6929, 0.5
      %v7042 = vmul.f32 %v6930, 0.5
      %v7043 = vmul.f32 %v6931, 0.5
      %v7044 = vmul.f32 %v6932, 0.5
      %v7045 = vmul.f32 %v6933, 0.5
      %v7046 = vmul.f32 %v6934, 0.5
      %v7047 = vpack.c.bf16 %v6936, %v6935
      %v7048 = vpack.c.bf16 %v6938, %v6937
      %v7049 = vpack.c.bf16 %v6940, %v6939
      %v7050 = vpack.c.bf16 %v6941, %v6941
      %v7051 = vpack.c.bf16 %v6943, %v6942
      %v7052 = vpack.c.bf16 %v6945, %v6944
      %v7053 = vpack.c.bf16 %v6947, %v6946
      %v7054 = vpack.c.bf16 %v6948, %v6948
      %v7055 = vpack.c.bf16 %v6950, %v6949
      %v7056 = vpack.c.bf16 %v6952, %v6951
      %v7057 = vpack.c.bf16 %v6954, %v6953
      %v7058 = vpack.c.bf16 %v6955, %v6955
      %v7059 = vpack.c.bf16 %v6957, %v6956
      %v7060 = vpack.c.bf16 %v6959, %v6958
      %v7061 = vpack.c.bf16 %v6961, %v6960
      %v7062 = vpack.c.bf16 %v6962, %v6962
      %v7063 = vpack.c.bf16 %v6964, %v6963
      %v7064 = vpack.c.bf16 %v6966, %v6965
      %v7065 = vpack.c.bf16 %v6968, %v6967
      %v7066 = vpack.c.bf16 %v6969, %v6969
      %v7067 = vpack.c.bf16 %v6971, %v6970
      %v7068 = vpack.c.bf16 %v6973, %v6972
      %v7069 = vpack.c.bf16 %v6975, %v6974
      %v7070 = vpack.c.bf16 %v6976, %v6976
      %v7071 = vpack.c.bf16 %v6978, %v6977
      %v7072 = vpack.c.bf16 %v6980, %v6979
      %v7073 = vpack.c.bf16 %v6982, %v6981
      %v7074 = vpack.c.bf16 %v6983, %v6983
      %v7075 = vpack.c.bf16 %v6985, %v6984
      %v7076 = vpack.c.bf16 %v6987, %v6986
      %v7077 = vpack.c.bf16 %v6989, %v6988
      %v7078 = vpack.c.bf16 %v6990, %v6990
      %v7079 = vpack.c.bf16 %v6992, %v6991
      %v7080 = vpack.c.bf16 %v6994, %v6993
      %v7081 = vpack.c.bf16 %v6996, %v6995
      %v7082 = vpack.c.bf16 %v6997, %v6997
      %v7083 = vpack.c.bf16 %v6999, %v6998
      %v7084 = vpack.c.bf16 %v7001, %v7000
      %v7085 = vpack.c.bf16 %v7003, %v7002
      %v7086 = vpack.c.bf16 %v7004, %v7004
      %v7087 = vpack.c.bf16 %v7006, %v7005
      %v7088 = vpack.c.bf16 %v7008, %v7007
      %v7089 = vpack.c.bf16 %v7010, %v7009
      %v7090 = vpack.c.bf16 %v7011, %v7011
      %v7091 = vpack.c.bf16 %v7013, %v7012
      %v7092 = vpack.c.bf16 %v7015, %v7014
      %v7093 = vpack.c.bf16 %v7017, %v7016
      %v7094 = vpack.c.bf16 %v7018, %v7018
      %v7095 = vpack.c.bf16 %v7020, %v7019
      %v7096 = vpack.c.bf16 %v7022, %v7021
      %v7097 = vpack.c.bf16 %v7024, %v7023
      %v7098 = vpack.c.bf16 %v7025, %v7025
      %v7099 = vpack.c.bf16 %v7027, %v7026
      %v7100 = vpack.c.bf16 %v7029, %v7028
      %v7101 = vpack.c.bf16 %v7031, %v7030
      %v7102 = vpack.c.bf16 %v7032, %v7032
      %v7103 = vpack.c.bf16 %v7034, %v7033
      %v7104 = vpack.c.bf16 %v7036, %v7035
      %v7105 = vpack.c.bf16 %v7038, %v7037
      %v7106 = vpack.c.bf16 %v7039, %v7039
      %v7107 = vpack.c.bf16 %v7041, %v7040
      %v7108 = vpack.c.bf16 %v7043, %v7042
      %v7109 = vpack.c.bf16 %v7045, %v7044
      %v7110 = vpack.c.bf16 %v7046, %v7046
      %v7111 = vunpack.c.l.bf16 %v7047
      %v7112 = vunpack.c.h.bf16 %v7047
      %v7113 = vunpack.c.l.bf16 %v7048
      %v7114 = vunpack.c.h.bf16 %v7048
      %v7115 = vunpack.c.l.bf16 %v7049
      %v7116 = vunpack.c.h.bf16 %v7049
      %v7117 = vunpack.c.l.bf16 %v7050
      %v7118 = vunpack.c.l.bf16 %v7051
      %v7119 = vunpack.c.h.bf16 %v7051
      %v7120 = vunpack.c.l.bf16 %v7052
      %v7121 = vunpack.c.h.bf16 %v7052
      %v7122 = vunpack.c.l.bf16 %v7053
      %v7123 = vunpack.c.h.bf16 %v7053
      %v7124 = vunpack.c.l.bf16 %v7054
      %v7125 = vunpack.c.l.bf16 %v7055
      %v7126 = vunpack.c.h.bf16 %v7055
      %v7127 = vunpack.c.l.bf16 %v7056
      %v7128 = vunpack.c.h.bf16 %v7056
      %v7129 = vunpack.c.l.bf16 %v7057
      %v7130 = vunpack.c.h.bf16 %v7057
      %v7131 = vunpack.c.l.bf16 %v7058
      %v7132 = vunpack.c.l.bf16 %v7059
      %v7133 = vunpack.c.h.bf16 %v7059
      %v7134 = vunpack.c.l.bf16 %v7060
      %v7135 = vunpack.c.h.bf16 %v7060
      %v7136 = vunpack.c.l.bf16 %v7061
      %v7137 = vunpack.c.h.bf16 %v7061
      %v7138 = vunpack.c.l.bf16 %v7062
      %v7139 = vunpack.c.l.bf16 %v7063
      %v7140 = vunpack.c.h.bf16 %v7063
      %v7141 = vunpack.c.l.bf16 %v7064
      %v7142 = vunpack.c.h.bf16 %v7064
      %v7143 = vunpack.c.l.bf16 %v7065
      %v7144 = vunpack.c.h.bf16 %v7065
      %v7145 = vunpack.c.l.bf16 %v7066
      %v7146 = vunpack.c.l.bf16 %v7067
      %v7147 = vunpack.c.h.bf16 %v7067
      %v7148 = vunpack.c.l.bf16 %v7068
      %v7149 = vunpack.c.h.bf16 %v7068
      %v7150 = vunpack.c.l.bf16 %v7069
      %v7151 = vunpack.c.h.bf16 %v7069
      %v7152 = vunpack.c.l.bf16 %v7070
      %v7153 = vunpack.c.l.bf16 %v7071
      %v7154 = vunpack.c.h.bf16 %v7071
      %v7155 = vunpack.c.l.bf16 %v7072
      %v7156 = vunpack.c.h.bf16 %v7072
      %v7157 = vunpack.c.l.bf16 %v7073
      %v7158 = vunpack.c.h.bf16 %v7073
      %v7159 = vunpack.c.l.bf16 %v7074
      %v7160 = vunpack.c.l.bf16 %v7075
      %v7161 = vunpack.c.h.bf16 %v7075
      %v7162 = vunpack.c.l.bf16 %v7076
      %v7163 = vunpack.c.h.bf16 %v7076
      %v7164 = vunpack.c.l.bf16 %v7077
      %v7165 = vunpack.c.h.bf16 %v7077
      %v7166 = vunpack.c.l.bf16 %v7078
      %v7167 = vunpack.c.l.bf16 %v7079
      %v7168 = vunpack.c.h.bf16 %v7079
      %v7169 = vunpack.c.l.bf16 %v7080
      %v7170 = vunpack.c.h.bf16 %v7080
      %v7171 = vunpack.c.l.bf16 %v7081
      %v7172 = vunpack.c.h.bf16 %v7081
      %v7173 = vunpack.c.l.bf16 %v7082
      %v7174 = vunpack.c.l.bf16 %v7083
      %v7175 = vunpack.c.h.bf16 %v7083
      %v7176 = vunpack.c.l.bf16 %v7084
      %v7177 = vunpack.c.h.bf16 %v7084
      %v7178 = vunpack.c.l.bf16 %v7085
      %v7179 = vunpack.c.h.bf16 %v7085
      %v7180 = vunpack.c.l.bf16 %v7086
      %v7181 = vunpack.c.l.bf16 %v7087
      %v7182 = vunpack.c.h.bf16 %v7087
      %v7183 = vunpack.c.l.bf16 %v7088
      %v7184 = vunpack.c.h.bf16 %v7088
      %v7185 = vunpack.c.l.bf16 %v7089
      %v7186 = vunpack.c.h.bf16 %v7089
      %v7187 = vunpack.c.l.bf16 %v7090
      %v7188 = vunpack.c.l.bf16 %v7091
      %v7189 = vunpack.c.h.bf16 %v7091
      %v7190 = vunpack.c.l.bf16 %v7092
      %v7191 = vunpack.c.h.bf16 %v7092
      %v7192 = vunpack.c.l.bf16 %v7093
      %v7193 = vunpack.c.h.bf16 %v7093
      %v7194 = vunpack.c.l.bf16 %v7094
      %v7195 = vunpack.c.l.bf16 %v7095
      %v7196 = vunpack.c.h.bf16 %v7095
      %v7197 = vunpack.c.l.bf16 %v7096
      %v7198 = vunpack.c.h.bf16 %v7096
      %v7199 = vunpack.c.l.bf16 %v7097
      %v7200 = vunpack.c.h.bf16 %v7097
      %v7201 = vunpack.c.l.bf16 %v7098
      %v7202 = vunpack.c.l.bf16 %v7099
      %v7203 = vunpack.c.h.bf16 %v7099
      %v7204 = vunpack.c.l.bf16 %v7100
      %v7205 = vunpack.c.h.bf16 %v7100
      %v7206 = vunpack.c.l.bf16 %v7101
      %v7207 = vunpack.c.h.bf16 %v7101
      %v7208 = vunpack.c.l.bf16 %v7102
      %v7209 = vunpack.c.l.bf16 %v7103
      %v7210 = vunpack.c.h.bf16 %v7103
      %v7211 = vunpack.c.l.bf16 %v7104
      %v7212 = vunpack.c.h.bf16 %v7104
      %v7213 = vunpack.c.l.bf16 %v7105
      %v7214 = vunpack.c.h.bf16 %v7105
      %v7215 = vunpack.c.l.bf16 %v7106
      %v7216 = vunpack.c.l.bf16 %v7107
      %v7217 = vunpack.c.h.bf16 %v7107
      %v7218 = vunpack.c.l.bf16 %v7108
      %v7219 = vunpack.c.h.bf16 %v7108
      %v7220 = vunpack.c.l.bf16 %v7109
      %v7221 = vunpack.c.h.bf16 %v7109
      %v7222 = vunpack.c.l.bf16 %v7110
      %v7223 = vtanh.pop %v7111
      %v7224 = vtanh.pop %v7112
      %v7225 = vtanh.pop %v7113
      %v7226 = vtanh.pop %v7114
      %v7227 = vtanh.pop %v7115
      %v7228 = vtanh.pop %v7116
      %v7229 = vtanh.pop %v7117
      %v7230 = vtanh.pop %v7118
      %v7231 = vtanh.pop %v7119
      %v7232 = vtanh.pop %v7120
      %v7233 = vtanh.pop %v7121
      %v7234 = vtanh.pop %v7122
      %v7235 = vtanh.pop %v7123
      %v7236 = vtanh.pop %v7124
      %v7237 = vtanh.pop %v7125
      %v7238 = vtanh.pop %v7126
      %v7239 = vtanh.pop %v7127
      %v7240 = vtanh.pop %v7128
      %v7241 = vtanh.pop %v7129
      %v7242 = vtanh.pop %v7130
      %v7243 = vtanh.pop %v7131
      %v7244 = vtanh.pop %v7132
      %v7245 = vtanh.pop %v7133
      %v7246 = vtanh.pop %v7134
      %v7247 = vtanh.pop %v7135
      %v7248 = vtanh.pop %v7136
      %v7249 = vtanh.pop %v7137
      %v7250 = vtanh.pop %v7138
      %v7251 = vtanh.pop %v7139
      %v7252 = vtanh.pop %v7140
      %v7253 = vtanh.pop %v7141
      %v7254 = vtanh.pop %v7142
      %v7255 = vtanh.pop %v7143
      %v7256 = vtanh.pop %v7144
      %v7257 = vtanh.pop %v7145
      %v7258 = vtanh.pop %v7146
      %v7259 = vtanh.pop %v7147
      %v7260 = vtanh.pop %v7148
      %v7261 = vtanh.pop %v7149
      %v7262 = vtanh.pop %v7150
      %v7263 = vtanh.pop %v7151
      %v7264 = vtanh.pop %v7152
      %v7265 = vtanh.pop %v7153
      %v7266 = vtanh.pop %v7154
      %v7267 = vtanh.pop %v7155
      %v7268 = vtanh.pop %v7156
      %v7269 = vtanh.pop %v7157
      %v7270 = vtanh.pop %v7158
      %v7271 = vtanh.pop %v7159
      %v7272 = vtanh.pop %v7160
      %v7273 = vtanh.pop %v7161
      %v7274 = vtanh.pop %v7162
      %v7275 = vtanh.pop %v7163
      %v7276 = vtanh.pop %v7164
      %v7277 = vtanh.pop %v7165
      %v7278 = vtanh.pop %v7166
      %v7279 = vtanh.pop %v7167
      %v7280 = vtanh.pop %v7168
      %v7281 = vtanh.pop %v7169
      %v7282 = vtanh.pop %v7170
      %v7283 = vtanh.pop %v7171
      %v7284 = vtanh.pop %v7172
      %v7285 = vtanh.pop %v7173
      %v7286 = vtanh.pop %v7174
      %v7287 = vtanh.pop %v7175
      %v7288 = vtanh.pop %v7176
      %v7289 = vtanh.pop %v7177
      %v7290 = vtanh.pop %v7178
      %v7291 = vtanh.pop %v7179
      %v7292 = vtanh.pop %v7180
      %v7293 = vtanh.pop %v7181
      %v7294 = vtanh.pop %v7182
      %v7295 = vtanh.pop %v7183
      %v7296 = vtanh.pop %v7184
      %v7297 = vtanh.pop %v7185
      %v7298 = vtanh.pop %v7186
      %v7299 = vtanh.pop %v7187
      %v7300 = vtanh.pop %v7188
      %v7301 = vtanh.pop %v7189
      %v7302 = vtanh.pop %v7190
      %v7303 = vtanh.pop %v7191
      %v7304 = vtanh.pop %v7192
      %v7305 = vtanh.pop %v7193
      %v7306 = vtanh.pop %v7194
      %v7307 = vtanh.pop %v7195
      %v7308 = vtanh.pop %v7196
      %v7309 = vtanh.pop %v7197
      %v7310 = vtanh.pop %v7198
      %v7311 = vtanh.pop %v7199
      %v7312 = vtanh.pop %v7200
      %v7313 = vtanh.pop %v7201
      %v7314 = vtanh.pop %v7202
      %v7315 = vtanh.pop %v7203
      %v7316 = vtanh.pop %v7204
      %v7317 = vtanh.pop %v7205
      %v7318 = vtanh.pop %v7206
      %v7319 = vtanh.pop %v7207
      %v7320 = vtanh.pop %v7208
      %v7321 = vtanh.pop %v7209
      %v7322 = vtanh.pop %v7210
      %v7323 = vtanh.pop %v7211
      %v7324 = vtanh.pop %v7212
      %v7325 = vtanh.pop %v7213
      %v7326 = vtanh.pop %v7214
      %v7327 = vtanh.pop %v7215
      %v7328 = vtanh.pop %v7216
      %v7329 = vtanh.pop %v7217
      %v7330 = vtanh.pop %v7218
      %v7331 = vtanh.pop %v7219
      %v7332 = vtanh.pop %v7220
      %v7333 = vtanh.pop %v7221
      %v7334 = vtanh.pop %v7222
      %v7335 = vpack.c.bf16 %v7224, %v7223
      %v7336 = vpack.c.bf16 %v7226, %v7225
      %v7337 = vpack.c.bf16 %v7228, %v7227
      %v7338 = vpack.c.bf16 %v7229, %v7229
      %v7339 = vpack.c.bf16 %v7231, %v7230
      %v7340 = vpack.c.bf16 %v7233, %v7232
      %v7341 = vpack.c.bf16 %v7235, %v7234
      %v7342 = vpack.c.bf16 %v7236, %v7236
      %v7343 = vpack.c.bf16 %v7238, %v7237
      %v7344 = vpack.c.bf16 %v7240, %v7239
      %v7345 = vpack.c.bf16 %v7242, %v7241
      %v7346 = vpack.c.bf16 %v7243, %v7243
      %v7347 = vpack.c.bf16 %v7245, %v7244
      %v7348 = vpack.c.bf16 %v7247, %v7246
      %v7349 = vpack.c.bf16 %v7249, %v7248
      %v7350 = vpack.c.bf16 %v7250, %v7250
      %v7351 = vpack.c.bf16 %v7252, %v7251
      %v7352 = vpack.c.bf16 %v7254, %v7253
      %v7353 = vpack.c.bf16 %v7256, %v7255
      %v7354 = vpack.c.bf16 %v7257, %v7257
      %v7355 = vpack.c.bf16 %v7259, %v7258
      %v7356 = vpack.c.bf16 %v7261, %v7260
      %v7357 = vpack.c.bf16 %v7263, %v7262
      %v7358 = vpack.c.bf16 %v7264, %v7264
      %v7359 = vpack.c.bf16 %v7266, %v7265
      %v7360 = vpack.c.bf16 %v7268, %v7267
      %v7361 = vpack.c.bf16 %v7270, %v7269
      %v7362 = vpack.c.bf16 %v7271, %v7271
      %v7363 = vpack.c.bf16 %v7273, %v7272
      %v7364 = vpack.c.bf16 %v7275, %v7274
      %v7365 = vpack.c.bf16 %v7277, %v7276
      %v7366 = vpack.c.bf16 %v7278, %v7278
      %v7367 = vpack.c.bf16 %v7280, %v7279
      %v7368 = vpack.c.bf16 %v7282, %v7281
      %v7369 = vpack.c.bf16 %v7284, %v7283
      %v7370 = vpack.c.bf16 %v7285, %v7285
      %v7371 = vpack.c.bf16 %v7287, %v7286
      %v7372 = vpack.c.bf16 %v7289, %v7288
      %v7373 = vpack.c.bf16 %v7291, %v7290
      %v7374 = vpack.c.bf16 %v7292, %v7292
      %v7375 = vpack.c.bf16 %v7294, %v7293
      %v7376 = vpack.c.bf16 %v7296, %v7295
      %v7377 = vpack.c.bf16 %v7298, %v7297
      %v7378 = vpack.c.bf16 %v7299, %v7299
      %v7379 = vpack.c.bf16 %v7301, %v7300
      %v7380 = vpack.c.bf16 %v7303, %v7302
      %v7381 = vpack.c.bf16 %v7305, %v7304
      %v7382 = vpack.c.bf16 %v7306, %v7306
      %v7383 = vpack.c.bf16 %v7308, %v7307
      %v7384 = vpack.c.bf16 %v7310, %v7309
      %v7385 = vpack.c.bf16 %v7312, %v7311
      %v7386 = vpack.c.bf16 %v7313, %v7313
      %v7387 = vpack.c.bf16 %v7315, %v7314
      %v7388 = vpack.c.bf16 %v7317, %v7316
      %v7389 = vpack.c.bf16 %v7319, %v7318
      %v7390 = vpack.c.bf16 %v7320, %v7320
      %v7391 = vpack.c.bf16 %v7322, %v7321
      %v7392 = vpack.c.bf16 %v7324, %v7323
      %v7393 = vpack.c.bf16 %v7326, %v7325
      %v7394 = vpack.c.bf16 %v7327, %v7327
      %v7395 = vpack.c.bf16 %v7329, %v7328
      %v7396 = vpack.c.bf16 %v7331, %v7330
      %v7397 = vpack.c.bf16 %v7333, %v7332
      %v7398 = vpack.c.bf16 %v7334, %v7334
      %v7399 = vunpack.c.l.bf16 %v7335
      %v7400 = vunpack.c.h.bf16 %v7335
      %v7401 = vunpack.c.l.bf16 %v7336
      %v7402 = vunpack.c.h.bf16 %v7336
      %v7403 = vunpack.c.l.bf16 %v7337
      %v7404 = vunpack.c.h.bf16 %v7337
      %v7405 = vunpack.c.l.bf16 %v7338
      %v7406 = vunpack.c.l.bf16 %v7339
      %v7407 = vunpack.c.h.bf16 %v7339
      %v7408 = vunpack.c.l.bf16 %v7340
      %v7409 = vunpack.c.h.bf16 %v7340
      %v7410 = vunpack.c.l.bf16 %v7341
      %v7411 = vunpack.c.h.bf16 %v7341
      %v7412 = vunpack.c.l.bf16 %v7342
      %v7413 = vunpack.c.l.bf16 %v7343
      %v7414 = vunpack.c.h.bf16 %v7343
      %v7415 = vunpack.c.l.bf16 %v7344
      %v7416 = vunpack.c.h.bf16 %v7344
      %v7417 = vunpack.c.l.bf16 %v7345
      %v7418 = vunpack.c.h.bf16 %v7345
      %v7419 = vunpack.c.l.bf16 %v7346
      %v7420 = vunpack.c.l.bf16 %v7347
      %v7421 = vunpack.c.h.bf16 %v7347
      %v7422 = vunpack.c.l.bf16 %v7348
      %v7423 = vunpack.c.h.bf16 %v7348
      %v7424 = vunpack.c.l.bf16 %v7349
      %v7425 = vunpack.c.h.bf16 %v7349
      %v7426 = vunpack.c.l.bf16 %v7350
      %v7427 = vunpack.c.l.bf16 %v7351
      %v7428 = vunpack.c.h.bf16 %v7351
      %v7429 = vunpack.c.l.bf16 %v7352
      %v7430 = vunpack.c.h.bf16 %v7352
      %v7431 = vunpack.c.l.bf16 %v7353
      %v7432 = vunpack.c.h.bf16 %v7353
      %v7433 = vunpack.c.l.bf16 %v7354
      %v7434 = vunpack.c.l.bf16 %v7355
      %v7435 = vunpack.c.h.bf16 %v7355
      %v7436 = vunpack.c.l.bf16 %v7356
      %v7437 = vunpack.c.h.bf16 %v7356
      %v7438 = vunpack.c.l.bf16 %v7357
      %v7439 = vunpack.c.h.bf16 %v7357
      %v7440 = vunpack.c.l.bf16 %v7358
      %v7441 = vunpack.c.l.bf16 %v7359
      %v7442 = vunpack.c.h.bf16 %v7359
      %v7443 = vunpack.c.l.bf16 %v7360
      %v7444 = vunpack.c.h.bf16 %v7360
      %v7445 = vunpack.c.l.bf16 %v7361
      %v7446 = vunpack.c.h.bf16 %v7361
      %v7447 = vunpack.c.l.bf16 %v7362
      %v7448 = vunpack.c.l.bf16 %v7363
      %v7449 = vunpack.c.h.bf16 %v7363
      %v7450 = vunpack.c.l.bf16 %v7364
      %v7451 = vunpack.c.h.bf16 %v7364
      %v7452 = vunpack.c.l.bf16 %v7365
      %v7453 = vunpack.c.h.bf16 %v7365
      %v7454 = vunpack.c.l.bf16 %v7366
      %v7455 = vunpack.c.l.bf16 %v7367
      %v7456 = vunpack.c.h.bf16 %v7367
      %v7457 = vunpack.c.l.bf16 %v7368
      %v7458 = vunpack.c.h.bf16 %v7368
      %v7459 = vunpack.c.l.bf16 %v7369
      %v7460 = vunpack.c.h.bf16 %v7369
      %v7461 = vunpack.c.l.bf16 %v7370
      %v7462 = vunpack.c.l.bf16 %v7371
      %v7463 = vunpack.c.h.bf16 %v7371
      %v7464 = vunpack.c.l.bf16 %v7372
      %v7465 = vunpack.c.h.bf16 %v7372
      %v7466 = vunpack.c.l.bf16 %v7373
      %v7467 = vunpack.c.h.bf16 %v7373
      %v7468 = vunpack.c.l.bf16 %v7374
      %v7469 = vunpack.c.l.bf16 %v7375
      %v7470 = vunpack.c.h.bf16 %v7375
      %v7471 = vunpack.c.l.bf16 %v7376
      %v7472 = vunpack.c.h.bf16 %v7376
      %v7473 = vunpack.c.l.bf16 %v7377
      %v7474 = vunpack.c.h.bf16 %v7377
      %v7475 = vunpack.c.l.bf16 %v7378
      %v7476 = vunpack.c.l.bf16 %v7379
      %v7477 = vunpack.c.h.bf16 %v7379
      %v7478 = vunpack.c.l.bf16 %v7380
      %v7479 = vunpack.c.h.bf16 %v7380
      %v7480 = vunpack.c.l.bf16 %v7381
      %v7481 = vunpack.c.h.bf16 %v7381
      %v7482 = vunpack.c.l.bf16 %v7382
      %v7483 = vunpack.c.l.bf16 %v7383
      %v7484 = vunpack.c.h.bf16 %v7383
      %v7485 = vunpack.c.l.bf16 %v7384
      %v7486 = vunpack.c.h.bf16 %v7384
      %v7487 = vunpack.c.l.bf16 %v7385
      %v7488 = vunpack.c.h.bf16 %v7385
      %v7489 = vunpack.c.l.bf16 %v7386
      %v7490 = vunpack.c.l.bf16 %v7387
      %v7491 = vunpack.c.h.bf16 %v7387
      %v7492 = vunpack.c.l.bf16 %v7388
      %v7493 = vunpack.c.h.bf16 %v7388
      %v7494 = vunpack.c.l.bf16 %v7389
      %v7495 = vunpack.c.h.bf16 %v7389
      %v7496 = vunpack.c.l.bf16 %v7390
      %v7497 = vunpack.c.l.bf16 %v7391
      %v7498 = vunpack.c.h.bf16 %v7391
      %v7499 = vunpack.c.l.bf16 %v7392
      %v7500 = vunpack.c.h.bf16 %v7392
      %v7501 = vunpack.c.l.bf16 %v7393
      %v7502 = vunpack.c.h.bf16 %v7393
      %v7503 = vunpack.c.l.bf16 %v7394
      %v7504 = vunpack.c.l.bf16 %v7395
      %v7505 = vunpack.c.h.bf16 %v7395
      %v7506 = vunpack.c.l.bf16 %v7396
      %v7507 = vunpack.c.h.bf16 %v7396
      %v7508 = vunpack.c.l.bf16 %v7397
      %v7509 = vunpack.c.h.bf16 %v7397
      %v7510 = vunpack.c.l.bf16 %v7398
      %v7511 = vmul.f32 %v7399, 0.5
      %v7512 = vmul.f32 %v7400, 0.5
      %v7513 = vmul.f32 %v7401, 0.5
      %v7514 = vmul.f32 %v7402, 0.5
      %v7515 = vmul.f32 %v7403, 0.5
      %v7516 = vmul.f32 %v7404, 0.5
      %v7517 = vmul.f32 %v7405, 0.5
      %v7518 = vmul.f32 %v7406, 0.5
      %v7519 = vmul.f32 %v7407, 0.5
      %v7520 = vmul.f32 %v7408, 0.5
      %v7521 = vmul.f32 %v7409, 0.5
      %v7522 = vmul.f32 %v7410, 0.5
      %v7523 = vmul.f32 %v7411, 0.5
      %v7524 = vmul.f32 %v7412, 0.5
      %v7525 = vmul.f32 %v7413, 0.5
      %v7526 = vmul.f32 %v7414, 0.5
      %v7527 = vmul.f32 %v7415, 0.5
      %v7528 = vmul.f32 %v7416, 0.5
      %v7529 = vmul.f32 %v7417, 0.5
      %v7530 = vmul.f32 %v7418, 0.5
      %v7531 = vmul.f32 %v7419, 0.5
      %v7532 = vmul.f32 %v7420, 0.5
      %v7533 = vmul.f32 %v7421, 0.5
      %v7534 = vmul.f32 %v7422, 0.5
      %v7535 = vmul.f32 %v7423, 0.5
      %v7536 = vmul.f32 %v7424, 0.5
      %v7537 = vmul.f32 %v7425, 0.5
      %v7538 = vmul.f32 %v7426, 0.5
      %v7539 = vmul.f32 %v7427, 0.5
      %v7540 = vmul.f32 %v7428, 0.5
      %v7541 = vmul.f32 %v7429, 0.5
      %v7542 = vmul.f32 %v7430, 0.5
      %v7543 = vmul.f32 %v7431, 0.5
      %v7544 = vmul.f32 %v7432, 0.5
      %v7545 = vmul.f32 %v7433, 0.5
      %v7546 = vmul.f32 %v7434, 0.5
      %v7547 = vmul.f32 %v7435, 0.5
      %v7548 = vmul.f32 %v7436, 0.5
      %v7549 = vmul.f32 %v7437, 0.5
      %v7550 = vmul.f32 %v7438, 0.5
      %v7551 = vmul.f32 %v7439, 0.5
      %v7552 = vmul.f32 %v7440, 0.5
      %v7553 = vmul.f32 %v7441, 0.5
      %v7554 = vmul.f32 %v7442, 0.5
      %v7555 = vmul.f32 %v7443, 0.5
      %v7556 = vmul.f32 %v7444, 0.5
      %v7557 = vmul.f32 %v7445, 0.5
      %v7558 = vmul.f32 %v7446, 0.5
      %v7559 = vmul.f32 %v7447, 0.5
      %v7560 = vmul.f32 %v7448, 0.5
      %v7561 = vmul.f32 %v7449, 0.5
      %v7562 = vmul.f32 %v7450, 0.5
      %v7563 = vmul.f32 %v7451, 0.5
      %v7564 = vmul.f32 %v7452, 0.5
      %v7565 = vmul.f32 %v7453, 0.5
      %v7566 = vmul.f32 %v7454, 0.5
      %v7567 = vmul.f32 %v7455, 0.5
      %v7568 = vmul.f32 %v7456, 0.5
      %v7569 = vmul.f32 %v7457, 0.5
      %v7570 = vmul.f32 %v7458, 0.5
      %v7571 = vmul.f32 %v7459, 0.5
      %v7572 = vmul.f32 %v7460, 0.5
      %v7573 = vmul.f32 %v7461, 0.5
      %v7574 = vmul.f32 %v7462, 0.5
      %v7575 = vmul.f32 %v7463, 0.5
      %v7576 = vmul.f32 %v7464, 0.5
      %v7577 = vmul.f32 %v7465, 0.5
      %v7578 = vmul.f32 %v7466, 0.5
      %v7579 = vmul.f32 %v7467, 0.5
      %v7580 = vmul.f32 %v7468, 0.5
      %v7581 = vmul.f32 %v7469, 0.5
      %v7582 = vmul.f32 %v7470, 0.5
      %v7583 = vmul.f32 %v7471, 0.5
      %v7584 = vmul.f32 %v7472, 0.5
      %v7585 = vmul.f32 %v7473, 0.5
      %v7586 = vmul.f32 %v7474, 0.5
      %v7587 = vmul.f32 %v7475, 0.5
      %v7588 = vmul.f32 %v7476, 0.5
      %v7589 = vmul.f32 %v7477, 0.5
      %v7590 = vmul.f32 %v7478, 0.5
      %v7591 = vmul.f32 %v7479, 0.5
      %v7592 = vmul.f32 %v7480, 0.5
      %v7593 = vmul.f32 %v7481, 0.5
      %v7594 = vmul.f32 %v7482, 0.5
      %v7595 = vmul.f32 %v7483, 0.5
      %v7596 = vmul.f32 %v7484, 0.5
      %v7597 = vmul.f32 %v7485, 0.5
      %v7598 = vmul.f32 %v7486, 0.5
      %v7599 = vmul.f32 %v7487, 0.5
      %v7600 = vmul.f32 %v7488, 0.5
      %v7601 = vmul.f32 %v7489, 0.5
      %v7602 = vmul.f32 %v7490, 0.5
      %v7603 = vmul.f32 %v7491, 0.5
      %v7604 = vmul.f32 %v7492, 0.5
      %v7605 = vmul.f32 %v7493, 0.5
      %v7606 = vmul.f32 %v7494, 0.5
      %v7607 = vmul.f32 %v7495, 0.5
      %v7608 = vmul.f32 %v7496, 0.5
      %v7609 = vmul.f32 %v7497, 0.5
      %v7610 = vmul.f32 %v7498, 0.5
      %v7611 = vmul.f32 %v7499, 0.5
      %v7612 = vmul.f32 %v7500, 0.5
      %v7613 = vmul.f32 %v7501, 0.5
      %v7614 = vmul.f32 %v7502, 0.5
      %v7615 = vmul.f32 %v7503, 0.5
      %v7616 = vmul.f32 %v7504, 0.5
      %v7617 = vmul.f32 %v7505, 0.5
      %v7618 = vmul.f32 %v7506, 0.5
      %v7619 = vmul.f32 %v7507, 0.5
      %v7620 = vmul.f32 %v7508, 0.5
      %v7621 = vmul.f32 %v7509, 0.5
      %v7622 = vmul.f32 %v7510, 0.5
      %v7623 = vpack.c.bf16 %v7512, %v7511
      %v7624 = vpack.c.bf16 %v7514, %v7513
      %v7625 = vpack.c.bf16 %v7516, %v7515
      %v7626 = vpack.c.bf16 %v7517, %v7517
      %v7627 = vpack.c.bf16 %v7519, %v7518
      %v7628 = vpack.c.bf16 %v7521, %v7520
      %v7629 = vpack.c.bf16 %v7523, %v7522
      %v7630 = vpack.c.bf16 %v7524, %v7524
      %v7631 = vpack.c.bf16 %v7526, %v7525
      %v7632 = vpack.c.bf16 %v7528, %v7527
      %v7633 = vpack.c.bf16 %v7530, %v7529
      %v7634 = vpack.c.bf16 %v7531, %v7531
      %v7635 = vpack.c.bf16 %v7533, %v7532
      %v7636 = vpack.c.bf16 %v7535, %v7534
      %v7637 = vpack.c.bf16 %v7537, %v7536
      %v7638 = vpack.c.bf16 %v7538, %v7538
      %v7639 = vpack.c.bf16 %v7540, %v7539
      %v7640 = vpack.c.bf16 %v7542, %v7541
      %v7641 = vpack.c.bf16 %v7544, %v7543
      %v7642 = vpack.c.bf16 %v7545, %v7545
      %v7643 = vpack.c.bf16 %v7547, %v7546
      %v7644 = vpack.c.bf16 %v7549, %v7548
      %v7645 = vpack.c.bf16 %v7551, %v7550
      %v7646 = vpack.c.bf16 %v7552, %v7552
      %v7647 = vpack.c.bf16 %v7554, %v7553
      %v7648 = vpack.c.bf16 %v7556, %v7555
      %v7649 = vpack.c.bf16 %v7558, %v7557
      %v7650 = vpack.c.bf16 %v7559, %v7559
      %v7651 = vpack.c.bf16 %v7561, %v7560
      %v7652 = vpack.c.bf16 %v7563, %v7562
      %v7653 = vpack.c.bf16 %v7565, %v7564
      %v7654 = vpack.c.bf16 %v7566, %v7566
      %v7655 = vpack.c.bf16 %v7568, %v7567
      %v7656 = vpack.c.bf16 %v7570, %v7569
      %v7657 = vpack.c.bf16 %v7572, %v7571
      %v7658 = vpack.c.bf16 %v7573, %v7573
      %v7659 = vpack.c.bf16 %v7575, %v7574
      %v7660 = vpack.c.bf16 %v7577, %v7576
      %v7661 = vpack.c.bf16 %v7579, %v7578
      %v7662 = vpack.c.bf16 %v7580, %v7580
      %v7663 = vpack.c.bf16 %v7582, %v7581
      %v7664 = vpack.c.bf16 %v7584, %v7583
      %v7665 = vpack.c.bf16 %v7586, %v7585
      %v7666 = vpack.c.bf16 %v7587, %v7587
      %v7667 = vpack.c.bf16 %v7589, %v7588
      %v7668 = vpack.c.bf16 %v7591, %v7590
      %v7669 = vpack.c.bf16 %v7593, %v7592
      %v7670 = vpack.c.bf16 %v7594, %v7594
      %v7671 = vpack.c.bf16 %v7596, %v7595
      %v7672 = vpack.c.bf16 %v7598, %v7597
      %v7673 = vpack.c.bf16 %v7600, %v7599
      %v7674 = vpack.c.bf16 %v7601, %v7601
      %v7675 = vpack.c.bf16 %v7603, %v7602
      %v7676 = vpack.c.bf16 %v7605, %v7604
      %v7677 = vpack.c.bf16 %v7607, %v7606
      %v7678 = vpack.c.bf16 %v7608, %v7608
      %v7679 = vpack.c.bf16 %v7610, %v7609
      %v7680 = vpack.c.bf16 %v7612, %v7611
      %v7681 = vpack.c.bf16 %v7614, %v7613
      %v7682 = vpack.c.bf16 %v7615, %v7615
      %v7683 = vpack.c.bf16 %v7617, %v7616
      %v7684 = vpack.c.bf16 %v7619, %v7618
      %v7685 = vpack.c.bf16 %v7621, %v7620
      %v7686 = vpack.c.bf16 %v7622, %v7622
      %v7687 = vunpack.c.l.bf16 %v7623
      %v7688 = vunpack.c.h.bf16 %v7623
      %v7689 = vunpack.c.l.bf16 %v7624
      %v7690 = vunpack.c.h.bf16 %v7624
      %v7691 = vunpack.c.l.bf16 %v7625
      %v7692 = vunpack.c.h.bf16 %v7625
      %v7693 = vunpack.c.l.bf16 %v7626
      %v7694 = vunpack.c.l.bf16 %v7627
      %v7695 = vunpack.c.h.bf16 %v7627
      %v7696 = vunpack.c.l.bf16 %v7628
      %v7697 = vunpack.c.h.bf16 %v7628
      %v7698 = vunpack.c.l.bf16 %v7629
      %v7699 = vunpack.c.h.bf16 %v7629
      %v7700 = vunpack.c.l.bf16 %v7630
      %v7701 = vunpack.c.l.bf16 %v7631
      %v7702 = vunpack.c.h.bf16 %v7631
      %v7703 = vunpack.c.l.bf16 %v7632
      %v7704 = vunpack.c.h.bf16 %v7632
      %v7705 = vunpack.c.l.bf16 %v7633
      %v7706 = vunpack.c.h.bf16 %v7633
      %v7707 = vunpack.c.l.bf16 %v7634
      %v7708 = vunpack.c.l.bf16 %v7635
      %v7709 = vunpack.c.h.bf16 %v7635
      %v7710 = vunpack.c.l.bf16 %v7636
      %v7711 = vunpack.c.h.bf16 %v7636
      %v7712 = vunpack.c.l.bf16 %v7637
      %v7713 = vunpack.c.h.bf16 %v7637
      %v7714 = vunpack.c.l.bf16 %v7638
      %v7715 = vunpack.c.l.bf16 %v7639
      %v7716 = vunpack.c.h.bf16 %v7639
      %v7717 = vunpack.c.l.bf16 %v7640
      %v7718 = vunpack.c.h.bf16 %v7640
      %v7719 = vunpack.c.l.bf16 %v7641
      %v7720 = vunpack.c.h.bf16 %v7641
      %v7721 = vunpack.c.l.bf16 %v7642
      %v7722 = vunpack.c.l.bf16 %v7643
      %v7723 = vunpack.c.h.bf16 %v7643
      %v7724 = vunpack.c.l.bf16 %v7644
      %v7725 = vunpack.c.h.bf16 %v7644
      %v7726 = vunpack.c.l.bf16 %v7645
      %v7727 = vunpack.c.h.bf16 %v7645
      %v7728 = vunpack.c.l.bf16 %v7646
      %v7729 = vunpack.c.l.bf16 %v7647
      %v7730 = vunpack.c.h.bf16 %v7647
      %v7731 = vunpack.c.l.bf16 %v7648
      %v7732 = vunpack.c.h.bf16 %v7648
      %v7733 = vunpack.c.l.bf16 %v7649
      %v7734 = vunpack.c.h.bf16 %v7649
      %v7735 = vunpack.c.l.bf16 %v7650
      %v7736 = vunpack.c.l.bf16 %v7651
      %v7737 = vunpack.c.h.bf16 %v7651
      %v7738 = vunpack.c.l.bf16 %v7652
      %v7739 = vunpack.c.h.bf16 %v7652
      %v7740 = vunpack.c.l.bf16 %v7653
      %v7741 = vunpack.c.h.bf16 %v7653
      %v7742 = vunpack.c.l.bf16 %v7654
      %v7743 = vunpack.c.l.bf16 %v7655
      %v7744 = vunpack.c.h.bf16 %v7655
      %v7745 = vunpack.c.l.bf16 %v7656
      %v7746 = vunpack.c.h.bf16 %v7656
      %v7747 = vunpack.c.l.bf16 %v7657
      %v7748 = vunpack.c.h.bf16 %v7657
      %v7749 = vunpack.c.l.bf16 %v7658
      %v7750 = vunpack.c.l.bf16 %v7659
      %v7751 = vunpack.c.h.bf16 %v7659
      %v7752 = vunpack.c.l.bf16 %v7660
      %v7753 = vunpack.c.h.bf16 %v7660
      %v7754 = vunpack.c.l.bf16 %v7661
      %v7755 = vunpack.c.h.bf16 %v7661
      %v7756 = vunpack.c.l.bf16 %v7662
      %v7757 = vunpack.c.l.bf16 %v7663
      %v7758 = vunpack.c.h.bf16 %v7663
      %v7759 = vunpack.c.l.bf16 %v7664
      %v7760 = vunpack.c.h.bf16 %v7664
      %v7761 = vunpack.c.l.bf16 %v7665
      %v7762 = vunpack.c.h.bf16 %v7665
      %v7763 = vunpack.c.l.bf16 %v7666
      %v7764 = vunpack.c.l.bf16 %v7667
      %v7765 = vunpack.c.h.bf16 %v7667
      %v7766 = vunpack.c.l.bf16 %v7668
      %v7767 = vunpack.c.h.bf16 %v7668
      %v7768 = vunpack.c.l.bf16 %v7669
      %v7769 = vunpack.c.h.bf16 %v7669
      %v7770 = vunpack.c.l.bf16 %v7670
      %v7771 = vunpack.c.l.bf16 %v7671
      %v7772 = vunpack.c.h.bf16 %v7671
      %v7773 = vunpack.c.l.bf16 %v7672
      %v7774 = vunpack.c.h.bf16 %v7672
      %v7775 = vunpack.c.l.bf16 %v7673
      %v7776 = vunpack.c.h.bf16 %v7673
      %v7777 = vunpack.c.l.bf16 %v7674
      %v7778 = vunpack.c.l.bf16 %v7675
      %v7779 = vunpack.c.h.bf16 %v7675
      %v7780 = vunpack.c.l.bf16 %v7676
      %v7781 = vunpack.c.h.bf16 %v7676
      %v7782 = vunpack.c.l.bf16 %v7677
      %v7783 = vunpack.c.h.bf16 %v7677
      %v7784 = vunpack.c.l.bf16 %v7678
      %v7785 = vunpack.c.l.bf16 %v7679
      %v7786 = vunpack.c.h.bf16 %v7679
      %v7787 = vunpack.c.l.bf16 %v7680
      %v7788 = vunpack.c.h.bf16 %v7680
      %v7789 = vunpack.c.l.bf16 %v7681
      %v7790 = vunpack.c.h.bf16 %v7681
      %v7791 = vunpack.c.l.bf16 %v7682
      %v7792 = vunpack.c.l.bf16 %v7683
      %v7793 = vunpack.c.h.bf16 %v7683
      %v7794 = vunpack.c.l.bf16 %v7684
      %v7795 = vunpack.c.h.bf16 %v7684
      %v7796 = vunpack.c.l.bf16 %v7685
      %v7797 = vunpack.c.h.bf16 %v7685
      %v7798 = vunpack.c.l.bf16 %v7686
      %v7799 = vadd.f32 %v7687, 0.5
      %v7800 = vadd.f32 %v7688, 0.5
      %v7801 = vadd.f32 %v7689, 0.5
      %v7802 = vadd.f32 %v7690, 0.5
      %v7803 = vadd.f32 %v7691, 0.5
      %v7804 = vadd.f32 %v7692, 0.5
      %v7805 = vadd.f32 %v7693, 0.5
      %v7806 = vadd.f32 %v7694, 0.5
      %v7807 = vadd.f32 %v7695, 0.5
      %v7808 = vadd.f32 %v7696, 0.5
      %v7809 = vadd.f32 %v7697, 0.5
      %v7810 = vadd.f32 %v7698, 0.5
      %v7811 = vadd.f32 %v7699, 0.5
      %v7812 = vadd.f32 %v7700, 0.5
      %v7813 = vadd.f32 %v7701, 0.5
      %v7814 = vadd.f32 %v7702, 0.5
      %v7815 = vadd.f32 %v7703, 0.5
      %v7816 = vadd.f32 %v7704, 0.5
      %v7817 = vadd.f32 %v7705, 0.5
      %v7818 = vadd.f32 %v7706, 0.5
      %v7819 = vadd.f32 %v7707, 0.5
      %v7820 = vadd.f32 %v7708, 0.5
      %v7821 = vadd.f32 %v7709, 0.5
      %v7822 = vadd.f32 %v7710, 0.5
      %v7823 = vadd.f32 %v7711, 0.5
      %v7824 = vadd.f32 %v7712, 0.5
      %v7825 = vadd.f32 %v7713, 0.5
      %v7826 = vadd.f32 %v7714, 0.5
      %v7827 = vadd.f32 %v7715, 0.5
      %v7828 = vadd.f32 %v7716, 0.5
      %v7829 = vadd.f32 %v7717, 0.5
      %v7830 = vadd.f32 %v7718, 0.5
      %v7831 = vadd.f32 %v7719, 0.5
      %v7832 = vadd.f32 %v7720, 0.5
      %v7833 = vadd.f32 %v7721, 0.5
      %v7834 = vadd.f32 %v7722, 0.5
      %v7835 = vadd.f32 %v7723, 0.5
      %v7836 = vadd.f32 %v7724, 0.5
      %v7837 = vadd.f32 %v7725, 0.5
      %v7838 = vadd.f32 %v7726, 0.5
      %v7839 = vadd.f32 %v7727, 0.5
      %v7840 = vadd.f32 %v7728, 0.5
      %v7841 = vadd.f32 %v7729, 0.5
      %v7842 = vadd.f32 %v7730, 0.5
      %v7843 = vadd.f32 %v7731, 0.5
      %v7844 = vadd.f32 %v7732, 0.5
      %v7845 = vadd.f32 %v7733, 0.5
      %v7846 = vadd.f32 %v7734, 0.5
      %v7847 = vadd.f32 %v7735, 0.5
      %v7848 = vadd.f32 %v7736, 0.5
      %v7849 = vadd.f32 %v7737, 0.5
      %v7850 = vadd.f32 %v7738, 0.5
      %v7851 = vadd.f32 %v7739, 0.5
      %v7852 = vadd.f32 %v7740, 0.5
      %v7853 = vadd.f32 %v7741, 0.5
      %v7854 = vadd.f32 %v7742, 0.5
      %v7855 = vadd.f32 %v7743, 0.5
      %v7856 = vadd.f32 %v7744, 0.5
      %v7857 = vadd.f32 %v7745, 0.5
      %v7858 = vadd.f32 %v7746, 0.5
      %v7859 = vadd.f32 %v7747, 0.5
      %v7860 = vadd.f32 %v7748, 0.5
      %v7861 = vadd.f32 %v7749, 0.5
      %v7862 = vadd.f32 %v7750, 0.5
      %v7863 = vadd.f32 %v7751, 0.5
      %v7864 = vadd.f32 %v7752, 0.5
      %v7865 = vadd.f32 %v7753, 0.5
      %v7866 = vadd.f32 %v7754, 0.5
      %v7867 = vadd.f32 %v7755, 0.5
      %v7868 = vadd.f32 %v7756, 0.5
      %v7869 = vadd.f32 %v7757, 0.5
      %v7870 = vadd.f32 %v7758, 0.5
      %v7871 = vadd.f32 %v7759, 0.5
      %v7872 = vadd.f32 %v7760, 0.5
      %v7873 = vadd.f32 %v7761, 0.5
      %v7874 = vadd.f32 %v7762, 0.5
      %v7875 = vadd.f32 %v7763, 0.5
      %v7876 = vadd.f32 %v7764, 0.5
      %v7877 = vadd.f32 %v7765, 0.5
      %v7878 = vadd.f32 %v7766, 0.5
      %v7879 = vadd.f32 %v7767, 0.5
      %v7880 = vadd.f32 %v7768, 0.5
      %v7881 = vadd.f32 %v7769, 0.5
      %v7882 = vadd.f32 %v7770, 0.5
      %v7883 = vadd.f32 %v7771, 0.5
      %v7884 = vadd.f32 %v7772, 0.5
      %v7885 = vadd.f32 %v7773, 0.5
      %v7886 = vadd.f32 %v7774, 0.5
      %v7887 = vadd.f32 %v7775, 0.5
      %v7888 = vadd.f32 %v7776, 0.5
      %v7889 = vadd.f32 %v7777, 0.5
      %v7890 = vadd.f32 %v7778, 0.5
      %v7891 = vadd.f32 %v7779, 0.5
      %v7892 = vadd.f32 %v7780, 0.5
      %v7893 = vadd.f32 %v7781, 0.5
      %v7894 = vadd.f32 %v7782, 0.5
      %v7895 = vadd.f32 %v7783, 0.5
      %v7896 = vadd.f32 %v7784, 0.5
      %v7897 = vadd.f32 %v7785, 0.5
      %v7898 = vadd.f32 %v7786, 0.5
      %v7899 = vadd.f32 %v7787, 0.5
      %v7900 = vadd.f32 %v7788, 0.5
      %v7901 = vadd.f32 %v7789, 0.5
      %v7902 = vadd.f32 %v7790, 0.5
      %v7903 = vadd.f32 %v7791, 0.5
      %v7904 = vadd.f32 %v7792, 0.5
      %v7905 = vadd.f32 %v7793, 0.5
      %v7906 = vadd.f32 %v7794, 0.5
      %v7907 = vadd.f32 %v7795, 0.5
      %v7908 = vadd.f32 %v7796, 0.5
      %v7909 = vadd.f32 %v7797, 0.5
      %v7910 = vadd.f32 %v7798, 0.5
      %v7911 = vpack.c.bf16 %v7800, %v7799
      %v7912 = vpack.c.bf16 %v7802, %v7801
      %v7913 = vpack.c.bf16 %v7804, %v7803
      %v7914 = vpack.c.bf16 %v7805, %v7805
      %v7915 = vpack.c.bf16 %v7807, %v7806
      %v7916 = vpack.c.bf16 %v7809, %v7808
      %v7917 = vpack.c.bf16 %v7811, %v7810
      %v7918 = vpack.c.bf16 %v7812, %v7812
      %v7919 = vpack.c.bf16 %v7814, %v7813
      %v7920 = vpack.c.bf16 %v7816, %v7815
      %v7921 = vpack.c.bf16 %v7818, %v7817
      %v7922 = vpack.c.bf16 %v7819, %v7819
      %v7923 = vpack.c.bf16 %v7821, %v7820
      %v7924 = vpack.c.bf16 %v7823, %v7822
      %v7925 = vpack.c.bf16 %v7825, %v7824
      %v7926 = vpack.c.bf16 %v7826, %v7826
      %v7927 = vpack.c.bf16 %v7828, %v7827
      %v7928 = vpack.c.bf16 %v7830, %v7829
      %v7929 = vpack.c.bf16 %v7832, %v7831
      %v7930 = vpack.c.bf16 %v7833, %v7833
      %v7931 = vpack.c.bf16 %v7835, %v7834
      %v7932 = vpack.c.bf16 %v7837, %v7836
      %v7933 = vpack.c.bf16 %v7839, %v7838
      %v7934 = vpack.c.bf16 %v7840, %v7840
      %v7935 = vpack.c.bf16 %v7842, %v7841
      %v7936 = vpack.c.bf16 %v7844, %v7843
      %v7937 = vpack.c.bf16 %v7846, %v7845
      %v7938 = vpack.c.bf16 %v7847, %v7847
      %v7939 = vpack.c.bf16 %v7849, %v7848
      %v7940 = vpack.c.bf16 %v7851, %v7850
      %v7941 = vpack.c.bf16 %v7853, %v7852
      %v7942 = vpack.c.bf16 %v7854, %v7854
      %v7943 = vpack.c.bf16 %v7856, %v7855
      %v7944 = vpack.c.bf16 %v7858, %v7857
      %v7945 = vpack.c.bf16 %v7860, %v7859
      %v7946 = vpack.c.bf16 %v7861, %v7861
      %v7947 = vpack.c.bf16 %v7863, %v7862
      %v7948 = vpack.c.bf16 %v7865, %v7864
      %v7949 = vpack.c.bf16 %v7867, %v7866
      %v7950 = vpack.c.bf16 %v7868, %v7868
      %v7951 = vpack.c.bf16 %v7870, %v7869
      %v7952 = vpack.c.bf16 %v7872, %v7871
      %v7953 = vpack.c.bf16 %v7874, %v7873
      %v7954 = vpack.c.bf16 %v7875, %v7875
      %v7955 = vpack.c.bf16 %v7877, %v7876
      %v7956 = vpack.c.bf16 %v7879, %v7878
      %v7957 = vpack.c.bf16 %v7881, %v7880
      %v7958 = vpack.c.bf16 %v7882, %v7882
      %v7959 = vpack.c.bf16 %v7884, %v7883
      %v7960 = vpack.c.bf16 %v7886, %v7885
      %v7961 = vpack.c.bf16 %v7888, %v7887
      %v7962 = vpack.c.bf16 %v7889, %v7889
      %v7963 = vpack.c.bf16 %v7891, %v7890
      %v7964 = vpack.c.bf16 %v7893, %v7892
      %v7965 = vpack.c.bf16 %v7895, %v7894
      %v7966 = vpack.c.bf16 %v7896, %v7896
      %v7967 = vpack.c.bf16 %v7898, %v7897
      %v7968 = vpack.c.bf16 %v7900, %v7899
      %v7969 = vpack.c.bf16 %v7902, %v7901
      %v7970 = vpack.c.bf16 %v7903, %v7903
      %v7971 = vpack.c.bf16 %v7905, %v7904
      %v7972 = vpack.c.bf16 %v7907, %v7906
      %v7973 = vpack.c.bf16 %v7909, %v7908
      %v7974 = vpack.c.bf16 %v7910, %v7910
      %vm7975 = vcmask 326656
      %7976 = vst.msk [vmem:[%s422] sm:$0xff] %vm7975, %v3664
      %7977 = vst.msk [vmem:[%s422 + $0x8] sm:$0xff] %vm7975, %v3666
      %7978 = vst.msk [vmem:[%s422 + $0x10] sm:$0xff] %vm7975, %v3669
      %7979 = vst.msk [vmem:[%s422 + $0x18] sm:$0xff] %vm7975, %v3671
      %7980 = vst.msk [vmem:[%s422 + $0x20] sm:$0xff] %vm7975, %v3674
      %7981 = vst.msk [vmem:[%s422 + $0x28] sm:$0xff] %vm7975, %v3676
      %7982 = vst.msk [vmem:[%s422 + $0x30] sm:$0xff] %vm7975, %v3679
      %7983 = vst.msk [vmem:[%s422 + $0x38] sm:$0xff] %vm7975, %v3681
      %7984 = vst.msk [vmem:[%s422 + $0x40] sm:$0xff] %vm7975, %v3684
      %7985 = vst.msk [vmem:[%s422 + $0x48] sm:$0xff] %vm7975, %v3686
      %7986 = vst.msk [vmem:[%s422 + $0x50] sm:$0xff] %vm7975, %v3689
      %7987 = vst.msk [vmem:[%s422 + $0x58] sm:$0xff] %vm7975, %v3691
      %7988 = vst.msk [vmem:[%s422 + $0x60] sm:$0xff] %vm7975, %v3694
      %7989 = vst.msk [vmem:[%s422 + $0x68] sm:$0xff] %vm7975, %v3696
      %7990 = vst.msk [vmem:[%s422 + $0x70] sm:$0xff] %vm7975, %v3699
      %7991 = vst.msk [vmem:[%s422 + $0x78] sm:$0xff] %vm7975, %v3701
      %7992 = vst [vmem:[%s429] sm:$0xff] %v7911
      %7993 = vst [vmem:[%s429 + $0x8] sm:$0xff] %v7912
      %7994 = vst [vmem:[%s429 + $0x10] sm:$0xff] %v7913
      %vm7995 = vcmask 125952
      %7996 = vst.msk [vmem:[%s429 + $0x18] sm:$0xf] %vm7995, %v7914
      %7997 = vst [vmem:[%s429 + $0x1c] sm:$0xff] %v7915
      %7998 = vst [vmem:[%s429 + $0x24] sm:$0xff] %v7916
      %7999 = vst [vmem:[%s429 + $0x2c] sm:$0xff] %v7917
      %8000 = vst.msk [vmem:[%s429 + $0x34] sm:$0xf] %vm7995, %v7918
      %8001 = vst [vmem:[%s429 + $0x38] sm:$0xff] %v7919
      %8002 = vst [vmem:[%s429 + $0x40] sm:$0xff] %v7920
      %8003 = vst [vmem:[%s429 + $0x48] sm:$0xff] %v7921
      %8004 = vst.msk [vmem:[%s429 + $0x50] sm:$0xf] %vm7995, %v7922
      %8005 = vst [vmem:[%s429 + $0x54] sm:$0xff] %v7923
      %8006 = vst [vmem:[%s429 + $0x5c] sm:$0xff] %v7924
      %8007 = vst [vmem:[%s429 + $0x64] sm:$0xff] %v7925
      %8008 = vst.msk [vmem:[%s429 + $0x6c] sm:$0xf] %vm7995, %v7926
      %8009 = vst [vmem:[%s429 + $0x70] sm:$0xff] %v7927
      %8010 = vst [vmem:[%s429 + $0x78] sm:$0xff] %v7928
      %8011 = vst [vmem:[%s429 + $0x80] sm:$0xff] %v7929
      %8012 = vst.msk [vmem:[%s429 + $0x88] sm:$0xf] %vm7995, %v7930
      %8013 = vst [vmem:[%s429 + $0x8c] sm:$0xff] %v7931
      %8014 = vst [vmem:[%s429 + $0x94] sm:$0xff] %v7932
      %8015 = vst [vmem:[%s429 + $0x9c] sm:$0xff] %v7933
      %8016 = vst.msk [vmem:[%s429 + $0xa4] sm:$0xf] %vm7995, %v7934
      %8017 = vst [vmem:[%s429 + $0xa8] sm:$0xff] %v7935
      %8018 = vst [vmem:[%s429 + $0xb0] sm:$0xff] %v7936
      %8019 = vst [vmem:[%s429 + $0xb8] sm:$0xff] %v7937
      %8020 = vst.msk [vmem:[%s429 + $0xc0] sm:$0xf] %vm7995, %v7938
      %8021 = vst [vmem:[%s429 + $0xc4] sm:$0xff] %v7939
      %8022 = vst [vmem:[%s429 + $0xcc] sm:$0xff] %v7940
      %8023 = vst [vmem:[%s429 + $0xd4] sm:$0xff] %v7941
      %8024 = vst.msk [vmem:[%s429 + $0xdc] sm:$0xf] %vm7995, %v7942
      %8025 = vst [vmem:[%s429 + $0xe0] sm:$0xff] %v7943
      %8026 = vst [vmem:[%s429 + $0xe8] sm:$0xff] %v7944
      %8027 = vst [vmem:[%s429 + $0xf0] sm:$0xff] %v7945
      %8028 = vst.msk [vmem:[%s429 + $0xf8] sm:$0xf] %vm7995, %v7946
      %8029 = vst [vmem:[%s429 + $0xfc] sm:$0xff] %v7947
      %8030 = vst [vmem:[%s429 + $0x104] sm:$0xff] %v7948
      %8031 = vst [vmem:[%s429 + $0x10c] sm:$0xff] %v7949
      %8032 = vst.msk [vmem:[%s429 + $0x114] sm:$0xf] %vm7995, %v7950
      %8033 = vst [vmem:[%s429 + $0x118] sm:$0xff] %v7951
      %8034 = vst [vmem:[%s429 + $0x120] sm:$0xff] %v7952
      %8035 = vst [vmem:[%s429 + $0x128] sm:$0xff] %v7953
      %8036 = vst.msk [vmem:[%s429 + $0x130] sm:$0xf] %vm7995, %v7954
      %8037 = vst [vmem:[%s429 + $0x134] sm:$0xff] %v7955
      %8038 = vst [vmem:[%s429 + $0x13c] sm:$0xff] %v7956
      %8039 = vst [vmem:[%s429 + $0x144] sm:$0xff] %v7957
      %8040 = vst.msk [vmem:[%s429 + $0x14c] sm:$0xf] %vm7995, %v7958
      %8041 = vst [vmem:[%s429 + $0x150] sm:$0xff] %v7959
      %8042 = vst [vmem:[%s429 + $0x158] sm:$0xff] %v7960
      %8043 = vst [vmem:[%s429 + $0x160] sm:$0xff] %v7961
      %8044 = vst.msk [vmem:[%s429 + $0x168] sm:$0xf] %vm7995, %v7962
      %8045 = vst [vmem:[%s429 + $0x16c] sm:$0xff] %v7963
      %8046 = vst [vmem:[%s429 + $0x174] sm:$0xff] %v7964
      %8047 = vst [vmem:[%s429 + $0x17c] sm:$0xff] %v7965
      %8048 = vst.msk [vmem:[%s429 + $0x184] sm:$0xf] %vm7995, %v7966
      %8049 = vst [vmem:[%s429 + $0x188] sm:$0xff] %v7967
      %8050 = vst [vmem:[%s429 + $0x190] sm:$0xff] %v7968
      %8051 = vst [vmem:[%s429 + $0x198] sm:$0xff] %v7969
      %8052 = vst.msk [vmem:[%s429 + $0x1a0] sm:$0xf] %vm7995, %v7970
      %8053 = vst [vmem:[%s429 + $0x1a4] sm:$0xff] %v7971
      %8054 = vst [vmem:[%s429 + $0x1ac] sm:$0xff] %v7972
      %8055 = vst [vmem:[%s429 + $0x1b4] sm:$0xff] %v7973
      %8056 = vst.msk [vmem:[%s429 + $0x1bc] sm:$0xf] %vm7995, %v7974
      %s8057 = smul.u32 16, %s23
      %p8058 = scmp.lt.s32.totalorder %s8057, 31
      %s8059 = scalar_select %p8058, %s8057, 31
      %s8060 = smul.addr %s8059, 8
      %s8061 = scalar_lea.vmem %s10, %s8060
      %s8062 = smul.u32 16, %s23
      %p8063 = scmp.lt.s32.totalorder %s8062, 31
      %s8064 = scalar_select %p8063, %s8062, 31
      %s8065 = smul.addr %s8064, 7
      %s8066 = smul.addr %s8065, 4
      %s8067 = scalar_lea.vmem %s11, %s8066
      // Predicated region
      $region61: #{tpu_custom_call.1} parent=59 // pred_check
        %p8068 = pneg %p261
      $region62: #{tpu_custom_call.1} parent=59 // pred_check_branch
        %8070 = sbr.rel (%p8068) target = $region64
      $region63: #{tpu_custom_call.1} parent=59 // pred_region
        %s8071 = smul.u32 16, %s23
      $region64: #{tpu_custom_call.1} parent=59 // pred_fallthru
        _
      // Predicated region
      $region65: #{tpu_custom_call.1} parent=59 // pred_check
        %p8072 = pneg %p287
      $region66: #{tpu_custom_call.1} parent=59 // pred_check_branch
        %8074 = sbr.rel (%p8072) target = $region68
      $region67: #{tpu_custom_call.1} parent=59 // pred_region
        %s8075 = smul.u32 16, %s23
      $region68: #{tpu_custom_call.1} parent=59 // pred_fallthru
        _
    $region60: #{tpu_custom_call.1} parent=5 // pred_fallthru
      _
    %p8076 = scmp.le.s32.totalorder 2, %s18
    // Predicated region
    $region69: #{tpu_custom_call.1} parent=5 // pred_check
      %p8077 = pneg %p8076
    $region70: #{tpu_custom_call.1} parent=5 // pred_check_branch
      %8079 = sbr.rel (%p8077) target = $region72
    $region71: #{tpu_custom_call.1} parent=5 // pred_region
      %s8080 = ssub.s32 %s18, 2
      // Predicated region
      $region73: #{tpu_custom_call.1} parent=71 // pred_check
        %p8081 = pneg %p267
      $region74: #{tpu_custom_call.1} parent=71 // pred_check_branch
        %8083 = sbr.rel (%p8081) target = $region76
      $region75: #{tpu_custom_call.1} parent=71 // pred_region
        %s8084 = smul.u32 16, %s24
        %p8085 = scmp.lt.s32.totalorder %s8084, 31
        %s8086 = scalar_select %p8085, %s8084, 31
        %s8087 = smul.addr %s8086, 8
        %s8088 = scalar_lea.vmem %s10, %s8087
      $region76: #{tpu_custom_call.1} parent=71 // pred_fallthru
        _
      // Predicated region
      $region77: #{tpu_custom_call.1} parent=71 // pred_check
        %p8089 = pneg %p293
      $region78: #{tpu_custom_call.1} parent=71 // pred_check_branch
        %8091 = sbr.rel (%p8089) target = $region80
      $region79: #{tpu_custom_call.1} parent=71 // pred_region
        %s8092 = smul.u32 16, %s24
        %p8093 = scmp.lt.s32.totalorder %s8092, 31
        %s8094 = scalar_select %p8093, %s8092, 31
        %s8095 = smul.addr %s8094, 7
        %s8096 = smul.addr %s8095, 4
        %s8097 = scalar_lea.vmem %s11, %s8096
      $region80: #{tpu_custom_call.1} parent=71 // pred_fallthru
        _
    $region72: #{tpu_custom_call.1} parent=5 // pred_fallthru
      _
  $region6: #{tpu_custom_call.1} parent=0 // loop_footer
    %s22 = sadd.s32 1, %s18
  $region7: #{tpu_custom_call.1} parent=0 // loop_footer_branch
    %17 = sbr.rel target = $region3
  $region8: #{tpu_custom_call.1} parent=0 // loop_exit
    _

</llo_original>
